<compile_context>
chip_gen: v7x
topology: tpu7x:2x2x1
jax: 0.10.0
libtpu: 0.0.40
codegen_flags: <defaults>
</compile_context>

<pallas_src>
import functools

import jax
import jax.numpy as jnp
from jax.experimental import pallas as pl
from jax.experimental.pallas import tpu as pltpu


# ----------------------------------------------------------------------------
# Fused  y = act(sum_k X_k @ W_k + shift [+ residual])  kernel
# (covers conv(+folded BN)+ReLU(+skip), LSTM input projection, Linear+bias)
# Grid = (M tiles, K tiles).  Multi-K path: f32 VMEM accumulator with epilogue
# at the last K step.  Single-K path: no scratch, direct store.
# ----------------------------------------------------------------------------
def _fused_matmul_kernel(has_res, relu, single_k, *refs):
    if single_k:
        if has_res:
            x_ref, w_ref, shift_ref, res_ref, o_ref = refs
        else:
            x_ref, w_ref, shift_ref, o_ref = refs
            res_ref = None
        y = jnp.dot(x_ref[...], w_ref[...], preferred_element_type=jnp.float32)
        y = y + shift_ref[...]
        if res_ref is not None:
            y = y + res_ref[...].astype(jnp.float32)
        if relu:
            y = jnp.maximum(y, 0.0)
        o_ref[...] = y.astype(o_ref.dtype)
        return

    if has_res:
        x_ref, w_ref, shift_ref, res_ref, o_ref, acc_ref = refs
    else:
        x_ref, w_ref, shift_ref, o_ref, acc_ref = refs
        res_ref = None
    k = pl.program_id(1)

    @pl.when(k == 0)
    def _():
        acc_ref[...] = jnp.zeros_like(acc_ref)

    acc_ref[...] += jnp.dot(x_ref[...], w_ref[...],
                            preferred_element_type=jnp.float32)

    @pl.when(k == pl.num_programs(1) - 1)
    def _():
        y = acc_ref[...] + shift_ref[...]
        if res_ref is not None:
            y = y + res_ref[...].astype(jnp.float32)
        if relu:
            y = jnp.maximum(y, 0.0)
        o_ref[...] = y.astype(o_ref.dtype)


def _pick_tile_m(M):
    for tm in (256, 128):
        if M >= tm and M % tm == 0:
            return tm
    return M


def _pick_tile_k(tm, K, cout):
    # Prefer a single K step when the whole-K blocks fit comfortably in VMEM
    # (skips the accumulator scratch and extra grid iterations).
    if K <= 512 or 2 * K * (tm + cout) <= 2 * 1024 * 1024:
        return K
    for tk in (512, 384, 256, 128):
        if K % tk == 0:
            return tk
    return K


def fused_matmul(x, w, shift, residual=None, relu=False, out_dtype=jnp.bfloat16):
    # x: [M, K] bf16, w: [K, Cout] bf16 (BN scale pre-folded), shift: [1, Cout] f32
    M, K = x.shape
    Cout = w.shape[1]
    TM = _pick_tile_m(M)
    TK = _pick_tile_k(TM, K, Cout)
    single_k = (TK == K)
    grid = (M // TM, K // TK)

    in_arrays = [x, w, shift]
    in_specs = [
        pl.BlockSpec((TM, TK), lambda i, k: (i, k)),
        pl.BlockSpec((TK, Cout), lambda i, k: (k, 0)),
        pl.BlockSpec((1, Cout), lambda i, k: (0, 0)),
    ]
    if residual is not None:
        in_arrays.append(residual)
        in_specs.append(pl.BlockSpec((TM, Cout), lambda i, k: (i, 0)))

    kernel = functools.partial(_fused_matmul_kernel, residual is not None, relu,
                               single_k)
    scratch = [] if single_k else [pltpu.VMEM((TM, Cout), jnp.float32)]

    out_itemsize = jnp.dtype(out_dtype).itemsize
    bytes_accessed = int(
        x.size * x.dtype.itemsize + w.size * w.dtype.itemsize
        + M * Cout * out_itemsize + shift.size * 4
        + (0 if residual is None else residual.size * residual.dtype.itemsize))

    return pl.pallas_call(
        kernel,
        out_shape=jax.ShapeDtypeStruct((M, Cout), out_dtype),
        grid=grid,
        in_specs=in_specs,
        out_specs=pl.BlockSpec((TM, Cout), lambda i, k: (i, 0)),
        scratch_shapes=scratch,
        compiler_params=pltpu.CompilerParams(
            dimension_semantics=("parallel", "arbitrary"),
            vmem_limit_bytes=48 * 1024 * 1024),
        cost_estimate=pl.CostEstimate(flops=2 * M * K * Cout,
                                      transcendentals=0,
                                      bytes_accessed=bytes_accessed),
    )(*in_arrays)


# ----------------------------------------------------------------------------
# 3x3 stride-2 pad-1 max pool: the 9 shifted window views are produced by XLA
# (same policy as im2col); the Pallas kernel is a fused chained jnp.maximum
# (pure VPU, full-array blocks, no in-kernel slicing).
# ----------------------------------------------------------------------------
def _maxpool9_kernel(*refs):
    o_ref = refs[-1]
    acc = refs[0][...]
    for r in refs[1:-1]:
        acc = jnp.maximum(acc, r[...])
    o_ref[...] = acc.astype(o_ref.dtype)


def maxpool_3x3_s2_p1(x):  # x: [Nf, H, W, C]
    Nf, H, W, C = x.shape
    OH = (H + 2 - 3) // 2 + 1
    OW = (W + 2 - 3) // 2 + 1
    xp = jnp.pad(x, ((0, 0), (1, 1), (1, 1), (0, 0)), constant_values=-jnp.inf)
    wins = [xp[:, i:i + 2 * (OH - 1) + 1:2, j:j + 2 * (OW - 1) + 1:2, :]
            for i in range(3) for j in range(3)]
    return pl.pallas_call(
        _maxpool9_kernel,
        out_shape=jax.ShapeDtypeStruct((Nf, OH, OW, C), x.dtype),
        grid=(1,),
        in_specs=[pl.BlockSpec((Nf, OH, OW, C), lambda i: (0, 0, 0, 0))] * 9,
        out_specs=pl.BlockSpec((Nf, OH, OW, C), lambda i: (0, 0, 0, 0)),
        compiler_params=pltpu.CompilerParams(
            dimension_semantics=("arbitrary",)),
    )(*wins)


# ----------------------------------------------------------------------------
# Conv (+folded BN, ReLU, residual) = XLA window gather + fused Pallas matmul.
# ----------------------------------------------------------------------------
def im2col(x, kh, kw, stride, pad):
    N, H, W, C = x.shape
    OH = (H + 2 * pad - kh) // stride + 1
    OW = (W + 2 * pad - kw) // stride + 1
    xp = jnp.pad(x, ((0, 0), (pad, pad), (pad, pad), (0, 0)))
    cols = []
    for i in range(kh):
        for j in range(kw):
            cols.append(xp[:, i:i + stride * (OH - 1) + 1:stride,
                           j:j + stride * (OW - 1) + 1:stride, :])
    cols = jnp.concatenate(cols, axis=-1)  # [N, OH, OW, kh*kw*C]
    return cols.reshape(N * OH * OW, kh * kw * C), OH, OW


def conv_bn(x, cp, stride, pad, relu, residual=None):
    Nf = x.shape[0]
    KH, KW, Cin, Cout = cp["w"].shape
    cols, OH, OW = im2col(x, KH, KW, stride, pad)
    res2d = None if residual is None else residual.reshape(Nf * OH * OW, Cout)
    y = fused_matmul(cols, cp["w"].reshape(KH * KW * Cin, Cout), cp["shift"],
                     residual=res2d, relu=relu, out_dtype=jnp.bfloat16)
    return y.reshape(Nf, OH, OW, Cout)


def basic_block(x, blk):
    st = blk["stride"]
    h = conv_bn(x, blk["conv1"], stride=st, pad=1, relu=True)
    if "down" in blk:
        idn = conv_bn(x, blk["down"], stride=st, pad=0, relu=False)
    else:
        idn = x
    # out = relu(bn2(conv2(h)) + identity)
    return conv_bn(h, blk["conv2"], stride=1, pad=1, relu=True, residual=idn)


def resnet_features(p, frames):  # frames: [Nf, H, W, C] bf16 -> [Nf, feat] bf16
    out = conv_bn(frames, p["stem"], stride=2, pad=3, relu=True)
    out = maxpool_3x3_s2_p1(out)
    for stage in p["layers"]:
        for blk in stage:
            out = basic_block(out, blk)
    Nf, Hh, Ww, Cc = out.shape
    if Hh * Ww == 1:
        return out.reshape(Nf, Cc)   # AdaptiveAvgPool2d((1,1)) + flatten, 1x1 case
    # TODO(synk): add a Pallas pooling kernel for spatial sizes > 1x1 (unused here).
    return jnp.mean(out.astype(jnp.float32), axis=(1, 2)).astype(out.dtype)


# ----------------------------------------------------------------------------
# LSTM (single layer, batch_first, zero init state) + fused fc1 on the final h.
# Grid iterates over time; h/c live in VMEM scratch; PyTorch gate order i,f,g,o.
# ----------------------------------------------------------------------------
def _lstm_fc_kernel(H, xproj_ref, whh_ref, wfc_ref, bfc_ref, o_ref, h_scr, c_scr):
    t = pl.program_id(0)

    @pl.when(t == 0)
    def _():
        h_scr[...] = jnp.zeros_like(h_scr)
        c_scr[...] = jnp.zeros_like(c_scr)

    gates = xproj_ref[...] + jnp.dot(h_scr[...].astype(jnp.bfloat16), whh_ref[...],
                                     preferred_element_type=jnp.float32)
    i = jax.nn.sigmoid(gates[:, 0:H])
    f = jax.nn.sigmoid(gates[:, H:2 * H])
    g = jnp.tanh(gates[:, 2 * H:3 * H])
    o = jax.nn.sigmoid(gates[:, 3 * H:4 * H])
    c = f * c_scr[...] + i * g
    h = o * jnp.tanh(c)
    c_scr[...] = c
    h_scr[...] = h

    @pl.when(t == pl.num_programs(0) - 1)
    def _():
        logits = jnp.dot(h.astype(jnp.bfloat16), wfc_ref[...],
                         preferred_element_type=jnp.float32) + bfc_ref[...]
        o_ref[...] = logits


def lstm_fc_logits(p, feats, T, B):
    # feats: [T*B, feat] bf16, rows ordered (t, n) -> [T, B, 4H] is a free reshape.
    lstm, fc = p["lstm"], p["fc1"]
    H = lstm["hidden"]
    H4 = 4 * H
    NC = fc["b"].shape[1]
    xproj = fused_matmul(feats, lstm["w_ih_t"], lstm["bias"],
                         out_dtype=jnp.float32)          # x_t @ W_ih^T + (b_ih+b_hh)
    xproj = xproj.reshape(T, B, H4)
    kernel = functools.partial(_lstm_fc_kernel, H)
    return pl.pallas_call(
        kernel,
        out_shape=jax.ShapeDtypeStruct((B, NC), jnp.float32),
        grid=(T,),
        in_specs=[
            pl.BlockSpec((None, B, H4), lambda t: (t, 0, 0)),
            pl.BlockSpec((H, H4), lambda t: (0, 0)),
            pl.BlockSpec((H, NC), lambda t: (0, 0)),
            pl.BlockSpec((1, NC), lambda t: (0, 0)),
        ],
        out_specs=pl.BlockSpec((B, NC), lambda t: (0, 0)),
        scratch_shapes=[pltpu.VMEM((B, H), jnp.float32),
                        pltpu.VMEM((B, H), jnp.float32)],
        compiler_params=pltpu.CompilerParams(dimension_semantics=("arbitrary",)),
    )(xproj, lstm["w_hh_t"], fc["w_t"], fc["b"])


# ----------------------------------------------------------------------------
# Full forward: fold T into the batch, run the CNN once, LSTM + fc1.
# ----------------------------------------------------------------------------
def rescrnn_forward(p, x):
    # x: [N, C, T, H, W]  (PyTorch NCTHW)
    N, C, T, H, W = x.shape
    # [T, N, H, W, C] -> [T*N, H, W, C]: one ResNet pass over all frames, and the
    # resulting feature rows are already time-major for the LSTM (no transpose).
    frames = jnp.transpose(x, (2, 0, 3, 4, 1)).reshape(T * N, H, W, C)
    frames = frames.astype(jnp.bfloat16)
    feats = resnet_features(p, frames)              # [T*N, feat]
    return lstm_fc_logits(p, feats, T, N)           # fc1(h_T)  -> [N, num_classes]


# ----------------------------------------------------------------------------
# Deterministic synthetic parameters (resnet18 topology, scaled-down widths).
# ----------------------------------------------------------------------------
def _conv_bn_params(key, kh, kw, cin, cout):
    kw1, kg, kb, km, kv = jax.random.split(key, 5)
    fan_in = kh * kw * cin
    w = jax.random.normal(kw1, (kh, kw, cin, cout), jnp.float32) * jnp.sqrt(2.0 / fan_in)
    gamma = 1.0 + 0.1 * jax.random.normal(kg, (cout,), jnp.float32)
    beta = 0.1 * jax.random.normal(kb, (cout,), jnp.float32)
    mean = 0.1 * jax.random.normal(km, (cout,), jnp.float32)
    var = 1.0 + 0.1 * jax.random.uniform(kv, (cout,), jnp.float32)
    scale = gamma / jnp.sqrt(var + 1e-5)             # folded eval-mode BatchNorm
    shift = beta - mean * scale
    return {"w": (w * scale).astype(jnp.bfloat16),   # BN scale folded into W
            "shift": shift.reshape(1, cout)}         # additive shift stays f32


def init_params(key, in_ch=3, base=16, hidden=64, num_classes=10):
    keys = jax.random.split(key, 64)
    ki = iter(keys)
    p = {"stem": _conv_bn_params(next(ki), 7, 7, in_ch, base)}
    widths = [base, base * 2, base * 4, base * 8]
    layers = []
    cin = base
    for s_idx, cout in enumerate(widths):
        stride = 1 if s_idx == 0 else 2
        blocks = []
        for b in range(2):
            st = stride if b == 0 else 1
            blk = {"conv1": _conv_bn_params(next(ki), 3, 3, cin, cout),
                   "conv2": _conv_bn_params(next(ki), 3, 3, cout, cout),
                   "stride": st}
            if st != 1 or cin != cout:
                blk["down"] = _conv_bn_params(next(ki), 1, 1, cin, cout)
            blocks.append(blk)
            cin = cout
        layers.append(blocks)
    p["layers"] = layers
    feat = widths[-1]

    k = 1.0 / float(jnp.sqrt(jnp.float32(hidden)))
    u = lambda kk, shape: jax.random.uniform(kk, shape, jnp.float32, -k, k)
    w_ih = u(next(ki), (4 * hidden, feat))
    w_hh = u(next(ki), (4 * hidden, hidden))
    b_ih = u(next(ki), (4 * hidden,))
    b_hh = u(next(ki), (4 * hidden,))
    p["lstm"] = {"w_ih_t": w_ih.T.astype(jnp.bfloat16),
                 "w_hh_t": w_hh.T.astype(jnp.bfloat16),
                 "bias": (b_ih + b_hh).reshape(1, 4 * hidden),
                 "hidden": hidden}
    w_fc = u(next(ki), (num_classes, hidden))
    b_fc = u(next(ki), (num_classes,))
    p["fc1"] = {"w_t": w_fc.T.astype(jnp.bfloat16),
                "b": b_fc.reshape(1, num_classes)}
    return p


if __name__ == "__main__":
    key = jax.random.PRNGKey(0)
    kp, kx = jax.random.split(key)

    # small shapes: batch=2, channels=3, seq=4, spatial=32, widths 16/32/64/128,
    # lstm hidden=64, classes=10
    params = init_params(kp, in_ch=3, base=16, hidden=64, num_classes=10)
    x = jax.random.normal(kx, (2, 3, 4, 32, 32), jnp.float32)   # [N, C, T, H, W]

    fwd = jax.jit(lambda xx: rescrnn_forward(params, xx))
    out = fwd(x)
    jax.block_until_ready(out)

    assert out.shape == (2, 10), out.shape
    assert bool(jnp.all(jnp.isfinite(out)))
    print("KERNEL_OK")
</pallas_src>

<mosaic_0001>
module attributes {stable_mosaic.version = 11 : i64} {
  func.func @_fused_matmul_kernel(%arg0: i32, %arg1: i32, %arg2: memref<256x147xbf16, #tpu.memory_space<vmem>>, %arg3: memref<147x16xbf16, #tpu.memory_space<vmem>>, %arg4: memref<1x16xf32, #tpu.memory_space<vmem>>, %arg5: memref<256x16xbf16, #tpu.memory_space<vmem>>) attributes {dimension_semantics = [#tpu.dimension_semantics<parallel>, #tpu.dimension_semantics<arbitrary>], iteration_bounds = array<i64: 8, 1>, scalar_prefetch = 0 : i64, scratch_operands = 0 : i64, tpu.core_type = #tpu.core_type<tc>, window_params = [{transform_indices = @transform_0, window_bounds = array<i64: 256, 147>}, {transform_indices = @transform_1, window_bounds = array<i64: 147, 16>}, {pipeline_mode = #tpu.pipeline_mode<synchronous>, transform_indices = @transform_2, window_bounds = array<i64: 1, 16>}, {transform_indices = @transform_3, window_bounds = array<i64: 256, 16>}]} {
    %c0 = arith.constant 0 : index
    %c0_0 = arith.constant 0 : index
    %0 = vector.load %arg2[%c0, %c0_0] : memref<256x147xbf16, #tpu.memory_space<vmem>>, vector<256x147xbf16>
    %c0_1 = arith.constant 0 : index
    %c0_2 = arith.constant 0 : index
    %1 = vector.load %arg3[%c0_1, %c0_2] : memref<147x16xbf16, #tpu.memory_space<vmem>>, vector<147x16xbf16>
    %cst = arith.constant dense<0.000000e+00> : vector<256x16xf32>
    %2 = tpu.matmul %0, %1, %cst {dimension_numbers = #tpu.dot_dimension_numbers<[1], [0], [0], [1], [0, 0, 1, 1], [], []>} : vector<256x147xbf16>, vector<147x16xbf16>, vector<256x16xf32> -> vector<256x16xf32>
    %c0_3 = arith.constant 0 : index
    %c0_4 = arith.constant 0 : index
    %3 = vector.load %arg4[%c0_3, %c0_4] : memref<1x16xf32, #tpu.memory_space<vmem>>, vector<1x16xf32>
    %4 = vector.broadcast %3 : vector<1x16xf32> to vector<256x16xf32>
    %5 = arith.addf %2, %4 : vector<256x16xf32>
    %cst_5 = arith.constant 0.000000e+00 : f32
    %6 = vector.broadcast %cst_5 : f32 to vector<256x16xf32>
    %7 = arith.maximumf %5, %6 : vector<256x16xf32>
    %8 = arith.truncf %7 : vector<256x16xf32> to vector<256x16xbf16>
    %c0_6 = arith.constant 0 : index
    %c0_7 = arith.constant 0 : index
    %9 = vector.load %arg5[%c0_6, %c0_7] : memref<256x16xbf16, #tpu.memory_space<vmem>>, vector<256x16xbf16>
    tpu.vector_store %arg5[%c0_6, %c0_7], %8 {strides = array<i32>} : memref<256x16xbf16, #tpu.memory_space<vmem>>, vector<256x16xbf16>,
    return
  }
  func.func @transform_0(%arg0: i32, %arg1: i32) -> (i32, i32) {
    %c0_i32 = arith.constant 0 : i32
    return %arg0, %arg1 : i32, i32
  }
  func.func @transform_1(%arg0: i32, %arg1: i32) -> (i32, i32) {
    %c0_i32 = arith.constant 0 : i32
    %c0_i32_0 = arith.constant 0 : i32
    return %arg1, %c0_i32 : i32, i32
  }
  func.func @transform_2(%arg0: i32, %arg1: i32) -> (i32, i32) {
    %c0_i32 = arith.constant 0 : i32
    %c0_i32_0 = arith.constant 0 : i32
    %c0_i32_1 = arith.constant 0 : i32
    return %c0_i32, %c0_i32_0 : i32, i32
  }
  func.func @transform_3(%arg0: i32, %arg1: i32) -> (i32, i32) {
    %c0_i32 = arith.constant 0 : i32
    %c0_i32_0 = arith.constant 0 : i32
    return %arg0, %c0_i32 : i32, i32
  }
}

module attributes {stable_mosaic.version = 11 : i64} {
  func.func @_maxpool9_kernel(%arg0: i32, %arg1: memref<8x8x8x16xbf16, #tpu.memory_space<vmem>>, %arg2: memref<8x8x8x16xbf16, #tpu.memory_space<vmem>>, %arg3: memref<8x8x8x16xbf16, #tpu.memory_space<vmem>>, %arg4: memref<8x8x8x16xbf16, #tpu.memory_space<vmem>>, %arg5: memref<8x8x8x16xbf16, #tpu.memory_space<vmem>>, %arg6: memref<8x8x8x16xbf16, #tpu.memory_space<vmem>>, %arg7: memref<8x8x8x16xbf16, #tpu.memory_space<vmem>>, %arg8: memref<8x8x8x16xbf16, #tpu.memory_space<vmem>>, %arg9: memref<8x8x8x16xbf16, #tpu.memory_space<vmem>>, %arg10: memref<8x8x8x16xbf16, #tpu.memory_space<vmem>>) attributes {dimension_semantics = [#tpu.dimension_semantics<arbitrary>], iteration_bounds = array<i64: 1>, scalar_prefetch = 0 : i64, scratch_operands = 0 : i64, tpu.core_type = #tpu.core_type<tc>, window_params = [{pipeline_mode = #tpu.pipeline_mode<synchronous>, transform_indices = @transform_0, window_bounds = array<i64: 8, 8, 8, 16>}, {pipeline_mode = #tpu.pipeline_mode<synchronous>, transform_indices = @transform_1, window_bounds = array<i64: 8, 8, 8, 16>}, {pipeline_mode = #tpu.pipeline_mode<synchronous>, transform_indices = @transform_2, window_bounds = array<i64: 8, 8, 8, 16>}, {pipeline_mode = #tpu.pipeline_mode<synchronous>, transform_indices = @transform_3, window_bounds = array<i64: 8, 8, 8, 16>}, {pipeline_mode = #tpu.pipeline_mode<synchronous>, transform_indices = @transform_4, window_bounds = array<i64: 8, 8, 8, 16>}, {pipeline_mode = #tpu.pipeline_mode<synchronous>, transform_indices = @transform_5, window_bounds = array<i64: 8, 8, 8, 16>}, {pipeline_mode = #tpu.pipeline_mode<synchronous>, transform_indices = @transform_6, window_bounds = array<i64: 8, 8, 8, 16>}, {pipeline_mode = #tpu.pipeline_mode<synchronous>, transform_indices = @transform_7, window_bounds = array<i64: 8, 8, 8, 16>}, {pipeline_mode = #tpu.pipeline_mode<synchronous>, transform_indices = @transform_8, window_bounds = array<i64: 8, 8, 8, 16>}, {pipeline_mode = #tpu.pipeline_mode<synchronous>, transform_indices = @transform_9, window_bounds = array<i64: 8, 8, 8, 16>}]} {
    %c0 = arith.constant 0 : index
    %c0_0 = arith.constant 0 : index
    %c0_1 = arith.constant 0 : index
    %c0_2 = arith.constant 0 : index
    %0 = vector.load %arg1[%c0, %c0_0, %c0_1, %c0_2] : memref<8x8x8x16xbf16, #tpu.memory_space<vmem>>, vector<8x8x8x16xbf16>
    %c0_3 = arith.constant 0 : index
    %c0_4 = arith.constant 0 : index
    %c0_5 = arith.constant 0 : index
    %c0_6 = arith.constant 0 : index
    %1 = vector.load %arg2[%c0_3, %c0_4, %c0_5, %c0_6] : memref<8x8x8x16xbf16, #tpu.memory_space<vmem>>, vector<8x8x8x16xbf16>
    %2 = arith.maximumf %0, %1 : vector<8x8x8x16xbf16>
    %c0_7 = arith.constant 0 : index
    %c0_8 = arith.constant 0 : index
    %c0_9 = arith.constant 0 : index
    %c0_10 = arith.constant 0 : index
    %3 = vector.load %arg3[%c0_7, %c0_8, %c0_9, %c0_10] : memref<8x8x8x16xbf16, #tpu.memory_space<vmem>>, vector<8x8x8x16xbf16>
    %4 = arith.maximumf %2, %3 : vector<8x8x8x16xbf16>
    %c0_11 = arith.constant 0 : index
    %c0_12 = arith.constant 0 : index
    %c0_13 = arith.constant 0 : index
    %c0_14 = arith.constant 0 : index
    %5 = vector.load %arg4[%c0_11, %c0_12, %c0_13, %c0_14] : memref<8x8x8x16xbf16, #tpu.memory_space<vmem>>, vector<8x8x8x16xbf16>
    %6 = arith.maximumf %4, %5 : vector<8x8x8x16xbf16>
    %c0_15 = arith.constant 0 : index
    %c0_16 = arith.constant 0 : index
    %c0_17 = arith.constant 0 : index
    %c0_18 = arith.constant 0 : index
    %7 = vector.load %arg5[%c0_15, %c0_16, %c0_17, %c0_18] : memref<8x8x8x16xbf16, #tpu.memory_space<vmem>>, vector<8x8x8x16xbf16>
    %8 = arith.maximumf %6, %7 : vector<8x8x8x16xbf16>
    %c0_19 = arith.constant 0 : index
    %c0_20 = arith.constant 0 : index
    %c0_21 = arith.constant 0 : index
    %c0_22 = arith.constant 0 : index
    %9 = vector.load %arg6[%c0_19, %c0_20, %c0_21, %c0_22] : memref<8x8x8x16xbf16, #tpu.memory_space<vmem>>, vector<8x8x8x16xbf16>
    %10 = arith.maximumf %8, %9 : vector<8x8x8x16xbf16>
    %c0_23 = arith.constant 0 : index
    %c0_24 = arith.constant 0 : index
    %c0_25 = arith.constant 0 : index
    %c0_26 = arith.constant 0 : index
    %11 = vector.load %arg7[%c0_23, %c0_24, %c0_25, %c0_26] : memref<8x8x8x16xbf16, #tpu.memory_space<vmem>>, vector<8x8x8x16xbf16>
    %12 = arith.maximumf %10, %11 : vector<8x8x8x16xbf16>
    %c0_27 = arith.constant 0 : index
    %c0_28 = arith.constant 0 : index
    %c0_29 = arith.constant 0 : index
    %c0_30 = arith.constant 0 : index
    %13 = vector.load %arg8[%c0_27, %c0_28, %c0_29, %c0_30] : memref<8x8x8x16xbf16, #tpu.memory_space<vmem>>, vector<8x8x8x16xbf16>
    %14 = arith.maximumf %12, %13 : vector<8x8x8x16xbf16>
    %c0_31 = arith.constant 0 : index
    %c0_32 = arith.constant 0 : index
    %c0_33 = arith.constant 0 : index
    %c0_34 = arith.constant 0 : index
    %15 = vector.load %arg9[%c0_31, %c0_32, %c0_33, %c0_34] : memref<8x8x8x16xbf16, #tpu.memory_space<vmem>>, vector<8x8x8x16xbf16>
    %16 = arith.maximumf %14, %15 : vector<8x8x8x16xbf16>
    %c0_35 = arith.constant 0 : index
    %c0_36 = arith.constant 0 : index
    %c0_37 = arith.constant 0 : index
    %c0_38 = arith.constant 0 : index
    %17 = vector.load %arg10[%c0_35, %c0_36, %c0_37, %c0_38] : memref<8x8x8x16xbf16, #tpu.memory_space<vmem>>, vector<8x8x8x16xbf16>
    tpu.vector_store %arg10[%c0_35, %c0_36, %c0_37, %c0_38], %16 {strides = array<i32>} : memref<8x8x8x16xbf16, #tpu.memory_space<vmem>>, vector<8x8x8x16xbf16>,
    return
  }
  func.func @transform_0(%arg0: i32) -> (i32, i32, i32, i32) {
    %c0_i32 = arith.constant 0 : i32
    %c0_i32_0 = arith.constant 0 : i32
    %c0_i32_1 = arith.constant 0 : i32
    %c0_i32_2 = arith.constant 0 : i32
    %c0_i32_3 = arith.constant 0 : i32
    return %c0_i32, %c0_i32_0, %c0_i32_1, %c0_i32_2 : i32, i32, i32, i32
  }
  func.func @transform_1(%arg0: i32) -> (i32, i32, i32, i32) {
    %c0_i32 = arith.constant 0 : i32
    %c0_i32_0 = arith.constant 0 : i32
    %c0_i32_1 = arith.constant 0 : i32
    %c0_i32_2 = arith.constant 0 : i32
    %c0_i32_3 = arith.constant 0 : i32
    return %c0_i32, %c0_i32_0, %c0_i32_1, %c0_i32_2 : i32, i32, i32, i32
  }
  func.func @transform_2(%arg0: i32) -> (i32, i32, i32, i32) {
    %c0_i32 = arith.constant 0 : i32
    %c0_i32_0 = arith.constant 0 : i32
    %c0_i32_1 = arith.constant 0 : i32
    %c0_i32_2 = arith.constant 0 : i32
    %c0_i32_3 = arith.constant 0 : i32
    return %c0_i32, %c0_i32_0, %c0_i32_1, %c0_i32_2 : i32, i32, i32, i32
  }
  func.func @transform_3(%arg0: i32) -> (i32, i32, i32, i32) {
    %c0_i32 = arith.constant 0 : i32
    %c0_i32_0 = arith.constant 0 : i32
    %c0_i32_1 = arith.constant 0 : i32
    %c0_i32_2 = arith.constant 0 : i32
    %c0_i32_3 = arith.constant 0 : i32
    return %c0_i32, %c0_i32_0, %c0_i32_1, %c0_i32_2 : i32, i32, i32, i32
  }
  func.func @transform_4(%arg0: i32) -> (i32, i32, i32, i32) {
    %c0_i32 = arith.constant 0 : i32
    %c0_i32_0 = arith.constant 0 : i32
    %c0_i32_1 = arith.constant 0 : i32
    %c0_i32_2 = arith.constant 0 : i32
    %c0_i32_3 = arith.constant 0 : i32
    return %c0_i32, %c0_i32_0, %c0_i32_1, %c0_i32_2 : i32, i32, i32, i32
  }
  func.func @transform_5(%arg0: i32) -> (i32, i32, i32, i32) {
    %c0_i32 = arith.constant 0 : i32
    %c0_i32_0 = arith.constant 0 : i32
    %c0_i32_1 = arith.constant 0 : i32
    %c0_i32_2 = arith.constant 0 : i32
    %c0_i32_3 = arith.constant 0 : i32
    return %c0_i32, %c0_i32_0, %c0_i32_1, %c0_i32_2 : i32, i32, i32, i32
  }
  func.func @transform_6(%arg0: i32) -> (i32, i32, i32, i32) {
    %c0_i32 = arith.constant 0 : i32
    %c0_i32_0 = arith.constant 0 : i32
    %c0_i32_1 = arith.constant 0 : i32
    %c0_i32_2 = arith.constant 0 : i32
    %c0_i32_3 = arith.constant 0 : i32
    return %c0_i32, %c0_i32_0, %c0_i32_1, %c0_i32_2 : i32, i32, i32, i32
  }
  func.func @transform_7(%arg0: i32) -> (i32, i32, i32, i32) {
    %c0_i32 = arith.constant 0 : i32
    %c0_i32_0 = arith.constant 0 : i32
    %c0_i32_1 = arith.constant 0 : i32
    %c0_i32_2 = arith.constant 0 : i32
    %c0_i32_3 = arith.constant 0 : i32
    return %c0_i32, %c0_i32_0, %c0_i32_1, %c0_i32_2 : i32, i32, i32, i32
  }
  func.func @transform_8(%arg0: i32) -> (i32, i32, i32, i32) {
    %c0_i32 = arith.constant 0 : i32
    %c0_i32_0 = arith.constant 0 : i32
    %c0_i32_1 = arith.constant 0 : i32
    %c0_i32_2 = arith.constant 0 : i32
    %c0_i32_3 = arith.constant 0 : i32
    return %c0_i32, %c0_i32_0, %c0_i32_1, %c0_i32_2 : i32, i32, i32, i32
  }
  func.func @transform_9(%arg0: i32) -> (i32, i32, i32, i32) {
    %c0_i32 = arith.constant 0 : i32
    %c0_i32_0 = arith.constant 0 : i32
    %c0_i32_1 = arith.constant 0 : i32
    %c0_i32_2 = arith.constant 0 : i32
    %c0_i32_3 = arith.constant 0 : i32
    return %c0_i32, %c0_i32_0, %c0_i32_1, %c0_i32_2 : i32, i32, i32, i32
  }
}

module attributes {stable_mosaic.version = 11 : i64} {
  func.func @_fused_matmul_kernel(%arg0: i32, %arg1: i32, %arg2: memref<256x144xbf16, #tpu.memory_space<vmem>>, %arg3: memref<144x16xbf16, #tpu.memory_space<vmem>>, %arg4: memref<1x16xf32, #tpu.memory_space<vmem>>, %arg5: memref<256x16xbf16, #tpu.memory_space<vmem>>) attributes {dimension_semantics = [#tpu.dimension_semantics<parallel>, #tpu.dimension_semantics<arbitrary>], iteration_bounds = array<i64: 2, 1>, scalar_prefetch = 0 : i64, scratch_operands = 0 : i64, tpu.core_type = #tpu.core_type<tc>, window_params = [{transform_indices = @transform_0, window_bounds = array<i64: 256, 144>}, {transform_indices = @transform_1, window_bounds = array<i64: 144, 16>}, {pipeline_mode = #tpu.pipeline_mode<synchronous>, transform_indices = @transform_2, window_bounds = array<i64: 1, 16>}, {transform_indices = @transform_3, window_bounds = array<i64: 256, 16>}]} {
    %c0 = arith.constant 0 : index
    %c0_0 = arith.constant 0 : index
    %0 = vector.load %arg2[%c0, %c0_0] : memref<256x144xbf16, #tpu.memory_space<vmem>>, vector<256x144xbf16>
    %c0_1 = arith.constant 0 : index
    %c0_2 = arith.constant 0 : index
    %1 = vector.load %arg3[%c0_1, %c0_2] : memref<144x16xbf16, #tpu.memory_space<vmem>>, vector<144x16xbf16>
    %cst = arith.constant dense<0.000000e+00> : vector<256x16xf32>
    %2 = tpu.matmul %0, %1, %cst {dimension_numbers = #tpu.dot_dimension_numbers<[1], [0], [0], [1], [0, 0, 1, 1], [], []>} : vector<256x144xbf16>, vector<144x16xbf16>, vector<256x16xf32> -> vector<256x16xf32>
    %c0_3 = arith.constant 0 : index
    %c0_4 = arith.constant 0 : index
    %3 = vector.load %arg4[%c0_3, %c0_4] : memref<1x16xf32, #tpu.memory_space<vmem>>, vector<1x16xf32>
    %4 = vector.broadcast %3 : vector<1x16xf32> to vector<256x16xf32>
    %5 = arith.addf %2, %4 : vector<256x16xf32>
    %cst_5 = arith.constant 0.000000e+00 : f32
    %6 = vector.broadcast %cst_5 : f32 to vector<256x16xf32>
    %7 = arith.maximumf %5, %6 : vector<256x16xf32>
    %8 = arith.truncf %7 : vector<256x16xf32> to vector<256x16xbf16>
    %c0_6 = arith.constant 0 : index
    %c0_7 = arith.constant 0 : index
    %9 = vector.load %arg5[%c0_6, %c0_7] : memref<256x16xbf16, #tpu.memory_space<vmem>>, vector<256x16xbf16>
    tpu.vector_store %arg5[%c0_6, %c0_7], %8 {strides = array<i32>} : memref<256x16xbf16, #tpu.memory_space<vmem>>, vector<256x16xbf16>,
    return
  }
  func.func @transform_0(%arg0: i32, %arg1: i32) -> (i32, i32) {
    %c0_i32 = arith.constant 0 : i32
    return %arg0, %arg1 : i32, i32
  }
  func.func @transform_1(%arg0: i32, %arg1: i32) -> (i32, i32) {
    %c0_i32 = arith.constant 0 : i32
    %c0_i32_0 = arith.constant 0 : i32
    return %arg1, %c0_i32 : i32, i32
  }
  func.func @transform_2(%arg0: i32, %arg1: i32) -> (i32, i32) {
    %c0_i32 = arith.constant 0 : i32
    %c0_i32_0 = arith.constant 0 : i32
    %c0_i32_1 = arith.constant 0 : i32
    return %c0_i32, %c0_i32_0 : i32, i32
  }
  func.func @transform_3(%arg0: i32, %arg1: i32) -> (i32, i32) {
    %c0_i32 = arith.constant 0 : i32
    %c0_i32_0 = arith.constant 0 : i32
    return %arg0, %c0_i32 : i32, i32
  }
}

module attributes {stable_mosaic.version = 11 : i64} {
  func.func @_fused_matmul_kernel(%arg0: i32, %arg1: i32, %arg2: memref<256x144xbf16, #tpu.memory_space<vmem>>, %arg3: memref<144x16xbf16, #tpu.memory_space<vmem>>, %arg4: memref<1x16xf32, #tpu.memory_space<vmem>>, %arg5: memref<256x16xbf16, #tpu.memory_space<vmem>>, %arg6: memref<256x16xbf16, #tpu.memory_space<vmem>>) attributes {dimension_semantics = [#tpu.dimension_semantics<parallel>, #tpu.dimension_semantics<arbitrary>], iteration_bounds = array<i64: 2, 1>, scalar_prefetch = 0 : i64, scratch_operands = 0 : i64, tpu.core_type = #tpu.core_type<tc>, window_params = [{transform_indices = @transform_0, window_bounds = array<i64: 256, 144>}, {transform_indices = @transform_1, window_bounds = array<i64: 144, 16>}, {pipeline_mode = #tpu.pipeline_mode<synchronous>, transform_indices = @transform_2, window_bounds = array<i64: 1, 16>}, {transform_indices = @transform_3, window_bounds = array<i64: 256, 16>}, {transform_indices = @transform_4, window_bounds = array<i64: 256, 16>}]} {
    %c0 = arith.constant 0 : index
    %c0_0 = arith.constant 0 : index
    %0 = vector.load %arg2[%c0, %c0_0] : memref<256x144xbf16, #tpu.memory_space<vmem>>, vector<256x144xbf16>
    %c0_1 = arith.constant 0 : index
    %c0_2 = arith.constant 0 : index
    %1 = vector.load %arg3[%c0_1, %c0_2] : memref<144x16xbf16, #tpu.memory_space<vmem>>, vector<144x16xbf16>
    %cst = arith.constant dense<0.000000e+00> : vector<256x16xf32>
    %2 = tpu.matmul %0, %1, %cst {dimension_numbers = #tpu.dot_dimension_numbers<[1], [0], [0], [1], [0, 0, 1, 1], [], []>} : vector<256x144xbf16>, vector<144x16xbf16>, vector<256x16xf32> -> vector<256x16xf32>
    %c0_3 = arith.constant 0 : index
    %c0_4 = arith.constant 0 : index
    %3 = vector.load %arg4[%c0_3, %c0_4] : memref<1x16xf32, #tpu.memory_space<vmem>>, vector<1x16xf32>
    %4 = vector.broadcast %3 : vector<1x16xf32> to vector<256x16xf32>
    %5 = arith.addf %2, %4 : vector<256x16xf32>
    %c0_5 = arith.constant 0 : index
    %c0_6 = arith.constant 0 : index
    %6 = vector.load %arg5[%c0_5, %c0_6] : memref<256x16xbf16, #tpu.memory_space<vmem>>, vector<256x16xbf16>
    %7 = arith.extf %6 : vector<256x16xbf16> to vector<256x16xf32>
    %8 = arith.addf %5, %7 : vector<256x16xf32>
    %cst_7 = arith.constant 0.000000e+00 : f32
    %9 = vector.broadcast %cst_7 : f32 to vector<256x16xf32>
    %10 = arith.maximumf %8, %9 : vector<256x16xf32>
    %11 = arith.truncf %10 : vector<256x16xf32> to vector<256x16xbf16>
    %c0_8 = arith.constant 0 : index
    %c0_9 = arith.constant 0 : index
    %12 = vector.load %arg6[%c0_8, %c0_9] : memref<256x16xbf16, #tpu.memory_space<vmem>>, vector<256x16xbf16>
    tpu.vector_store %arg6[%c0_8, %c0_9], %11 {strides = array<i32>} : memref<256x16xbf16, #tpu.memory_space<vmem>>, vector<256x16xbf16>,
    return
  }
  func.func @transform_0(%arg0: i32, %arg1: i32) -> (i32, i32) {
    %c0_i32 = arith.constant 0 : i32
    return %arg0, %arg1 : i32, i32
  }
  func.func @transform_1(%arg0: i32, %arg1: i32) -> (i32, i32) {
    %c0_i32 = arith.constant 0 : i32
    %c0_i32_0 = arith.constant 0 : i32
    return %arg1, %c0_i32 : i32, i32
  }
  func.func @transform_2(%arg0: i32, %arg1: i32) -> (i32, i32) {
    %c0_i32 = arith.constant 0 : i32
    %c0_i32_0 = arith.constant 0 : i32
    %c0_i32_1 = arith.constant 0 : i32
    return %c0_i32, %c0_i32_0 : i32, i32
  }
  func.func @transform_3(%arg0: i32, %arg1: i32) -> (i32, i32) {
    %c0_i32 = arith.constant 0 : i32
    %c0_i32_0 = arith.constant 0 : i32
    return %arg0, %c0_i32 : i32, i32
  }
  func.func @transform_4(%arg0: i32, %arg1: i32) -> (i32, i32) {
    %c0_i32 = arith.constant 0 : i32
    %c0_i32_0 = arith.constant 0 : i32
    return %arg0, %c0_i32 : i32, i32
  }
}

module attributes {stable_mosaic.version = 11 : i64} {
  func.func @_fused_matmul_kernel(%arg0: i32, %arg1: i32, %arg2: memref<128x144xbf16, #tpu.memory_space<vmem>>, %arg3: memref<144x32xbf16, #tpu.memory_space<vmem>>, %arg4: memref<1x32xf32, #tpu.memory_space<vmem>>, %arg5: memref<128x32xbf16, #tpu.memory_space<vmem>>) attributes {dimension_semantics = [#tpu.dimension_semantics<parallel>, #tpu.dimension_semantics<arbitrary>], iteration_bounds = array<i64: 1, 1>, scalar_prefetch = 0 : i64, scratch_operands = 0 : i64, tpu.core_type = #tpu.core_type<tc>, window_params = [{transform_indices = @transform_0, window_bounds = array<i64: 128, 144>}, {transform_indices = @transform_1, window_bounds = array<i64: 144, 32>}, {pipeline_mode = #tpu.pipeline_mode<synchronous>, transform_indices = @transform_2, window_bounds = array<i64: 1, 32>}, {transform_indices = @transform_3, window_bounds = array<i64: 128, 32>}]} {
    %c0 = arith.constant 0 : index
    %c0_0 = arith.constant 0 : index
    %0 = vector.load %arg2[%c0, %c0_0] : memref<128x144xbf16, #tpu.memory_space<vmem>>, vector<128x144xbf16>
    %c0_1 = arith.constant 0 : index
    %c0_2 = arith.constant 0 : index
    %1 = vector.load %arg3[%c0_1, %c0_2] : memref<144x32xbf16, #tpu.memory_space<vmem>>, vector<144x32xbf16>
    %cst = arith.constant dense<0.000000e+00> : vector<128x32xf32>
    %2 = tpu.matmul %0, %1, %cst {dimension_numbers = #tpu.dot_dimension_numbers<[1], [0], [0], [1], [0, 0, 1, 1], [], []>} : vector<128x144xbf16>, vector<144x32xbf16>, vector<128x32xf32> -> vector<128x32xf32>
    %c0_3 = arith.constant 0 : index
    %c0_4 = arith.constant 0 : index
    %3 = vector.load %arg4[%c0_3, %c0_4] : memref<1x32xf32, #tpu.memory_space<vmem>>, vector<1x32xf32>
    %4 = vector.broadcast %3 : vector<1x32xf32> to vector<128x32xf32>
    %5 = arith.addf %2, %4 : vector<128x32xf32>
    %cst_5 = arith.constant 0.000000e+00 : f32
    %6 = vector.broadcast %cst_5 : f32 to vector<128x32xf32>
    %7 = arith.maximumf %5, %6 : vector<128x32xf32>
    %8 = arith.truncf %7 : vector<128x32xf32> to vector<128x32xbf16>
    %c0_6 = arith.constant 0 : index
    %c0_7 = arith.constant 0 : index
    %9 = vector.load %arg5[%c0_6, %c0_7] : memref<128x32xbf16, #tpu.memory_space<vmem>>, vector<128x32xbf16>
    tpu.vector_store %arg5[%c0_6, %c0_7], %8 {strides = array<i32>} : memref<128x32xbf16, #tpu.memory_space<vmem>>, vector<128x32xbf16>,
    return
  }
  func.func @transform_0(%arg0: i32, %arg1: i32) -> (i32, i32) {
    %c0_i32 = arith.constant 0 : i32
    return %arg0, %arg1 : i32, i32
  }
  func.func @transform_1(%arg0: i32, %arg1: i32) -> (i32, i32) {
    %c0_i32 = arith.constant 0 : i32
    %c0_i32_0 = arith.constant 0 : i32
    return %arg1, %c0_i32 : i32, i32
  }
  func.func @transform_2(%arg0: i32, %arg1: i32) -> (i32, i32) {
    %c0_i32 = arith.constant 0 : i32
    %c0_i32_0 = arith.constant 0 : i32
    %c0_i32_1 = arith.constant 0 : i32
    return %c0_i32, %c0_i32_0 : i32, i32
  }
  func.func @transform_3(%arg0: i32, %arg1: i32) -> (i32, i32) {
    %c0_i32 = arith.constant 0 : i32
    %c0_i32_0 = arith.constant 0 : i32
    return %arg0, %c0_i32 : i32, i32
  }
}

module attributes {stable_mosaic.version = 11 : i64} {
  func.func @_fused_matmul_kernel(%arg0: i32, %arg1: i32, %arg2: memref<128x16xbf16, #tpu.memory_space<vmem>>, %arg3: memref<16x32xbf16, #tpu.memory_space<vmem>>, %arg4: memref<1x32xf32, #tpu.memory_space<vmem>>, %arg5: memref<128x32xbf16, #tpu.memory_space<vmem>>) attributes {dimension_semantics = [#tpu.dimension_semantics<parallel>, #tpu.dimension_semantics<arbitrary>], iteration_bounds = array<i64: 1, 1>, scalar_prefetch = 0 : i64, scratch_operands = 0 : i64, tpu.core_type = #tpu.core_type<tc>, window_params = [{transform_indices = @transform_0, window_bounds = array<i64: 128, 16>}, {transform_indices = @transform_1, window_bounds = array<i64: 16, 32>}, {pipeline_mode = #tpu.pipeline_mode<synchronous>, transform_indices = @transform_2, window_bounds = array<i64: 1, 32>}, {transform_indices = @transform_3, window_bounds = array<i64: 128, 32>}]} {
    %c0 = arith.constant 0 : index
    %c0_0 = arith.constant 0 : index
    %0 = vector.load %arg2[%c0, %c0_0] : memref<128x16xbf16, #tpu.memory_space<vmem>>, vector<128x16xbf16>
    %c0_1 = arith.constant 0 : index
    %c0_2 = arith.constant 0 : index
    %1 = vector.load %arg3[%c0_1, %c0_2] : memref<16x32xbf16, #tpu.memory_space<vmem>>, vector<16x32xbf16>
    %cst = arith.constant dense<0.000000e+00> : vector<128x32xf32>
    %2 = tpu.matmul %0, %1, %cst {dimension_numbers = #tpu.dot_dimension_numbers<[1], [0], [0], [1], [0, 0, 1, 1], [], []>} : vector<128x16xbf16>, vector<16x32xbf16>, vector<128x32xf32> -> vector<128x32xf32>
    %c0_3 = arith.constant 0 : index
    %c0_4 = arith.constant 0 : index
    %3 = vector.load %arg4[%c0_3, %c0_4] : memref<1x32xf32, #tpu.memory_space<vmem>>, vector<1x32xf32>
    %4 = vector.broadcast %3 : vector<1x32xf32> to vector<128x32xf32>
    %5 = arith.addf %2, %4 : vector<128x32xf32>
    %6 = arith.truncf %5 : vector<128x32xf32> to vector<128x32xbf16>
    %c0_5 = arith.constant 0 : index
    %c0_6 = arith.constant 0 : index
    %7 = vector.load %arg5[%c0_5, %c0_6] : memref<128x32xbf16, #tpu.memory_space<vmem>>, vector<128x32xbf16>
    tpu.vector_store %arg5[%c0_5, %c0_6], %6 {strides = array<i32>} : memref<128x32xbf16, #tpu.memory_space<vmem>>, vector<128x32xbf16>,
    return
  }
  func.func @transform_0(%arg0: i32, %arg1: i32) -> (i32, i32) {
    %c0_i32 = arith.constant 0 : i32
    return %arg0, %arg1 : i32, i32
  }
  func.func @transform_1(%arg0: i32, %arg1: i32) -> (i32, i32) {
    %c0_i32 = arith.constant 0 : i32
    %c0_i32_0 = arith.constant 0 : i32
    return %arg1, %c0_i32 : i32, i32
  }
  func.func @transform_2(%arg0: i32, %arg1: i32) -> (i32, i32) {
    %c0_i32 = arith.constant 0 : i32
    %c0_i32_0 = arith.constant 0 : i32
    %c0_i32_1 = arith.constant 0 : i32
    return %c0_i32, %c0_i32_0 : i32, i32
  }
  func.func @transform_3(%arg0: i32, %arg1: i32) -> (i32, i32) {
    %c0_i32 = arith.constant 0 : i32
    %c0_i32_0 = arith.constant 0 : i32
    return %arg0, %c0_i32 : i32, i32
  }
}

module attributes {stable_mosaic.version = 11 : i64} {
  func.func @_fused_matmul_kernel(%arg0: i32, %arg1: i32, %arg2: memref<128x288xbf16, #tpu.memory_space<vmem>>, %arg3: memref<288x32xbf16, #tpu.memory_space<vmem>>, %arg4: memref<1x32xf32, #tpu.memory_space<vmem>>, %arg5: memref<128x32xbf16, #tpu.memory_space<vmem>>, %arg6: memref<128x32xbf16, #tpu.memory_space<vmem>>) attributes {dimension_semantics = [#tpu.dimension_semantics<parallel>, #tpu.dimension_semantics<arbitrary>], iteration_bounds = array<i64: 1, 1>, scalar_prefetch = 0 : i64, scratch_operands = 0 : i64, tpu.core_type = #tpu.core_type<tc>, window_params = [{transform_indices = @transform_0, window_bounds = array<i64: 128, 288>}, {transform_indices = @transform_1, window_bounds = array<i64: 288, 32>}, {pipeline_mode = #tpu.pipeline_mode<synchronous>, transform_indices = @transform_2, window_bounds = array<i64: 1, 32>}, {transform_indices = @transform_3, window_bounds = array<i64: 128, 32>}, {transform_indices = @transform_4, window_bounds = array<i64: 128, 32>}]} {
    %c0 = arith.constant 0 : index
    %c0_0 = arith.constant 0 : index
    %0 = vector.load %arg2[%c0, %c0_0] : memref<128x288xbf16, #tpu.memory_space<vmem>>, vector<128x288xbf16>
    %c0_1 = arith.constant 0 : index
    %c0_2 = arith.constant 0 : index
    %1 = vector.load %arg3[%c0_1, %c0_2] : memref<288x32xbf16, #tpu.memory_space<vmem>>, vector<288x32xbf16>
    %cst = arith.constant dense<0.000000e+00> : vector<128x32xf32>
    %2 = tpu.matmul %0, %1, %cst {dimension_numbers = #tpu.dot_dimension_numbers<[1], [0], [0], [1], [0, 0, 1, 1], [], []>} : vector<128x288xbf16>, vector<288x32xbf16>, vector<128x32xf32> -> vector<128x32xf32>
    %c0_3 = arith.constant 0 : index
    %c0_4 = arith.constant 0 : index
    %3 = vector.load %arg4[%c0_3, %c0_4] : memref<1x32xf32, #tpu.memory_space<vmem>>, vector<1x32xf32>
    %4 = vector.broadcast %3 : vector<1x32xf32> to vector<128x32xf32>
    %5 = arith.addf %2, %4 : vector<128x32xf32>
    %c0_5 = arith.constant 0 : index
    %c0_6 = arith.constant 0 : index
    %6 = vector.load %arg5[%c0_5, %c0_6] : memref<128x32xbf16, #tpu.memory_space<vmem>>, vector<128x32xbf16>
    %7 = arith.extf %6 : vector<128x32xbf16> to vector<128x32xf32>
    %8 = arith.addf %5, %7 : vector<128x32xf32>
    %cst_7 = arith.constant 0.000000e+00 : f32
    %9 = vector.broadcast %cst_7 : f32 to vector<128x32xf32>
    %10 = arith.maximumf %8, %9 : vector<128x32xf32>
    %11 = arith.truncf %10 : vector<128x32xf32> to vector<128x32xbf16>
    %c0_8 = arith.constant 0 : index
    %c0_9 = arith.constant 0 : index
    %12 = vector.load %arg6[%c0_8, %c0_9] : memref<128x32xbf16, #tpu.memory_space<vmem>>, vector<128x32xbf16>
    tpu.vector_store %arg6[%c0_8, %c0_9], %11 {strides = array<i32>} : memref<128x32xbf16, #tpu.memory_space<vmem>>, vector<128x32xbf16>,
    return
  }
  func.func @transform_0(%arg0: i32, %arg1: i32) -> (i32, i32) {
    %c0_i32 = arith.constant 0 : i32
    return %arg0, %arg1 : i32, i32
  }
  func.func @transform_1(%arg0: i32, %arg1: i32) -> (i32, i32) {
    %c0_i32 = arith.constant 0 : i32
    %c0_i32_0 = arith.constant 0 : i32
    return %arg1, %c0_i32 : i32, i32
  }
  func.func @transform_2(%arg0: i32, %arg1: i32) -> (i32, i32) {
    %c0_i32 = arith.constant 0 : i32
    %c0_i32_0 = arith.constant 0 : i32
    %c0_i32_1 = arith.constant 0 : i32
    return %c0_i32, %c0_i32_0 : i32, i32
  }
  func.func @transform_3(%arg0: i32, %arg1: i32) -> (i32, i32) {
    %c0_i32 = arith.constant 0 : i32
    %c0_i32_0 = arith.constant 0 : i32
    return %arg0, %c0_i32 : i32, i32
  }
  func.func @transform_4(%arg0: i32, %arg1: i32) -> (i32, i32) {
    %c0_i32 = arith.constant 0 : i32
    %c0_i32_0 = arith.constant 0 : i32
    return %arg0, %c0_i32 : i32, i32
  }
}

module attributes {stable_mosaic.version = 11 : i64} {
  func.func @_fused_matmul_kernel(%arg0: i32, %arg1: i32, %arg2: memref<128x288xbf16, #tpu.memory_space<vmem>>, %arg3: memref<288x32xbf16, #tpu.memory_space<vmem>>, %arg4: memref<1x32xf32, #tpu.memory_space<vmem>>, %arg5: memref<128x32xbf16, #tpu.memory_space<vmem>>) attributes {dimension_semantics = [#tpu.dimension_semantics<parallel>, #tpu.dimension_semantics<arbitrary>], iteration_bounds = array<i64: 1, 1>, scalar_prefetch = 0 : i64, scratch_operands = 0 : i64, tpu.core_type = #tpu.core_type<tc>, window_params = [{transform_indices = @transform_0, window_bounds = array<i64: 128, 288>}, {transform_indices = @transform_1, window_bounds = array<i64: 288, 32>}, {pipeline_mode = #tpu.pipeline_mode<synchronous>, transform_indices = @transform_2, window_bounds = array<i64: 1, 32>}, {transform_indices = @transform_3, window_bounds = array<i64: 128, 32>}]} {
    %c0 = arith.constant 0 : index
    %c0_0 = arith.constant 0 : index
    %0 = vector.load %arg2[%c0, %c0_0] : memref<128x288xbf16, #tpu.memory_space<vmem>>, vector<128x288xbf16>
    %c0_1 = arith.constant 0 : index
    %c0_2 = arith.constant 0 : index
    %1 = vector.load %arg3[%c0_1, %c0_2] : memref<288x32xbf16, #tpu.memory_space<vmem>>, vector<288x32xbf16>
    %cst = arith.constant dense<0.000000e+00> : vector<128x32xf32>
    %2 = tpu.matmul %0, %1, %cst {dimension_numbers = #tpu.dot_dimension_numbers<[1], [0], [0], [1], [0, 0, 1, 1], [], []>} : vector<128x288xbf16>, vector<288x32xbf16>, vector<128x32xf32> -> vector<128x32xf32>
    %c0_3 = arith.constant 0 : index
    %c0_4 = arith.constant 0 : index
    %3 = vector.load %arg4[%c0_3, %c0_4] : memref<1x32xf32, #tpu.memory_space<vmem>>, vector<1x32xf32>
    %4 = vector.broadcast %3 : vector<1x32xf32> to vector<128x32xf32>
    %5 = arith.addf %2, %4 : vector<128x32xf32>
    %cst_5 = arith.constant 0.000000e+00 : f32
    %6 = vector.broadcast %cst_5 : f32 to vector<128x32xf32>
    %7 = arith.maximumf %5, %6 : vector<128x32xf32>
    %8 = arith.truncf %7 : vector<128x32xf32> to vector<128x32xbf16>
    %c0_6 = arith.constant 0 : index
    %c0_7 = arith.constant 0 : index
    %9 = vector.load %arg5[%c0_6, %c0_7] : memref<128x32xbf16, #tpu.memory_space<vmem>>, vector<128x32xbf16>
    tpu.vector_store %arg5[%c0_6, %c0_7], %8 {strides = array<i32>} : memref<128x32xbf16, #tpu.memory_space<vmem>>, vector<128x32xbf16>,
    return
  }
  func.func @transform_0(%arg0: i32, %arg1: i32) -> (i32, i32) {
    %c0_i32 = arith.constant 0 : i32
    return %arg0, %arg1 : i32, i32
  }
  func.func @transform_1(%arg0: i32, %arg1: i32) -> (i32, i32) {
    %c0_i32 = arith.constant 0 : i32
    %c0_i32_0 = arith.constant 0 : i32
    return %arg1, %c0_i32 : i32, i32
  }
  func.func @transform_2(%arg0: i32, %arg1: i32) -> (i32, i32) {
    %c0_i32 = arith.constant 0 : i32
    %c0_i32_0 = arith.constant 0 : i32
    %c0_i32_1 = arith.constant 0 : i32
    return %c0_i32, %c0_i32_0 : i32, i32
  }
  func.func @transform_3(%arg0: i32, %arg1: i32) -> (i32, i32) {
    %c0_i32 = arith.constant 0 : i32
    %c0_i32_0 = arith.constant 0 : i32
    return %arg0, %c0_i32 : i32, i32
  }
}

module attributes {stable_mosaic.version = 11 : i64} {
  func.func @_fused_matmul_kernel(%arg0: i32, %arg1: i32, %arg2: memref<32x288xbf16, #tpu.memory_space<vmem>>, %arg3: memref<288x64xbf16, #tpu.memory_space<vmem>>, %arg4: memref<1x64xf32, #tpu.memory_space<vmem>>, %arg5: memref<32x64xbf16, #tpu.memory_space<vmem>>) attributes {dimension_semantics = [#tpu.dimension_semantics<parallel>, #tpu.dimension_semantics<arbitrary>], iteration_bounds = array<i64: 1, 1>, scalar_prefetch = 0 : i64, scratch_operands = 0 : i64, tpu.core_type = #tpu.core_type<tc>, window_params = [{transform_indices = @transform_0, window_bounds = array<i64: 32, 288>}, {transform_indices = @transform_1, window_bounds = array<i64: 288, 64>}, {pipeline_mode = #tpu.pipeline_mode<synchronous>, transform_indices = @transform_2, window_bounds = array<i64: 1, 64>}, {transform_indices = @transform_3, window_bounds = array<i64: 32, 64>}]} {
    %c0 = arith.constant 0 : index
    %c0_0 = arith.constant 0 : index
    %0 = vector.load %arg2[%c0, %c0_0] : memref<32x288xbf16, #tpu.memory_space<vmem>>, vector<32x288xbf16>
    %c0_1 = arith.constant 0 : index
    %c0_2 = arith.constant 0 : index
    %1 = vector.load %arg3[%c0_1, %c0_2] : memref<288x64xbf16, #tpu.memory_space<vmem>>, vector<288x64xbf16>
    %cst = arith.constant dense<0.000000e+00> : vector<32x64xf32>
    %2 = tpu.matmul %0, %1, %cst {dimension_numbers = #tpu.dot_dimension_numbers<[1], [0], [0], [1], [0, 0, 1, 1], [], []>} : vector<32x288xbf16>, vector<288x64xbf16>, vector<32x64xf32> -> vector<32x64xf32>
    %c0_3 = arith.constant 0 : index
    %c0_4 = arith.constant 0 : index
    %3 = vector.load %arg4[%c0_3, %c0_4] : memref<1x64xf32, #tpu.memory_space<vmem>>, vector<1x64xf32>
    %4 = vector.broadcast %3 : vector<1x64xf32> to vector<32x64xf32>
    %5 = arith.addf %2, %4 : vector<32x64xf32>
    %cst_5 = arith.constant 0.000000e+00 : f32
    %6 = vector.broadcast %cst_5 : f32 to vector<32x64xf32>
    %7 = arith.maximumf %5, %6 : vector<32x64xf32>
    %8 = arith.truncf %7 : vector<32x64xf32> to vector<32x64xbf16>
    %c0_6 = arith.constant 0 : index
    %c0_7 = arith.constant 0 : index
    %9 = vector.load %arg5[%c0_6, %c0_7] : memref<32x64xbf16, #tpu.memory_space<vmem>>, vector<32x64xbf16>
    tpu.vector_store %arg5[%c0_6, %c0_7], %8 {strides = array<i32>} : memref<32x64xbf16, #tpu.memory_space<vmem>>, vector<32x64xbf16>,
    return
  }
  func.func @transform_0(%arg0: i32, %arg1: i32) -> (i32, i32) {
    %c0_i32 = arith.constant 0 : i32
    return %arg0, %arg1 : i32, i32
  }
  func.func @transform_1(%arg0: i32, %arg1: i32) -> (i32, i32) {
    %c0_i32 = arith.constant 0 : i32
    %c0_i32_0 = arith.constant 0 : i32
    return %arg1, %c0_i32 : i32, i32
  }
  func.func @transform_2(%arg0: i32, %arg1: i32) -> (i32, i32) {
    %c0_i32 = arith.constant 0 : i32
    %c0_i32_0 = arith.constant 0 : i32
    %c0_i32_1 = arith.constant 0 : i32
    return %c0_i32, %c0_i32_0 : i32, i32
  }
  func.func @transform_3(%arg0: i32, %arg1: i32) -> (i32, i32) {
    %c0_i32 = arith.constant 0 : i32
    %c0_i32_0 = arith.constant 0 : i32
    return %arg0, %c0_i32 : i32, i32
  }
}

module attributes {stable_mosaic.version = 11 : i64} {
  func.func @_fused_matmul_kernel(%arg0: i32, %arg1: i32, %arg2: memref<32x576xbf16, #tpu.memory_space<vmem>>, %arg3: memref<576x64xbf16, #tpu.memory_space<vmem>>, %arg4: memref<1x64xf32, #tpu.memory_space<vmem>>, %arg5: memref<32x64xbf16, #tpu.memory_space<vmem>>, %arg6: memref<32x64xbf16, #tpu.memory_space<vmem>>) attributes {dimension_semantics = [#tpu.dimension_semantics<parallel>, #tpu.dimension_semantics<arbitrary>], iteration_bounds = array<i64: 1, 1>, scalar_prefetch = 0 : i64, scratch_operands = 0 : i64, tpu.core_type = #tpu.core_type<tc>, window_params = [{transform_indices = @transform_0, window_bounds = array<i64: 32, 576>}, {transform_indices = @transform_1, window_bounds = array<i64: 576, 64>}, {pipeline_mode = #tpu.pipeline_mode<synchronous>, transform_indices = @transform_2, window_bounds = array<i64: 1, 64>}, {transform_indices = @transform_3, window_bounds = array<i64: 32, 64>}, {transform_indices = @transform_4, window_bounds = array<i64: 32, 64>}]} {
    %c0 = arith.constant 0 : index
    %c0_0 = arith.constant 0 : index
    %0 = vector.load %arg2[%c0, %c0_0] : memref<32x576xbf16, #tpu.memory_space<vmem>>, vector<32x576xbf16>
    %c0_1 = arith.constant 0 : index
    %c0_2 = arith.constant 0 : index
    %1 = vector.load %arg3[%c0_1, %c0_2] : memref<576x64xbf16, #tpu.memory_space<vmem>>, vector<576x64xbf16>
    %cst = arith.constant dense<0.000000e+00> : vector<32x64xf32>
    %2 = tpu.matmul %0, %1, %cst {dimension_numbers = #tpu.dot_dimension_numbers<[1], [0], [0], [1], [0, 0, 1, 1], [], []>} : vector<32x576xbf16>, vector<576x64xbf16>, vector<32x64xf32> -> vector<32x64xf32>
    %c0_3 = arith.constant 0 : index
    %c0_4 = arith.constant 0 : index
    %3 = vector.load %arg4[%c0_3, %c0_4] : memref<1x64xf32, #tpu.memory_space<vmem>>, vector<1x64xf32>
    %4 = vector.broadcast %3 : vector<1x64xf32> to vector<32x64xf32>
    %5 = arith.addf %2, %4 : vector<32x64xf32>
    %c0_5 = arith.constant 0 : index
    %c0_6 = arith.constant 0 : index
    %6 = vector.load %arg5[%c0_5, %c0_6] : memref<32x64xbf16, #tpu.memory_space<vmem>>, vector<32x64xbf16>
    %7 = arith.extf %6 : vector<32x64xbf16> to vector<32x64xf32>
    %8 = arith.addf %5, %7 : vector<32x64xf32>
    %cst_7 = arith.constant 0.000000e+00 : f32
    %9 = vector.broadcast %cst_7 : f32 to vector<32x64xf32>
    %10 = arith.maximumf %8, %9 : vector<32x64xf32>
    %11 = arith.truncf %10 : vector<32x64xf32> to vector<32x64xbf16>
    %c0_8 = arith.constant 0 : index
    %c0_9 = arith.constant 0 : index
    %12 = vector.load %arg6[%c0_8, %c0_9] : memref<32x64xbf16, #tpu.memory_space<vmem>>, vector<32x64xbf16>
    tpu.vector_store %arg6[%c0_8, %c0_9], %11 {strides = array<i32>} : memref<32x64xbf16, #tpu.memory_space<vmem>>, vector<32x64xbf16>,
    return
  }
  func.func @transform_0(%arg0: i32, %arg1: i32) -> (i32, i32) {
    %c0_i32 = arith.constant 0 : i32
    return %arg0, %arg1 : i32, i32
  }
  func.func @transform_1(%arg0: i32, %arg1: i32) -> (i32, i32) {
    %c0_i32 = arith.constant 0 : i32
    %c0_i32_0 = arith.constant 0 : i32
    return %arg1, %c0_i32 : i32, i32
  }
  func.func @transform_2(%arg0: i32, %arg1: i32) -> (i32, i32) {
    %c0_i32 = arith.constant 0 : i32
    %c0_i32_0 = arith.constant 0 : i32
    %c0_i32_1 = arith.constant 0 : i32
    return %c0_i32, %c0_i32_0 : i32, i32
  }
  func.func @transform_3(%arg0: i32, %arg1: i32) -> (i32, i32) {
    %c0_i32 = arith.constant 0 : i32
    %c0_i32_0 = arith.constant 0 : i32
    return %arg0, %c0_i32 : i32, i32
  }
  func.func @transform_4(%arg0: i32, %arg1: i32) -> (i32, i32) {
    %c0_i32 = arith.constant 0 : i32
    %c0_i32_0 = arith.constant 0 : i32
    return %arg0, %c0_i32 : i32, i32
  }
}

module attributes {stable_mosaic.version = 11 : i64} {
  func.func @_fused_matmul_kernel(%arg0: i32, %arg1: i32, %arg2: memref<32x32xbf16, #tpu.memory_space<vmem>>, %arg3: memref<32x64xbf16, #tpu.memory_space<vmem>>, %arg4: memref<1x64xf32, #tpu.memory_space<vmem>>, %arg5: memref<32x64xbf16, #tpu.memory_space<vmem>>) attributes {dimension_semantics = [#tpu.dimension_semantics<parallel>, #tpu.dimension_semantics<arbitrary>], iteration_bounds = array<i64: 1, 1>, scalar_prefetch = 0 : i64, scratch_operands = 0 : i64, tpu.core_type = #tpu.core_type<tc>, window_params = [{transform_indices = @transform_0, window_bounds = array<i64: 32, 32>}, {transform_indices = @transform_1, window_bounds = array<i64: 32, 64>}, {pipeline_mode = #tpu.pipeline_mode<synchronous>, transform_indices = @transform_2, window_bounds = array<i64: 1, 64>}, {transform_indices = @transform_3, window_bounds = array<i64: 32, 64>}]} {
    %c0 = arith.constant 0 : index
    %c0_0 = arith.constant 0 : index
    %0 = vector.load %arg2[%c0, %c0_0] : memref<32x32xbf16, #tpu.memory_space<vmem>>, vector<32x32xbf16>
    %c0_1 = arith.constant 0 : index
    %c0_2 = arith.constant 0 : index
    %1 = vector.load %arg3[%c0_1, %c0_2] : memref<32x64xbf16, #tpu.memory_space<vmem>>, vector<32x64xbf16>
    %cst = arith.constant dense<0.000000e+00> : vector<32x64xf32>
    %2 = tpu.matmul %0, %1, %cst {dimension_numbers = #tpu.dot_dimension_numbers<[1], [0], [0], [1], [0, 0, 1, 1], [], []>} : vector<32x32xbf16>, vector<32x64xbf16>, vector<32x64xf32> -> vector<32x64xf32>
    %c0_3 = arith.constant 0 : index
    %c0_4 = arith.constant 0 : index
    %3 = vector.load %arg4[%c0_3, %c0_4] : memref<1x64xf32, #tpu.memory_space<vmem>>, vector<1x64xf32>
    %4 = vector.broadcast %3 : vector<1x64xf32> to vector<32x64xf32>
    %5 = arith.addf %2, %4 : vector<32x64xf32>
    %6 = arith.truncf %5 : vector<32x64xf32> to vector<32x64xbf16>
    %c0_5 = arith.constant 0 : index
    %c0_6 = arith.constant 0 : index
    %7 = vector.load %arg5[%c0_5, %c0_6] : memref<32x64xbf16, #tpu.memory_space<vmem>>, vector<32x64xbf16>
    tpu.vector_store %arg5[%c0_5, %c0_6], %6 {strides = array<i32>} : memref<32x64xbf16, #tpu.memory_space<vmem>>, vector<32x64xbf16>,
    return
  }
  func.func @transform_0(%arg0: i32, %arg1: i32) -> (i32, i32) {
    %c0_i32 = arith.constant 0 : i32
    return %arg0, %arg1 : i32, i32
  }
  func.func @transform_1(%arg0: i32, %arg1: i32) -> (i32, i32) {
    %c0_i32 = arith.constant 0 : i32
    %c0_i32_0 = arith.constant 0 : i32
    return %arg1, %c0_i32 : i32, i32
  }
  func.func @transform_2(%arg0: i32, %arg1: i32) -> (i32, i32) {
    %c0_i32 = arith.constant 0 : i32
    %c0_i32_0 = arith.constant 0 : i32
    %c0_i32_1 = arith.constant 0 : i32
    return %c0_i32, %c0_i32_0 : i32, i32
  }
  func.func @transform_3(%arg0: i32, %arg1: i32) -> (i32, i32) {
    %c0_i32 = arith.constant 0 : i32
    %c0_i32_0 = arith.constant 0 : i32
    return %arg0, %c0_i32 : i32, i32
  }
}

module attributes {stable_mosaic.version = 11 : i64} {
  func.func @_fused_matmul_kernel(%arg0: i32, %arg1: i32, %arg2: memref<32x576xbf16, #tpu.memory_space<vmem>>, %arg3: memref<576x64xbf16, #tpu.memory_space<vmem>>, %arg4: memref<1x64xf32, #tpu.memory_space<vmem>>, %arg5: memref<32x64xbf16, #tpu.memory_space<vmem>>) attributes {dimension_semantics = [#tpu.dimension_semantics<parallel>, #tpu.dimension_semantics<arbitrary>], iteration_bounds = array<i64: 1, 1>, scalar_prefetch = 0 : i64, scratch_operands = 0 : i64, tpu.core_type = #tpu.core_type<tc>, window_params = [{transform_indices = @transform_0, window_bounds = array<i64: 32, 576>}, {transform_indices = @transform_1, window_bounds = array<i64: 576, 64>}, {pipeline_mode = #tpu.pipeline_mode<synchronous>, transform_indices = @transform_2, window_bounds = array<i64: 1, 64>}, {transform_indices = @transform_3, window_bounds = array<i64: 32, 64>}]} {
    %c0 = arith.constant 0 : index
    %c0_0 = arith.constant 0 : index
    %0 = vector.load %arg2[%c0, %c0_0] : memref<32x576xbf16, #tpu.memory_space<vmem>>, vector<32x576xbf16>
    %c0_1 = arith.constant 0 : index
    %c0_2 = arith.constant 0 : index
    %1 = vector.load %arg3[%c0_1, %c0_2] : memref<576x64xbf16, #tpu.memory_space<vmem>>, vector<576x64xbf16>
    %cst = arith.constant dense<0.000000e+00> : vector<32x64xf32>
    %2 = tpu.matmul %0, %1, %cst {dimension_numbers = #tpu.dot_dimension_numbers<[1], [0], [0], [1], [0, 0, 1, 1], [], []>} : vector<32x576xbf16>, vector<576x64xbf16>, vector<32x64xf32> -> vector<32x64xf32>
    %c0_3 = arith.constant 0 : index
    %c0_4 = arith.constant 0 : index
    %3 = vector.load %arg4[%c0_3, %c0_4] : memref<1x64xf32, #tpu.memory_space<vmem>>, vector<1x64xf32>
    %4 = vector.broadcast %3 : vector<1x64xf32> to vector<32x64xf32>
    %5 = arith.addf %2, %4 : vector<32x64xf32>
    %cst_5 = arith.constant 0.000000e+00 : f32
    %6 = vector.broadcast %cst_5 : f32 to vector<32x64xf32>
    %7 = arith.maximumf %5, %6 : vector<32x64xf32>
    %8 = arith.truncf %7 : vector<32x64xf32> to vector<32x64xbf16>
    %c0_6 = arith.constant 0 : index
    %c0_7 = arith.constant 0 : index
    %9 = vector.load %arg5[%c0_6, %c0_7] : memref<32x64xbf16, #tpu.memory_space<vmem>>, vector<32x64xbf16>
    tpu.vector_store %arg5[%c0_6, %c0_7], %8 {strides = array<i32>} : memref<32x64xbf16, #tpu.memory_space<vmem>>, vector<32x64xbf16>,
    return
  }
  func.func @transform_0(%arg0: i32, %arg1: i32) -> (i32, i32) {
    %c0_i32 = arith.constant 0 : i32
    return %arg0, %arg1 : i32, i32
  }
  func.func @transform_1(%arg0: i32, %arg1: i32) -> (i32, i32) {
    %c0_i32 = arith.constant 0 : i32
    %c0_i32_0 = arith.constant 0 : i32
    return %arg1, %c0_i32 : i32, i32
  }
  func.func @transform_2(%arg0: i32, %arg1: i32) -> (i32, i32) {
    %c0_i32 = arith.constant 0 : i32
    %c0_i32_0 = arith.constant 0 : i32
    %c0_i32_1 = arith.constant 0 : i32
    return %c0_i32, %c0_i32_0 : i32, i32
  }
  func.func @transform_3(%arg0: i32, %arg1: i32) -> (i32, i32) {
    %c0_i32 = arith.constant 0 : i32
    %c0_i32_0 = arith.constant 0 : i32
    return %arg0, %c0_i32 : i32, i32
  }
}

module attributes {stable_mosaic.version = 11 : i64} {
  func.func @_fused_matmul_kernel(%arg0: i32, %arg1: i32, %arg2: memref<8x576xbf16, #tpu.memory_space<vmem>>, %arg3: memref<576x128xbf16, #tpu.memory_space<vmem>>, %arg4: memref<1x128xf32, #tpu.memory_space<vmem>>, %arg5: memref<8x128xbf16, #tpu.memory_space<vmem>>) attributes {dimension_semantics = [#tpu.dimension_semantics<parallel>, #tpu.dimension_semantics<arbitrary>], iteration_bounds = array<i64: 1, 1>, scalar_prefetch = 0 : i64, scratch_operands = 0 : i64, tpu.core_type = #tpu.core_type<tc>, window_params = [{transform_indices = @transform_0, window_bounds = array<i64: 8, 576>}, {transform_indices = @transform_1, window_bounds = array<i64: 576, 128>}, {pipeline_mode = #tpu.pipeline_mode<synchronous>, transform_indices = @transform_2, window_bounds = array<i64: 1, 128>}, {transform_indices = @transform_3, window_bounds = array<i64: 8, 128>}]} {
    %c0 = arith.constant 0 : index
    %c0_0 = arith.constant 0 : index
    %0 = vector.load %arg2[%c0, %c0_0] : memref<8x576xbf16, #tpu.memory_space<vmem>>, vector<8x576xbf16>
    %c0_1 = arith.constant 0 : index
    %c0_2 = arith.constant 0 : index
    %1 = vector.load %arg3[%c0_1, %c0_2] : memref<576x128xbf16, #tpu.memory_space<vmem>>, vector<576x128xbf16>
    %cst = arith.constant dense<0.000000e+00> : vector<8x128xf32>
    %2 = tpu.matmul %0, %1, %cst {dimension_numbers = #tpu.dot_dimension_numbers<[1], [0], [0], [1], [0, 0, 1, 1], [], []>} : vector<8x576xbf16>, vector<576x128xbf16>, vector<8x128xf32> -> vector<8x128xf32>
    %c0_3 = arith.constant 0 : index
    %c0_4 = arith.constant 0 : index
    %3 = vector.load %arg4[%c0_3, %c0_4] : memref<1x128xf32, #tpu.memory_space<vmem>>, vector<1x128xf32>
    %4 = vector.broadcast %3 : vector<1x128xf32> to vector<8x128xf32>
    %5 = arith.addf %2, %4 : vector<8x128xf32>
    %cst_5 = arith.constant 0.000000e+00 : f32
    %6 = vector.broadcast %cst_5 : f32 to vector<8x128xf32>
    %7 = arith.maximumf %5, %6 : vector<8x128xf32>
    %8 = arith.truncf %7 : vector<8x128xf32> to vector<8x128xbf16>
    %c0_6 = arith.constant 0 : index
    %c0_7 = arith.constant 0 : index
    %9 = vector.load %arg5[%c0_6, %c0_7] : memref<8x128xbf16, #tpu.memory_space<vmem>>, vector<8x128xbf16>
    tpu.vector_store %arg5[%c0_6, %c0_7], %8 {strides = array<i32>} : memref<8x128xbf16, #tpu.memory_space<vmem>>, vector<8x128xbf16>,
    return
  }
  func.func @transform_0(%arg0: i32, %arg1: i32) -> (i32, i32) {
    %c0_i32 = arith.constant 0 : i32
    return %arg0, %arg1 : i32, i32
  }
  func.func @transform_1(%arg0: i32, %arg1: i32) -> (i32, i32) {
    %c0_i32 = arith.constant 0 : i32
    %c0_i32_0 = arith.constant 0 : i32
    return %arg1, %c0_i32 : i32, i32
  }
  func.func @transform_2(%arg0: i32, %arg1: i32) -> (i32, i32) {
    %c0_i32 = arith.constant 0 : i32
    %c0_i32_0 = arith.constant 0 : i32
    %c0_i32_1 = arith.constant 0 : i32
    return %c0_i32, %c0_i32_0 : i32, i32
  }
  func.func @transform_3(%arg0: i32, %arg1: i32) -> (i32, i32) {
    %c0_i32 = arith.constant 0 : i32
    %c0_i32_0 = arith.constant 0 : i32
    return %arg0, %c0_i32 : i32, i32
  }
}

module attributes {stable_mosaic.version = 11 : i64} {
  func.func @_fused_matmul_kernel(%arg0: i32, %arg1: i32, %arg2: memref<8x64xbf16, #tpu.memory_space<vmem>>, %arg3: memref<64x128xbf16, #tpu.memory_space<vmem>>, %arg4: memref<1x128xf32, #tpu.memory_space<vmem>>, %arg5: memref<8x128xbf16, #tpu.memory_space<vmem>>) attributes {dimension_semantics = [#tpu.dimension_semantics<parallel>, #tpu.dimension_semantics<arbitrary>], iteration_bounds = array<i64: 1, 1>, scalar_prefetch = 0 : i64, scratch_operands = 0 : i64, tpu.core_type = #tpu.core_type<tc>, window_params = [{transform_indices = @transform_0, window_bounds = array<i64: 8, 64>}, {transform_indices = @transform_1, window_bounds = array<i64: 64, 128>}, {pipeline_mode = #tpu.pipeline_mode<synchronous>, transform_indices = @transform_2, window_bounds = array<i64: 1, 128>}, {transform_indices = @transform_3, window_bounds = array<i64: 8, 128>}]} {
    %c0 = arith.constant 0 : index
    %c0_0 = arith.constant 0 : index
    %0 = vector.load %arg2[%c0, %c0_0] : memref<8x64xbf16, #tpu.memory_space<vmem>>, vector<8x64xbf16>
    %c0_1 = arith.constant 0 : index
    %c0_2 = arith.constant 0 : index
    %1 = vector.load %arg3[%c0_1, %c0_2] : memref<64x128xbf16, #tpu.memory_space<vmem>>, vector<64x128xbf16>
    %cst = arith.constant dense<0.000000e+00> : vector<8x128xf32>
    %2 = tpu.matmul %0, %1, %cst {dimension_numbers = #tpu.dot_dimension_numbers<[1], [0], [0], [1], [0, 0, 1, 1], [], []>} : vector<8x64xbf16>, vector<64x128xbf16>, vector<8x128xf32> -> vector<8x128xf32>
    %c0_3 = arith.constant 0 : index
    %c0_4 = arith.constant 0 : index
    %3 = vector.load %arg4[%c0_3, %c0_4] : memref<1x128xf32, #tpu.memory_space<vmem>>, vector<1x128xf32>
    %4 = vector.broadcast %3 : vector<1x128xf32> to vector<8x128xf32>
    %5 = arith.addf %2, %4 : vector<8x128xf32>
    %6 = arith.truncf %5 : vector<8x128xf32> to vector<8x128xbf16>
    %c0_5 = arith.constant 0 : index
    %c0_6 = arith.constant 0 : index
    %7 = vector.load %arg5[%c0_5, %c0_6] : memref<8x128xbf16, #tpu.memory_space<vmem>>, vector<8x128xbf16>
    tpu.vector_store %arg5[%c0_5, %c0_6], %6 {strides = array<i32>} : memref<8x128xbf16, #tpu.memory_space<vmem>>, vector<8x128xbf16>,
    return
  }
  func.func @transform_0(%arg0: i32, %arg1: i32) -> (i32, i32) {
    %c0_i32 = arith.constant 0 : i32
    return %arg0, %arg1 : i32, i32
  }
  func.func @transform_1(%arg0: i32, %arg1: i32) -> (i32, i32) {
    %c0_i32 = arith.constant 0 : i32
    %c0_i32_0 = arith.constant 0 : i32
    return %arg1, %c0_i32 : i32, i32
  }
  func.func @transform_2(%arg0: i32, %arg1: i32) -> (i32, i32) {
    %c0_i32 = arith.constant 0 : i32
    %c0_i32_0 = arith.constant 0 : i32
    %c0_i32_1 = arith.constant 0 : i32
    return %c0_i32, %c0_i32_0 : i32, i32
  }
  func.func @transform_3(%arg0: i32, %arg1: i32) -> (i32, i32) {
    %c0_i32 = arith.constant 0 : i32
    %c0_i32_0 = arith.constant 0 : i32
    return %arg0, %c0_i32 : i32, i32
  }
}

module attributes {stable_mosaic.version = 11 : i64} {
  func.func @_fused_matmul_kernel(%arg0: i32, %arg1: i32, %arg2: memref<8x1152xbf16, #tpu.memory_space<vmem>>, %arg3: memref<1152x128xbf16, #tpu.memory_space<vmem>>, %arg4: memref<1x128xf32, #tpu.memory_space<vmem>>, %arg5: memref<8x128xbf16, #tpu.memory_space<vmem>>, %arg6: memref<8x128xbf16, #tpu.memory_space<vmem>>) attributes {dimension_semantics = [#tpu.dimension_semantics<parallel>, #tpu.dimension_semantics<arbitrary>], iteration_bounds = array<i64: 1, 1>, scalar_prefetch = 0 : i64, scratch_operands = 0 : i64, tpu.core_type = #tpu.core_type<tc>, window_params = [{transform_indices = @transform_0, window_bounds = array<i64: 8, 1152>}, {transform_indices = @transform_1, window_bounds = array<i64: 1152, 128>}, {pipeline_mode = #tpu.pipeline_mode<synchronous>, transform_indices = @transform_2, window_bounds = array<i64: 1, 128>}, {transform_indices = @transform_3, window_bounds = array<i64: 8, 128>}, {transform_indices = @transform_4, window_bounds = array<i64: 8, 128>}]} {
    %c0 = arith.constant 0 : index
    %c0_0 = arith.constant 0 : index
    %0 = vector.load %arg2[%c0, %c0_0] : memref<8x1152xbf16, #tpu.memory_space<vmem>>, vector<8x1152xbf16>
    %c0_1 = arith.constant 0 : index
    %c0_2 = arith.constant 0 : index
    %1 = vector.load %arg3[%c0_1, %c0_2] : memref<1152x128xbf16, #tpu.memory_space<vmem>>, vector<1152x128xbf16>
    %cst = arith.constant dense<0.000000e+00> : vector<8x128xf32>
    %2 = tpu.matmul %0, %1, %cst {dimension_numbers = #tpu.dot_dimension_numbers<[1], [0], [0], [1], [0, 0, 1, 1], [], []>} : vector<8x1152xbf16>, vector<1152x128xbf16>, vector<8x128xf32> -> vector<8x128xf32>
    %c0_3 = arith.constant 0 : index
    %c0_4 = arith.constant 0 : index
    %3 = vector.load %arg4[%c0_3, %c0_4] : memref<1x128xf32, #tpu.memory_space<vmem>>, vector<1x128xf32>
    %4 = vector.broadcast %3 : vector<1x128xf32> to vector<8x128xf32>
    %5 = arith.addf %2, %4 : vector<8x128xf32>
    %c0_5 = arith.constant 0 : index
    %c0_6 = arith.constant 0 : index
    %6 = vector.load %arg5[%c0_5, %c0_6] : memref<8x128xbf16, #tpu.memory_space<vmem>>, vector<8x128xbf16>
    %7 = arith.extf %6 : vector<8x128xbf16> to vector<8x128xf32>
    %8 = arith.addf %5, %7 : vector<8x128xf32>
    %cst_7 = arith.constant 0.000000e+00 : f32
    %9 = vector.broadcast %cst_7 : f32 to vector<8x128xf32>
    %10 = arith.maximumf %8, %9 : vector<8x128xf32>
    %11 = arith.truncf %10 : vector<8x128xf32> to vector<8x128xbf16>
    %c0_8 = arith.constant 0 : index
    %c0_9 = arith.constant 0 : index
    %12 = vector.load %arg6[%c0_8, %c0_9] : memref<8x128xbf16, #tpu.memory_space<vmem>>, vector<8x128xbf16>
    tpu.vector_store %arg6[%c0_8, %c0_9], %11 {strides = array<i32>} : memref<8x128xbf16, #tpu.memory_space<vmem>>, vector<8x128xbf16>,
    return
  }
  func.func @transform_0(%arg0: i32, %arg1: i32) -> (i32, i32) {
    %c0_i32 = arith.constant 0 : i32
    return %arg0, %arg1 : i32, i32
  }
  func.func @transform_1(%arg0: i32, %arg1: i32) -> (i32, i32) {
    %c0_i32 = arith.constant 0 : i32
    %c0_i32_0 = arith.constant 0 : i32
    return %arg1, %c0_i32 : i32, i32
  }
  func.func @transform_2(%arg0: i32, %arg1: i32) -> (i32, i32) {
    %c0_i32 = arith.constant 0 : i32
    %c0_i32_0 = arith.constant 0 : i32
    %c0_i32_1 = arith.constant 0 : i32
    return %c0_i32, %c0_i32_0 : i32, i32
  }
  func.func @transform_3(%arg0: i32, %arg1: i32) -> (i32, i32) {
    %c0_i32 = arith.constant 0 : i32
    %c0_i32_0 = arith.constant 0 : i32
    return %arg0, %c0_i32 : i32, i32
  }
  func.func @transform_4(%arg0: i32, %arg1: i32) -> (i32, i32) {
    %c0_i32 = arith.constant 0 : i32
    %c0_i32_0 = arith.constant 0 : i32
    return %arg0, %c0_i32 : i32, i32
  }
}

module attributes {stable_mosaic.version = 11 : i64} {
  func.func @_fused_matmul_kernel(%arg0: i32, %arg1: i32, %arg2: memref<8x128xbf16, #tpu.memory_space<vmem>>, %arg3: memref<128x256xbf16, #tpu.memory_space<vmem>>, %arg4: memref<1x256xf32, #tpu.memory_space<vmem>>, %arg5: memref<8x256xf32, #tpu.memory_space<vmem>>) attributes {dimension_semantics = [#tpu.dimension_semantics<parallel>, #tpu.dimension_semantics<arbitrary>], iteration_bounds = array<i64: 1, 1>, scalar_prefetch = 0 : i64, scratch_operands = 0 : i64, tpu.core_type = #tpu.core_type<tc>, window_params = [{transform_indices = @transform_0, window_bounds = array<i64: 8, 128>}, {transform_indices = @transform_1, window_bounds = array<i64: 128, 256>}, {pipeline_mode = #tpu.pipeline_mode<synchronous>, transform_indices = @transform_2, window_bounds = array<i64: 1, 256>}, {transform_indices = @transform_3, window_bounds = array<i64: 8, 256>}]} {
    %c0 = arith.constant 0 : index
    %c0_0 = arith.constant 0 : index
    %0 = vector.load %arg2[%c0, %c0_0] : memref<8x128xbf16, #tpu.memory_space<vmem>>, vector<8x128xbf16>
    %c0_1 = arith.constant 0 : index
    %c0_2 = arith.constant 0 : index
    %1 = vector.load %arg3[%c0_1, %c0_2] : memref<128x256xbf16, #tpu.memory_space<vmem>>, vector<128x256xbf16>
    %cst = arith.constant dense<0.000000e+00> : vector<8x256xf32>
    %2 = tpu.matmul %0, %1, %cst {dimension_numbers = #tpu.dot_dimension_numbers<[1], [0], [0], [1], [0, 0, 1, 1], [], []>} : vector<8x128xbf16>, vector<128x256xbf16>, vector<8x256xf32> -> vector<8x256xf32>
    %c0_3 = arith.constant 0 : index
    %c0_4 = arith.constant 0 : index
    %3 = vector.load %arg4[%c0_3, %c0_4] : memref<1x256xf32, #tpu.memory_space<vmem>>, vector<1x256xf32>
    %4 = vector.broadcast %3 : vector<1x256xf32> to vector<8x256xf32>
    %5 = arith.addf %2, %4 : vector<8x256xf32>
    %c0_5 = arith.constant 0 : index
    %c0_6 = arith.constant 0 : index
    %6 = vector.load %arg5[%c0_5, %c0_6] : memref<8x256xf32, #tpu.memory_space<vmem>>, vector<8x256xf32>
    tpu.vector_store %arg5[%c0_5, %c0_6], %5 {strides = array<i32>} : memref<8x256xf32, #tpu.memory_space<vmem>>, vector<8x256xf32>,
    return
  }
  func.func @transform_0(%arg0: i32, %arg1: i32) -> (i32, i32) {
    %c0_i32 = arith.constant 0 : i32
    return %arg0, %arg1 : i32, i32
  }
  func.func @transform_1(%arg0: i32, %arg1: i32) -> (i32, i32) {
    %c0_i32 = arith.constant 0 : i32
    %c0_i32_0 = arith.constant 0 : i32
    return %arg1, %c0_i32 : i32, i32
  }
  func.func @transform_2(%arg0: i32, %arg1: i32) -> (i32, i32) {
    %c0_i32 = arith.constant 0 : i32
    %c0_i32_0 = arith.constant 0 : i32
    %c0_i32_1 = arith.constant 0 : i32
    return %c0_i32, %c0_i32_0 : i32, i32
  }
  func.func @transform_3(%arg0: i32, %arg1: i32) -> (i32, i32) {
    %c0_i32 = arith.constant 0 : i32
    %c0_i32_0 = arith.constant 0 : i32
    return %arg0, %c0_i32 : i32, i32
  }
}

module attributes {stable_mosaic.version = 11 : i64} {
  func.func @_fused_matmul_kernel(%arg0: i32, %arg1: i32, %arg2: memref<8x1152xbf16, #tpu.memory_space<vmem>>, %arg3: memref<1152x128xbf16, #tpu.memory_space<vmem>>, %arg4: memref<1x128xf32, #tpu.memory_space<vmem>>, %arg5: memref<8x128xbf16, #tpu.memory_space<vmem>>) attributes {dimension_semantics = [#tpu.dimension_semantics<parallel>, #tpu.dimension_semantics<arbitrary>], iteration_bounds = array<i64: 1, 1>, scalar_prefetch = 0 : i64, scratch_operands = 0 : i64, tpu.core_type = #tpu.core_type<tc>, window_params = [{transform_indices = @transform_0, window_bounds = array<i64: 8, 1152>}, {transform_indices = @transform_1, window_bounds = array<i64: 1152, 128>}, {pipeline_mode = #tpu.pipeline_mode<synchronous>, transform_indices = @transform_2, window_bounds = array<i64: 1, 128>}, {transform_indices = @transform_3, window_bounds = array<i64: 8, 128>}]} {
    %c0 = arith.constant 0 : index
    %c0_0 = arith.constant 0 : index
    %0 = vector.load %arg2[%c0, %c0_0] : memref<8x1152xbf16, #tpu.memory_space<vmem>>, vector<8x1152xbf16>
    %c0_1 = arith.constant 0 : index
    %c0_2 = arith.constant 0 : index
    %1 = vector.load %arg3[%c0_1, %c0_2] : memref<1152x128xbf16, #tpu.memory_space<vmem>>, vector<1152x128xbf16>
    %cst = arith.constant dense<0.000000e+00> : vector<8x128xf32>
    %2 = tpu.matmul %0, %1, %cst {dimension_numbers = #tpu.dot_dimension_numbers<[1], [0], [0], [1], [0, 0, 1, 1], [], []>} : vector<8x1152xbf16>, vector<1152x128xbf16>, vector<8x128xf32> -> vector<8x128xf32>
    %c0_3 = arith.constant 0 : index
    %c0_4 = arith.constant 0 : index
    %3 = vector.load %arg4[%c0_3, %c0_4] : memref<1x128xf32, #tpu.memory_space<vmem>>, vector<1x128xf32>
    %4 = vector.broadcast %3 : vector<1x128xf32> to vector<8x128xf32>
    %5 = arith.addf %2, %4 : vector<8x128xf32>
    %cst_5 = arith.constant 0.000000e+00 : f32
    %6 = vector.broadcast %cst_5 : f32 to vector<8x128xf32>
    %7 = arith.maximumf %5, %6 : vector<8x128xf32>
    %8 = arith.truncf %7 : vector<8x128xf32> to vector<8x128xbf16>
    %c0_6 = arith.constant 0 : index
    %c0_7 = arith.constant 0 : index
    %9 = vector.load %arg5[%c0_6, %c0_7] : memref<8x128xbf16, #tpu.memory_space<vmem>>, vector<8x128xbf16>
    tpu.vector_store %arg5[%c0_6, %c0_7], %8 {strides = array<i32>} : memref<8x128xbf16, #tpu.memory_space<vmem>>, vector<8x128xbf16>,
    return
  }
  func.func @transform_0(%arg0: i32, %arg1: i32) -> (i32, i32) {
    %c0_i32 = arith.constant 0 : i32
    return %arg0, %arg1 : i32, i32
  }
  func.func @transform_1(%arg0: i32, %arg1: i32) -> (i32, i32) {
    %c0_i32 = arith.constant 0 : i32
    %c0_i32_0 = arith.constant 0 : i32
    return %arg1, %c0_i32 : i32, i32
  }
  func.func @transform_2(%arg0: i32, %arg1: i32) -> (i32, i32) {
    %c0_i32 = arith.constant 0 : i32
    %c0_i32_0 = arith.constant 0 : i32
    %c0_i32_1 = arith.constant 0 : i32
    return %c0_i32, %c0_i32_0 : i32, i32
  }
  func.func @transform_3(%arg0: i32, %arg1: i32) -> (i32, i32) {
    %c0_i32 = arith.constant 0 : i32
    %c0_i32_0 = arith.constant 0 : i32
    return %arg0, %c0_i32 : i32, i32
  }
}

module attributes {stable_mosaic.version = 11 : i64} {
  func.func @_lstm_fc_kernel(%arg0: i32, %arg1: memref<1x2x256xf32, #tpu.memory_space<vmem>>, %arg2: memref<64x256xbf16, #tpu.memory_space<vmem>>, %arg3: memref<64x10xbf16, #tpu.memory_space<vmem>>, %arg4: memref<1x10xf32, #tpu.memory_space<vmem>>, %arg5: memref<2x10xf32, #tpu.memory_space<vmem>>, %arg6: memref<2x64xf32, #tpu.memory_space<vmem>>, %arg7: memref<2x64xf32, #tpu.memory_space<vmem>>) attributes {dimension_semantics = [#tpu.dimension_semantics<arbitrary>], iteration_bounds = array<i64: 4>, scalar_prefetch = 0 : i64, scratch_operands = 2 : i64, tpu.core_type = #tpu.core_type<tc>, window_params = [{transform_indices = @transform_0, window_bounds = array<i64: 1, 2, 256>}, {pipeline_mode = #tpu.pipeline_mode<synchronous>, transform_indices = @transform_1, window_bounds = array<i64: 64, 256>}, {pipeline_mode = #tpu.pipeline_mode<synchronous>, transform_indices = @transform_2, window_bounds = array<i64: 64, 10>}, {pipeline_mode = #tpu.pipeline_mode<synchronous>, transform_indices = @transform_3, window_bounds = array<i64: 1, 10>}, {pipeline_mode = #tpu.pipeline_mode<synchronous>, transform_indices = @transform_4, window_bounds = array<i64: 2, 10>}]} {
    %c0_i32 = arith.constant 0 : i32
    %0 = arith.cmpi eq, %arg0, %c0_i32 : i32
    %1 = arith.extui %0 : i1 to i32
    %c0_i32_0 = arith.constant 0 : i32
    %2 = arith.cmpi ne, %1, %c0_i32_0 : i32
    scf.if %2 {
      %cst_17 = arith.constant 0.000000e+00 : f32
      %41 = vector.broadcast %cst_17 : f32 to vector<2x64xf32>
      %c0_18 = arith.constant 0 : index
      %c0_19 = arith.constant 0 : index
      %42 = vector.load %arg6[%c0_18, %c0_19] : memref<2x64xf32, #tpu.memory_space<vmem>>, vector<2x64xf32>
      tpu.vector_store %arg6[%c0_18, %c0_19], %41 {strides = array<i32>} : memref<2x64xf32, #tpu.memory_space<vmem>>, vector<2x64xf32>,
      %cst_20 = arith.constant 0.000000e+00 : f32
      %43 = vector.broadcast %cst_20 : f32 to vector<2x64xf32>
      %c0_21 = arith.constant 0 : index
      %c0_22 = arith.constant 0 : index
      %44 = vector.load %arg7[%c0_21, %c0_22] : memref<2x64xf32, #tpu.memory_space<vmem>>, vector<2x64xf32>
      tpu.vector_store %arg7[%c0_21, %c0_22], %43 {strides = array<i32>} : memref<2x64xf32, #tpu.memory_space<vmem>>, vector<2x64xf32>,
    } else {
    }
    %c0 = arith.constant 0 : index
    %c0_1 = arith.constant 0 : index
    %c0_2 = arith.constant 0 : index
    %3 = vector.load %arg1[%c0, %c0_1, %c0_2] : memref<1x2x256xf32, #tpu.memory_space<vmem>>, vector<1x2x256xf32>
    %4 = vector.shape_cast %3 : vector<1x2x256xf32> to vector<2x256xf32>
    %c0_3 = arith.constant 0 : index
    %c0_4 = arith.constant 0 : index
    %5 = vector.load %arg6[%c0_3, %c0_4] : memref<2x64xf32, #tpu.memory_space<vmem>>, vector<2x64xf32>
    %6 = arith.truncf %5 : vector<2x64xf32> to vector<2x64xbf16>
    %c0_5 = arith.constant 0 : index
    %c0_6 = arith.constant 0 : index
    %7 = vector.load %arg2[%c0_5, %c0_6] : memref<64x256xbf16, #tpu.memory_space<vmem>>, vector<64x256xbf16>
    %cst = arith.constant dense<0.000000e+00> : vector<2x256xf32>
    %8 = tpu.matmul %6, %7, %cst {dimension_numbers = #tpu.dot_dimension_numbers<[1], [0], [0], [1], [0, 0, 1, 1], [], []>} : vector<2x64xbf16>, vector<64x256xbf16>, vector<2x256xf32> -> vector<2x256xf32>
    %9 = arith.addf %4, %8 : vector<2x256xf32>
    %10 = vector.extract_strided_slice %9 {offsets = [0, 0], sizes = [2, 64], strides = [1, 1]} : vector<2x256xf32> to vector<2x64xf32>
    %11 = arith.negf %10 : vector<2x64xf32>
    %12 = math.exp %11 : vector<2x64xf32>
    %cst_7 = arith.constant 1.000000e+00 : f32
    %13 = vector.broadcast %cst_7 : f32 to vector<2x64xf32>
    %14 = arith.addf %13, %12 : vector<2x64xf32>
    %15 = arith.divf %13, %14 : vector<2x64xf32>
    %16 = vector.extract_strided_slice %9 {offsets = [0, 64], sizes = [2, 64], strides = [1, 1]} : vector<2x256xf32> to vector<2x64xf32>
    %17 = arith.negf %16 : vector<2x64xf32>
    %18 = math.exp %17 : vector<2x64xf32>
    %cst_8 = arith.constant 1.000000e+00 : f32
    %19 = vector.broadcast %cst_8 : f32 to vector<2x64xf32>
    %20 = arith.addf %19, %18 : vector<2x64xf32>
    %21 = arith.divf %19, %20 : vector<2x64xf32>
    %22 = vector.extract_strided_slice %9 {offsets = [0, 128], sizes = [2, 64], strides = [1, 1]} : vector<2x256xf32> to vector<2x64xf32>
    %23 = math.tanh %22 : vector<2x64xf32>
    %24 = vector.extract_strided_slice %9 {offsets = [0, 192], sizes = [2, 64], strides = [1, 1]} : vector<2x256xf32> to vector<2x64xf32>
    %25 = arith.negf %24 : vector<2x64xf32>
    %26 = math.exp %25 : vector<2x64xf32>
    %cst_9 = arith.constant 1.000000e+00 : f32
    %27 = vector.broadcast %cst_9 : f32 to vector<2x64xf32>
    %28 = arith.addf %27, %26 : vector<2x64xf32>
    %29 = arith.divf %27, %28 : vector<2x64xf32>
    %c0_10 = arith.constant 0 : index
    %c0_11 = arith.constant 0 : index
    %30 = vector.load %arg7[%c0_10, %c0_11] : memref<2x64xf32, #tpu.memory_space<vmem>>, vector<2x64xf32>
    %31 = arith.mulf %21, %30 : vector<2x64xf32>
    %32 = arith.mulf %15, %23 : vector<2x64xf32>
    %33 = arith.addf %31, %32 : vector<2x64xf32>
    %34 = math.tanh %33 : vector<2x64xf32>
    %35 = arith.mulf %29, %34 : vector<2x64xf32>
    %c0_12 = arith.constant 0 : index
    %c0_13 = arith.constant 0 : index
    %36 = vector.load %arg7[%c0_12, %c0_13] : memref<2x64xf32, #tpu.memory_space<vmem>>, vector<2x64xf32>
    tpu.vector_store %arg7[%c0_12, %c0_13], %33 {strides = array<i32>} : memref<2x64xf32, #tpu.memory_space<vmem>>, vector<2x64xf32>,
    %c0_14 = arith.constant 0 : index
    %c0_15 = arith.constant 0 : index
    %37 = vector.load %arg6[%c0_14, %c0_15] : memref<2x64xf32, #tpu.memory_space<vmem>>, vector<2x64xf32>
    tpu.vector_store %arg6[%c0_14, %c0_15], %35 {strides = array<i32>} : memref<2x64xf32, #tpu.memory_space<vmem>>, vector<2x64xf32>,
    %c3_i32 = arith.constant 3 : i32
    %38 = arith.cmpi eq, %arg0, %c3_i32 : i32
    %39 = arith.extui %38 : i1 to i32
    %c0_i32_16 = arith.constant 0 : i32
    %40 = arith.cmpi ne, %39, %c0_i32_16 : i32
    scf.if %40 {
      %41 = arith.truncf %35 : vector<2x64xf32> to vector<2x64xbf16>
      %c0_17 = arith.constant 0 : index
      %c0_18 = arith.constant 0 : index
      %42 = vector.load %arg3[%c0_17, %c0_18] : memref<64x10xbf16, #tpu.memory_space<vmem>>, vector<64x10xbf16>
      %cst_19 = arith.constant dense<0.000000e+00> : vector<2x10xf32>
      %43 = tpu.matmul %41, %42, %cst_19 {dimension_numbers = #tpu.dot_dimension_numbers<[1], [0], [0], [1], [0, 0, 1, 1], [], []>} : vector<2x64xbf16>, vector<64x10xbf16>, vector<2x10xf32> -> vector<2x10xf32>
      %c0_20 = arith.constant 0 : index
      %c0_21 = arith.constant 0 : index
      %44 = vector.load %arg4[%c0_20, %c0_21] : memref<1x10xf32, #tpu.memory_space<vmem>>, vector<1x10xf32>
      %45 = vector.broadcast %44 : vector<1x10xf32> to vector<2x10xf32>
      %46 = arith.addf %43, %45 : vector<2x10xf32>
      %c0_22 = arith.constant 0 : index
      %c0_23 = arith.constant 0 : index
      %47 = vector.load %arg5[%c0_22, %c0_23] : memref<2x10xf32, #tpu.memory_space<vmem>>, vector<2x10xf32>
      tpu.vector_store %arg5[%c0_22, %c0_23], %46 {strides = array<i32>} : memref<2x10xf32, #tpu.memory_space<vmem>>, vector<2x10xf32>,
    } else {
    }
    return
  }
  func.func @transform_0(%arg0: i32) -> (i32, i32, i32) {
    %c0_i32 = arith.constant 0 : i32
    %c0_i32_0 = arith.constant 0 : i32
    %c0_i32_1 = arith.constant 0 : i32
    return %arg0, %c0_i32, %c0_i32_0 : i32, i32, i32
  }
  func.func @transform_1(%arg0: i32) -> (i32, i32) {
    %c0_i32 = arith.constant 0 : i32
    %c0_i32_0 = arith.constant 0 : i32
    %c0_i32_1 = arith.constant 0 : i32
    return %c0_i32, %c0_i32_0 : i32, i32
  }
  func.func @transform_2(%arg0: i32) -> (i32, i32) {
    %c0_i32 = arith.constant 0 : i32
    %c0_i32_0 = arith.constant 0 : i32
    %c0_i32_1 = arith.constant 0 : i32
    return %c0_i32, %c0_i32_0 : i32, i32
  }
  func.func @transform_3(%arg0: i32) -> (i32, i32) {
    %c0_i32 = arith.constant 0 : i32
    %c0_i32_0 = arith.constant 0 : i32
    %c0_i32_1 = arith.constant 0 : i32
    return %c0_i32, %c0_i32_0 : i32, i32
  }
  func.func @transform_4(%arg0: i32) -> (i32, i32) {
    %c0_i32 = arith.constant 0 : i32
    %c0_i32_0 = arith.constant 0 : i32
    %c0_i32_1 = arith.constant 0 : i32
    return %c0_i32, %c0_i32_0 : i32, i32
  }
}

</mosaic_0001>

<llo_original>
// kernel: _lambda_.23
$region0: #{_lambda_.23}
  #allocation0 [shape = 'u32[]', space=smem, size = 0x4, offset = 0x4, fixed_abs, tag = 'smem constant byte address 0x4 - core index']
  #allocation1 [shape = 'u32[144,128]{1,0:T(1,128)}', space=vmem, size = 0x12000, scoped, tag = 'internal scratch']
  %s0 = inlined_call_operand.vmem [shape: bf16[2048,147], index: 0, kind: input, shape index: {}]
  %s1 = inlined_call_operand.vmem [shape: bf16[147,16], index: 1, kind: input, shape index: {}]
  %s2 = inlined_call_operand.vmem [shape: f32[1,16], index: 2, kind: input, shape index: {}]
  %s3 = inlined_call_operand.vmem [shape: bf16[2048,16], index: 3, kind: output, shape index: {}]
  %s4 = sld [smem:[#allocation0]]
  $region45: #{_lambda_.23} parent=0
    _
  %s6 = ssub.s32 1, %s4
  %s7 = scalar_select 0, %s6, %s4
  loop: start=0, step=1, limit=10
  $region2: #{_lambda_.23} parent=0 // loop_pre_header
    _
  $region3: #{_lambda_.23} parent=0 // loop_header
    %s9 = sphi 0, %s13
    %p10 = scmp.ge.s32.totalorder %s9, 10
    %s16 = sphi 0, %s28
    %s17 = sphi 0, %s24
    %s18 = sphi 0, %s16
    %s19 = sphi 0, %s17
    %s20 = sphi 0, %s18
    %s21 = sphi 0, %s19
    %s33 = sphi 0, %s35
    %s36 = sphi 0, %s33
    %s37 = sphi 0, %s36
    %s53 = sphi 0, %s37
    %s59 = sphi 0, %s61
    %s62 = sphi 0, %s59
    %s63 = sphi 0, %s62
    %s79 = sphi 0, %s63
    %s83 = sphi 0, %s83
    %s85 = sphi 0, %s83
    %s86 = sphi 0, %s85
    %s100 = sphi 0, %s86
    %s106 = sphi 0, %s108
    %s109 = sphi 0, %s106
    %s110 = sphi 0, %s109
    %s126 = sphi 0, %s110
  $region4: #{_lambda_.23} parent=0 // loop_header_branch
    %12 = sbr.rel (%p10) target = $region8
  $region5: #{_lambda_.23} parent=0 // loop_body
    %s14 = ssub.s32 %s9, 1
    %s15 = ssub.s32 %s9, 2
    %s22 = sadd.s32 1, %s17
    %p23 = scmp.ge.s32.totalorder %s22, 1
    %s24 = scalar_select %p23, 0, %s22
    %s25 = sadd.s32 1, %s16
    %s26 = scalar_select %p23, %s25, %s16
    %p27 = scmp.ge.s32.totalorder %s26, 8
    %s28 = scalar_select %p27, 0, %s26
    %s29 = ssub.s32 %s16, %s28
    %s30 = ssub.s32 %s17, %s24
    %s31 = sor.u32 %s29, %s30
    %p32 = scmp.eq.s32.totalorder %s31, 0
    %s34 = sadd.s32 %s33, 1
    %s35 = scalar_select %p32, %s33, %s34
    %p38 = pneg %p32
    %p39 = scmp.eq.s32.totalorder %s9, 7
    %p40 = por %p38, %p39
    %p41 = scmp.ne.s32.totalorder %s33, %s36
    %p42 = scmp.eq.s32.totalorder %s9, 0
    %p43 = por %p41, %p42
    %p44 = scmp.ne.s32.totalorder %s33, %s36
    %p45 = scmp.eq.s32.totalorder %s14, 7
    %p46 = por %p44, %p45
    %p47 = scmp.ne.s32.totalorder %s36, %s37
    %p48 = scmp.eq.s32.totalorder %s14, 0
    %p49 = por %p47, %p48
    %p50 = scmp.ne.s32.totalorder %s36, %s37
    %p51 = scmp.eq.s32.totalorder %s15, 7
    %p52 = por %p50, %p51
    %p54 = scmp.ne.s32.totalorder %s37, %s53
    %p55 = scmp.eq.s32.totalorder %s15, 0
    %p56 = por %p54, %p55
    %s57 = ssub.s32 %s17, %s24
    %p58 = scmp.eq.s32.totalorder %s57, 0
    %s60 = sadd.s32 %s59, 1
    %s61 = scalar_select %p58, %s59, %s60
    %p64 = pneg %p58
    %p65 = scmp.eq.s32.totalorder %s9, 7
    %p66 = por %p64, %p65
    %p67 = scmp.ne.s32.totalorder %s59, %s62
    %p68 = scmp.eq.s32.totalorder %s9, 0
    %p69 = por %p67, %p68
    %p70 = scmp.ne.s32.totalorder %s59, %s62
    %p71 = scmp.eq.s32.totalorder %s14, 7
    %p72 = por %p70, %p71
    %p73 = scmp.ne.s32.totalorder %s62, %s63
    %p74 = scmp.eq.s32.totalorder %s14, 0
    %p75 = por %p73, %p74
    %p76 = scmp.ne.s32.totalorder %s62, %s63
    %p77 = scmp.eq.s32.totalorder %s15, 7
    %p78 = por %p76, %p77
    %p80 = scmp.ne.s32.totalorder %s63, %s79
    %p81 = scmp.eq.s32.totalorder %s15, 0
    %p82 = por %p80, %p81
    %s84 = sadd.s32 %s83, 1
    %p87 = scmp.eq.s32.totalorder %s9, 7
    %p88 = scmp.ne.s32.totalorder %s83, %s85
    %p89 = scmp.eq.s32.totalorder %s9, 0
    %p90 = por %p88, %p89
    %p91 = scmp.ne.s32.totalorder %s83, %s85
    %p92 = scmp.eq.s32.totalorder %s14, 7
    %p93 = por %p91, %p92
    %p94 = scmp.ne.s32.totalorder %s85, %s86
    %p95 = scmp.eq.s32.totalorder %s14, 0
    %p96 = por %p94, %p95
    %p97 = scmp.ne.s32.totalorder %s85, %s86
    %p98 = scmp.eq.s32.totalorder %s15, 7
    %p99 = por %p97, %p98
    %p101 = scmp.ne.s32.totalorder %s86, %s100
    %p102 = scmp.eq.s32.totalorder %s15, 0
    %p103 = por %p101, %p102
    %s104 = ssub.s32 %s16, %s28
    %p105 = scmp.eq.s32.totalorder %s104, 0
    %s107 = sadd.s32 %s106, 1
    %s108 = scalar_select %p105, %s106, %s107
    %p111 = pneg %p105
    %p112 = scmp.eq.s32.totalorder %s9, 7
    %p113 = por %p111, %p112
    %p114 = scmp.ne.s32.totalorder %s106, %s109
    %p115 = scmp.eq.s32.totalorder %s9, 0
    %p116 = por %p114, %p115
    %p117 = scmp.ne.s32.totalorder %s106, %s109
    %p118 = scmp.eq.s32.totalorder %s14, 7
    %p119 = por %p117, %p118
    %p120 = scmp.ne.s32.totalorder %s109, %s110
    %p121 = scmp.eq.s32.totalorder %s14, 0
    %p122 = por %p120, %p121
    %p123 = scmp.ne.s32.totalorder %s109, %s110
    %p124 = scmp.eq.s32.totalorder %s15, 7
    %p125 = por %p123, %p124
    %p127 = scmp.ne.s32.totalorder %s110, %s126
    %p128 = scmp.eq.s32.totalorder %s15, 0
    %p129 = por %p127, %p128
    %p130 = scmp.le.s32.totalorder 1, %s9
    %p131 = scmp.lt.s32.totalorder %s9, 9
    %p132 = pnand %p130, %p131
    %p133 = pneg %p132
    // Predicated region
    $region9: #{_lambda_.23} parent=5 // pred_check
      _
    $region10: #{_lambda_.23} parent=5 // pred_check_branch
      %135 = sbr.rel (%p132) target = $region12
    $region11: #{_lambda_.23} parent=5 // pred_region
      %s136 = ssub.s32 %s9, 1
      // Predicated region
      $region13: #{_lambda_.23} parent=11 // pred_check
        %p137 = pneg %p75
      $region14: #{_lambda_.23} parent=11 // pred_check_branch
        %139 = sbr.rel (%p137) target = $region16
      $region15: #{_lambda_.23} parent=11 // pred_region
        %s140 = smul.u32 19, %s19
        %p141 = scmp.lt.s32.totalorder %s140, 18
        %s142 = scalar_select %p141, %s140, 18
        %s143 = smul.addr %s142, 4
        %s144 = scalar_lea.vmem %s1, %s143
        %s145 = smul.u32 19, %s19
      $region16: #{_lambda_.23} parent=11 // pred_fallthru
        _
      // Predicated region
      $region17: #{_lambda_.23} parent=11 // pred_check
        %p146 = pneg %p96
      $region18: #{_lambda_.23} parent=11 // pred_check_branch
        %148 = sbr.rel (%p146) target = $region20
      $region19: #{_lambda_.23} parent=11 // pred_region
        _
      $region20: #{_lambda_.23} parent=11 // pred_fallthru
        _
    $region12: #{_lambda_.23} parent=5 // pred_fallthru
      _
    %p149 = scmp.lt.s32.totalorder %s9, 8
    // Predicated region
    $region21: #{_lambda_.23} parent=5 // pred_check
      %p150 = pneg %p149
    $region22: #{_lambda_.23} parent=5 // pred_check_branch
      %152 = sbr.rel (%p150) target = $region24
    $region23: #{_lambda_.23} parent=5 // pred_region
      // Predicated region
      $region25: #{_lambda_.23} parent=23 // pred_check
        %p153 = pneg %p43
      $region26: #{_lambda_.23} parent=23 // pred_check_branch
        %155 = sbr.rel (%p153) target = $region28
      $region27: #{_lambda_.23} parent=23 // pred_region
        %s156 = smul.u32 32, %s16
        %s157 = smul.u32 2, %s17
        %p158 = scmp.lt.s32.totalorder %s156, 255
        %s159 = scalar_select %p158, %s156, 255
        %p160 = scmp.lt.s32.totalorder %s157, 1
        %s161 = scalar_select %p160, %s157, 1
        %s162 = smul.addr %s159, 2
        %s163 = sadd.s32 %s161, %s162
        %s164 = smul.addr %s163, 4
        %s165 = scalar_lea.vmem %s0, %s164
        %s166 = smul.u32 32, %s16
        %s167 = smul.u32 2, %s17
      $region28: #{_lambda_.23} parent=23 // pred_fallthru
        _
    $region24: #{_lambda_.23} parent=5 // pred_fallthru
      _
    %p168 = scmp.le.s32.totalorder 1, %s9
    %p169 = scmp.lt.s32.totalorder %s9, 9
    %p170 = pnand %p168, %p169
    %p171 = pneg %p170
    // Predicated region
    $region29: #{_lambda_.23} parent=5 // pred_check
      _
    $region30: #{_lambda_.23} parent=5 // pred_check_branch
      %173 = sbr.rel (%p170) target = $region32
    $region31: #{_lambda_.23} parent=5 // pred_region
      %s174 = ssub.s32 %s9, 1
      %s175 = smul.u32 32, %s18
      %s176 = smul.u32 2, %s19
      %p177 = scmp.lt.s32.totalorder %s175, 255
      %s178 = scalar_select %p177, %s175, 255
      %p179 = scmp.lt.s32.totalorder %s176, 1
      %s180 = scalar_select %p179, %s176, 1
      %s181 = smul.addr %s178, 2
      %s182 = sadd.s32 %s180, %s181
      %s183 = smul.addr %s182, 4
      %s184 = scalar_lea.vmem %s0, %s183
      %p185 = pneg %p49
      %p186 = pneg %p46
      %s187 = smul.u32 19, %s19
      %p188 = scmp.lt.s32.totalorder %s187, 18
      %s189 = scalar_select %p188, %s187, 18
      %s190 = smul.addr %s189, 4
      %s191 = scalar_lea.vmem %s1, %s190
      %p192 = pneg %p75
      %p193 = pneg %p72
      %p194 = pneg %p96
      %p195 = pneg %p93
      %p196 = pneg %p122
      %p197 = pneg %p119
      %s198 = smul.u32 32, %s18
      %p199 = scmp.lt.s32.totalorder %s198, 255
      %s200 = scalar_select %p199, %s198, 255
      %s201 = smul.addr %s200, 4
      %s202 = scalar_lea.vmem %s3, %s201
      %s203 = smul.u32 32, %s18
      %s204 = smul.u32 2, %s19
      %p205 = scmp.lt.s32.totalorder %s203, 255
      %s206 = scalar_select %p205, %s203, 255
      %p207 = scmp.lt.s32.totalorder %s204, 1
      %s208 = scalar_select %p207, %s204, 1
      %s209 = smul.addr %s206, 2
      %s210 = sadd.s32 %s208, %s209
      %s211 = smul.addr %s210, 4
      %s212 = scalar_lea.vmem %s0, %s211
      %s213 = smul.u32 32, %s18
      %s214 = smul.u32 2, %s19
      %s215 = smul.u32 19, %s19
      %p216 = scmp.lt.s32.totalorder %s215, 18
      %s217 = scalar_select %p216, %s215, 18
      %s218 = smul.addr %s217, 4
      %s219 = scalar_lea.vmem %s1, %s218
      %s220 = smul.u32 19, %s19
      %s221 = smul.u32 32, %s18
      %p222 = scmp.lt.s32.totalorder %s221, 255
      %s223 = scalar_select %p222, %s221, 255
      %s224 = smul.addr %s223, 4
      %s225 = scalar_lea.vmem %s3, %s224
      %s226 = smul.u32 32, %s18
      %v228 = vld [vmem:[%s212] sm:$0xff]
      %v229 = vld [vmem:[%s212 + $0x8] sm:$0xff]
      %v230 = vld [vmem:[%s212 + $0x10] sm:$0xff]
      %v231 = vld [vmem:[%s212 + $0x18] sm:$0xff]
      %v232 = vld [vmem:[%s212 + $0x20] sm:$0xff]
      %v233 = vld [vmem:[%s212 + $0x28] sm:$0xff]
      %v234 = vld [vmem:[%s212 + $0x30] sm:$0xff]
      %v235 = vld [vmem:[%s212 + $0x38] sm:$0xff]
      %v236 = vld [vmem:[%s212 + $0x40] sm:$0xff]
      %v237 = vld [vmem:[%s212 + $0x48] sm:$0xff]
      %v238 = vld [vmem:[%s212 + $0x50] sm:$0xff]
      %v239 = vld [vmem:[%s212 + $0x58] sm:$0xff]
      %v240 = vld [vmem:[%s212 + $0x60] sm:$0xff]
      %v241 = vld [vmem:[%s212 + $0x68] sm:$0xff]
      %v242 = vld [vmem:[%s212 + $0x70] sm:$0xff]
      %v243 = vld [vmem:[%s212 + $0x78] sm:$0xff]
      %v244 = vld [vmem:[%s212 + $0x80] sm:$0xff]
      %v245 = vld [vmem:[%s212 + $0x88] sm:$0xff]
      %v246 = vld [vmem:[%s212 + $0x90] sm:$0xff]
      %v247 = vld [vmem:[%s212 + $0x98] sm:$0xff]
      %v248 = vld [vmem:[%s212 + $0xa0] sm:$0xff]
      %v249 = vld [vmem:[%s212 + $0xa8] sm:$0xff]
      %v250 = vld [vmem:[%s212 + $0xb0] sm:$0xff]
      %v251 = vld [vmem:[%s212 + $0xb8] sm:$0xff]
      %v252 = vld [vmem:[%s212 + $0xc0] sm:$0xff]
      %v253 = vld [vmem:[%s212 + $0xc8] sm:$0xff]
      %v254 = vld [vmem:[%s212 + $0xd0] sm:$0xff]
      %v255 = vld [vmem:[%s212 + $0xd8] sm:$0xff]
      %v256 = vld [vmem:[%s212 + $0xe0] sm:$0xff]
      %v257 = vld [vmem:[%s212 + $0xe8] sm:$0xff]
      %v258 = vld [vmem:[%s212 + $0xf0] sm:$0xff]
      %v259 = vld [vmem:[%s212 + $0xf8] sm:$0xff]
      %v260 = vld [vmem:[%s219] sm:$0xf]
      %v261 = vld [vmem:[%s219 + $0x4] sm:$0xf]
      %v262 = vld [vmem:[%s219 + $0x8] sm:$0xf]
      %v263 = vld [vmem:[%s219 + $0xc] sm:$0xf]
      %v264 = vld [vmem:[%s219 + $0x10] sm:$0xf]
      %v265 = vld [vmem:[%s219 + $0x14] sm:$0xf]
      %v266 = vld [vmem:[%s219 + $0x18] sm:$0xf]
      %v267 = vld [vmem:[%s219 + $0x1c] sm:$0xf]
      %v268 = vld [vmem:[%s219 + $0x20] sm:$0xf]
      %v269 = vld [vmem:[%s219 + $0x24] sm:$0xf]
      %v270 = vld [vmem:[%s219 + $0x28] sm:$0xf]
      %v271 = vld [vmem:[%s219 + $0x2c] sm:$0xf]
      %v272 = vld [vmem:[%s219 + $0x30] sm:$0xf]
      %v273 = vld [vmem:[%s219 + $0x34] sm:$0xf]
      %v274 = vld [vmem:[%s219 + $0x38] sm:$0xf]
      %v275 = vld [vmem:[%s219 + $0x3c] sm:$0xf]
      %v276 = vld [vmem:[%s219 + $0x40] sm:$0xf]
      %v277 = vld [vmem:[%s219 + $0x44] sm:$0xf]
      %v278 = vld [vmem:[%s219 + $0x48] sm:$0x3]
      %v279 = vld [vmem:[%s2] sm:$0x1]
      %v281 = vlaneseq
      %v282 = vshrl.u32 %v281, 7
      %v283 = vsub.s32 0, %v282
      %v284 = vrot.slane %v279, %v283
      %v318 = vunpack.c.l.b16 %v228
      %v319 = vunpack.c.h.b16 %v228
      %v320 = vunpack.c.l.b16 %v229
      %v321 = vunpack.c.h.b16 %v229
      %v322 = vunpack.c.l.b16 %v230
      %v323 = vunpack.c.h.b16 %v230
      %v324 = vunpack.c.l.b16 %v231
      %v325 = vunpack.c.h.b16 %v231
      %v326 = vunpack.c.l.b16 %v232
      %v327 = vunpack.c.h.b16 %v232
      %v328 = vunpack.c.l.b16 %v233
      %v329 = vunpack.c.h.b16 %v233
      %v330 = vunpack.c.l.b16 %v234
      %v331 = vunpack.c.h.b16 %v234
      %v332 = vunpack.c.l.b16 %v235
      %v333 = vunpack.c.h.b16 %v235
      %v334 = vunpack.c.l.b16 %v236
      %v335 = vunpack.c.h.b16 %v236
      %v336 = vunpack.c.l.b16 %v237
      %v337 = vunpack.c.h.b16 %v237
      %v338 = vunpack.c.l.b16 %v238
      %v339 = vunpack.c.h.b16 %v238
      %v340 = vunpack.c.l.b16 %v239
      %v341 = vunpack.c.h.b16 %v239
      %v342 = vunpack.c.l.b16 %v240
      %v343 = vunpack.c.h.b16 %v240
      %v344 = vunpack.c.l.b16 %v241
      %v345 = vunpack.c.h.b16 %v241
      %v346 = vunpack.c.l.b16 %v242
      %v347 = vunpack.c.h.b16 %v242
      %v348 = vunpack.c.l.b16 %v243
      %v349 = vunpack.c.h.b16 %v243
      %v350 = vunpack.c.l.b16 %v244
      %v351 = vunpack.c.h.b16 %v244
      %v352 = vunpack.c.l.b16 %v245
      %v353 = vunpack.c.h.b16 %v245
      %v354 = vunpack.c.l.b16 %v246
      %v355 = vunpack.c.h.b16 %v246
      %v356 = vunpack.c.l.b16 %v247
      %v357 = vunpack.c.h.b16 %v247
      %v358 = vunpack.c.l.b16 %v248
      %v359 = vunpack.c.h.b16 %v248
      %v360 = vunpack.c.l.b16 %v249
      %v361 = vunpack.c.h.b16 %v249
      %v362 = vunpack.c.l.b16 %v250
      %v363 = vunpack.c.h.b16 %v250
      %v364 = vunpack.c.l.b16 %v251
      %v365 = vunpack.c.h.b16 %v251
      %v366 = vunpack.c.l.b16 %v252
      %v367 = vunpack.c.h.b16 %v252
      %v368 = vunpack.c.l.b16 %v253
      %v369 = vunpack.c.h.b16 %v253
      %v370 = vunpack.c.l.b16 %v254
      %v371 = vunpack.c.h.b16 %v254
      %v372 = vunpack.c.l.b16 %v255
      %v373 = vunpack.c.h.b16 %v255
      %v374 = vunpack.c.l.b16 %v256
      %v375 = vunpack.c.h.b16 %v256
      %v376 = vunpack.c.l.b16 %v257
      %v377 = vunpack.c.h.b16 %v257
      %v378 = vunpack.c.l.b16 %v258
      %v379 = vunpack.c.h.b16 %v258
      %v380 = vunpack.c.l.b16 %v259
      %v381 = vunpack.c.h.b16 %v259
      %v382 = vpack.c.b16 %v320, %v318
      %v383 = vpack.c.b16 %v321, %v319
      %v384 = vpack.c.b16 %v324, %v322
      %v385 = vpack.c.b16 %v325, %v323
      %v386 = vpack.c.b16 %v328, %v326
      %v387 = vpack.c.b16 %v329, %v327
      %v388 = vpack.c.b16 %v332, %v330
      %v389 = vpack.c.b16 %v333, %v331
      %v390 = vpack.c.b16 %v336, %v334
      %v391 = vpack.c.b16 %v337, %v335
      %v392 = vpack.c.b16 %v340, %v338
      %v393 = vpack.c.b16 %v341, %v339
      %v394 = vpack.c.b16 %v344, %v342
      %v395 = vpack.c.b16 %v345, %v343
      %v396 = vpack.c.b16 %v348, %v346
      %v397 = vpack.c.b16 %v349, %v347
      %v398 = vpack.c.b16 %v352, %v350
      %v399 = vpack.c.b16 %v353, %v351
      %v400 = vpack.c.b16 %v356, %v354
      %v401 = vpack.c.b16 %v357, %v355
      %v402 = vpack.c.b16 %v360, %v358
      %v403 = vpack.c.b16 %v361, %v359
      %v404 = vpack.c.b16 %v364, %v362
      %v405 = vpack.c.b16 %v365, %v363
      %v406 = vpack.c.b16 %v368, %v366
      %v407 = vpack.c.b16 %v369, %v367
      %v408 = vpack.c.b16 %v372, %v370
      %v409 = vpack.c.b16 %v373, %v371
      %v410 = vpack.c.b16 %v376, %v374
      %v411 = vpack.c.b16 %v377, %v375
      %v412 = vpack.c.b16 %v380, %v378
      %v413 = vpack.c.b16 %v381, %v379
      %v449 = vunpack.c.l.b16 %v260
      %v450 = vunpack.c.l.b16 %v261
      %v451 = vunpack.c.l.b16 %v262
      %v452 = vunpack.c.l.b16 %v263
      %v453 = vunpack.c.l.b16 %v264
      %v454 = vunpack.c.l.b16 %v265
      %v455 = vunpack.c.l.b16 %v266
      %v456 = vunpack.c.l.b16 %v267
      %v457 = vunpack.c.l.b16 %v268
      %v458 = vunpack.c.l.b16 %v269
      %v459 = vunpack.c.l.b16 %v270
      %v460 = vunpack.c.l.b16 %v271
      %v461 = vunpack.c.l.b16 %v272
      %v462 = vunpack.c.l.b16 %v273
      %v463 = vunpack.c.l.b16 %v274
      %v464 = vunpack.c.l.b16 %v275
      %v465 = vunpack.c.l.b16 %v276
      %v466 = vunpack.c.l.b16 %v277
      %v467 = vunpack.c.l.b16 %v278
      %v468 = vpack.c.b16 %v450, %v449
      %v469 = vpack.c.b16 %v452, %v451
      %v470 = vpack.c.b16 %v454, %v453
      %v471 = vpack.c.b16 %v456, %v455
      %v472 = vpack.c.b16 %v458, %v457
      %v473 = vpack.c.b16 %v460, %v459
      %v474 = vpack.c.b16 %v462, %v461
      %v475 = vpack.c.b16 %v464, %v463
      %v476 = vpack.c.b16 %v466, %v465
      %v477 = vpack.c.b16 %v467, %v467
      %vm487 = vcmask 154624
      %v489 = vsel %vm487, %v383, 0
      %v492 = vsel %vm487, %v385, 0
      %v495 = vsel %vm487, %v387, 0
      %v498 = vsel %vm487, %v389, 0
      %v501 = vsel %vm487, %v391, 0
      %v504 = vsel %vm487, %v393, 0
      %v507 = vsel %vm487, %v395, 0
      %v510 = vsel %vm487, %v397, 0
      %v513 = vsel %vm487, %v399, 0
      %v516 = vsel %vm487, %v401, 0
      %v519 = vsel %vm487, %v403, 0
      %v522 = vsel %vm487, %v405, 0
      %v525 = vsel %vm487, %v407, 0
      %v528 = vsel %vm487, %v409, 0
      %v531 = vsel %vm487, %v411, 0
      %v534 = vsel %vm487, %v413, 0
      %vm536 = vcmask 1040384
      %vm537 = vcmask 1041408
      %v538 = vsel %vm536, 4294967295, 65535
      %v539 = vsel %vm537, %v538, 0
      %v541 = vand.u32 %v477, %v539
      %543 = vmatprep.subr.bf16.mxu0 0
      %544 = vmatpush1.bf16.msra.mxu0 %v468
      %545 = vmatprep.subr.bf16.mxu0 0
      %546 = vmatpush1.bf16.msra.mxu0 %v469
      %547 = vmatprep.subr.bf16.mxu0 0
      %548 = vmatpush1.bf16.msra.mxu0 %v470
      %549 = vmatprep.subr.bf16.mxu0 0
      %550 = vmatpush1.bf16.msra.mxu0 %v471
      %551 = vmatprep.subr.bf16.mxu0 0
      %552 = vmatpush1.bf16.msra.mxu0 %v472
      %553 = vmatprep.subr.bf16.mxu0 0
      %554 = vmatpush1.bf16.msra.mxu0 %v473
      %555 = vmatprep.subr.bf16.mxu0 0
      %556 = vmatpush1.bf16.msra.mxu0 %v474
      %557 = vmatprep.subr.bf16.mxu0 0
      %558 = vmatpush1.bf16.msra.mxu0 %v475
      %559 = vmatprep.subr.bf16.mxu0 0
      %560 = vmatpush1.bf16.msra.mxu0 %v476
      %561 = vmatprep.subr.bf16.mxu0 0
      %562 = vmatpush1.bf16.msra.mxu0 %v541
      %563 = vmatprep.subr.bf16.mxu0 0
      %564 = vmatpush1.bf16.msra.mxu0 0
      %565 = vmatprep.subr.bf16.mxu0 0
      %566 = vmatpush1.bf16.msra.mxu0 0
      %567 = vmatprep.subr.bf16.mxu0 0
      %568 = vmatpush1.bf16.msra.mxu0 0
      %569 = vmatprep.subr.bf16.mxu0 0
      %570 = vmatpush1.bf16.msra.mxu0 0
      %571 = vmatprep.subr.bf16.mxu0 0
      %572 = vmatpush1.bf16.msra.mxu0 0
      %573 = vmatprep.subr.bf16.mxu0 0
      %574 = vmatpush1.bf16.msra.mxu0 0
      %575 = vmatprep.mubr.bf16.mxu0 %v489
      %576 = vmatmul.mubr.bf16.gmra.mrb[0].mxu0 %v382
      %v577 = vpop.f32.mrb[0].mxu0
      %v578 = vadd.f32 %v284, %v577
      %v579 = vpop.f32.mrb[0].mxu0
      %v580 = vpop.f32.mrb[0].mxu0
      %v581 = vadd.f32 %v284, %v580
      %v582 = vpop.f32.mrb[0].mxu0
      %583 = vmatprep.mubr.bf16.mxu0 %v492
      %584 = vmatmul.mubr.bf16.gmra.mrb[0].mxu0 %v384
      %v585 = vpop.f32.mrb[0].mxu0
      %v586 = vadd.f32 %v284, %v585
      %v587 = vpop.f32.mrb[0].mxu0
      %v588 = vpop.f32.mrb[0].mxu0
      %v589 = vadd.f32 %v284, %v588
      %v590 = vpop.f32.mrb[0].mxu0
      %591 = vmatprep.mubr.bf16.mxu0 %v495
      %592 = vmatmul.mubr.bf16.gmra.mrb[0].mxu0 %v386
      %v593 = vpop.f32.mrb[0].mxu0
      %v594 = vadd.f32 %v284, %v593
      %v595 = vpop.f32.mrb[0].mxu0
      %v596 = vpop.f32.mrb[0].mxu0
      %v597 = vadd.f32 %v284, %v596
      %v598 = vpop.f32.mrb[0].mxu0
      %599 = vmatprep.mubr.bf16.mxu0 %v498
      %600 = vmatmul.mubr.bf16.gmra.mrb[0].mxu0 %v388
      %v601 = vpop.f32.mrb[0].mxu0
      %v602 = vadd.f32 %v284, %v601
      %v603 = vpop.f32.mrb[0].mxu0
      %v604 = vpop.f32.mrb[0].mxu0
      %v605 = vadd.f32 %v284, %v604
      %v606 = vpop.f32.mrb[0].mxu0
      %607 = vmatprep.mubr.bf16.mxu0 %v501
      %608 = vmatmul.mubr.bf16.gmra.mrb[0].mxu0 %v390
      %v609 = vpop.f32.mrb[0].mxu0
      %v610 = vadd.f32 %v284, %v609
      %v611 = vpop.f32.mrb[0].mxu0
      %v612 = vpop.f32.mrb[0].mxu0
      %v613 = vadd.f32 %v284, %v612
      %v614 = vpop.f32.mrb[0].mxu0
      %615 = vmatprep.mubr.bf16.mxu0 %v504
      %616 = vmatmul.mubr.bf16.gmra.mrb[0].mxu0 %v392
      %v617 = vpop.f32.mrb[0].mxu0
      %v618 = vadd.f32 %v284, %v617
      %v619 = vpop.f32.mrb[0].mxu0
      %v620 = vpop.f32.mrb[0].mxu0
      %v621 = vadd.f32 %v284, %v620
      %v622 = vpop.f32.mrb[0].mxu0
      %623 = vmatprep.mubr.bf16.mxu0 %v507
      %624 = vmatmul.mubr.bf16.gmra.mrb[0].mxu0 %v394
      %v625 = vpop.f32.mrb[0].mxu0
      %v626 = vadd.f32 %v284, %v625
      %v627 = vpop.f32.mrb[0].mxu0
      %v628 = vpop.f32.mrb[0].mxu0
      %v629 = vadd.f32 %v284, %v628
      %v630 = vpop.f32.mrb[0].mxu0
      %631 = vmatprep.mubr.bf16.mxu0 %v510
      %632 = vmatmul.mubr.bf16.gmra.mrb[0].mxu0 %v396
      %v633 = vpop.f32.mrb[0].mxu0
      %v634 = vadd.f32 %v284, %v633
      %v635 = vpop.f32.mrb[0].mxu0
      %v636 = vpop.f32.mrb[0].mxu0
      %v637 = vadd.f32 %v284, %v636
      %v638 = vpop.f32.mrb[0].mxu0
      %639 = vmatprep.mubr.bf16.mxu0 %v513
      %640 = vmatmul.mubr.bf16.gmra.mrb[0].mxu0 %v398
      %v641 = vpop.f32.mrb[0].mxu0
      %v642 = vadd.f32 %v284, %v641
      %v643 = vpop.f32.mrb[0].mxu0
      %v644 = vpop.f32.mrb[0].mxu0
      %v645 = vadd.f32 %v284, %v644
      %v646 = vpop.f32.mrb[0].mxu0
      %647 = vmatprep.mubr.bf16.mxu0 %v516
      %648 = vmatmul.mubr.bf16.gmra.mrb[0].mxu0 %v400
      %v649 = vpop.f32.mrb[0].mxu0
      %v650 = vadd.f32 %v284, %v649
      %v651 = vpop.f32.mrb[0].mxu0
      %v652 = vpop.f32.mrb[0].mxu0
      %v653 = vadd.f32 %v284, %v652
      %v654 = vpop.f32.mrb[0].mxu0
      %655 = vmatprep.mubr.bf16.mxu0 %v519
      %656 = vmatmul.mubr.bf16.gmra.mrb[0].mxu0 %v402
      %v657 = vpop.f32.mrb[0].mxu0
      %v658 = vadd.f32 %v284, %v657
      %v659 = vpop.f32.mrb[0].mxu0
      %v660 = vpop.f32.mrb[0].mxu0
      %v661 = vadd.f32 %v284, %v660
      %v662 = vpop.f32.mrb[0].mxu0
      %663 = vmatprep.mubr.bf16.mxu0 %v522
      %664 = vmatmul.mubr.bf16.gmra.mrb[0].mxu0 %v404
      %v665 = vpop.f32.mrb[0].mxu0
      %v666 = vadd.f32 %v284, %v665
      %v667 = vpop.f32.mrb[0].mxu0
      %v668 = vpop.f32.mrb[0].mxu0
      %v669 = vadd.f32 %v284, %v668
      %v670 = vpop.f32.mrb[0].mxu0
      %671 = vmatprep.mubr.bf16.mxu0 %v525
      %672 = vmatmul.mubr.bf16.gmra.mrb[0].mxu0 %v406
      %v673 = vpop.f32.mrb[0].mxu0
      %v674 = vadd.f32 %v284, %v673
      %v675 = vpop.f32.mrb[0].mxu0
      %v676 = vpop.f32.mrb[0].mxu0
      %v677 = vadd.f32 %v284, %v676
      %v678 = vpop.f32.mrb[0].mxu0
      %679 = vmatprep.mubr.bf16.mxu0 %v528
      %680 = vmatmul.mubr.bf16.gmra.mrb[0].mxu0 %v408
      %v681 = vpop.f32.mrb[0].mxu0
      %v682 = vadd.f32 %v284, %v681
      %v683 = vpop.f32.mrb[0].mxu0
      %v684 = vpop.f32.mrb[0].mxu0
      %v685 = vadd.f32 %v284, %v684
      %v686 = vpop.f32.mrb[0].mxu0
      %687 = vmatprep.mubr.bf16.mxu0 %v531
      %688 = vmatmul.mubr.bf16.gmra.mrb[0].mxu0 %v410
      %v689 = vpop.f32.mrb[0].mxu0
      %v690 = vadd.f32 %v284, %v689
      %v691 = vpop.f32.mrb[0].mxu0
      %v692 = vpop.f32.mrb[0].mxu0
      %v693 = vadd.f32 %v284, %v692
      %v694 = vpop.f32.mrb[0].mxu0
      %695 = vmatprep.mubr.bf16.mxu0 %v534
      %696 = vmatmul.mubr.bf16.gmra.mrb[0].mxu0 %v412
      %v697 = vpop.f32.mrb[0].mxu0
      %v698 = vadd.f32 %v284, %v697
      %v699 = vpop.f32.mrb[0].mxu0
      %v700 = vpop.f32.mrb[0].mxu0
      %v701 = vadd.f32 %v284, %v700
      %v702 = vpop.f32.mrb[0].mxu0
      %703 = vdwg.mxu0
      %v704 = vmax.f32 %v578, 0.0
      %v705 = vmax.f32 %v581, 0.0
      %v706 = vmax.f32 %v586, 0.0
      %v707 = vmax.f32 %v589, 0.0
      %v708 = vmax.f32 %v594, 0.0
      %v709 = vmax.f32 %v597, 0.0
      %v710 = vmax.f32 %v602, 0.0
      %v711 = vmax.f32 %v605, 0.0
      %v712 = vmax.f32 %v610, 0.0
      %v713 = vmax.f32 %v613, 0.0
      %v714 = vmax.f32 %v618, 0.0
      %v715 = vmax.f32 %v621, 0.0
      %v716 = vmax.f32 %v626, 0.0
      %v717 = vmax.f32 %v629, 0.0
      %v718 = vmax.f32 %v634, 0.0
      %v719 = vmax.f32 %v637, 0.0
      %v720 = vmax.f32 %v642, 0.0
      %v721 = vmax.f32 %v645, 0.0
      %v722 = vmax.f32 %v650, 0.0
      %v723 = vmax.f32 %v653, 0.0
      %v724 = vmax.f32 %v658, 0.0
      %v725 = vmax.f32 %v661, 0.0
      %v726 = vmax.f32 %v666, 0.0
      %v727 = vmax.f32 %v669, 0.0
      %v728 = vmax.f32 %v674, 0.0
      %v729 = vmax.f32 %v677, 0.0
      %v730 = vmax.f32 %v682, 0.0
      %v731 = vmax.f32 %v685, 0.0
      %v732 = vmax.f32 %v690, 0.0
      %v733 = vmax.f32 %v693, 0.0
      %v734 = vmax.f32 %v698, 0.0
      %v735 = vmax.f32 %v701, 0.0
      %v736 = vpack.c.bf16 %v705, %v704
      %v737 = vpack.c.bf16 %v707, %v706
      %v738 = vpack.c.bf16 %v709, %v708
      %v739 = vpack.c.bf16 %v711, %v710
      %v740 = vpack.c.bf16 %v713, %v712
      %v741 = vpack.c.bf16 %v715, %v714
      %v742 = vpack.c.bf16 %v717, %v716
      %v743 = vpack.c.bf16 %v719, %v718
      %v744 = vpack.c.bf16 %v721, %v720
      %v745 = vpack.c.bf16 %v723, %v722
      %v746 = vpack.c.bf16 %v725, %v724
      %v747 = vpack.c.bf16 %v727, %v726
      %v748 = vpack.c.bf16 %v729, %v728
      %v749 = vpack.c.bf16 %v731, %v730
      %v750 = vpack.c.bf16 %v733, %v732
      %v751 = vpack.c.bf16 %v735, %v734
      %v768 = vunpack.c.l.b16 %v736
      %v769 = vunpack.c.h.b16 %v736
      %v770 = vunpack.c.l.b16 %v737
      %v771 = vunpack.c.h.b16 %v737
      %v772 = vunpack.c.l.b16 %v738
      %v773 = vunpack.c.h.b16 %v738
      %v774 = vunpack.c.l.b16 %v739
      %v775 = vunpack.c.h.b16 %v739
      %v776 = vunpack.c.l.b16 %v740
      %v777 = vunpack.c.h.b16 %v740
      %v778 = vunpack.c.l.b16 %v741
      %v779 = vunpack.c.h.b16 %v741
      %v780 = vunpack.c.l.b16 %v742
      %v781 = vunpack.c.h.b16 %v742
      %v782 = vunpack.c.l.b16 %v743
      %v783 = vunpack.c.h.b16 %v743
      %v784 = vunpack.c.l.b16 %v744
      %v785 = vunpack.c.h.b16 %v744
      %v786 = vunpack.c.l.b16 %v745
      %v787 = vunpack.c.h.b16 %v745
      %v788 = vunpack.c.l.b16 %v746
      %v789 = vunpack.c.h.b16 %v746
      %v790 = vunpack.c.l.b16 %v747
      %v791 = vunpack.c.h.b16 %v747
      %v792 = vunpack.c.l.b16 %v748
      %v793 = vunpack.c.h.b16 %v748
      %v794 = vunpack.c.l.b16 %v749
      %v795 = vunpack.c.h.b16 %v749
      %v796 = vunpack.c.l.b16 %v750
      %v797 = vunpack.c.h.b16 %v750
      %v798 = vunpack.c.l.b16 %v751
      %v799 = vunpack.c.h.b16 %v751
      %v800 = vpack.c.b16 %v768, %v768
      %v801 = vpack.c.b16 %v769, %v769
      %v802 = vpack.c.b16 %v770, %v770
      %v803 = vpack.c.b16 %v771, %v771
      %v804 = vpack.c.b16 %v772, %v772
      %v805 = vpack.c.b16 %v773, %v773
      %v806 = vpack.c.b16 %v774, %v774
      %v807 = vpack.c.b16 %v775, %v775
      %v808 = vpack.c.b16 %v776, %v776
      %v809 = vpack.c.b16 %v777, %v777
      %v810 = vpack.c.b16 %v778, %v778
      %v811 = vpack.c.b16 %v779, %v779
      %v812 = vpack.c.b16 %v780, %v780
      %v813 = vpack.c.b16 %v781, %v781
      %v814 = vpack.c.b16 %v782, %v782
      %v815 = vpack.c.b16 %v783, %v783
      %v816 = vpack.c.b16 %v784, %v784
      %v817 = vpack.c.b16 %v785, %v785
      %v818 = vpack.c.b16 %v786, %v786
      %v819 = vpack.c.b16 %v787, %v787
      %v820 = vpack.c.b16 %v788, %v788
      %v821 = vpack.c.b16 %v789, %v789
      %v822 = vpack.c.b16 %v790, %v790
      %v823 = vpack.c.b16 %v791, %v791
      %v824 = vpack.c.b16 %v792, %v792
      %v825 = vpack.c.b16 %v793, %v793
      %v826 = vpack.c.b16 %v794, %v794
      %v827 = vpack.c.b16 %v795, %v795
      %v828 = vpack.c.b16 %v796, %v796
      %v829 = vpack.c.b16 %v797, %v797
      %v830 = vpack.c.b16 %v798, %v798
      %v831 = vpack.c.b16 %v799, %v799
      %vm864 = vcmask 125952
      %865 = vst.msk [vmem:[%s225] sm:$0xf] %vm864, %v800
      %866 = vst.msk [vmem:[%s225 + $0x4] sm:$0xf] %vm864, %v801
      %867 = vst.msk [vmem:[%s225 + $0x8] sm:$0xf] %vm864, %v802
      %868 = vst.msk [vmem:[%s225 + $0xc] sm:$0xf] %vm864, %v803
      %869 = vst.msk [vmem:[%s225 + $0x10] sm:$0xf] %vm864, %v804
      %870 = vst.msk [vmem:[%s225 + $0x14] sm:$0xf] %vm864, %v805
      %871 = vst.msk [vmem:[%s225 + $0x18] sm:$0xf] %vm864, %v806
      %872 = vst.msk [vmem:[%s225 + $0x1c] sm:$0xf] %vm864, %v807
      %873 = vst.msk [vmem:[%s225 + $0x20] sm:$0xf] %vm864, %v808
      %874 = vst.msk [vmem:[%s225 + $0x24] sm:$0xf] %vm864, %v809
      %875 = vst.msk [vmem:[%s225 + $0x28] sm:$0xf] %vm864, %v810
      %876 = vst.msk [vmem:[%s225 + $0x2c] sm:$0xf] %vm864, %v811
      %877 = vst.msk [vmem:[%s225 + $0x30] sm:$0xf] %vm864, %v812
      %878 = vst.msk [vmem:[%s225 + $0x34] sm:$0xf] %vm864, %v813
      %879 = vst.msk [vmem:[%s225 + $0x38] sm:$0xf] %vm864, %v814
      %880 = vst.msk [vmem:[%s225 + $0x3c] sm:$0xf] %vm864, %v815
      %881 = vst.msk [vmem:[%s225 + $0x40] sm:$0xf] %vm864, %v816
      %882 = vst.msk [vmem:[%s225 + $0x44] sm:$0xf] %vm864, %v817
      %883 = vst.msk [vmem:[%s225 + $0x48] sm:$0xf] %vm864, %v818
      %884 = vst.msk [vmem:[%s225 + $0x4c] sm:$0xf] %vm864, %v819
      %885 = vst.msk [vmem:[%s225 + $0x50] sm:$0xf] %vm864, %v820
      %886 = vst.msk [vmem:[%s225 + $0x54] sm:$0xf] %vm864, %v821
      %887 = vst.msk [vmem:[%s225 + $0x58] sm:$0xf] %vm864, %v822
      %888 = vst.msk [vmem:[%s225 + $0x5c] sm:$0xf] %vm864, %v823
      %889 = vst.msk [vmem:[%s225 + $0x60] sm:$0xf] %vm864, %v824
      %890 = vst.msk [vmem:[%s225 + $0x64] sm:$0xf] %vm864, %v825
      %891 = vst.msk [vmem:[%s225 + $0x68] sm:$0xf] %vm864, %v826
      %892 = vst.msk [vmem:[%s225 + $0x6c] sm:$0xf] %vm864, %v827
      %893 = vst.msk [vmem:[%s225 + $0x70] sm:$0xf] %vm864, %v828
      %894 = vst.msk [vmem:[%s225 + $0x74] sm:$0xf] %vm864, %v829
      %895 = vst.msk [vmem:[%s225 + $0x78] sm:$0xf] %vm864, %v830
      %896 = vst.msk [vmem:[%s225 + $0x7c] sm:$0xf] %vm864, %v831
      %s897 = smul.u32 32, %s18
      %p898 = scmp.lt.s32.totalorder %s897, 255
      %s899 = scalar_select %p898, %s897, 255
      %s900 = smul.addr %s899, 4
      %s901 = scalar_lea.vmem %s3, %s900
      // Predicated region
      $region33: #{_lambda_.23} parent=31 // pred_check
        %p902 = pneg %p119
      $region34: #{_lambda_.23} parent=31 // pred_check_branch
        %904 = sbr.rel (%p902) target = $region36
      $region35: #{_lambda_.23} parent=31 // pred_region
        %s905 = smul.u32 32, %s18
      $region36: #{_lambda_.23} parent=31 // pred_fallthru
        _
    $region32: #{_lambda_.23} parent=5 // pred_fallthru
      _
    %p906 = scmp.le.s32.totalorder 2, %s9
    // Predicated region
    $region37: #{_lambda_.23} parent=5 // pred_check
      %p907 = pneg %p906
    $region38: #{_lambda_.23} parent=5 // pred_check_branch
      %909 = sbr.rel (%p907) target = $region40
    $region39: #{_lambda_.23} parent=5 // pred_region
      %s910 = ssub.s32 %s9, 2
      // Predicated region
      $region41: #{_lambda_.23} parent=39 // pred_check
        %p911 = pneg %p125
      $region42: #{_lambda_.23} parent=39 // pred_check_branch
        %913 = sbr.rel (%p911) target = $region44
      $region43: #{_lambda_.23} parent=39 // pred_region
        %s914 = smul.u32 32, %s20
        %p915 = scmp.lt.s32.totalorder %s914, 255
        %s916 = scalar_select %p915, %s914, 255
        %s917 = smul.addr %s916, 4
        %s918 = scalar_lea.vmem %s3, %s917
      $region44: #{_lambda_.23} parent=39 // pred_fallthru
        _
    $region40: #{_lambda_.23} parent=5 // pred_fallthru
      _
  $region6: #{_lambda_.23} parent=0 // loop_footer
    %s13 = sadd.s32 1, %s9
  $region7: #{_lambda_.23} parent=0 // loop_footer_branch
    %8 = sbr.rel target = $region3
  $region8: #{_lambda_.23} parent=0 // loop_exit
    _

// kernel: _lambda_.24
$region0: #{_lambda_.24}
  #allocation0 [shape = 'u32[]', space=smem, size = 0x4, offset = 0x4, fixed_abs, tag = 'smem constant byte address 0x4 - core index']
  #allocation1 [shape = 'u32[144,128]{1,0:T(1,128)}', space=vmem, size = 0x12000, scoped, tag = 'internal scratch']
  %s0 = inlined_call_operand.vmem [shape: bf16[8,8,8,16], index: 0, kind: input, shape index: {}]
  %s1 = inlined_call_operand.vmem [shape: bf16[8,8,8,16], index: 1, kind: input, shape index: {}]
  %s2 = inlined_call_operand.vmem [shape: bf16[8,8,8,16], index: 2, kind: input, shape index: {}]
  %s3 = inlined_call_operand.vmem [shape: bf16[8,8,8,16], index: 3, kind: input, shape index: {}]
  %s4 = inlined_call_operand.vmem [shape: bf16[8,8,8,16], index: 4, kind: input, shape index: {}]
  %s5 = inlined_call_operand.vmem [shape: bf16[8,8,8,16], index: 5, kind: input, shape index: {}]
  %s6 = inlined_call_operand.vmem [shape: bf16[8,8,8,16], index: 6, kind: input, shape index: {}]
  %s7 = inlined_call_operand.vmem [shape: bf16[8,8,8,16], index: 7, kind: input, shape index: {}]
  %s8 = inlined_call_operand.vmem [shape: bf16[8,8,8,16], index: 8, kind: input, shape index: {}]
  %s9 = inlined_call_operand.vmem [shape: bf16[8,8,8,16], index: 9, kind: output, shape index: {}]
  %s10 = sld [smem:[#allocation0]]
  $region46: #{_lambda_.24} parent=0
    _
  %s12 = ssub.s32 1, %s10
  %s13 = scalar_select 0, %s12, %s10
  // Predicated region
  $region2: #{_lambda_.24} parent=0 // pred_check
    _
  $region3: #{_lambda_.24} parent=0 // pred_check_branch
    %15 = sbr.rel (0) target = $region5
  $region4: #{_lambda_.24} parent=0 // pred_region
    _
  $region5: #{_lambda_.24} parent=0 // pred_fallthru
    _
  // Predicated region
  $region6: #{_lambda_.24} parent=0 // pred_check
    _
  $region7: #{_lambda_.24} parent=0 // pred_check_branch
    %17 = sbr.rel (0) target = $region9
  $region8: #{_lambda_.24} parent=0 // pred_region
    _
  $region9: #{_lambda_.24} parent=0 // pred_fallthru
    _
  // Predicated region
  $region10: #{_lambda_.24} parent=0 // pred_check
    _
  $region11: #{_lambda_.24} parent=0 // pred_check_branch
    %19 = sbr.rel (0) target = $region13
  $region12: #{_lambda_.24} parent=0 // pred_region
    _
  $region13: #{_lambda_.24} parent=0 // pred_fallthru
    _
  // Predicated region
  $region14: #{_lambda_.24} parent=0 // pred_check
    _
  $region15: #{_lambda_.24} parent=0 // pred_check_branch
    %21 = sbr.rel (0) target = $region17
  $region16: #{_lambda_.24} parent=0 // pred_region
    _
  $region17: #{_lambda_.24} parent=0 // pred_fallthru
    _
  // Predicated region
  $region18: #{_lambda_.24} parent=0 // pred_check
    _
  $region19: #{_lambda_.24} parent=0 // pred_check_branch
    %23 = sbr.rel (0) target = $region21
  $region20: #{_lambda_.24} parent=0 // pred_region
    _
  $region21: #{_lambda_.24} parent=0 // pred_fallthru
    _
  // Predicated region
  $region22: #{_lambda_.24} parent=0 // pred_check
    _
  $region23: #{_lambda_.24} parent=0 // pred_check_branch
    %25 = sbr.rel (0) target = $region25
  $region24: #{_lambda_.24} parent=0 // pred_region
    _
  $region25: #{_lambda_.24} parent=0 // pred_fallthru
    _
  // Predicated region
  $region26: #{_lambda_.24} parent=0 // pred_check
    _
  $region27: #{_lambda_.24} parent=0 // pred_check_branch
    %27 = sbr.rel (0) target = $region29
  $region28: #{_lambda_.24} parent=0 // pred_region
    _
  $region29: #{_lambda_.24} parent=0 // pred_fallthru
    _
  // Predicated region
  $region30: #{_lambda_.24} parent=0 // pred_check
    _
  $region31: #{_lambda_.24} parent=0 // pred_check_branch
    %29 = sbr.rel (0) target = $region33
  $region32: #{_lambda_.24} parent=0 // pred_region
    _
  $region33: #{_lambda_.24} parent=0 // pred_fallthru
    _
  // Predicated region
  $region34: #{_lambda_.24} parent=0 // pred_check
    _
  $region35: #{_lambda_.24} parent=0 // pred_check_branch
    %31 = sbr.rel (0) target = $region37
  $region36: #{_lambda_.24} parent=0 // pred_region
    _
  $region37: #{_lambda_.24} parent=0 // pred_fallthru
    _
  %v32 = vld [vmem:[%s0] sm:$0xf]
  %v33 = vld [vmem:[%s0 + $0x4] sm:$0xf]
  %v34 = vld [vmem:[%s0 + $0x8] sm:$0xf]
  %v35 = vld [vmem:[%s0 + $0xc] sm:$0xf]
  %v36 = vld [vmem:[%s0 + $0x10] sm:$0xf]
  %v37 = vld [vmem:[%s0 + $0x14] sm:$0xf]
  %v38 = vld [vmem:[%s0 + $0x18] sm:$0xf]
  %v39 = vld [vmem:[%s0 + $0x1c] sm:$0xf]
  %v40 = vld [vmem:[%s0 + $0x20] sm:$0xf]
  %v41 = vld [vmem:[%s0 + $0x24] sm:$0xf]
  %v42 = vld [vmem:[%s0 + $0x28] sm:$0xf]
  %v43 = vld [vmem:[%s0 + $0x2c] sm:$0xf]
  %v44 = vld [vmem:[%s0 + $0x30] sm:$0xf]
  %v45 = vld [vmem:[%s0 + $0x34] sm:$0xf]
  %v46 = vld [vmem:[%s0 + $0x38] sm:$0xf]
  %v47 = vld [vmem:[%s0 + $0x3c] sm:$0xf]
  %v48 = vld [vmem:[%s0 + $0x40] sm:$0xf]
  %v49 = vld [vmem:[%s0 + $0x44] sm:$0xf]
  %v50 = vld [vmem:[%s0 + $0x48] sm:$0xf]
  %v51 = vld [vmem:[%s0 + $0x4c] sm:$0xf]
  %v52 = vld [vmem:[%s0 + $0x50] sm:$0xf]
  %v53 = vld [vmem:[%s0 + $0x54] sm:$0xf]
  %v54 = vld [vmem:[%s0 + $0x58] sm:$0xf]
  %v55 = vld [vmem:[%s0 + $0x5c] sm:$0xf]
  %v56 = vld [vmem:[%s0 + $0x60] sm:$0xf]
  %v57 = vld [vmem:[%s0 + $0x64] sm:$0xf]
  %v58 = vld [vmem:[%s0 + $0x68] sm:$0xf]
  %v59 = vld [vmem:[%s0 + $0x6c] sm:$0xf]
  %v60 = vld [vmem:[%s0 + $0x70] sm:$0xf]
  %v61 = vld [vmem:[%s0 + $0x74] sm:$0xf]
  %v62 = vld [vmem:[%s0 + $0x78] sm:$0xf]
  %v63 = vld [vmem:[%s0 + $0x7c] sm:$0xf]
  %v64 = vld [vmem:[%s0 + $0x80] sm:$0xf]
  %v65 = vld [vmem:[%s0 + $0x84] sm:$0xf]
  %v66 = vld [vmem:[%s0 + $0x88] sm:$0xf]
  %v67 = vld [vmem:[%s0 + $0x8c] sm:$0xf]
  %v68 = vld [vmem:[%s0 + $0x90] sm:$0xf]
  %v69 = vld [vmem:[%s0 + $0x94] sm:$0xf]
  %v70 = vld [vmem:[%s0 + $0x98] sm:$0xf]
  %v71 = vld [vmem:[%s0 + $0x9c] sm:$0xf]
  %v72 = vld [vmem:[%s0 + $0xa0] sm:$0xf]
  %v73 = vld [vmem:[%s0 + $0xa4] sm:$0xf]
  %v74 = vld [vmem:[%s0 + $0xa8] sm:$0xf]
  %v75 = vld [vmem:[%s0 + $0xac] sm:$0xf]
  %v76 = vld [vmem:[%s0 + $0xb0] sm:$0xf]
  %v77 = vld [vmem:[%s0 + $0xb4] sm:$0xf]
  %v78 = vld [vmem:[%s0 + $0xb8] sm:$0xf]
  %v79 = vld [vmem:[%s0 + $0xbc] sm:$0xf]
  %v80 = vld [vmem:[%s0 + $0xc0] sm:$0xf]
  %v81 = vld [vmem:[%s0 + $0xc4] sm:$0xf]
  %v82 = vld [vmem:[%s0 + $0xc8] sm:$0xf]
  %v83 = vld [vmem:[%s0 + $0xcc] sm:$0xf]
  %v84 = vld [vmem:[%s0 + $0xd0] sm:$0xf]
  %v85 = vld [vmem:[%s0 + $0xd4] sm:$0xf]
  %v86 = vld [vmem:[%s0 + $0xd8] sm:$0xf]
  %v87 = vld [vmem:[%s0 + $0xdc] sm:$0xf]
  %v88 = vld [vmem:[%s0 + $0xe0] sm:$0xf]
  %v89 = vld [vmem:[%s0 + $0xe4] sm:$0xf]
  %v90 = vld [vmem:[%s0 + $0xe8] sm:$0xf]
  %v91 = vld [vmem:[%s0 + $0xec] sm:$0xf]
  %v92 = vld [vmem:[%s0 + $0xf0] sm:$0xf]
  %v93 = vld [vmem:[%s0 + $0xf4] sm:$0xf]
  %v94 = vld [vmem:[%s0 + $0xf8] sm:$0xf]
  %v95 = vld [vmem:[%s0 + $0xfc] sm:$0xf]
  %v96 = vld [vmem:[%s1] sm:$0xf]
  %v97 = vld [vmem:[%s1 + $0x4] sm:$0xf]
  %v98 = vld [vmem:[%s1 + $0x8] sm:$0xf]
  %v99 = vld [vmem:[%s1 + $0xc] sm:$0xf]
  %v100 = vld [vmem:[%s1 + $0x10] sm:$0xf]
  %v101 = vld [vmem:[%s1 + $0x14] sm:$0xf]
  %v102 = vld [vmem:[%s1 + $0x18] sm:$0xf]
  %v103 = vld [vmem:[%s1 + $0x1c] sm:$0xf]
  %v104 = vld [vmem:[%s1 + $0x20] sm:$0xf]
  %v105 = vld [vmem:[%s1 + $0x24] sm:$0xf]
  %v106 = vld [vmem:[%s1 + $0x28] sm:$0xf]
  %v107 = vld [vmem:[%s1 + $0x2c] sm:$0xf]
  %v108 = vld [vmem:[%s1 + $0x30] sm:$0xf]
  %v109 = vld [vmem:[%s1 + $0x34] sm:$0xf]
  %v110 = vld [vmem:[%s1 + $0x38] sm:$0xf]
  %v111 = vld [vmem:[%s1 + $0x3c] sm:$0xf]
  %v112 = vld [vmem:[%s1 + $0x40] sm:$0xf]
  %v113 = vld [vmem:[%s1 + $0x44] sm:$0xf]
  %v114 = vld [vmem:[%s1 + $0x48] sm:$0xf]
  %v115 = vld [vmem:[%s1 + $0x4c] sm:$0xf]
  %v116 = vld [vmem:[%s1 + $0x50] sm:$0xf]
  %v117 = vld [vmem:[%s1 + $0x54] sm:$0xf]
  %v118 = vld [vmem:[%s1 + $0x58] sm:$0xf]
  %v119 = vld [vmem:[%s1 + $0x5c] sm:$0xf]
  %v120 = vld [vmem:[%s1 + $0x60] sm:$0xf]
  %v121 = vld [vmem:[%s1 + $0x64] sm:$0xf]
  %v122 = vld [vmem:[%s1 + $0x68] sm:$0xf]
  %v123 = vld [vmem:[%s1 + $0x6c] sm:$0xf]
  %v124 = vld [vmem:[%s1 + $0x70] sm:$0xf]
  %v125 = vld [vmem:[%s1 + $0x74] sm:$0xf]
  %v126 = vld [vmem:[%s1 + $0x78] sm:$0xf]
  %v127 = vld [vmem:[%s1 + $0x7c] sm:$0xf]
  %v128 = vld [vmem:[%s1 + $0x80] sm:$0xf]
  %v129 = vld [vmem:[%s1 + $0x84] sm:$0xf]
  %v130 = vld [vmem:[%s1 + $0x88] sm:$0xf]
  %v131 = vld [vmem:[%s1 + $0x8c] sm:$0xf]
  %v132 = vld [vmem:[%s1 + $0x90] sm:$0xf]
  %v133 = vld [vmem:[%s1 + $0x94] sm:$0xf]
  %v134 = vld [vmem:[%s1 + $0x98] sm:$0xf]
  %v135 = vld [vmem:[%s1 + $0x9c] sm:$0xf]
  %v136 = vld [vmem:[%s1 + $0xa0] sm:$0xf]
  %v137 = vld [vmem:[%s1 + $0xa4] sm:$0xf]
  %v138 = vld [vmem:[%s1 + $0xa8] sm:$0xf]
  %v139 = vld [vmem:[%s1 + $0xac] sm:$0xf]
  %v140 = vld [vmem:[%s1 + $0xb0] sm:$0xf]
  %v141 = vld [vmem:[%s1 + $0xb4] sm:$0xf]
  %v142 = vld [vmem:[%s1 + $0xb8] sm:$0xf]
  %v143 = vld [vmem:[%s1 + $0xbc] sm:$0xf]
  %v144 = vld [vmem:[%s1 + $0xc0] sm:$0xf]
  %v145 = vld [vmem:[%s1 + $0xc4] sm:$0xf]
  %v146 = vld [vmem:[%s1 + $0xc8] sm:$0xf]
  %v147 = vld [vmem:[%s1 + $0xcc] sm:$0xf]
  %v148 = vld [vmem:[%s1 + $0xd0] sm:$0xf]
  %v149 = vld [vmem:[%s1 + $0xd4] sm:$0xf]
  %v150 = vld [vmem:[%s1 + $0xd8] sm:$0xf]
  %v151 = vld [vmem:[%s1 + $0xdc] sm:$0xf]
  %v152 = vld [vmem:[%s1 + $0xe0] sm:$0xf]
  %v153 = vld [vmem:[%s1 + $0xe4] sm:$0xf]
  %v154 = vld [vmem:[%s1 + $0xe8] sm:$0xf]
  %v155 = vld [vmem:[%s1 + $0xec] sm:$0xf]
  %v156 = vld [vmem:[%s1 + $0xf0] sm:$0xf]
  %v157 = vld [vmem:[%s1 + $0xf4] sm:$0xf]
  %v158 = vld [vmem:[%s1 + $0xf8] sm:$0xf]
  %v159 = vld [vmem:[%s1 + $0xfc] sm:$0xf]
  %v160 = vmax.bf16 %v32, %v96
  %v161 = vmax.bf16 %v33, %v97
  %v162 = vmax.bf16 %v34, %v98
  %v163 = vmax.bf16 %v35, %v99
  %v164 = vmax.bf16 %v36, %v100
  %v165 = vmax.bf16 %v37, %v101
  %v166 = vmax.bf16 %v38, %v102
  %v167 = vmax.bf16 %v39, %v103
  %v168 = vmax.bf16 %v40, %v104
  %v169 = vmax.bf16 %v41, %v105
  %v170 = vmax.bf16 %v42, %v106
  %v171 = vmax.bf16 %v43, %v107
  %v172 = vmax.bf16 %v44, %v108
  %v173 = vmax.bf16 %v45, %v109
  %v174 = vmax.bf16 %v46, %v110
  %v175 = vmax.bf16 %v47, %v111
  %v176 = vmax.bf16 %v48, %v112
  %v177 = vmax.bf16 %v49, %v113
  %v178 = vmax.bf16 %v50, %v114
  %v179 = vmax.bf16 %v51, %v115
  %v180 = vmax.bf16 %v52, %v116
  %v181 = vmax.bf16 %v53, %v117
  %v182 = vmax.bf16 %v54, %v118
  %v183 = vmax.bf16 %v55, %v119
  %v184 = vmax.bf16 %v56, %v120
  %v185 = vmax.bf16 %v57, %v121
  %v186 = vmax.bf16 %v58, %v122
  %v187 = vmax.bf16 %v59, %v123
  %v188 = vmax.bf16 %v60, %v124
  %v189 = vmax.bf16 %v61, %v125
  %v190 = vmax.bf16 %v62, %v126
  %v191 = vmax.bf16 %v63, %v127
  %v192 = vmax.bf16 %v64, %v128
  %v193 = vmax.bf16 %v65, %v129
  %v194 = vmax.bf16 %v66, %v130
  %v195 = vmax.bf16 %v67, %v131
  %v196 = vmax.bf16 %v68, %v132
  %v197 = vmax.bf16 %v69, %v133
  %v198 = vmax.bf16 %v70, %v134
  %v199 = vmax.bf16 %v71, %v135
  %v200 = vmax.bf16 %v72, %v136
  %v201 = vmax.bf16 %v73, %v137
  %v202 = vmax.bf16 %v74, %v138
  %v203 = vmax.bf16 %v75, %v139
  %v204 = vmax.bf16 %v76, %v140
  %v205 = vmax.bf16 %v77, %v141
  %v206 = vmax.bf16 %v78, %v142
  %v207 = vmax.bf16 %v79, %v143
  %v208 = vmax.bf16 %v80, %v144
  %v209 = vmax.bf16 %v81, %v145
  %v210 = vmax.bf16 %v82, %v146
  %v211 = vmax.bf16 %v83, %v147
  %v212 = vmax.bf16 %v84, %v148
  %v213 = vmax.bf16 %v85, %v149
  %v214 = vmax.bf16 %v86, %v150
  %v215 = vmax.bf16 %v87, %v151
  %v216 = vmax.bf16 %v88, %v152
  %v217 = vmax.bf16 %v89, %v153
  %v218 = vmax.bf16 %v90, %v154
  %v219 = vmax.bf16 %v91, %v155
  %v220 = vmax.bf16 %v92, %v156
  %v221 = vmax.bf16 %v93, %v157
  %v222 = vmax.bf16 %v94, %v158
  %v223 = vmax.bf16 %v95, %v159
  %v224 = vld [vmem:[%s2] sm:$0xf]
  %v225 = vld [vmem:[%s2 + $0x4] sm:$0xf]
  %v226 = vld [vmem:[%s2 + $0x8] sm:$0xf]
  %v227 = vld [vmem:[%s2 + $0xc] sm:$0xf]
  %v228 = vld [vmem:[%s2 + $0x10] sm:$0xf]
  %v229 = vld [vmem:[%s2 + $0x14] sm:$0xf]
  %v230 = vld [vmem:[%s2 + $0x18] sm:$0xf]
  %v231 = vld [vmem:[%s2 + $0x1c] sm:$0xf]
  %v232 = vld [vmem:[%s2 + $0x20] sm:$0xf]
  %v233 = vld [vmem:[%s2 + $0x24] sm:$0xf]
  %v234 = vld [vmem:[%s2 + $0x28] sm:$0xf]
  %v235 = vld [vmem:[%s2 + $0x2c] sm:$0xf]
  %v236 = vld [vmem:[%s2 + $0x30] sm:$0xf]
  %v237 = vld [vmem:[%s2 + $0x34] sm:$0xf]
  %v238 = vld [vmem:[%s2 + $0x38] sm:$0xf]
  %v239 = vld [vmem:[%s2 + $0x3c] sm:$0xf]
  %v240 = vld [vmem:[%s2 + $0x40] sm:$0xf]
  %v241 = vld [vmem:[%s2 + $0x44] sm:$0xf]
  %v242 = vld [vmem:[%s2 + $0x48] sm:$0xf]
  %v243 = vld [vmem:[%s2 + $0x4c] sm:$0xf]
  %v244 = vld [vmem:[%s2 + $0x50] sm:$0xf]
  %v245 = vld [vmem:[%s2 + $0x54] sm:$0xf]
  %v246 = vld [vmem:[%s2 + $0x58] sm:$0xf]
  %v247 = vld [vmem:[%s2 + $0x5c] sm:$0xf]
  %v248 = vld [vmem:[%s2 + $0x60] sm:$0xf]
  %v249 = vld [vmem:[%s2 + $0x64] sm:$0xf]
  %v250 = vld [vmem:[%s2 + $0x68] sm:$0xf]
  %v251 = vld [vmem:[%s2 + $0x6c] sm:$0xf]
  %v252 = vld [vmem:[%s2 + $0x70] sm:$0xf]
  %v253 = vld [vmem:[%s2 + $0x74] sm:$0xf]
  %v254 = vld [vmem:[%s2 + $0x78] sm:$0xf]
  %v255 = vld [vmem:[%s2 + $0x7c] sm:$0xf]
  %v256 = vld [vmem:[%s2 + $0x80] sm:$0xf]
  %v257 = vld [vmem:[%s2 + $0x84] sm:$0xf]
  %v258 = vld [vmem:[%s2 + $0x88] sm:$0xf]
  %v259 = vld [vmem:[%s2 + $0x8c] sm:$0xf]
  %v260 = vld [vmem:[%s2 + $0x90] sm:$0xf]
  %v261 = vld [vmem:[%s2 + $0x94] sm:$0xf]
  %v262 = vld [vmem:[%s2 + $0x98] sm:$0xf]
  %v263 = vld [vmem:[%s2 + $0x9c] sm:$0xf]
  %v264 = vld [vmem:[%s2 + $0xa0] sm:$0xf]
  %v265 = vld [vmem:[%s2 + $0xa4] sm:$0xf]
  %v266 = vld [vmem:[%s2 + $0xa8] sm:$0xf]
  %v267 = vld [vmem:[%s2 + $0xac] sm:$0xf]
  %v268 = vld [vmem:[%s2 + $0xb0] sm:$0xf]
  %v269 = vld [vmem:[%s2 + $0xb4] sm:$0xf]
  %v270 = vld [vmem:[%s2 + $0xb8] sm:$0xf]
  %v271 = vld [vmem:[%s2 + $0xbc] sm:$0xf]
  %v272 = vld [vmem:[%s2 + $0xc0] sm:$0xf]
  %v273 = vld [vmem:[%s2 + $0xc4] sm:$0xf]
  %v274 = vld [vmem:[%s2 + $0xc8] sm:$0xf]
  %v275 = vld [vmem:[%s2 + $0xcc] sm:$0xf]
  %v276 = vld [vmem:[%s2 + $0xd0] sm:$0xf]
  %v277 = vld [vmem:[%s2 + $0xd4] sm:$0xf]
  %v278 = vld [vmem:[%s2 + $0xd8] sm:$0xf]
  %v279 = vld [vmem:[%s2 + $0xdc] sm:$0xf]
  %v280 = vld [vmem:[%s2 + $0xe0] sm:$0xf]
  %v281 = vld [vmem:[%s2 + $0xe4] sm:$0xf]
  %v282 = vld [vmem:[%s2 + $0xe8] sm:$0xf]
  %v283 = vld [vmem:[%s2 + $0xec] sm:$0xf]
  %v284 = vld [vmem:[%s2 + $0xf0] sm:$0xf]
  %v285 = vld [vmem:[%s2 + $0xf4] sm:$0xf]
  %v286 = vld [vmem:[%s2 + $0xf8] sm:$0xf]
  %v287 = vld [vmem:[%s2 + $0xfc] sm:$0xf]
  %v288 = vmax.bf16 %v160, %v224
  %v289 = vmax.bf16 %v161, %v225
  %v290 = vmax.bf16 %v162, %v226
  %v291 = vmax.bf16 %v163, %v227
  %v292 = vmax.bf16 %v164, %v228
  %v293 = vmax.bf16 %v165, %v229
  %v294 = vmax.bf16 %v166, %v230
  %v295 = vmax.bf16 %v167, %v231
  %v296 = vmax.bf16 %v168, %v232
  %v297 = vmax.bf16 %v169, %v233
  %v298 = vmax.bf16 %v170, %v234
  %v299 = vmax.bf16 %v171, %v235
  %v300 = vmax.bf16 %v172, %v236
  %v301 = vmax.bf16 %v173, %v237
  %v302 = vmax.bf16 %v174, %v238
  %v303 = vmax.bf16 %v175, %v239
  %v304 = vmax.bf16 %v176, %v240
  %v305 = vmax.bf16 %v177, %v241
  %v306 = vmax.bf16 %v178, %v242
  %v307 = vmax.bf16 %v179, %v243
  %v308 = vmax.bf16 %v180, %v244
  %v309 = vmax.bf16 %v181, %v245
  %v310 = vmax.bf16 %v182, %v246
  %v311 = vmax.bf16 %v183, %v247
  %v312 = vmax.bf16 %v184, %v248
  %v313 = vmax.bf16 %v185, %v249
  %v314 = vmax.bf16 %v186, %v250
  %v315 = vmax.bf16 %v187, %v251
  %v316 = vmax.bf16 %v188, %v252
  %v317 = vmax.bf16 %v189, %v253
  %v318 = vmax.bf16 %v190, %v254
  %v319 = vmax.bf16 %v191, %v255
  %v320 = vmax.bf16 %v192, %v256
  %v321 = vmax.bf16 %v193, %v257
  %v322 = vmax.bf16 %v194, %v258
  %v323 = vmax.bf16 %v195, %v259
  %v324 = vmax.bf16 %v196, %v260
  %v325 = vmax.bf16 %v197, %v261
  %v326 = vmax.bf16 %v198, %v262
  %v327 = vmax.bf16 %v199, %v263
  %v328 = vmax.bf16 %v200, %v264
  %v329 = vmax.bf16 %v201, %v265
  %v330 = vmax.bf16 %v202, %v266
  %v331 = vmax.bf16 %v203, %v267
  %v332 = vmax.bf16 %v204, %v268
  %v333 = vmax.bf16 %v205, %v269
  %v334 = vmax.bf16 %v206, %v270
  %v335 = vmax.bf16 %v207, %v271
  %v336 = vmax.bf16 %v208, %v272
  %v337 = vmax.bf16 %v209, %v273
  %v338 = vmax.bf16 %v210, %v274
  %v339 = vmax.bf16 %v211, %v275
  %v340 = vmax.bf16 %v212, %v276
  %v341 = vmax.bf16 %v213, %v277
  %v342 = vmax.bf16 %v214, %v278
  %v343 = vmax.bf16 %v215, %v279
  %v344 = vmax.bf16 %v216, %v280
  %v345 = vmax.bf16 %v217, %v281
  %v346 = vmax.bf16 %v218, %v282
  %v347 = vmax.bf16 %v219, %v283
  %v348 = vmax.bf16 %v220, %v284
  %v349 = vmax.bf16 %v221, %v285
  %v350 = vmax.bf16 %v222, %v286
  %v351 = vmax.bf16 %v223, %v287
  %v352 = vld [vmem:[%s3] sm:$0xf]
  %v353 = vld [vmem:[%s3 + $0x4] sm:$0xf]
  %v354 = vld [vmem:[%s3 + $0x8] sm:$0xf]
  %v355 = vld [vmem:[%s3 + $0xc] sm:$0xf]
  %v356 = vld [vmem:[%s3 + $0x10] sm:$0xf]
  %v357 = vld [vmem:[%s3 + $0x14] sm:$0xf]
  %v358 = vld [vmem:[%s3 + $0x18] sm:$0xf]
  %v359 = vld [vmem:[%s3 + $0x1c] sm:$0xf]
  %v360 = vld [vmem:[%s3 + $0x20] sm:$0xf]
  %v361 = vld [vmem:[%s3 + $0x24] sm:$0xf]
  %v362 = vld [vmem:[%s3 + $0x28] sm:$0xf]
  %v363 = vld [vmem:[%s3 + $0x2c] sm:$0xf]
  %v364 = vld [vmem:[%s3 + $0x30] sm:$0xf]
  %v365 = vld [vmem:[%s3 + $0x34] sm:$0xf]
  %v366 = vld [vmem:[%s3 + $0x38] sm:$0xf]
  %v367 = vld [vmem:[%s3 + $0x3c] sm:$0xf]
  %v368 = vld [vmem:[%s3 + $0x40] sm:$0xf]
  %v369 = vld [vmem:[%s3 + $0x44] sm:$0xf]
  %v370 = vld [vmem:[%s3 + $0x48] sm:$0xf]
  %v371 = vld [vmem:[%s3 + $0x4c] sm:$0xf]
  %v372 = vld [vmem:[%s3 + $0x50] sm:$0xf]
  %v373 = vld [vmem:[%s3 + $0x54] sm:$0xf]
  %v374 = vld [vmem:[%s3 + $0x58] sm:$0xf]
  %v375 = vld [vmem:[%s3 + $0x5c] sm:$0xf]
  %v376 = vld [vmem:[%s3 + $0x60] sm:$0xf]
  %v377 = vld [vmem:[%s3 + $0x64] sm:$0xf]
  %v378 = vld [vmem:[%s3 + $0x68] sm:$0xf]
  %v379 = vld [vmem:[%s3 + $0x6c] sm:$0xf]
  %v380 = vld [vmem:[%s3 + $0x70] sm:$0xf]
  %v381 = vld [vmem:[%s3 + $0x74] sm:$0xf]
  %v382 = vld [vmem:[%s3 + $0x78] sm:$0xf]
  %v383 = vld [vmem:[%s3 + $0x7c] sm:$0xf]
  %v384 = vld [vmem:[%s3 + $0x80] sm:$0xf]
  %v385 = vld [vmem:[%s3 + $0x84] sm:$0xf]
  %v386 = vld [vmem:[%s3 + $0x88] sm:$0xf]
  %v387 = vld [vmem:[%s3 + $0x8c] sm:$0xf]
  %v388 = vld [vmem:[%s3 + $0x90] sm:$0xf]
  %v389 = vld [vmem:[%s3 + $0x94] sm:$0xf]
  %v390 = vld [vmem:[%s3 + $0x98] sm:$0xf]
  %v391 = vld [vmem:[%s3 + $0x9c] sm:$0xf]
  %v392 = vld [vmem:[%s3 + $0xa0] sm:$0xf]
  %v393 = vld [vmem:[%s3 + $0xa4] sm:$0xf]
  %v394 = vld [vmem:[%s3 + $0xa8] sm:$0xf]
  %v395 = vld [vmem:[%s3 + $0xac] sm:$0xf]
  %v396 = vld [vmem:[%s3 + $0xb0] sm:$0xf]
  %v397 = vld [vmem:[%s3 + $0xb4] sm:$0xf]
  %v398 = vld [vmem:[%s3 + $0xb8] sm:$0xf]
  %v399 = vld [vmem:[%s3 + $0xbc] sm:$0xf]
  %v400 = vld [vmem:[%s3 + $0xc0] sm:$0xf]
  %v401 = vld [vmem:[%s3 + $0xc4] sm:$0xf]
  %v402 = vld [vmem:[%s3 + $0xc8] sm:$0xf]
  %v403 = vld [vmem:[%s3 + $0xcc] sm:$0xf]
  %v404 = vld [vmem:[%s3 + $0xd0] sm:$0xf]
  %v405 = vld [vmem:[%s3 + $0xd4] sm:$0xf]
  %v406 = vld [vmem:[%s3 + $0xd8] sm:$0xf]
  %v407 = vld [vmem:[%s3 + $0xdc] sm:$0xf]
  %v408 = vld [vmem:[%s3 + $0xe0] sm:$0xf]
  %v409 = vld [vmem:[%s3 + $0xe4] sm:$0xf]
  %v410 = vld [vmem:[%s3 + $0xe8] sm:$0xf]
  %v411 = vld [vmem:[%s3 + $0xec] sm:$0xf]
  %v412 = vld [vmem:[%s3 + $0xf0] sm:$0xf]
  %v413 = vld [vmem:[%s3 + $0xf4] sm:$0xf]
  %v414 = vld [vmem:[%s3 + $0xf8] sm:$0xf]
  %v415 = vld [vmem:[%s3 + $0xfc] sm:$0xf]
  %v416 = vmax.bf16 %v288, %v352
  %v417 = vmax.bf16 %v289, %v353
  %v418 = vmax.bf16 %v290, %v354
  %v419 = vmax.bf16 %v291, %v355
  %v420 = vmax.bf16 %v292, %v356
  %v421 = vmax.bf16 %v293, %v357
  %v422 = vmax.bf16 %v294, %v358
  %v423 = vmax.bf16 %v295, %v359
  %v424 = vmax.bf16 %v296, %v360
  %v425 = vmax.bf16 %v297, %v361
  %v426 = vmax.bf16 %v298, %v362
  %v427 = vmax.bf16 %v299, %v363
  %v428 = vmax.bf16 %v300, %v364
  %v429 = vmax.bf16 %v301, %v365
  %v430 = vmax.bf16 %v302, %v366
  %v431 = vmax.bf16 %v303, %v367
  %v432 = vmax.bf16 %v304, %v368
  %v433 = vmax.bf16 %v305, %v369
  %v434 = vmax.bf16 %v306, %v370
  %v435 = vmax.bf16 %v307, %v371
  %v436 = vmax.bf16 %v308, %v372
  %v437 = vmax.bf16 %v309, %v373
  %v438 = vmax.bf16 %v310, %v374
  %v439 = vmax.bf16 %v311, %v375
  %v440 = vmax.bf16 %v312, %v376
  %v441 = vmax.bf16 %v313, %v377
  %v442 = vmax.bf16 %v314, %v378
  %v443 = vmax.bf16 %v315, %v379
  %v444 = vmax.bf16 %v316, %v380
  %v445 = vmax.bf16 %v317, %v381
  %v446 = vmax.bf16 %v318, %v382
  %v447 = vmax.bf16 %v319, %v383
  %v448 = vmax.bf16 %v320, %v384
  %v449 = vmax.bf16 %v321, %v385
  %v450 = vmax.bf16 %v322, %v386
  %v451 = vmax.bf16 %v323, %v387
  %v452 = vmax.bf16 %v324, %v388
  %v453 = vmax.bf16 %v325, %v389
  %v454 = vmax.bf16 %v326, %v390
  %v455 = vmax.bf16 %v327, %v391
  %v456 = vmax.bf16 %v328, %v392
  %v457 = vmax.bf16 %v329, %v393
  %v458 = vmax.bf16 %v330, %v394
  %v459 = vmax.bf16 %v331, %v395
  %v460 = vmax.bf16 %v332, %v396
  %v461 = vmax.bf16 %v333, %v397
  %v462 = vmax.bf16 %v334, %v398
  %v463 = vmax.bf16 %v335, %v399
  %v464 = vmax.bf16 %v336, %v400
  %v465 = vmax.bf16 %v337, %v401
  %v466 = vmax.bf16 %v338, %v402
  %v467 = vmax.bf16 %v339, %v403
  %v468 = vmax.bf16 %v340, %v404
  %v469 = vmax.bf16 %v341, %v405
  %v470 = vmax.bf16 %v342, %v406
  %v471 = vmax.bf16 %v343, %v407
  %v472 = vmax.bf16 %v344, %v408
  %v473 = vmax.bf16 %v345, %v409
  %v474 = vmax.bf16 %v346, %v410
  %v475 = vmax.bf16 %v347, %v411
  %v476 = vmax.bf16 %v348, %v412
  %v477 = vmax.bf16 %v349, %v413
  %v478 = vmax.bf16 %v350, %v414
  %v479 = vmax.bf16 %v351, %v415
  %v480 = vld [vmem:[%s4] sm:$0xf]
  %v481 = vld [vmem:[%s4 + $0x4] sm:$0xf]
  %v482 = vld [vmem:[%s4 + $0x8] sm:$0xf]
  %v483 = vld [vmem:[%s4 + $0xc] sm:$0xf]
  %v484 = vld [vmem:[%s4 + $0x10] sm:$0xf]
  %v485 = vld [vmem:[%s4 + $0x14] sm:$0xf]
  %v486 = vld [vmem:[%s4 + $0x18] sm:$0xf]
  %v487 = vld [vmem:[%s4 + $0x1c] sm:$0xf]
  %v488 = vld [vmem:[%s4 + $0x20] sm:$0xf]
  %v489 = vld [vmem:[%s4 + $0x24] sm:$0xf]
  %v490 = vld [vmem:[%s4 + $0x28] sm:$0xf]
  %v491 = vld [vmem:[%s4 + $0x2c] sm:$0xf]
  %v492 = vld [vmem:[%s4 + $0x30] sm:$0xf]
  %v493 = vld [vmem:[%s4 + $0x34] sm:$0xf]
  %v494 = vld [vmem:[%s4 + $0x38] sm:$0xf]
  %v495 = vld [vmem:[%s4 + $0x3c] sm:$0xf]
  %v496 = vld [vmem:[%s4 + $0x40] sm:$0xf]
  %v497 = vld [vmem:[%s4 + $0x44] sm:$0xf]
  %v498 = vld [vmem:[%s4 + $0x48] sm:$0xf]
  %v499 = vld [vmem:[%s4 + $0x4c] sm:$0xf]
  %v500 = vld [vmem:[%s4 + $0x50] sm:$0xf]
  %v501 = vld [vmem:[%s4 + $0x54] sm:$0xf]
  %v502 = vld [vmem:[%s4 + $0x58] sm:$0xf]
  %v503 = vld [vmem:[%s4 + $0x5c] sm:$0xf]
  %v504 = vld [vmem:[%s4 + $0x60] sm:$0xf]
  %v505 = vld [vmem:[%s4 + $0x64] sm:$0xf]
  %v506 = vld [vmem:[%s4 + $0x68] sm:$0xf]
  %v507 = vld [vmem:[%s4 + $0x6c] sm:$0xf]
  %v508 = vld [vmem:[%s4 + $0x70] sm:$0xf]
  %v509 = vld [vmem:[%s4 + $0x74] sm:$0xf]
  %v510 = vld [vmem:[%s4 + $0x78] sm:$0xf]
  %v511 = vld [vmem:[%s4 + $0x7c] sm:$0xf]
  %v512 = vld [vmem:[%s4 + $0x80] sm:$0xf]
  %v513 = vld [vmem:[%s4 + $0x84] sm:$0xf]
  %v514 = vld [vmem:[%s4 + $0x88] sm:$0xf]
  %v515 = vld [vmem:[%s4 + $0x8c] sm:$0xf]
  %v516 = vld [vmem:[%s4 + $0x90] sm:$0xf]
  %v517 = vld [vmem:[%s4 + $0x94] sm:$0xf]
  %v518 = vld [vmem:[%s4 + $0x98] sm:$0xf]
  %v519 = vld [vmem:[%s4 + $0x9c] sm:$0xf]
  %v520 = vld [vmem:[%s4 + $0xa0] sm:$0xf]
  %v521 = vld [vmem:[%s4 + $0xa4] sm:$0xf]
  %v522 = vld [vmem:[%s4 + $0xa8] sm:$0xf]
  %v523 = vld [vmem:[%s4 + $0xac] sm:$0xf]
  %v524 = vld [vmem:[%s4 + $0xb0] sm:$0xf]
  %v525 = vld [vmem:[%s4 + $0xb4] sm:$0xf]
  %v526 = vld [vmem:[%s4 + $0xb8] sm:$0xf]
  %v527 = vld [vmem:[%s4 + $0xbc] sm:$0xf]
  %v528 = vld [vmem:[%s4 + $0xc0] sm:$0xf]
  %v529 = vld [vmem:[%s4 + $0xc4] sm:$0xf]
  %v530 = vld [vmem:[%s4 + $0xc8] sm:$0xf]
  %v531 = vld [vmem:[%s4 + $0xcc] sm:$0xf]
  %v532 = vld [vmem:[%s4 + $0xd0] sm:$0xf]
  %v533 = vld [vmem:[%s4 + $0xd4] sm:$0xf]
  %v534 = vld [vmem:[%s4 + $0xd8] sm:$0xf]
  %v535 = vld [vmem:[%s4 + $0xdc] sm:$0xf]
  %v536 = vld [vmem:[%s4 + $0xe0] sm:$0xf]
  %v537 = vld [vmem:[%s4 + $0xe4] sm:$0xf]
  %v538 = vld [vmem:[%s4 + $0xe8] sm:$0xf]
  %v539 = vld [vmem:[%s4 + $0xec] sm:$0xf]
  %v540 = vld [vmem:[%s4 + $0xf0] sm:$0xf]
  %v541 = vld [vmem:[%s4 + $0xf4] sm:$0xf]
  %v542 = vld [vmem:[%s4 + $0xf8] sm:$0xf]
  %v543 = vld [vmem:[%s4 + $0xfc] sm:$0xf]
  %v544 = vmax.bf16 %v416, %v480
  %v545 = vmax.bf16 %v417, %v481
  %v546 = vmax.bf16 %v418, %v482
  %v547 = vmax.bf16 %v419, %v483
  %v548 = vmax.bf16 %v420, %v484
  %v549 = vmax.bf16 %v421, %v485
  %v550 = vmax.bf16 %v422, %v486
  %v551 = vmax.bf16 %v423, %v487
  %v552 = vmax.bf16 %v424, %v488
  %v553 = vmax.bf16 %v425, %v489
  %v554 = vmax.bf16 %v426, %v490
  %v555 = vmax.bf16 %v427, %v491
  %v556 = vmax.bf16 %v428, %v492
  %v557 = vmax.bf16 %v429, %v493
  %v558 = vmax.bf16 %v430, %v494
  %v559 = vmax.bf16 %v431, %v495
  %v560 = vmax.bf16 %v432, %v496
  %v561 = vmax.bf16 %v433, %v497
  %v562 = vmax.bf16 %v434, %v498
  %v563 = vmax.bf16 %v435, %v499
  %v564 = vmax.bf16 %v436, %v500
  %v565 = vmax.bf16 %v437, %v501
  %v566 = vmax.bf16 %v438, %v502
  %v567 = vmax.bf16 %v439, %v503
  %v568 = vmax.bf16 %v440, %v504
  %v569 = vmax.bf16 %v441, %v505
  %v570 = vmax.bf16 %v442, %v506
  %v571 = vmax.bf16 %v443, %v507
  %v572 = vmax.bf16 %v444, %v508
  %v573 = vmax.bf16 %v445, %v509
  %v574 = vmax.bf16 %v446, %v510
  %v575 = vmax.bf16 %v447, %v511
  %v576 = vmax.bf16 %v448, %v512
  %v577 = vmax.bf16 %v449, %v513
  %v578 = vmax.bf16 %v450, %v514
  %v579 = vmax.bf16 %v451, %v515
  %v580 = vmax.bf16 %v452, %v516
  %v581 = vmax.bf16 %v453, %v517
  %v582 = vmax.bf16 %v454, %v518
  %v583 = vmax.bf16 %v455, %v519
  %v584 = vmax.bf16 %v456, %v520
  %v585 = vmax.bf16 %v457, %v521
  %v586 = vmax.bf16 %v458, %v522
  %v587 = vmax.bf16 %v459, %v523
  %v588 = vmax.bf16 %v460, %v524
  %v589 = vmax.bf16 %v461, %v525
  %v590 = vmax.bf16 %v462, %v526
  %v591 = vmax.bf16 %v463, %v527
  %v592 = vmax.bf16 %v464, %v528
  %v593 = vmax.bf16 %v465, %v529
  %v594 = vmax.bf16 %v466, %v530
  %v595 = vmax.bf16 %v467, %v531
  %v596 = vmax.bf16 %v468, %v532
  %v597 = vmax.bf16 %v469, %v533
  %v598 = vmax.bf16 %v470, %v534
  %v599 = vmax.bf16 %v471, %v535
  %v600 = vmax.bf16 %v472, %v536
  %v601 = vmax.bf16 %v473, %v537
  %v602 = vmax.bf16 %v474, %v538
  %v603 = vmax.bf16 %v475, %v539
  %v604 = vmax.bf16 %v476, %v540
  %v605 = vmax.bf16 %v477, %v541
  %v606 = vmax.bf16 %v478, %v542
  %v607 = vmax.bf16 %v479, %v543
  %v608 = vld [vmem:[%s5] sm:$0xf]
  %v609 = vld [vmem:[%s5 + $0x4] sm:$0xf]
  %v610 = vld [vmem:[%s5 + $0x8] sm:$0xf]
  %v611 = vld [vmem:[%s5 + $0xc] sm:$0xf]
  %v612 = vld [vmem:[%s5 + $0x10] sm:$0xf]
  %v613 = vld [vmem:[%s5 + $0x14] sm:$0xf]
  %v614 = vld [vmem:[%s5 + $0x18] sm:$0xf]
  %v615 = vld [vmem:[%s5 + $0x1c] sm:$0xf]
  %v616 = vld [vmem:[%s5 + $0x20] sm:$0xf]
  %v617 = vld [vmem:[%s5 + $0x24] sm:$0xf]
  %v618 = vld [vmem:[%s5 + $0x28] sm:$0xf]
  %v619 = vld [vmem:[%s5 + $0x2c] sm:$0xf]
  %v620 = vld [vmem:[%s5 + $0x30] sm:$0xf]
  %v621 = vld [vmem:[%s5 + $0x34] sm:$0xf]
  %v622 = vld [vmem:[%s5 + $0x38] sm:$0xf]
  %v623 = vld [vmem:[%s5 + $0x3c] sm:$0xf]
  %v624 = vld [vmem:[%s5 + $0x40] sm:$0xf]
  %v625 = vld [vmem:[%s5 + $0x44] sm:$0xf]
  %v626 = vld [vmem:[%s5 + $0x48] sm:$0xf]
  %v627 = vld [vmem:[%s5 + $0x4c] sm:$0xf]
  %v628 = vld [vmem:[%s5 + $0x50] sm:$0xf]
  %v629 = vld [vmem:[%s5 + $0x54] sm:$0xf]
  %v630 = vld [vmem:[%s5 + $0x58] sm:$0xf]
  %v631 = vld [vmem:[%s5 + $0x5c] sm:$0xf]
  %v632 = vld [vmem:[%s5 + $0x60] sm:$0xf]
  %v633 = vld [vmem:[%s5 + $0x64] sm:$0xf]
  %v634 = vld [vmem:[%s5 + $0x68] sm:$0xf]
  %v635 = vld [vmem:[%s5 + $0x6c] sm:$0xf]
  %v636 = vld [vmem:[%s5 + $0x70] sm:$0xf]
  %v637 = vld [vmem:[%s5 + $0x74] sm:$0xf]
  %v638 = vld [vmem:[%s5 + $0x78] sm:$0xf]
  %v639 = vld [vmem:[%s5 + $0x7c] sm:$0xf]
  %v640 = vld [vmem:[%s5 + $0x80] sm:$0xf]
  %v641 = vld [vmem:[%s5 + $0x84] sm:$0xf]
  %v642 = vld [vmem:[%s5 + $0x88] sm:$0xf]
  %v643 = vld [vmem:[%s5 + $0x8c] sm:$0xf]
  %v644 = vld [vmem:[%s5 + $0x90] sm:$0xf]
  %v645 = vld [vmem:[%s5 + $0x94] sm:$0xf]
  %v646 = vld [vmem:[%s5 + $0x98] sm:$0xf]
  %v647 = vld [vmem:[%s5 + $0x9c] sm:$0xf]
  %v648 = vld [vmem:[%s5 + $0xa0] sm:$0xf]
  %v649 = vld [vmem:[%s5 + $0xa4] sm:$0xf]
  %v650 = vld [vmem:[%s5 + $0xa8] sm:$0xf]
  %v651 = vld [vmem:[%s5 + $0xac] sm:$0xf]
  %v652 = vld [vmem:[%s5 + $0xb0] sm:$0xf]
  %v653 = vld [vmem:[%s5 + $0xb4] sm:$0xf]
  %v654 = vld [vmem:[%s5 + $0xb8] sm:$0xf]
  %v655 = vld [vmem:[%s5 + $0xbc] sm:$0xf]
  %v656 = vld [vmem:[%s5 + $0xc0] sm:$0xf]
  %v657 = vld [vmem:[%s5 + $0xc4] sm:$0xf]
  %v658 = vld [vmem:[%s5 + $0xc8] sm:$0xf]
  %v659 = vld [vmem:[%s5 + $0xcc] sm:$0xf]
  %v660 = vld [vmem:[%s5 + $0xd0] sm:$0xf]
  %v661 = vld [vmem:[%s5 + $0xd4] sm:$0xf]
  %v662 = vld [vmem:[%s5 + $0xd8] sm:$0xf]
  %v663 = vld [vmem:[%s5 + $0xdc] sm:$0xf]
  %v664 = vld [vmem:[%s5 + $0xe0] sm:$0xf]
  %v665 = vld [vmem:[%s5 + $0xe4] sm:$0xf]
  %v666 = vld [vmem:[%s5 + $0xe8] sm:$0xf]
  %v667 = vld [vmem:[%s5 + $0xec] sm:$0xf]
  %v668 = vld [vmem:[%s5 + $0xf0] sm:$0xf]
  %v669 = vld [vmem:[%s5 + $0xf4] sm:$0xf]
  %v670 = vld [vmem:[%s5 + $0xf8] sm:$0xf]
  %v671 = vld [vmem:[%s5 + $0xfc] sm:$0xf]
  %v672 = vmax.bf16 %v544, %v608
  %v673 = vmax.bf16 %v545, %v609
  %v674 = vmax.bf16 %v546, %v610
  %v675 = vmax.bf16 %v547, %v611
  %v676 = vmax.bf16 %v548, %v612
  %v677 = vmax.bf16 %v549, %v613
  %v678 = vmax.bf16 %v550, %v614
  %v679 = vmax.bf16 %v551, %v615
  %v680 = vmax.bf16 %v552, %v616
  %v681 = vmax.bf16 %v553, %v617
  %v682 = vmax.bf16 %v554, %v618
  %v683 = vmax.bf16 %v555, %v619
  %v684 = vmax.bf16 %v556, %v620
  %v685 = vmax.bf16 %v557, %v621
  %v686 = vmax.bf16 %v558, %v622
  %v687 = vmax.bf16 %v559, %v623
  %v688 = vmax.bf16 %v560, %v624
  %v689 = vmax.bf16 %v561, %v625
  %v690 = vmax.bf16 %v562, %v626
  %v691 = vmax.bf16 %v563, %v627
  %v692 = vmax.bf16 %v564, %v628
  %v693 = vmax.bf16 %v565, %v629
  %v694 = vmax.bf16 %v566, %v630
  %v695 = vmax.bf16 %v567, %v631
  %v696 = vmax.bf16 %v568, %v632
  %v697 = vmax.bf16 %v569, %v633
  %v698 = vmax.bf16 %v570, %v634
  %v699 = vmax.bf16 %v571, %v635
  %v700 = vmax.bf16 %v572, %v636
  %v701 = vmax.bf16 %v573, %v637
  %v702 = vmax.bf16 %v574, %v638
  %v703 = vmax.bf16 %v575, %v639
  %v704 = vmax.bf16 %v576, %v640
  %v705 = vmax.bf16 %v577, %v641
  %v706 = vmax.bf16 %v578, %v642
  %v707 = vmax.bf16 %v579, %v643
  %v708 = vmax.bf16 %v580, %v644
  %v709 = vmax.bf16 %v581, %v645
  %v710 = vmax.bf16 %v582, %v646
  %v711 = vmax.bf16 %v583, %v647
  %v712 = vmax.bf16 %v584, %v648
  %v713 = vmax.bf16 %v585, %v649
  %v714 = vmax.bf16 %v586, %v650
  %v715 = vmax.bf16 %v587, %v651
  %v716 = vmax.bf16 %v588, %v652
  %v717 = vmax.bf16 %v589, %v653
  %v718 = vmax.bf16 %v590, %v654
  %v719 = vmax.bf16 %v591, %v655
  %v720 = vmax.bf16 %v592, %v656
  %v721 = vmax.bf16 %v593, %v657
  %v722 = vmax.bf16 %v594, %v658
  %v723 = vmax.bf16 %v595, %v659
  %v724 = vmax.bf16 %v596, %v660
  %v725 = vmax.bf16 %v597, %v661
  %v726 = vmax.bf16 %v598, %v662
  %v727 = vmax.bf16 %v599, %v663
  %v728 = vmax.bf16 %v600, %v664
  %v729 = vmax.bf16 %v601, %v665
  %v730 = vmax.bf16 %v602, %v666
  %v731 = vmax.bf16 %v603, %v667
  %v732 = vmax.bf16 %v604, %v668
  %v733 = vmax.bf16 %v605, %v669
  %v734 = vmax.bf16 %v606, %v670
  %v735 = vmax.bf16 %v607, %v671
  %v736 = vld [vmem:[%s6] sm:$0xf]
  %v737 = vld [vmem:[%s6 + $0x4] sm:$0xf]
  %v738 = vld [vmem:[%s6 + $0x8] sm:$0xf]
  %v739 = vld [vmem:[%s6 + $0xc] sm:$0xf]
  %v740 = vld [vmem:[%s6 + $0x10] sm:$0xf]
  %v741 = vld [vmem:[%s6 + $0x14] sm:$0xf]
  %v742 = vld [vmem:[%s6 + $0x18] sm:$0xf]
  %v743 = vld [vmem:[%s6 + $0x1c] sm:$0xf]
  %v744 = vld [vmem:[%s6 + $0x20] sm:$0xf]
  %v745 = vld [vmem:[%s6 + $0x24] sm:$0xf]
  %v746 = vld [vmem:[%s6 + $0x28] sm:$0xf]
  %v747 = vld [vmem:[%s6 + $0x2c] sm:$0xf]
  %v748 = vld [vmem:[%s6 + $0x30] sm:$0xf]
  %v749 = vld [vmem:[%s6 + $0x34] sm:$0xf]
  %v750 = vld [vmem:[%s6 + $0x38] sm:$0xf]
  %v751 = vld [vmem:[%s6 + $0x3c] sm:$0xf]
  %v752 = vld [vmem:[%s6 + $0x40] sm:$0xf]
  %v753 = vld [vmem:[%s6 + $0x44] sm:$0xf]
  %v754 = vld [vmem:[%s6 + $0x48] sm:$0xf]
  %v755 = vld [vmem:[%s6 + $0x4c] sm:$0xf]
  %v756 = vld [vmem:[%s6 + $0x50] sm:$0xf]
  %v757 = vld [vmem:[%s6 + $0x54] sm:$0xf]
  %v758 = vld [vmem:[%s6 + $0x58] sm:$0xf]
  %v759 = vld [vmem:[%s6 + $0x5c] sm:$0xf]
  %v760 = vld [vmem:[%s6 + $0x60] sm:$0xf]
  %v761 = vld [vmem:[%s6 + $0x64] sm:$0xf]
  %v762 = vld [vmem:[%s6 + $0x68] sm:$0xf]
  %v763 = vld [vmem:[%s6 + $0x6c] sm:$0xf]
  %v764 = vld [vmem:[%s6 + $0x70] sm:$0xf]
  %v765 = vld [vmem:[%s6 + $0x74] sm:$0xf]
  %v766 = vld [vmem:[%s6 + $0x78] sm:$0xf]
  %v767 = vld [vmem:[%s6 + $0x7c] sm:$0xf]
  %v768 = vld [vmem:[%s6 + $0x80] sm:$0xf]
  %v769 = vld [vmem:[%s6 + $0x84] sm:$0xf]
  %v770 = vld [vmem:[%s6 + $0x88] sm:$0xf]
  %v771 = vld [vmem:[%s6 + $0x8c] sm:$0xf]
  %v772 = vld [vmem:[%s6 + $0x90] sm:$0xf]
  %v773 = vld [vmem:[%s6 + $0x94] sm:$0xf]
  %v774 = vld [vmem:[%s6 + $0x98] sm:$0xf]
  %v775 = vld [vmem:[%s6 + $0x9c] sm:$0xf]
  %v776 = vld [vmem:[%s6 + $0xa0] sm:$0xf]
  %v777 = vld [vmem:[%s6 + $0xa4] sm:$0xf]
  %v778 = vld [vmem:[%s6 + $0xa8] sm:$0xf]
  %v779 = vld [vmem:[%s6 + $0xac] sm:$0xf]
  %v780 = vld [vmem:[%s6 + $0xb0] sm:$0xf]
  %v781 = vld [vmem:[%s6 + $0xb4] sm:$0xf]
  %v782 = vld [vmem:[%s6 + $0xb8] sm:$0xf]
  %v783 = vld [vmem:[%s6 + $0xbc] sm:$0xf]
  %v784 = vld [vmem:[%s6 + $0xc0] sm:$0xf]
  %v785 = vld [vmem:[%s6 + $0xc4] sm:$0xf]
  %v786 = vld [vmem:[%s6 + $0xc8] sm:$0xf]
  %v787 = vld [vmem:[%s6 + $0xcc] sm:$0xf]
  %v788 = vld [vmem:[%s6 + $0xd0] sm:$0xf]
  %v789 = vld [vmem:[%s6 + $0xd4] sm:$0xf]
  %v790 = vld [vmem:[%s6 + $0xd8] sm:$0xf]
  %v791 = vld [vmem:[%s6 + $0xdc] sm:$0xf]
  %v792 = vld [vmem:[%s6 + $0xe0] sm:$0xf]
  %v793 = vld [vmem:[%s6 + $0xe4] sm:$0xf]
  %v794 = vld [vmem:[%s6 + $0xe8] sm:$0xf]
  %v795 = vld [vmem:[%s6 + $0xec] sm:$0xf]
  %v796 = vld [vmem:[%s6 + $0xf0] sm:$0xf]
  %v797 = vld [vmem:[%s6 + $0xf4] sm:$0xf]
  %v798 = vld [vmem:[%s6 + $0xf8] sm:$0xf]
  %v799 = vld [vmem:[%s6 + $0xfc] sm:$0xf]
  %v800 = vmax.bf16 %v672, %v736
  %v801 = vmax.bf16 %v673, %v737
  %v802 = vmax.bf16 %v674, %v738
  %v803 = vmax.bf16 %v675, %v739
  %v804 = vmax.bf16 %v676, %v740
  %v805 = vmax.bf16 %v677, %v741
  %v806 = vmax.bf16 %v678, %v742
  %v807 = vmax.bf16 %v679, %v743
  %v808 = vmax.bf16 %v680, %v744
  %v809 = vmax.bf16 %v681, %v745
  %v810 = vmax.bf16 %v682, %v746
  %v811 = vmax.bf16 %v683, %v747
  %v812 = vmax.bf16 %v684, %v748
  %v813 = vmax.bf16 %v685, %v749
  %v814 = vmax.bf16 %v686, %v750
  %v815 = vmax.bf16 %v687, %v751
  %v816 = vmax.bf16 %v688, %v752
  %v817 = vmax.bf16 %v689, %v753
  %v818 = vmax.bf16 %v690, %v754
  %v819 = vmax.bf16 %v691, %v755
  %v820 = vmax.bf16 %v692, %v756
  %v821 = vmax.bf16 %v693, %v757
  %v822 = vmax.bf16 %v694, %v758
  %v823 = vmax.bf16 %v695, %v759
  %v824 = vmax.bf16 %v696, %v760
  %v825 = vmax.bf16 %v697, %v761
  %v826 = vmax.bf16 %v698, %v762
  %v827 = vmax.bf16 %v699, %v763
  %v828 = vmax.bf16 %v700, %v764
  %v829 = vmax.bf16 %v701, %v765
  %v830 = vmax.bf16 %v702, %v766
  %v831 = vmax.bf16 %v703, %v767
  %v832 = vmax.bf16 %v704, %v768
  %v833 = vmax.bf16 %v705, %v769
  %v834 = vmax.bf16 %v706, %v770
  %v835 = vmax.bf16 %v707, %v771
  %v836 = vmax.bf16 %v708, %v772
  %v837 = vmax.bf16 %v709, %v773
  %v838 = vmax.bf16 %v710, %v774
  %v839 = vmax.bf16 %v711, %v775
  %v840 = vmax.bf16 %v712, %v776
  %v841 = vmax.bf16 %v713, %v777
  %v842 = vmax.bf16 %v714, %v778
  %v843 = vmax.bf16 %v715, %v779
  %v844 = vmax.bf16 %v716, %v780
  %v845 = vmax.bf16 %v717, %v781
  %v846 = vmax.bf16 %v718, %v782
  %v847 = vmax.bf16 %v719, %v783
  %v848 = vmax.bf16 %v720, %v784
  %v849 = vmax.bf16 %v721, %v785
  %v850 = vmax.bf16 %v722, %v786
  %v851 = vmax.bf16 %v723, %v787
  %v852 = vmax.bf16 %v724, %v788
  %v853 = vmax.bf16 %v725, %v789
  %v854 = vmax.bf16 %v726, %v790
  %v855 = vmax.bf16 %v727, %v791
  %v856 = vmax.bf16 %v728, %v792
  %v857 = vmax.bf16 %v729, %v793
  %v858 = vmax.bf16 %v730, %v794
  %v859 = vmax.bf16 %v731, %v795
  %v860 = vmax.bf16 %v732, %v796
  %v861 = vmax.bf16 %v733, %v797
  %v862 = vmax.bf16 %v734, %v798
  %v863 = vmax.bf16 %v735, %v799
  %v864 = vld [vmem:[%s7] sm:$0xf]
  %v865 = vld [vmem:[%s7 + $0x4] sm:$0xf]
  %v866 = vld [vmem:[%s7 + $0x8] sm:$0xf]
  %v867 = vld [vmem:[%s7 + $0xc] sm:$0xf]
  %v868 = vld [vmem:[%s7 + $0x10] sm:$0xf]
  %v869 = vld [vmem:[%s7 + $0x14] sm:$0xf]
  %v870 = vld [vmem:[%s7 + $0x18] sm:$0xf]
  %v871 = vld [vmem:[%s7 + $0x1c] sm:$0xf]
  %v872 = vld [vmem:[%s7 + $0x20] sm:$0xf]
  %v873 = vld [vmem:[%s7 + $0x24] sm:$0xf]
  %v874 = vld [vmem:[%s7 + $0x28] sm:$0xf]
  %v875 = vld [vmem:[%s7 + $0x2c] sm:$0xf]
  %v876 = vld [vmem:[%s7 + $0x30] sm:$0xf]
  %v877 = vld [vmem:[%s7 + $0x34] sm:$0xf]
  %v878 = vld [vmem:[%s7 + $0x38] sm:$0xf]
  %v879 = vld [vmem:[%s7 + $0x3c] sm:$0xf]
  %v880 = vld [vmem:[%s7 + $0x40] sm:$0xf]
  %v881 = vld [vmem:[%s7 + $0x44] sm:$0xf]
  %v882 = vld [vmem:[%s7 + $0x48] sm:$0xf]
  %v883 = vld [vmem:[%s7 + $0x4c] sm:$0xf]
  %v884 = vld [vmem:[%s7 + $0x50] sm:$0xf]
  %v885 = vld [vmem:[%s7 + $0x54] sm:$0xf]
  %v886 = vld [vmem:[%s7 + $0x58] sm:$0xf]
  %v887 = vld [vmem:[%s7 + $0x5c] sm:$0xf]
  %v888 = vld [vmem:[%s7 + $0x60] sm:$0xf]
  %v889 = vld [vmem:[%s7 + $0x64] sm:$0xf]
  %v890 = vld [vmem:[%s7 + $0x68] sm:$0xf]
  %v891 = vld [vmem:[%s7 + $0x6c] sm:$0xf]
  %v892 = vld [vmem:[%s7 + $0x70] sm:$0xf]
  %v893 = vld [vmem:[%s7 + $0x74] sm:$0xf]
  %v894 = vld [vmem:[%s7 + $0x78] sm:$0xf]
  %v895 = vld [vmem:[%s7 + $0x7c] sm:$0xf]
  %v896 = vld [vmem:[%s7 + $0x80] sm:$0xf]
  %v897 = vld [vmem:[%s7 + $0x84] sm:$0xf]
  %v898 = vld [vmem:[%s7 + $0x88] sm:$0xf]
  %v899 = vld [vmem:[%s7 + $0x8c] sm:$0xf]
  %v900 = vld [vmem:[%s7 + $0x90] sm:$0xf]
  %v901 = vld [vmem:[%s7 + $0x94] sm:$0xf]
  %v902 = vld [vmem:[%s7 + $0x98] sm:$0xf]
  %v903 = vld [vmem:[%s7 + $0x9c] sm:$0xf]
  %v904 = vld [vmem:[%s7 + $0xa0] sm:$0xf]
  %v905 = vld [vmem:[%s7 + $0xa4] sm:$0xf]
  %v906 = vld [vmem:[%s7 + $0xa8] sm:$0xf]
  %v907 = vld [vmem:[%s7 + $0xac] sm:$0xf]
  %v908 = vld [vmem:[%s7 + $0xb0] sm:$0xf]
  %v909 = vld [vmem:[%s7 + $0xb4] sm:$0xf]
  %v910 = vld [vmem:[%s7 + $0xb8] sm:$0xf]
  %v911 = vld [vmem:[%s7 + $0xbc] sm:$0xf]
  %v912 = vld [vmem:[%s7 + $0xc0] sm:$0xf]
  %v913 = vld [vmem:[%s7 + $0xc4] sm:$0xf]
  %v914 = vld [vmem:[%s7 + $0xc8] sm:$0xf]
  %v915 = vld [vmem:[%s7 + $0xcc] sm:$0xf]
  %v916 = vld [vmem:[%s7 + $0xd0] sm:$0xf]
  %v917 = vld [vmem:[%s7 + $0xd4] sm:$0xf]
  %v918 = vld [vmem:[%s7 + $0xd8] sm:$0xf]
  %v919 = vld [vmem:[%s7 + $0xdc] sm:$0xf]
  %v920 = vld [vmem:[%s7 + $0xe0] sm:$0xf]
  %v921 = vld [vmem:[%s7 + $0xe4] sm:$0xf]
  %v922 = vld [vmem:[%s7 + $0xe8] sm:$0xf]
  %v923 = vld [vmem:[%s7 + $0xec] sm:$0xf]
  %v924 = vld [vmem:[%s7 + $0xf0] sm:$0xf]
  %v925 = vld [vmem:[%s7 + $0xf4] sm:$0xf]
  %v926 = vld [vmem:[%s7 + $0xf8] sm:$0xf]
  %v927 = vld [vmem:[%s7 + $0xfc] sm:$0xf]
  %v928 = vmax.bf16 %v800, %v864
  %v929 = vmax.bf16 %v801, %v865
  %v930 = vmax.bf16 %v802, %v866
  %v931 = vmax.bf16 %v803, %v867
  %v932 = vmax.bf16 %v804, %v868
  %v933 = vmax.bf16 %v805, %v869
  %v934 = vmax.bf16 %v806, %v870
  %v935 = vmax.bf16 %v807, %v871
  %v936 = vmax.bf16 %v808, %v872
  %v937 = vmax.bf16 %v809, %v873
  %v938 = vmax.bf16 %v810, %v874
  %v939 = vmax.bf16 %v811, %v875
  %v940 = vmax.bf16 %v812, %v876
  %v941 = vmax.bf16 %v813, %v877
  %v942 = vmax.bf16 %v814, %v878
  %v943 = vmax.bf16 %v815, %v879
  %v944 = vmax.bf16 %v816, %v880
  %v945 = vmax.bf16 %v817, %v881
  %v946 = vmax.bf16 %v818, %v882
  %v947 = vmax.bf16 %v819, %v883
  %v948 = vmax.bf16 %v820, %v884
  %v949 = vmax.bf16 %v821, %v885
  %v950 = vmax.bf16 %v822, %v886
  %v951 = vmax.bf16 %v823, %v887
  %v952 = vmax.bf16 %v824, %v888
  %v953 = vmax.bf16 %v825, %v889
  %v954 = vmax.bf16 %v826, %v890
  %v955 = vmax.bf16 %v827, %v891
  %v956 = vmax.bf16 %v828, %v892
  %v957 = vmax.bf16 %v829, %v893
  %v958 = vmax.bf16 %v830, %v894
  %v959 = vmax.bf16 %v831, %v895
  %v960 = vmax.bf16 %v832, %v896
  %v961 = vmax.bf16 %v833, %v897
  %v962 = vmax.bf16 %v834, %v898
  %v963 = vmax.bf16 %v835, %v899
  %v964 = vmax.bf16 %v836, %v900
  %v965 = vmax.bf16 %v837, %v901
  %v966 = vmax.bf16 %v838, %v902
  %v967 = vmax.bf16 %v839, %v903
  %v968 = vmax.bf16 %v840, %v904
  %v969 = vmax.bf16 %v841, %v905
  %v970 = vmax.bf16 %v842, %v906
  %v971 = vmax.bf16 %v843, %v907
  %v972 = vmax.bf16 %v844, %v908
  %v973 = vmax.bf16 %v845, %v909
  %v974 = vmax.bf16 %v846, %v910
  %v975 = vmax.bf16 %v847, %v911
  %v976 = vmax.bf16 %v848, %v912
  %v977 = vmax.bf16 %v849, %v913
  %v978 = vmax.bf16 %v850, %v914
  %v979 = vmax.bf16 %v851, %v915
  %v980 = vmax.bf16 %v852, %v916
  %v981 = vmax.bf16 %v853, %v917
  %v982 = vmax.bf16 %v854, %v918
  %v983 = vmax.bf16 %v855, %v919
  %v984 = vmax.bf16 %v856, %v920
  %v985 = vmax.bf16 %v857, %v921
  %v986 = vmax.bf16 %v858, %v922
  %v987 = vmax.bf16 %v859, %v923
  %v988 = vmax.bf16 %v860, %v924
  %v989 = vmax.bf16 %v861, %v925
  %v990 = vmax.bf16 %v862, %v926
  %v991 = vmax.bf16 %v863, %v927
  %v992 = vld [vmem:[%s8] sm:$0xf]
  %v993 = vld [vmem:[%s8 + $0x4] sm:$0xf]
  %v994 = vld [vmem:[%s8 + $0x8] sm:$0xf]
  %v995 = vld [vmem:[%s8 + $0xc] sm:$0xf]
  %v996 = vld [vmem:[%s8 + $0x10] sm:$0xf]
  %v997 = vld [vmem:[%s8 + $0x14] sm:$0xf]
  %v998 = vld [vmem:[%s8 + $0x18] sm:$0xf]
  %v999 = vld [vmem:[%s8 + $0x1c] sm:$0xf]
  %v1000 = vld [vmem:[%s8 + $0x20] sm:$0xf]
  %v1001 = vld [vmem:[%s8 + $0x24] sm:$0xf]
  %v1002 = vld [vmem:[%s8 + $0x28] sm:$0xf]
  %v1003 = vld [vmem:[%s8 + $0x2c] sm:$0xf]
  %v1004 = vld [vmem:[%s8 + $0x30] sm:$0xf]
  %v1005 = vld [vmem:[%s8 + $0x34] sm:$0xf]
  %v1006 = vld [vmem:[%s8 + $0x38] sm:$0xf]
  %v1007 = vld [vmem:[%s8 + $0x3c] sm:$0xf]
  %v1008 = vld [vmem:[%s8 + $0x40] sm:$0xf]
  %v1009 = vld [vmem:[%s8 + $0x44] sm:$0xf]
  %v1010 = vld [vmem:[%s8 + $0x48] sm:$0xf]
  %v1011 = vld [vmem:[%s8 + $0x4c] sm:$0xf]
  %v1012 = vld [vmem:[%s8 + $0x50] sm:$0xf]
  %v1013 = vld [vmem:[%s8 + $0x54] sm:$0xf]
  %v1014 = vld [vmem:[%s8 + $0x58] sm:$0xf]
  %v1015 = vld [vmem:[%s8 + $0x5c] sm:$0xf]
  %v1016 = vld [vmem:[%s8 + $0x60] sm:$0xf]
  %v1017 = vld [vmem:[%s8 + $0x64] sm:$0xf]
  %v1018 = vld [vmem:[%s8 + $0x68] sm:$0xf]
  %v1019 = vld [vmem:[%s8 + $0x6c] sm:$0xf]
  %v1020 = vld [vmem:[%s8 + $0x70] sm:$0xf]
  %v1021 = vld [vmem:[%s8 + $0x74] sm:$0xf]
  %v1022 = vld [vmem:[%s8 + $0x78] sm:$0xf]
  %v1023 = vld [vmem:[%s8 + $0x7c] sm:$0xf]
  %v1024 = vld [vmem:[%s8 + $0x80] sm:$0xf]
  %v1025 = vld [vmem:[%s8 + $0x84] sm:$0xf]
  %v1026 = vld [vmem:[%s8 + $0x88] sm:$0xf]
  %v1027 = vld [vmem:[%s8 + $0x8c] sm:$0xf]
  %v1028 = vld [vmem:[%s8 + $0x90] sm:$0xf]
  %v1029 = vld [vmem:[%s8 + $0x94] sm:$0xf]
  %v1030 = vld [vmem:[%s8 + $0x98] sm:$0xf]
  %v1031 = vld [vmem:[%s8 + $0x9c] sm:$0xf]
  %v1032 = vld [vmem:[%s8 + $0xa0] sm:$0xf]
  %v1033 = vld [vmem:[%s8 + $0xa4] sm:$0xf]
  %v1034 = vld [vmem:[%s8 + $0xa8] sm:$0xf]
  %v1035 = vld [vmem:[%s8 + $0xac] sm:$0xf]
  %v1036 = vld [vmem:[%s8 + $0xb0] sm:$0xf]
  %v1037 = vld [vmem:[%s8 + $0xb4] sm:$0xf]
  %v1038 = vld [vmem:[%s8 + $0xb8] sm:$0xf]
  %v1039 = vld [vmem:[%s8 + $0xbc] sm:$0xf]
  %v1040 = vld [vmem:[%s8 + $0xc0] sm:$0xf]
  %v1041 = vld [vmem:[%s8 + $0xc4] sm:$0xf]
  %v1042 = vld [vmem:[%s8 + $0xc8] sm:$0xf]
  %v1043 = vld [vmem:[%s8 + $0xcc] sm:$0xf]
  %v1044 = vld [vmem:[%s8 + $0xd0] sm:$0xf]
  %v1045 = vld [vmem:[%s8 + $0xd4] sm:$0xf]
  %v1046 = vld [vmem:[%s8 + $0xd8] sm:$0xf]
  %v1047 = vld [vmem:[%s8 + $0xdc] sm:$0xf]
  %v1048 = vld [vmem:[%s8 + $0xe0] sm:$0xf]
  %v1049 = vld [vmem:[%s8 + $0xe4] sm:$0xf]
  %v1050 = vld [vmem:[%s8 + $0xe8] sm:$0xf]
  %v1051 = vld [vmem:[%s8 + $0xec] sm:$0xf]
  %v1052 = vld [vmem:[%s8 + $0xf0] sm:$0xf]
  %v1053 = vld [vmem:[%s8 + $0xf4] sm:$0xf]
  %v1054 = vld [vmem:[%s8 + $0xf8] sm:$0xf]
  %v1055 = vld [vmem:[%s8 + $0xfc] sm:$0xf]
  %v1056 = vmax.bf16 %v928, %v992
  %v1057 = vmax.bf16 %v929, %v993
  %v1058 = vmax.bf16 %v930, %v994
  %v1059 = vmax.bf16 %v931, %v995
  %v1060 = vmax.bf16 %v932, %v996
  %v1061 = vmax.bf16 %v933, %v997
  %v1062 = vmax.bf16 %v934, %v998
  %v1063 = vmax.bf16 %v935, %v999
  %v1064 = vmax.bf16 %v936, %v1000
  %v1065 = vmax.bf16 %v937, %v1001
  %v1066 = vmax.bf16 %v938, %v1002
  %v1067 = vmax.bf16 %v939, %v1003
  %v1068 = vmax.bf16 %v940, %v1004
  %v1069 = vmax.bf16 %v941, %v1005
  %v1070 = vmax.bf16 %v942, %v1006
  %v1071 = vmax.bf16 %v943, %v1007
  %v1072 = vmax.bf16 %v944, %v1008
  %v1073 = vmax.bf16 %v945, %v1009
  %v1074 = vmax.bf16 %v946, %v1010
  %v1075 = vmax.bf16 %v947, %v1011
  %v1076 = vmax.bf16 %v948, %v1012
  %v1077 = vmax.bf16 %v949, %v1013
  %v1078 = vmax.bf16 %v950, %v1014
  %v1079 = vmax.bf16 %v951, %v1015
  %v1080 = vmax.bf16 %v952, %v1016
  %v1081 = vmax.bf16 %v953, %v1017
  %v1082 = vmax.bf16 %v954, %v1018
  %v1083 = vmax.bf16 %v955, %v1019
  %v1084 = vmax.bf16 %v956, %v1020
  %v1085 = vmax.bf16 %v957, %v1021
  %v1086 = vmax.bf16 %v958, %v1022
  %v1087 = vmax.bf16 %v959, %v1023
  %v1088 = vmax.bf16 %v960, %v1024
  %v1089 = vmax.bf16 %v961, %v1025
  %v1090 = vmax.bf16 %v962, %v1026
  %v1091 = vmax.bf16 %v963, %v1027
  %v1092 = vmax.bf16 %v964, %v1028
  %v1093 = vmax.bf16 %v965, %v1029
  %v1094 = vmax.bf16 %v966, %v1030
  %v1095 = vmax.bf16 %v967, %v1031
  %v1096 = vmax.bf16 %v968, %v1032
  %v1097 = vmax.bf16 %v969, %v1033
  %v1098 = vmax.bf16 %v970, %v1034
  %v1099 = vmax.bf16 %v971, %v1035
  %v1100 = vmax.bf16 %v972, %v1036
  %v1101 = vmax.bf16 %v973, %v1037
  %v1102 = vmax.bf16 %v974, %v1038
  %v1103 = vmax.bf16 %v975, %v1039
  %v1104 = vmax.bf16 %v976, %v1040
  %v1105 = vmax.bf16 %v977, %v1041
  %v1106 = vmax.bf16 %v978, %v1042
  %v1107 = vmax.bf16 %v979, %v1043
  %v1108 = vmax.bf16 %v980, %v1044
  %v1109 = vmax.bf16 %v981, %v1045
  %v1110 = vmax.bf16 %v982, %v1046
  %v1111 = vmax.bf16 %v983, %v1047
  %v1112 = vmax.bf16 %v984, %v1048
  %v1113 = vmax.bf16 %v985, %v1049
  %v1114 = vmax.bf16 %v986, %v1050
  %v1115 = vmax.bf16 %v987, %v1051
  %v1116 = vmax.bf16 %v988, %v1052
  %v1117 = vmax.bf16 %v989, %v1053
  %v1118 = vmax.bf16 %v990, %v1054
  %v1119 = vmax.bf16 %v991, %v1055
  %vm1120 = vcmask 125952
  %1121 = vst.msk [vmem:[%s9] sm:$0xf] %vm1120, %v1056
  %1122 = vst.msk [vmem:[%s9 + $0x4] sm:$0xf] %vm1120, %v1057
  %1123 = vst.msk [vmem:[%s9 + $0x8] sm:$0xf] %vm1120, %v1058
  %1124 = vst.msk [vmem:[%s9 + $0xc] sm:$0xf] %vm1120, %v1059
  %1125 = vst.msk [vmem:[%s9 + $0x10] sm:$0xf] %vm1120, %v1060
  %1126 = vst.msk [vmem:[%s9 + $0x14] sm:$0xf] %vm1120, %v1061
  %1127 = vst.msk [vmem:[%s9 + $0x18] sm:$0xf] %vm1120, %v1062
  %1128 = vst.msk [vmem:[%s9 + $0x1c] sm:$0xf] %vm1120, %v1063
  %1129 = vst.msk [vmem:[%s9 + $0x20] sm:$0xf] %vm1120, %v1064
  %1130 = vst.msk [vmem:[%s9 + $0x24] sm:$0xf] %vm1120, %v1065
  %1131 = vst.msk [vmem:[%s9 + $0x28] sm:$0xf] %vm1120, %v1066
  %1132 = vst.msk [vmem:[%s9 + $0x2c] sm:$0xf] %vm1120, %v1067
  %1133 = vst.msk [vmem:[%s9 + $0x30] sm:$0xf] %vm1120, %v1068
  %1134 = vst.msk [vmem:[%s9 + $0x34] sm:$0xf] %vm1120, %v1069
  %1135 = vst.msk [vmem:[%s9 + $0x38] sm:$0xf] %vm1120, %v1070
  %1136 = vst.msk [vmem:[%s9 + $0x3c] sm:$0xf] %vm1120, %v1071
  %1137 = vst.msk [vmem:[%s9 + $0x40] sm:$0xf] %vm1120, %v1072
  %1138 = vst.msk [vmem:[%s9 + $0x44] sm:$0xf] %vm1120, %v1073
  %1139 = vst.msk [vmem:[%s9 + $0x48] sm:$0xf] %vm1120, %v1074
  %1140 = vst.msk [vmem:[%s9 + $0x4c] sm:$0xf] %vm1120, %v1075
  %1141 = vst.msk [vmem:[%s9 + $0x50] sm:$0xf] %vm1120, %v1076
  %1142 = vst.msk [vmem:[%s9 + $0x54] sm:$0xf] %vm1120, %v1077
  %1143 = vst.msk [vmem:[%s9 + $0x58] sm:$0xf] %vm1120, %v1078
  %1144 = vst.msk [vmem:[%s9 + $0x5c] sm:$0xf] %vm1120, %v1079
  %1145 = vst.msk [vmem:[%s9 + $0x60] sm:$0xf] %vm1120, %v1080
  %1146 = vst.msk [vmem:[%s9 + $0x64] sm:$0xf] %vm1120, %v1081
  %1147 = vst.msk [vmem:[%s9 + $0x68] sm:$0xf] %vm1120, %v1082
  %1148 = vst.msk [vmem:[%s9 + $0x6c] sm:$0xf] %vm1120, %v1083
  %1149 = vst.msk [vmem:[%s9 + $0x70] sm:$0xf] %vm1120, %v1084
  %1150 = vst.msk [vmem:[%s9 + $0x74] sm:$0xf] %vm1120, %v1085
  %1151 = vst.msk [vmem:[%s9 + $0x78] sm:$0xf] %vm1120, %v1086
  %1152 = vst.msk [vmem:[%s9 + $0x7c] sm:$0xf] %vm1120, %v1087
  %1153 = vst.msk [vmem:[%s9 + $0x80] sm:$0xf] %vm1120, %v1088
  %1154 = vst.msk [vmem:[%s9 + $0x84] sm:$0xf] %vm1120, %v1089
  %1155 = vst.msk [vmem:[%s9 + $0x88] sm:$0xf] %vm1120, %v1090
  %1156 = vst.msk [vmem:[%s9 + $0x8c] sm:$0xf] %vm1120, %v1091
  %1157 = vst.msk [vmem:[%s9 + $0x90] sm:$0xf] %vm1120, %v1092
  %1158 = vst.msk [vmem:[%s9 + $0x94] sm:$0xf] %vm1120, %v1093
  %1159 = vst.msk [vmem:[%s9 + $0x98] sm:$0xf] %vm1120, %v1094
  %1160 = vst.msk [vmem:[%s9 + $0x9c] sm:$0xf] %vm1120, %v1095
  %1161 = vst.msk [vmem:[%s9 + $0xa0] sm:$0xf] %vm1120, %v1096
  %1162 = vst.msk [vmem:[%s9 + $0xa4] sm:$0xf] %vm1120, %v1097
  %1163 = vst.msk [vmem:[%s9 + $0xa8] sm:$0xf] %vm1120, %v1098
  %1164 = vst.msk [vmem:[%s9 + $0xac] sm:$0xf] %vm1120, %v1099
  %1165 = vst.msk [vmem:[%s9 + $0xb0] sm:$0xf] %vm1120, %v1100
  %1166 = vst.msk [vmem:[%s9 + $0xb4] sm:$0xf] %vm1120, %v1101
  %1167 = vst.msk [vmem:[%s9 + $0xb8] sm:$0xf] %vm1120, %v1102
  %1168 = vst.msk [vmem:[%s9 + $0xbc] sm:$0xf] %vm1120, %v1103
  %1169 = vst.msk [vmem:[%s9 + $0xc0] sm:$0xf] %vm1120, %v1104
  %1170 = vst.msk [vmem:[%s9 + $0xc4] sm:$0xf] %vm1120, %v1105
  %1171 = vst.msk [vmem:[%s9 + $0xc8] sm:$0xf] %vm1120, %v1106
  %1172 = vst.msk [vmem:[%s9 + $0xcc] sm:$0xf] %vm1120, %v1107
  %1173 = vst.msk [vmem:[%s9 + $0xd0] sm:$0xf] %vm1120, %v1108
  %1174 = vst.msk [vmem:[%s9 + $0xd4] sm:$0xf] %vm1120, %v1109
  %1175 = vst.msk [vmem:[%s9 + $0xd8] sm:$0xf] %vm1120, %v1110
  %1176 = vst.msk [vmem:[%s9 + $0xdc] sm:$0xf] %vm1120, %v1111
  %1177 = vst.msk [vmem:[%s9 + $0xe0] sm:$0xf] %vm1120, %v1112
  %1178 = vst.msk [vmem:[%s9 + $0xe4] sm:$0xf] %vm1120, %v1113
  %1179 = vst.msk [vmem:[%s9 + $0xe8] sm:$0xf] %vm1120, %v1114
  %1180 = vst.msk [vmem:[%s9 + $0xec] sm:$0xf] %vm1120, %v1115
  %1181 = vst.msk [vmem:[%s9 + $0xf0] sm:$0xf] %vm1120, %v1116
  %1182 = vst.msk [vmem:[%s9 + $0xf4] sm:$0xf] %vm1120, %v1117
  %1183 = vst.msk [vmem:[%s9 + $0xf8] sm:$0xf] %vm1120, %v1118
  %1184 = vst.msk [vmem:[%s9 + $0xfc] sm:$0xf] %vm1120, %v1119
  // Predicated region
  $region38: #{_lambda_.24} parent=0 // pred_check
    _
  $region39: #{_lambda_.24} parent=0 // pred_check_branch
    %1186 = sbr.rel (0) target = $region41
  $region40: #{_lambda_.24} parent=0 // pred_region
    _
  $region41: #{_lambda_.24} parent=0 // pred_fallthru
    _
  // Predicated region
  $region42: #{_lambda_.24} parent=0 // pred_check
    _
  $region43: #{_lambda_.24} parent=0 // pred_check_branch
    %1188 = sbr.rel (0) target = $region45
  $region44: #{_lambda_.24} parent=0 // pred_region
    _
  $region45: #{_lambda_.24} parent=0 // pred_fallthru
    _

// kernel: _lambda_.25
$region0: #{_lambda_.25}
  #allocation0 [shape = 'u32[]', space=smem, size = 0x4, offset = 0x4, fixed_abs, tag = 'smem constant byte address 0x4 - core index']
  #allocation1 [shape = 'u32[144,128]{1,0:T(1,128)}', space=vmem, size = 0x12000, scoped, tag = 'internal scratch']
  %s0 = inlined_call_operand.vmem [shape: bf16[512,144], index: 0, kind: input, shape index: {}]
  %s1 = inlined_call_operand.vmem [shape: bf16[144,16], index: 1, kind: input, shape index: {}]
  %s2 = inlined_call_operand.vmem [shape: f32[1,16], index: 2, kind: input, shape index: {}]
  %s3 = inlined_call_operand.vmem [shape: bf16[512,16], index: 3, kind: output, shape index: {}]
  %s4 = sld [smem:[#allocation0]]
  $region45: #{_lambda_.25} parent=0
    _
  %s6 = ssub.s32 1, %s4
  %s7 = scalar_select 0, %s6, %s4
  loop: start=0, step=1, limit=4
  $region2: #{_lambda_.25} parent=0 // loop_pre_header
    _
  $region3: #{_lambda_.25} parent=0 // loop_header
    %s9 = sphi 0, %s13
    %p10 = scmp.ge.s32.totalorder %s9, 4
    %s16 = sphi 0, %s28
    %s17 = sphi 0, %s24
    %s18 = sphi 0, %s16
    %s19 = sphi 0, %s17
    %s20 = sphi 0, %s18
    %s21 = sphi 0, %s19
    %s33 = sphi 0, %s35
    %s36 = sphi 0, %s33
    %s37 = sphi 0, %s36
    %s53 = sphi 0, %s37
    %s59 = sphi 0, %s61
    %s62 = sphi 0, %s59
    %s63 = sphi 0, %s62
    %s79 = sphi 0, %s63
    %s83 = sphi 0, %s83
    %s85 = sphi 0, %s83
    %s86 = sphi 0, %s85
    %s100 = sphi 0, %s86
    %s106 = sphi 0, %s108
    %s109 = sphi 0, %s106
    %s110 = sphi 0, %s109
    %s126 = sphi 0, %s110
  $region4: #{_lambda_.25} parent=0 // loop_header_branch
    %12 = sbr.rel (%p10) target = $region8
  $region5: #{_lambda_.25} parent=0 // loop_body
    %s14 = ssub.s32 %s9, 1
    %s15 = ssub.s32 %s9, 2
    %s22 = sadd.s32 1, %s17
    %p23 = scmp.ge.s32.totalorder %s22, 1
    %s24 = scalar_select %p23, 0, %s22
    %s25 = sadd.s32 1, %s16
    %s26 = scalar_select %p23, %s25, %s16
    %p27 = scmp.ge.s32.totalorder %s26, 2
    %s28 = scalar_select %p27, 0, %s26
    %s29 = ssub.s32 %s16, %s28
    %s30 = ssub.s32 %s17, %s24
    %s31 = sor.u32 %s29, %s30
    %p32 = scmp.eq.s32.totalorder %s31, 0
    %s34 = sadd.s32 %s33, 1
    %s35 = scalar_select %p32, %s33, %s34
    %p38 = pneg %p32
    %p39 = scmp.eq.s32.totalorder %s9, 1
    %p40 = por %p38, %p39
    %p41 = scmp.ne.s32.totalorder %s33, %s36
    %p42 = scmp.eq.s32.totalorder %s9, 0
    %p43 = por %p41, %p42
    %p44 = scmp.ne.s32.totalorder %s33, %s36
    %p45 = scmp.eq.s32.totalorder %s14, 1
    %p46 = por %p44, %p45
    %p47 = scmp.ne.s32.totalorder %s36, %s37
    %p48 = scmp.eq.s32.totalorder %s14, 0
    %p49 = por %p47, %p48
    %p50 = scmp.ne.s32.totalorder %s36, %s37
    %p51 = scmp.eq.s32.totalorder %s15, 1
    %p52 = por %p50, %p51
    %p54 = scmp.ne.s32.totalorder %s37, %s53
    %p55 = scmp.eq.s32.totalorder %s15, 0
    %p56 = por %p54, %p55
    %s57 = ssub.s32 %s17, %s24
    %p58 = scmp.eq.s32.totalorder %s57, 0
    %s60 = sadd.s32 %s59, 1
    %s61 = scalar_select %p58, %s59, %s60
    %p64 = pneg %p58
    %p65 = scmp.eq.s32.totalorder %s9, 1
    %p66 = por %p64, %p65
    %p67 = scmp.ne.s32.totalorder %s59, %s62
    %p68 = scmp.eq.s32.totalorder %s9, 0
    %p69 = por %p67, %p68
    %p70 = scmp.ne.s32.totalorder %s59, %s62
    %p71 = scmp.eq.s32.totalorder %s14, 1
    %p72 = por %p70, %p71
    %p73 = scmp.ne.s32.totalorder %s62, %s63
    %p74 = scmp.eq.s32.totalorder %s14, 0
    %p75 = por %p73, %p74
    %p76 = scmp.ne.s32.totalorder %s62, %s63
    %p77 = scmp.eq.s32.totalorder %s15, 1
    %p78 = por %p76, %p77
    %p80 = scmp.ne.s32.totalorder %s63, %s79
    %p81 = scmp.eq.s32.totalorder %s15, 0
    %p82 = por %p80, %p81
    %s84 = sadd.s32 %s83, 1
    %p87 = scmp.eq.s32.totalorder %s9, 1
    %p88 = scmp.ne.s32.totalorder %s83, %s85
    %p89 = scmp.eq.s32.totalorder %s9, 0
    %p90 = por %p88, %p89
    %p91 = scmp.ne.s32.totalorder %s83, %s85
    %p92 = scmp.eq.s32.totalorder %s14, 1
    %p93 = por %p91, %p92
    %p94 = scmp.ne.s32.totalorder %s85, %s86
    %p95 = scmp.eq.s32.totalorder %s14, 0
    %p96 = por %p94, %p95
    %p97 = scmp.ne.s32.totalorder %s85, %s86
    %p98 = scmp.eq.s32.totalorder %s15, 1
    %p99 = por %p97, %p98
    %p101 = scmp.ne.s32.totalorder %s86, %s100
    %p102 = scmp.eq.s32.totalorder %s15, 0
    %p103 = por %p101, %p102
    %s104 = ssub.s32 %s16, %s28
    %p105 = scmp.eq.s32.totalorder %s104, 0
    %s107 = sadd.s32 %s106, 1
    %s108 = scalar_select %p105, %s106, %s107
    %p111 = pneg %p105
    %p112 = scmp.eq.s32.totalorder %s9, 1
    %p113 = por %p111, %p112
    %p114 = scmp.ne.s32.totalorder %s106, %s109
    %p115 = scmp.eq.s32.totalorder %s9, 0
    %p116 = por %p114, %p115
    %p117 = scmp.ne.s32.totalorder %s106, %s109
    %p118 = scmp.eq.s32.totalorder %s14, 1
    %p119 = por %p117, %p118
    %p120 = scmp.ne.s32.totalorder %s109, %s110
    %p121 = scmp.eq.s32.totalorder %s14, 0
    %p122 = por %p120, %p121
    %p123 = scmp.ne.s32.totalorder %s109, %s110
    %p124 = scmp.eq.s32.totalorder %s15, 1
    %p125 = por %p123, %p124
    %p127 = scmp.ne.s32.totalorder %s110, %s126
    %p128 = scmp.eq.s32.totalorder %s15, 0
    %p129 = por %p127, %p128
    %p130 = scmp.le.s32.totalorder 1, %s9
    %p131 = scmp.lt.s32.totalorder %s9, 3
    %p132 = pnand %p130, %p131
    %p133 = pneg %p132
    // Predicated region
    $region9: #{_lambda_.25} parent=5 // pred_check
      _
    $region10: #{_lambda_.25} parent=5 // pred_check_branch
      %135 = sbr.rel (%p132) target = $region12
    $region11: #{_lambda_.25} parent=5 // pred_region
      %s136 = ssub.s32 %s9, 1
      // Predicated region
      $region13: #{_lambda_.25} parent=11 // pred_check
        %p137 = pneg %p75
      $region14: #{_lambda_.25} parent=11 // pred_check_branch
        %139 = sbr.rel (%p137) target = $region16
      $region15: #{_lambda_.25} parent=11 // pred_region
        %s140 = smul.u32 18, %s19
        %p141 = scmp.lt.s32.totalorder %s140, 17
        %s142 = scalar_select %p141, %s140, 17
        %s143 = smul.addr %s142, 4
        %s144 = scalar_lea.vmem %s1, %s143
        %s145 = smul.u32 18, %s19
      $region16: #{_lambda_.25} parent=11 // pred_fallthru
        _
      // Predicated region
      $region17: #{_lambda_.25} parent=11 // pred_check
        %p146 = pneg %p96
      $region18: #{_lambda_.25} parent=11 // pred_check_branch
        %148 = sbr.rel (%p146) target = $region20
      $region19: #{_lambda_.25} parent=11 // pred_region
        _
      $region20: #{_lambda_.25} parent=11 // pred_fallthru
        _
    $region12: #{_lambda_.25} parent=5 // pred_fallthru
      _
    %p149 = scmp.lt.s32.totalorder %s9, 2
    // Predicated region
    $region21: #{_lambda_.25} parent=5 // pred_check
      %p150 = pneg %p149
    $region22: #{_lambda_.25} parent=5 // pred_check_branch
      %152 = sbr.rel (%p150) target = $region24
    $region23: #{_lambda_.25} parent=5 // pred_region
      // Predicated region
      $region25: #{_lambda_.25} parent=23 // pred_check
        %p153 = pneg %p43
      $region26: #{_lambda_.25} parent=23 // pred_check_branch
        %155 = sbr.rel (%p153) target = $region28
      $region27: #{_lambda_.25} parent=23 // pred_region
        %s156 = smul.u32 32, %s16
        %s157 = smul.u32 2, %s17
        %p158 = scmp.lt.s32.totalorder %s156, 63
        %s159 = scalar_select %p158, %s156, 63
        %p160 = scmp.lt.s32.totalorder %s157, 1
        %s161 = scalar_select %p160, %s157, 1
        %s162 = smul.addr %s159, 2
        %s163 = sadd.s32 %s161, %s162
        %s164 = smul.addr %s163, 4
        %s165 = scalar_lea.vmem %s0, %s164
        %s166 = smul.u32 32, %s16
        %s167 = smul.u32 2, %s17
      $region28: #{_lambda_.25} parent=23 // pred_fallthru
        _
    $region24: #{_lambda_.25} parent=5 // pred_fallthru
      _
    %p168 = scmp.le.s32.totalorder 1, %s9
    %p169 = scmp.lt.s32.totalorder %s9, 3
    %p170 = pnand %p168, %p169
    %p171 = pneg %p170
    // Predicated region
    $region29: #{_lambda_.25} parent=5 // pred_check
      _
    $region30: #{_lambda_.25} parent=5 // pred_check_branch
      %173 = sbr.rel (%p170) target = $region32
    $region31: #{_lambda_.25} parent=5 // pred_region
      %s174 = ssub.s32 %s9, 1
      %s175 = smul.u32 32, %s18
      %s176 = smul.u32 2, %s19
      %p177 = scmp.lt.s32.totalorder %s175, 63
      %s178 = scalar_select %p177, %s175, 63
      %p179 = scmp.lt.s32.totalorder %s176, 1
      %s180 = scalar_select %p179, %s176, 1
      %s181 = smul.addr %s178, 2
      %s182 = sadd.s32 %s180, %s181
      %s183 = smul.addr %s182, 4
      %s184 = scalar_lea.vmem %s0, %s183
      %p185 = pneg %p49
      %p186 = pneg %p46
      %s187 = smul.u32 18, %s19
      %p188 = scmp.lt.s32.totalorder %s187, 17
      %s189 = scalar_select %p188, %s187, 17
      %s190 = smul.addr %s189, 4
      %s191 = scalar_lea.vmem %s1, %s190
      %p192 = pneg %p75
      %p193 = pneg %p72
      %p194 = pneg %p96
      %p195 = pneg %p93
      %p196 = pneg %p122
      %p197 = pneg %p119
      %s198 = smul.u32 32, %s18
      %p199 = scmp.lt.s32.totalorder %s198, 63
      %s200 = scalar_select %p199, %s198, 63
      %s201 = smul.addr %s200, 4
      %s202 = scalar_lea.vmem %s3, %s201
      %s203 = smul.u32 32, %s18
      %s204 = smul.u32 2, %s19
      %p205 = scmp.lt.s32.totalorder %s203, 63
      %s206 = scalar_select %p205, %s203, 63
      %p207 = scmp.lt.s32.totalorder %s204, 1
      %s208 = scalar_select %p207, %s204, 1
      %s209 = smul.addr %s206, 2
      %s210 = sadd.s32 %s208, %s209
      %s211 = smul.addr %s210, 4
      %s212 = scalar_lea.vmem %s0, %s211
      %s213 = smul.u32 32, %s18
      %s214 = smul.u32 2, %s19
      %s215 = smul.u32 18, %s19
      %p216 = scmp.lt.s32.totalorder %s215, 17
      %s217 = scalar_select %p216, %s215, 17
      %s218 = smul.addr %s217, 4
      %s219 = scalar_lea.vmem %s1, %s218
      %s220 = smul.u32 18, %s19
      %s221 = smul.u32 32, %s18
      %p222 = scmp.lt.s32.totalorder %s221, 63
      %s223 = scalar_select %p222, %s221, 63
      %s224 = smul.addr %s223, 4
      %s225 = scalar_lea.vmem %s3, %s224
      %s226 = smul.u32 32, %s18
      %v228 = vld [vmem:[%s212] sm:$0xff]
      %v229 = vld [vmem:[%s212 + $0x8] sm:$0xff]
      %v230 = vld [vmem:[%s212 + $0x10] sm:$0xff]
      %v231 = vld [vmem:[%s212 + $0x18] sm:$0xff]
      %v232 = vld [vmem:[%s212 + $0x20] sm:$0xff]
      %v233 = vld [vmem:[%s212 + $0x28] sm:$0xff]
      %v234 = vld [vmem:[%s212 + $0x30] sm:$0xff]
      %v235 = vld [vmem:[%s212 + $0x38] sm:$0xff]
      %v236 = vld [vmem:[%s212 + $0x40] sm:$0xff]
      %v237 = vld [vmem:[%s212 + $0x48] sm:$0xff]
      %v238 = vld [vmem:[%s212 + $0x50] sm:$0xff]
      %v239 = vld [vmem:[%s212 + $0x58] sm:$0xff]
      %v240 = vld [vmem:[%s212 + $0x60] sm:$0xff]
      %v241 = vld [vmem:[%s212 + $0x68] sm:$0xff]
      %v242 = vld [vmem:[%s212 + $0x70] sm:$0xff]
      %v243 = vld [vmem:[%s212 + $0x78] sm:$0xff]
      %v244 = vld [vmem:[%s212 + $0x80] sm:$0xff]
      %v245 = vld [vmem:[%s212 + $0x88] sm:$0xff]
      %v246 = vld [vmem:[%s212 + $0x90] sm:$0xff]
      %v247 = vld [vmem:[%s212 + $0x98] sm:$0xff]
      %v248 = vld [vmem:[%s212 + $0xa0] sm:$0xff]
      %v249 = vld [vmem:[%s212 + $0xa8] sm:$0xff]
      %v250 = vld [vmem:[%s212 + $0xb0] sm:$0xff]
      %v251 = vld [vmem:[%s212 + $0xb8] sm:$0xff]
      %v252 = vld [vmem:[%s212 + $0xc0] sm:$0xff]
      %v253 = vld [vmem:[%s212 + $0xc8] sm:$0xff]
      %v254 = vld [vmem:[%s212 + $0xd0] sm:$0xff]
      %v255 = vld [vmem:[%s212 + $0xd8] sm:$0xff]
      %v256 = vld [vmem:[%s212 + $0xe0] sm:$0xff]
      %v257 = vld [vmem:[%s212 + $0xe8] sm:$0xff]
      %v258 = vld [vmem:[%s212 + $0xf0] sm:$0xff]
      %v259 = vld [vmem:[%s212 + $0xf8] sm:$0xff]
      %v260 = vld [vmem:[%s219] sm:$0xf]
      %v261 = vld [vmem:[%s219 + $0x4] sm:$0xf]
      %v262 = vld [vmem:[%s219 + $0x8] sm:$0xf]
      %v263 = vld [vmem:[%s219 + $0xc] sm:$0xf]
      %v264 = vld [vmem:[%s219 + $0x10] sm:$0xf]
      %v265 = vld [vmem:[%s219 + $0x14] sm:$0xf]
      %v266 = vld [vmem:[%s219 + $0x18] sm:$0xf]
      %v267 = vld [vmem:[%s219 + $0x1c] sm:$0xf]
      %v268 = vld [vmem:[%s219 + $0x20] sm:$0xf]
      %v269 = vld [vmem:[%s219 + $0x24] sm:$0xf]
      %v270 = vld [vmem:[%s219 + $0x28] sm:$0xf]
      %v271 = vld [vmem:[%s219 + $0x2c] sm:$0xf]
      %v272 = vld [vmem:[%s219 + $0x30] sm:$0xf]
      %v273 = vld [vmem:[%s219 + $0x34] sm:$0xf]
      %v274 = vld [vmem:[%s219 + $0x38] sm:$0xf]
      %v275 = vld [vmem:[%s219 + $0x3c] sm:$0xf]
      %v276 = vld [vmem:[%s219 + $0x40] sm:$0xf]
      %v277 = vld [vmem:[%s219 + $0x44] sm:$0xf]
      %v278 = vld [vmem:[%s2] sm:$0x1]
      %v280 = vlaneseq
      %v281 = vshrl.u32 %v280, 7
      %v282 = vsub.s32 0, %v281
      %v283 = vrot.slane %v278, %v282
      %v317 = vunpack.c.l.b16 %v228
      %v318 = vunpack.c.h.b16 %v228
      %v319 = vunpack.c.l.b16 %v229
      %v320 = vunpack.c.h.b16 %v229
      %v321 = vunpack.c.l.b16 %v230
      %v322 = vunpack.c.h.b16 %v230
      %v323 = vunpack.c.l.b16 %v231
      %v324 = vunpack.c.h.b16 %v231
      %v325 = vunpack.c.l.b16 %v232
      %v326 = vunpack.c.h.b16 %v232
      %v327 = vunpack.c.l.b16 %v233
      %v328 = vunpack.c.h.b16 %v233
      %v329 = vunpack.c.l.b16 %v234
      %v330 = vunpack.c.h.b16 %v234
      %v331 = vunpack.c.l.b16 %v235
      %v332 = vunpack.c.h.b16 %v235
      %v333 = vunpack.c.l.b16 %v236
      %v334 = vunpack.c.h.b16 %v236
      %v335 = vunpack.c.l.b16 %v237
      %v336 = vunpack.c.h.b16 %v237
      %v337 = vunpack.c.l.b16 %v238
      %v338 = vunpack.c.h.b16 %v238
      %v339 = vunpack.c.l.b16 %v239
      %v340 = vunpack.c.h.b16 %v239
      %v341 = vunpack.c.l.b16 %v240
      %v342 = vunpack.c.h.b16 %v240
      %v343 = vunpack.c.l.b16 %v241
      %v344 = vunpack.c.h.b16 %v241
      %v345 = vunpack.c.l.b16 %v242
      %v346 = vunpack.c.h.b16 %v242
      %v347 = vunpack.c.l.b16 %v243
      %v348 = vunpack.c.h.b16 %v243
      %v349 = vunpack.c.l.b16 %v244
      %v350 = vunpack.c.h.b16 %v244
      %v351 = vunpack.c.l.b16 %v245
      %v352 = vunpack.c.h.b16 %v245
      %v353 = vunpack.c.l.b16 %v246
      %v354 = vunpack.c.h.b16 %v246
      %v355 = vunpack.c.l.b16 %v247
      %v356 = vunpack.c.h.b16 %v247
      %v357 = vunpack.c.l.b16 %v248
      %v358 = vunpack.c.h.b16 %v248
      %v359 = vunpack.c.l.b16 %v249
      %v360 = vunpack.c.h.b16 %v249
      %v361 = vunpack.c.l.b16 %v250
      %v362 = vunpack.c.h.b16 %v250
      %v363 = vunpack.c.l.b16 %v251
      %v364 = vunpack.c.h.b16 %v251
      %v365 = vunpack.c.l.b16 %v252
      %v366 = vunpack.c.h.b16 %v252
      %v367 = vunpack.c.l.b16 %v253
      %v368 = vunpack.c.h.b16 %v253
      %v369 = vunpack.c.l.b16 %v254
      %v370 = vunpack.c.h.b16 %v254
      %v371 = vunpack.c.l.b16 %v255
      %v372 = vunpack.c.h.b16 %v255
      %v373 = vunpack.c.l.b16 %v256
      %v374 = vunpack.c.h.b16 %v256
      %v375 = vunpack.c.l.b16 %v257
      %v376 = vunpack.c.h.b16 %v257
      %v377 = vunpack.c.l.b16 %v258
      %v378 = vunpack.c.h.b16 %v258
      %v379 = vunpack.c.l.b16 %v259
      %v380 = vunpack.c.h.b16 %v259
      %v381 = vpack.c.b16 %v319, %v317
      %v382 = vpack.c.b16 %v320, %v318
      %v383 = vpack.c.b16 %v323, %v321
      %v384 = vpack.c.b16 %v324, %v322
      %v385 = vpack.c.b16 %v327, %v325
      %v386 = vpack.c.b16 %v328, %v326
      %v387 = vpack.c.b16 %v331, %v329
      %v388 = vpack.c.b16 %v332, %v330
      %v389 = vpack.c.b16 %v335, %v333
      %v390 = vpack.c.b16 %v336, %v334
      %v391 = vpack.c.b16 %v339, %v337
      %v392 = vpack.c.b16 %v340, %v338
      %v393 = vpack.c.b16 %v343, %v341
      %v394 = vpack.c.b16 %v344, %v342
      %v395 = vpack.c.b16 %v347, %v345
      %v396 = vpack.c.b16 %v348, %v346
      %v397 = vpack.c.b16 %v351, %v349
      %v398 = vpack.c.b16 %v352, %v350
      %v399 = vpack.c.b16 %v355, %v353
      %v400 = vpack.c.b16 %v356, %v354
      %v401 = vpack.c.b16 %v359, %v357
      %v402 = vpack.c.b16 %v360, %v358
      %v403 = vpack.c.b16 %v363, %v361
      %v404 = vpack.c.b16 %v364, %v362
      %v405 = vpack.c.b16 %v367, %v365
      %v406 = vpack.c.b16 %v368, %v366
      %v407 = vpack.c.b16 %v371, %v369
      %v408 = vpack.c.b16 %v372, %v370
      %v409 = vpack.c.b16 %v375, %v373
      %v410 = vpack.c.b16 %v376, %v374
      %v411 = vpack.c.b16 %v379, %v377
      %v412 = vpack.c.b16 %v380, %v378
      %v447 = vunpack.c.l.b16 %v260
      %v448 = vunpack.c.l.b16 %v261
      %v449 = vunpack.c.l.b16 %v262
      %v450 = vunpack.c.l.b16 %v263
      %v451 = vunpack.c.l.b16 %v264
      %v452 = vunpack.c.l.b16 %v265
      %v453 = vunpack.c.l.b16 %v266
      %v454 = vunpack.c.l.b16 %v267
      %v455 = vunpack.c.l.b16 %v268
      %v456 = vunpack.c.l.b16 %v269
      %v457 = vunpack.c.l.b16 %v270
      %v458 = vunpack.c.l.b16 %v271
      %v459 = vunpack.c.l.b16 %v272
      %v460 = vunpack.c.l.b16 %v273
      %v461 = vunpack.c.l.b16 %v274
      %v462 = vunpack.c.l.b16 %v275
      %v463 = vunpack.c.l.b16 %v276
      %v464 = vunpack.c.l.b16 %v277
      %v465 = vpack.c.b16 %v448, %v447
      %v466 = vpack.c.b16 %v450, %v449
      %v467 = vpack.c.b16 %v452, %v451
      %v468 = vpack.c.b16 %v454, %v453
      %v469 = vpack.c.b16 %v456, %v455
      %v470 = vpack.c.b16 %v458, %v457
      %v471 = vpack.c.b16 %v460, %v459
      %v472 = vpack.c.b16 %v462, %v461
      %v473 = vpack.c.b16 %v464, %v463
      %vm483 = vcmask 130048
      %v485 = vsel %vm483, %v382, 0
      %v488 = vsel %vm483, %v384, 0
      %v491 = vsel %vm483, %v386, 0
      %v494 = vsel %vm483, %v388, 0
      %v497 = vsel %vm483, %v390, 0
      %v500 = vsel %vm483, %v392, 0
      %v503 = vsel %vm483, %v394, 0
      %v506 = vsel %vm483, %v396, 0
      %v509 = vsel %vm483, %v398, 0
      %v512 = vsel %vm483, %v400, 0
      %v515 = vsel %vm483, %v402, 0
      %v518 = vsel %vm483, %v404, 0
      %v521 = vsel %vm483, %v406, 0
      %v524 = vsel %vm483, %v408, 0
      %v527 = vsel %vm483, %v410, 0
      %v530 = vsel %vm483, %v412, 0
      %532 = vmatprep.subr.bf16.mxu0 0
      %533 = vmatpush1.bf16.msra.mxu0 %v465
      %534 = vmatprep.subr.bf16.mxu0 0
      %535 = vmatpush1.bf16.msra.mxu0 %v466
      %536 = vmatprep.subr.bf16.mxu0 0
      %537 = vmatpush1.bf16.msra.mxu0 %v467
      %538 = vmatprep.subr.bf16.mxu0 0
      %539 = vmatpush1.bf16.msra.mxu0 %v468
      %540 = vmatprep.subr.bf16.mxu0 0
      %541 = vmatpush1.bf16.msra.mxu0 %v469
      %542 = vmatprep.subr.bf16.mxu0 0
      %543 = vmatpush1.bf16.msra.mxu0 %v470
      %544 = vmatprep.subr.bf16.mxu0 0
      %545 = vmatpush1.bf16.msra.mxu0 %v471
      %546 = vmatprep.subr.bf16.mxu0 0
      %547 = vmatpush1.bf16.msra.mxu0 %v472
      %548 = vmatprep.subr.bf16.mxu0 0
      %549 = vmatpush1.bf16.msra.mxu0 %v473
      %550 = vmatprep.subr.bf16.mxu0 0
      %551 = vmatpush1.bf16.msra.mxu0 0
      %552 = vmatprep.subr.bf16.mxu0 0
      %553 = vmatpush1.bf16.msra.mxu0 0
      %554 = vmatprep.subr.bf16.mxu0 0
      %555 = vmatpush1.bf16.msra.mxu0 0
      %556 = vmatprep.subr.bf16.mxu0 0
      %557 = vmatpush1.bf16.msra.mxu0 0
      %558 = vmatprep.subr.bf16.mxu0 0
      %559 = vmatpush1.bf16.msra.mxu0 0
      %560 = vmatprep.subr.bf16.mxu0 0
      %561 = vmatpush1.bf16.msra.mxu0 0
      %562 = vmatprep.subr.bf16.mxu0 0
      %563 = vmatpush1.bf16.msra.mxu0 0
      %564 = vmatprep.mubr.bf16.mxu0 %v485
      %565 = vmatmul.mubr.bf16.gmra.mrb[0].mxu0 %v381
      %v566 = vpop.f32.mrb[0].mxu0
      %v567 = vadd.f32 %v283, %v566
      %v568 = vpop.f32.mrb[0].mxu0
      %v569 = vpop.f32.mrb[0].mxu0
      %v570 = vadd.f32 %v283, %v569
      %v571 = vpop.f32.mrb[0].mxu0
      %572 = vmatprep.mubr.bf16.mxu0 %v488
      %573 = vmatmul.mubr.bf16.gmra.mrb[0].mxu0 %v383
      %v574 = vpop.f32.mrb[0].mxu0
      %v575 = vadd.f32 %v283, %v574
      %v576 = vpop.f32.mrb[0].mxu0
      %v577 = vpop.f32.mrb[0].mxu0
      %v578 = vadd.f32 %v283, %v577
      %v579 = vpop.f32.mrb[0].mxu0
      %580 = vmatprep.mubr.bf16.mxu0 %v491
      %581 = vmatmul.mubr.bf16.gmra.mrb[0].mxu0 %v385
      %v582 = vpop.f32.mrb[0].mxu0
      %v583 = vadd.f32 %v283, %v582
      %v584 = vpop.f32.mrb[0].mxu0
      %v585 = vpop.f32.mrb[0].mxu0
      %v586 = vadd.f32 %v283, %v585
      %v587 = vpop.f32.mrb[0].mxu0
      %588 = vmatprep.mubr.bf16.mxu0 %v494
      %589 = vmatmul.mubr.bf16.gmra.mrb[0].mxu0 %v387
      %v590 = vpop.f32.mrb[0].mxu0
      %v591 = vadd.f32 %v283, %v590
      %v592 = vpop.f32.mrb[0].mxu0
      %v593 = vpop.f32.mrb[0].mxu0
      %v594 = vadd.f32 %v283, %v593
      %v595 = vpop.f32.mrb[0].mxu0
      %596 = vmatprep.mubr.bf16.mxu0 %v497
      %597 = vmatmul.mubr.bf16.gmra.mrb[0].mxu0 %v389
      %v598 = vpop.f32.mrb[0].mxu0
      %v599 = vadd.f32 %v283, %v598
      %v600 = vpop.f32.mrb[0].mxu0
      %v601 = vpop.f32.mrb[0].mxu0
      %v602 = vadd.f32 %v283, %v601
      %v603 = vpop.f32.mrb[0].mxu0
      %604 = vmatprep.mubr.bf16.mxu0 %v500
      %605 = vmatmul.mubr.bf16.gmra.mrb[0].mxu0 %v391
      %v606 = vpop.f32.mrb[0].mxu0
      %v607 = vadd.f32 %v283, %v606
      %v608 = vpop.f32.mrb[0].mxu0
      %v609 = vpop.f32.mrb[0].mxu0
      %v610 = vadd.f32 %v283, %v609
      %v611 = vpop.f32.mrb[0].mxu0
      %612 = vmatprep.mubr.bf16.mxu0 %v503
      %613 = vmatmul.mubr.bf16.gmra.mrb[0].mxu0 %v393
      %v614 = vpop.f32.mrb[0].mxu0
      %v615 = vadd.f32 %v283, %v614
      %v616 = vpop.f32.mrb[0].mxu0
      %v617 = vpop.f32.mrb[0].mxu0
      %v618 = vadd.f32 %v283, %v617
      %v619 = vpop.f32.mrb[0].mxu0
      %620 = vmatprep.mubr.bf16.mxu0 %v506
      %621 = vmatmul.mubr.bf16.gmra.mrb[0].mxu0 %v395
      %v622 = vpop.f32.mrb[0].mxu0
      %v623 = vadd.f32 %v283, %v622
      %v624 = vpop.f32.mrb[0].mxu0
      %v625 = vpop.f32.mrb[0].mxu0
      %v626 = vadd.f32 %v283, %v625
      %v627 = vpop.f32.mrb[0].mxu0
      %628 = vmatprep.mubr.bf16.mxu0 %v509
      %629 = vmatmul.mubr.bf16.gmra.mrb[0].mxu0 %v397
      %v630 = vpop.f32.mrb[0].mxu0
      %v631 = vadd.f32 %v283, %v630
      %v632 = vpop.f32.mrb[0].mxu0
      %v633 = vpop.f32.mrb[0].mxu0
      %v634 = vadd.f32 %v283, %v633
      %v635 = vpop.f32.mrb[0].mxu0
      %636 = vmatprep.mubr.bf16.mxu0 %v512
      %637 = vmatmul.mubr.bf16.gmra.mrb[0].mxu0 %v399
      %v638 = vpop.f32.mrb[0].mxu0
      %v639 = vadd.f32 %v283, %v638
      %v640 = vpop.f32.mrb[0].mxu0
      %v641 = vpop.f32.mrb[0].mxu0
      %v642 = vadd.f32 %v283, %v641
      %v643 = vpop.f32.mrb[0].mxu0
      %644 = vmatprep.mubr.bf16.mxu0 %v515
      %645 = vmatmul.mubr.bf16.gmra.mrb[0].mxu0 %v401
      %v646 = vpop.f32.mrb[0].mxu0
      %v647 = vadd.f32 %v283, %v646
      %v648 = vpop.f32.mrb[0].mxu0
      %v649 = vpop.f32.mrb[0].mxu0
      %v650 = vadd.f32 %v283, %v649
      %v651 = vpop.f32.mrb[0].mxu0
      %652 = vmatprep.mubr.bf16.mxu0 %v518
      %653 = vmatmul.mubr.bf16.gmra.mrb[0].mxu0 %v403
      %v654 = vpop.f32.mrb[0].mxu0
      %v655 = vadd.f32 %v283, %v654
      %v656 = vpop.f32.mrb[0].mxu0
      %v657 = vpop.f32.mrb[0].mxu0
      %v658 = vadd.f32 %v283, %v657
      %v659 = vpop.f32.mrb[0].mxu0
      %660 = vmatprep.mubr.bf16.mxu0 %v521
      %661 = vmatmul.mubr.bf16.gmra.mrb[0].mxu0 %v405
      %v662 = vpop.f32.mrb[0].mxu0
      %v663 = vadd.f32 %v283, %v662
      %v664 = vpop.f32.mrb[0].mxu0
      %v665 = vpop.f32.mrb[0].mxu0
      %v666 = vadd.f32 %v283, %v665
      %v667 = vpop.f32.mrb[0].mxu0
      %668 = vmatprep.mubr.bf16.mxu0 %v524
      %669 = vmatmul.mubr.bf16.gmra.mrb[0].mxu0 %v407
      %v670 = vpop.f32.mrb[0].mxu0
      %v671 = vadd.f32 %v283, %v670
      %v672 = vpop.f32.mrb[0].mxu0
      %v673 = vpop.f32.mrb[0].mxu0
      %v674 = vadd.f32 %v283, %v673
      %v675 = vpop.f32.mrb[0].mxu0
      %676 = vmatprep.mubr.bf16.mxu0 %v527
      %677 = vmatmul.mubr.bf16.gmra.mrb[0].mxu0 %v409
      %v678 = vpop.f32.mrb[0].mxu0
      %v679 = vadd.f32 %v283, %v678
      %v680 = vpop.f32.mrb[0].mxu0
      %v681 = vpop.f32.mrb[0].mxu0
      %v682 = vadd.f32 %v283, %v681
      %v683 = vpop.f32.mrb[0].mxu0
      %684 = vmatprep.mubr.bf16.mxu0 %v530
      %685 = vmatmul.mubr.bf16.gmra.mrb[0].mxu0 %v411
      %v686 = vpop.f32.mrb[0].mxu0
      %v687 = vadd.f32 %v283, %v686
      %v688 = vpop.f32.mrb[0].mxu0
      %v689 = vpop.f32.mrb[0].mxu0
      %v690 = vadd.f32 %v283, %v689
      %v691 = vpop.f32.mrb[0].mxu0
      %692 = vdwg.mxu0
      %v693 = vmax.f32 %v567, 0.0
      %v694 = vmax.f32 %v570, 0.0
      %v695 = vmax.f32 %v575, 0.0
      %v696 = vmax.f32 %v578, 0.0
      %v697 = vmax.f32 %v583, 0.0
      %v698 = vmax.f32 %v586, 0.0
      %v699 = vmax.f32 %v591, 0.0
      %v700 = vmax.f32 %v594, 0.0
      %v701 = vmax.f32 %v599, 0.0
      %v702 = vmax.f32 %v602, 0.0
      %v703 = vmax.f32 %v607, 0.0
      %v704 = vmax.f32 %v610, 0.0
      %v705 = vmax.f32 %v615, 0.0
      %v706 = vmax.f32 %v618, 0.0
      %v707 = vmax.f32 %v623, 0.0
      %v708 = vmax.f32 %v626, 0.0
      %v709 = vmax.f32 %v631, 0.0
      %v710 = vmax.f32 %v634, 0.0
      %v711 = vmax.f32 %v639, 0.0
      %v712 = vmax.f32 %v642, 0.0
      %v713 = vmax.f32 %v647, 0.0
      %v714 = vmax.f32 %v650, 0.0
      %v715 = vmax.f32 %v655, 0.0
      %v716 = vmax.f32 %v658, 0.0
      %v717 = vmax.f32 %v663, 0.0
      %v718 = vmax.f32 %v666, 0.0
      %v719 = vmax.f32 %v671, 0.0
      %v720 = vmax.f32 %v674, 0.0
      %v721 = vmax.f32 %v679, 0.0
      %v722 = vmax.f32 %v682, 0.0
      %v723 = vmax.f32 %v687, 0.0
      %v724 = vmax.f32 %v690, 0.0
      %v725 = vpack.c.bf16 %v694, %v693
      %v726 = vpack.c.bf16 %v696, %v695
      %v727 = vpack.c.bf16 %v698, %v697
      %v728 = vpack.c.bf16 %v700, %v699
      %v729 = vpack.c.bf16 %v702, %v701
      %v730 = vpack.c.bf16 %v704, %v703
      %v731 = vpack.c.bf16 %v706, %v705
      %v732 = vpack.c.bf16 %v708, %v707
      %v733 = vpack.c.bf16 %v710, %v709
      %v734 = vpack.c.bf16 %v712, %v711
      %v735 = vpack.c.bf16 %v714, %v713
      %v736 = vpack.c.bf16 %v716, %v715
      %v737 = vpack.c.bf16 %v718, %v717
      %v738 = vpack.c.bf16 %v720, %v719
      %v739 = vpack.c.bf16 %v722, %v721
      %v740 = vpack.c.bf16 %v724, %v723
      %v757 = vunpack.c.l.b16 %v725
      %v758 = vunpack.c.h.b16 %v725
      %v759 = vunpack.c.l.b16 %v726
      %v760 = vunpack.c.h.b16 %v726
      %v761 = vunpack.c.l.b16 %v727
      %v762 = vunpack.c.h.b16 %v727
      %v763 = vunpack.c.l.b16 %v728
      %v764 = vunpack.c.h.b16 %v728
      %v765 = vunpack.c.l.b16 %v729
      %v766 = vunpack.c.h.b16 %v729
      %v767 = vunpack.c.l.b16 %v730
      %v768 = vunpack.c.h.b16 %v730
      %v769 = vunpack.c.l.b16 %v731
      %v770 = vunpack.c.h.b16 %v731
      %v771 = vunpack.c.l.b16 %v732
      %v772 = vunpack.c.h.b16 %v732
      %v773 = vunpack.c.l.b16 %v733
      %v774 = vunpack.c.h.b16 %v733
      %v775 = vunpack.c.l.b16 %v734
      %v776 = vunpack.c.h.b16 %v734
      %v777 = vunpack.c.l.b16 %v735
      %v778 = vunpack.c.h.b16 %v735
      %v779 = vunpack.c.l.b16 %v736
      %v780 = vunpack.c.h.b16 %v736
      %v781 = vunpack.c.l.b16 %v737
      %v782 = vunpack.c.h.b16 %v737
      %v783 = vunpack.c.l.b16 %v738
      %v784 = vunpack.c.h.b16 %v738
      %v785 = vunpack.c.l.b16 %v739
      %v786 = vunpack.c.h.b16 %v739
      %v787 = vunpack.c.l.b16 %v740
      %v788 = vunpack.c.h.b16 %v740
      %v789 = vpack.c.b16 %v757, %v757
      %v790 = vpack.c.b16 %v758, %v758
      %v791 = vpack.c.b16 %v759, %v759
      %v792 = vpack.c.b16 %v760, %v760
      %v793 = vpack.c.b16 %v761, %v761
      %v794 = vpack.c.b16 %v762, %v762
      %v795 = vpack.c.b16 %v763, %v763
      %v796 = vpack.c.b16 %v764, %v764
      %v797 = vpack.c.b16 %v765, %v765
      %v798 = vpack.c.b16 %v766, %v766
      %v799 = vpack.c.b16 %v767, %v767
      %v800 = vpack.c.b16 %v768, %v768
      %v801 = vpack.c.b16 %v769, %v769
      %v802 = vpack.c.b16 %v770, %v770
      %v803 = vpack.c.b16 %v771, %v771
      %v804 = vpack.c.b16 %v772, %v772
      %v805 = vpack.c.b16 %v773, %v773
      %v806 = vpack.c.b16 %v774, %v774
      %v807 = vpack.c.b16 %v775, %v775
      %v808 = vpack.c.b16 %v776, %v776
      %v809 = vpack.c.b16 %v777, %v777
      %v810 = vpack.c.b16 %v778, %v778
      %v811 = vpack.c.b16 %v779, %v779
      %v812 = vpack.c.b16 %v780, %v780
      %v813 = vpack.c.b16 %v781, %v781
      %v814 = vpack.c.b16 %v782, %v782
      %v815 = vpack.c.b16 %v783, %v783
      %v816 = vpack.c.b16 %v784, %v784
      %v817 = vpack.c.b16 %v785, %v785
      %v818 = vpack.c.b16 %v786, %v786
      %v819 = vpack.c.b16 %v787, %v787
      %v820 = vpack.c.b16 %v788, %v788
      %vm853 = vcmask 125952
      %854 = vst.msk [vmem:[%s225] sm:$0xf] %vm853, %v789
      %855 = vst.msk [vmem:[%s225 + $0x4] sm:$0xf] %vm853, %v790
      %856 = vst.msk [vmem:[%s225 + $0x8] sm:$0xf] %vm853, %v791
      %857 = vst.msk [vmem:[%s225 + $0xc] sm:$0xf] %vm853, %v792
      %858 = vst.msk [vmem:[%s225 + $0x10] sm:$0xf] %vm853, %v793
      %859 = vst.msk [vmem:[%s225 + $0x14] sm:$0xf] %vm853, %v794
      %860 = vst.msk [vmem:[%s225 + $0x18] sm:$0xf] %vm853, %v795
      %861 = vst.msk [vmem:[%s225 + $0x1c] sm:$0xf] %vm853, %v796
      %862 = vst.msk [vmem:[%s225 + $0x20] sm:$0xf] %vm853, %v797
      %863 = vst.msk [vmem:[%s225 + $0x24] sm:$0xf] %vm853, %v798
      %864 = vst.msk [vmem:[%s225 + $0x28] sm:$0xf] %vm853, %v799
      %865 = vst.msk [vmem:[%s225 + $0x2c] sm:$0xf] %vm853, %v800
      %866 = vst.msk [vmem:[%s225 + $0x30] sm:$0xf] %vm853, %v801
      %867 = vst.msk [vmem:[%s225 + $0x34] sm:$0xf] %vm853, %v802
      %868 = vst.msk [vmem:[%s225 + $0x38] sm:$0xf] %vm853, %v803
      %869 = vst.msk [vmem:[%s225 + $0x3c] sm:$0xf] %vm853, %v804
      %870 = vst.msk [vmem:[%s225 + $0x40] sm:$0xf] %vm853, %v805
      %871 = vst.msk [vmem:[%s225 + $0x44] sm:$0xf] %vm853, %v806
      %872 = vst.msk [vmem:[%s225 + $0x48] sm:$0xf] %vm853, %v807
      %873 = vst.msk [vmem:[%s225 + $0x4c] sm:$0xf] %vm853, %v808
      %874 = vst.msk [vmem:[%s225 + $0x50] sm:$0xf] %vm853, %v809
      %875 = vst.msk [vmem:[%s225 + $0x54] sm:$0xf] %vm853, %v810
      %876 = vst.msk [vmem:[%s225 + $0x58] sm:$0xf] %vm853, %v811
      %877 = vst.msk [vmem:[%s225 + $0x5c] sm:$0xf] %vm853, %v812
      %878 = vst.msk [vmem:[%s225 + $0x60] sm:$0xf] %vm853, %v813
      %879 = vst.msk [vmem:[%s225 + $0x64] sm:$0xf] %vm853, %v814
      %880 = vst.msk [vmem:[%s225 + $0x68] sm:$0xf] %vm853, %v815
      %881 = vst.msk [vmem:[%s225 + $0x6c] sm:$0xf] %vm853, %v816
      %882 = vst.msk [vmem:[%s225 + $0x70] sm:$0xf] %vm853, %v817
      %883 = vst.msk [vmem:[%s225 + $0x74] sm:$0xf] %vm853, %v818
      %884 = vst.msk [vmem:[%s225 + $0x78] sm:$0xf] %vm853, %v819
      %885 = vst.msk [vmem:[%s225 + $0x7c] sm:$0xf] %vm853, %v820
      %s886 = smul.u32 32, %s18
      %p887 = scmp.lt.s32.totalorder %s886, 63
      %s888 = scalar_select %p887, %s886, 63
      %s889 = smul.addr %s888, 4
      %s890 = scalar_lea.vmem %s3, %s889
      // Predicated region
      $region33: #{_lambda_.25} parent=31 // pred_check
        %p891 = pneg %p119
      $region34: #{_lambda_.25} parent=31 // pred_check_branch
        %893 = sbr.rel (%p891) target = $region36
      $region35: #{_lambda_.25} parent=31 // pred_region
        %s894 = smul.u32 32, %s18
      $region36: #{_lambda_.25} parent=31 // pred_fallthru
        _
    $region32: #{_lambda_.25} parent=5 // pred_fallthru
      _
    %p895 = scmp.le.s32.totalorder 2, %s9
    // Predicated region
    $region37: #{_lambda_.25} parent=5 // pred_check
      %p896 = pneg %p895
    $region38: #{_lambda_.25} parent=5 // pred_check_branch
      %898 = sbr.rel (%p896) target = $region40
    $region39: #{_lambda_.25} parent=5 // pred_region
      %s899 = ssub.s32 %s9, 2
      // Predicated region
      $region41: #{_lambda_.25} parent=39 // pred_check
        %p900 = pneg %p125
      $region42: #{_lambda_.25} parent=39 // pred_check_branch
        %902 = sbr.rel (%p900) target = $region44
      $region43: #{_lambda_.25} parent=39 // pred_region
        %s903 = smul.u32 32, %s20
        %p904 = scmp.lt.s32.totalorder %s903, 63
        %s905 = scalar_select %p904, %s903, 63
        %s906 = smul.addr %s905, 4
        %s907 = scalar_lea.vmem %s3, %s906
      $region44: #{_lambda_.25} parent=39 // pred_fallthru
        _
    $region40: #{_lambda_.25} parent=5 // pred_fallthru
      _
  $region6: #{_lambda_.25} parent=0 // loop_footer
    %s13 = sadd.s32 1, %s9
  $region7: #{_lambda_.25} parent=0 // loop_footer_branch
    %8 = sbr.rel target = $region3
  $region8: #{_lambda_.25} parent=0 // loop_exit
    _

// kernel: _lambda_.26
$region0: #{_lambda_.26}
  #allocation0 [shape = 'u32[]', space=smem, size = 0x4, offset = 0x4, fixed_abs, tag = 'smem constant byte address 0x4 - core index']
  #allocation1 [shape = 'u32[144,128]{1,0:T(1,128)}', space=vmem, size = 0x12000, scoped, tag = 'internal scratch']
  %s0 = inlined_call_operand.vmem [shape: bf16[512,144], index: 0, kind: input, shape index: {}]
  %s1 = inlined_call_operand.vmem [shape: bf16[144,16], index: 1, kind: input, shape index: {}]
  %s2 = inlined_call_operand.vmem [shape: f32[1,16], index: 2, kind: input, shape index: {}]
  %s3 = inlined_call_operand.vmem [shape: bf16[512,16], index: 3, kind: input, shape index: {}]
  %s4 = inlined_call_operand.vmem [shape: bf16[512,16], index: 4, kind: output, shape index: {}]
  %s5 = sld [smem:[#allocation0]]
  $region49: #{_lambda_.26} parent=0
    _
  %s7 = ssub.s32 1, %s5
  %s8 = scalar_select 0, %s7, %s5
  loop: start=0, step=1, limit=4
  $region2: #{_lambda_.26} parent=0 // loop_pre_header
    _
  $region3: #{_lambda_.26} parent=0 // loop_header
    %s10 = sphi 0, %s14
    %p11 = scmp.ge.s32.totalorder %s10, 4
    %s17 = sphi 0, %s29
    %s18 = sphi 0, %s25
    %s19 = sphi 0, %s17
    %s20 = sphi 0, %s18
    %s21 = sphi 0, %s19
    %s22 = sphi 0, %s20
    %s34 = sphi 0, %s36
    %s37 = sphi 0, %s34
    %s38 = sphi 0, %s37
    %s54 = sphi 0, %s38
    %s60 = sphi 0, %s62
    %s63 = sphi 0, %s60
    %s64 = sphi 0, %s63
    %s80 = sphi 0, %s64
    %s84 = sphi 0, %s84
    %s86 = sphi 0, %s84
    %s87 = sphi 0, %s86
    %s101 = sphi 0, %s87
    %s107 = sphi 0, %s109
    %s110 = sphi 0, %s107
    %s111 = sphi 0, %s110
    %s127 = sphi 0, %s111
    %s133 = sphi 0, %s135
    %s136 = sphi 0, %s133
    %s137 = sphi 0, %s136
    %s153 = sphi 0, %s137
  $region4: #{_lambda_.26} parent=0 // loop_header_branch
    %13 = sbr.rel (%p11) target = $region8
  $region5: #{_lambda_.26} parent=0 // loop_body
    %s15 = ssub.s32 %s10, 1
    %s16 = ssub.s32 %s10, 2
    %s23 = sadd.s32 1, %s18
    %p24 = scmp.ge.s32.totalorder %s23, 1
    %s25 = scalar_select %p24, 0, %s23
    %s26 = sadd.s32 1, %s17
    %s27 = scalar_select %p24, %s26, %s17
    %p28 = scmp.ge.s32.totalorder %s27, 2
    %s29 = scalar_select %p28, 0, %s27
    %s30 = ssub.s32 %s17, %s29
    %s31 = ssub.s32 %s18, %s25
    %s32 = sor.u32 %s30, %s31
    %p33 = scmp.eq.s32.totalorder %s32, 0
    %s35 = sadd.s32 %s34, 1
    %s36 = scalar_select %p33, %s34, %s35
    %p39 = pneg %p33
    %p40 = scmp.eq.s32.totalorder %s10, 1
    %p41 = por %p39, %p40
    %p42 = scmp.ne.s32.totalorder %s34, %s37
    %p43 = scmp.eq.s32.totalorder %s10, 0
    %p44 = por %p42, %p43
    %p45 = scmp.ne.s32.totalorder %s34, %s37
    %p46 = scmp.eq.s32.totalorder %s15, 1
    %p47 = por %p45, %p46
    %p48 = scmp.ne.s32.totalorder %s37, %s38
    %p49 = scmp.eq.s32.totalorder %s15, 0
    %p50 = por %p48, %p49
    %p51 = scmp.ne.s32.totalorder %s37, %s38
    %p52 = scmp.eq.s32.totalorder %s16, 1
    %p53 = por %p51, %p52
    %p55 = scmp.ne.s32.totalorder %s38, %s54
    %p56 = scmp.eq.s32.totalorder %s16, 0
    %p57 = por %p55, %p56
    %s58 = ssub.s32 %s18, %s25
    %p59 = scmp.eq.s32.totalorder %s58, 0
    %s61 = sadd.s32 %s60, 1
    %s62 = scalar_select %p59, %s60, %s61
    %p65 = pneg %p59
    %p66 = scmp.eq.s32.totalorder %s10, 1
    %p67 = por %p65, %p66
    %p68 = scmp.ne.s32.totalorder %s60, %s63
    %p69 = scmp.eq.s32.totalorder %s10, 0
    %p70 = por %p68, %p69
    %p71 = scmp.ne.s32.totalorder %s60, %s63
    %p72 = scmp.eq.s32.totalorder %s15, 1
    %p73 = por %p71, %p72
    %p74 = scmp.ne.s32.totalorder %s63, %s64
    %p75 = scmp.eq.s32.totalorder %s15, 0
    %p76 = por %p74, %p75
    %p77 = scmp.ne.s32.totalorder %s63, %s64
    %p78 = scmp.eq.s32.totalorder %s16, 1
    %p79 = por %p77, %p78
    %p81 = scmp.ne.s32.totalorder %s64, %s80
    %p82 = scmp.eq.s32.totalorder %s16, 0
    %p83 = por %p81, %p82
    %s85 = sadd.s32 %s84, 1
    %p88 = scmp.eq.s32.totalorder %s10, 1
    %p89 = scmp.ne.s32.totalorder %s84, %s86
    %p90 = scmp.eq.s32.totalorder %s10, 0
    %p91 = por %p89, %p90
    %p92 = scmp.ne.s32.totalorder %s84, %s86
    %p93 = scmp.eq.s32.totalorder %s15, 1
    %p94 = por %p92, %p93
    %p95 = scmp.ne.s32.totalorder %s86, %s87
    %p96 = scmp.eq.s32.totalorder %s15, 0
    %p97 = por %p95, %p96
    %p98 = scmp.ne.s32.totalorder %s86, %s87
    %p99 = scmp.eq.s32.totalorder %s16, 1
    %p100 = por %p98, %p99
    %p102 = scmp.ne.s32.totalorder %s87, %s101
    %p103 = scmp.eq.s32.totalorder %s16, 0
    %p104 = por %p102, %p103
    %s105 = ssub.s32 %s17, %s29
    %p106 = scmp.eq.s32.totalorder %s105, 0
    %s108 = sadd.s32 %s107, 1
    %s109 = scalar_select %p106, %s107, %s108
    %p112 = pneg %p106
    %p113 = scmp.eq.s32.totalorder %s10, 1
    %p114 = por %p112, %p113
    %p115 = scmp.ne.s32.totalorder %s107, %s110
    %p116 = scmp.eq.s32.totalorder %s10, 0
    %p117 = por %p115, %p116
    %p118 = scmp.ne.s32.totalorder %s107, %s110
    %p119 = scmp.eq.s32.totalorder %s15, 1
    %p120 = por %p118, %p119
    %p121 = scmp.ne.s32.totalorder %s110, %s111
    %p122 = scmp.eq.s32.totalorder %s15, 0
    %p123 = por %p121, %p122
    %p124 = scmp.ne.s32.totalorder %s110, %s111
    %p125 = scmp.eq.s32.totalorder %s16, 1
    %p126 = por %p124, %p125
    %p128 = scmp.ne.s32.totalorder %s111, %s127
    %p129 = scmp.eq.s32.totalorder %s16, 0
    %p130 = por %p128, %p129
    %s131 = ssub.s32 %s17, %s29
    %p132 = scmp.eq.s32.totalorder %s131, 0
    %s134 = sadd.s32 %s133, 1
    %s135 = scalar_select %p132, %s133, %s134
    %p138 = pneg %p132
    %p139 = scmp.eq.s32.totalorder %s10, 1
    %p140 = por %p138, %p139
    %p141 = scmp.ne.s32.totalorder %s133, %s136
    %p142 = scmp.eq.s32.totalorder %s10, 0
    %p143 = por %p141, %p142
    %p144 = scmp.ne.s32.totalorder %s133, %s136
    %p145 = scmp.eq.s32.totalorder %s15, 1
    %p146 = por %p144, %p145
    %p147 = scmp.ne.s32.totalorder %s136, %s137
    %p148 = scmp.eq.s32.totalorder %s15, 0
    %p149 = por %p147, %p148
    %p150 = scmp.ne.s32.totalorder %s136, %s137
    %p151 = scmp.eq.s32.totalorder %s16, 1
    %p152 = por %p150, %p151
    %p154 = scmp.ne.s32.totalorder %s137, %s153
    %p155 = scmp.eq.s32.totalorder %s16, 0
    %p156 = por %p154, %p155
    %p157 = scmp.le.s32.totalorder 1, %s10
    %p158 = scmp.lt.s32.totalorder %s10, 3
    %p159 = pnand %p157, %p158
    %p160 = pneg %p159
    // Predicated region
    $region9: #{_lambda_.26} parent=5 // pred_check
      _
    $region10: #{_lambda_.26} parent=5 // pred_check_branch
      %162 = sbr.rel (%p159) target = $region12
    $region11: #{_lambda_.26} parent=5 // pred_region
      %s163 = ssub.s32 %s10, 1
      // Predicated region
      $region13: #{_lambda_.26} parent=11 // pred_check
        %p164 = pneg %p76
      $region14: #{_lambda_.26} parent=11 // pred_check_branch
        %166 = sbr.rel (%p164) target = $region16
      $region15: #{_lambda_.26} parent=11 // pred_region
        %s167 = smul.u32 18, %s20
        %p168 = scmp.lt.s32.totalorder %s167, 17
        %s169 = scalar_select %p168, %s167, 17
        %s170 = smul.addr %s169, 4
        %s171 = scalar_lea.vmem %s1, %s170
        %s172 = smul.u32 18, %s20
      $region16: #{_lambda_.26} parent=11 // pred_fallthru
        _
      // Predicated region
      $region17: #{_lambda_.26} parent=11 // pred_check
        %p173 = pneg %p97
      $region18: #{_lambda_.26} parent=11 // pred_check_branch
        %175 = sbr.rel (%p173) target = $region20
      $region19: #{_lambda_.26} parent=11 // pred_region
        _
      $region20: #{_lambda_.26} parent=11 // pred_fallthru
        _
    $region12: #{_lambda_.26} parent=5 // pred_fallthru
      _
    %p176 = scmp.lt.s32.totalorder %s10, 2
    // Predicated region
    $region21: #{_lambda_.26} parent=5 // pred_check
      %p177 = pneg %p176
    $region22: #{_lambda_.26} parent=5 // pred_check_branch
      %179 = sbr.rel (%p177) target = $region24
    $region23: #{_lambda_.26} parent=5 // pred_region
      // Predicated region
      $region25: #{_lambda_.26} parent=23 // pred_check
        %p180 = pneg %p44
      $region26: #{_lambda_.26} parent=23 // pred_check_branch
        %182 = sbr.rel (%p180) target = $region28
      $region27: #{_lambda_.26} parent=23 // pred_region
        %s183 = smul.u32 32, %s17
        %s184 = smul.u32 2, %s18
        %p185 = scmp.lt.s32.totalorder %s183, 63
        %s186 = scalar_select %p185, %s183, 63
        %p187 = scmp.lt.s32.totalorder %s184, 1
        %s188 = scalar_select %p187, %s184, 1
        %s189 = smul.addr %s186, 2
        %s190 = sadd.s32 %s188, %s189
        %s191 = smul.addr %s190, 4
        %s192 = scalar_lea.vmem %s0, %s191
        %s193 = smul.u32 32, %s17
        %s194 = smul.u32 2, %s18
      $region28: #{_lambda_.26} parent=23 // pred_fallthru
        _
      // Predicated region
      $region29: #{_lambda_.26} parent=23 // pred_check
        %p195 = pneg %p117
      $region30: #{_lambda_.26} parent=23 // pred_check_branch
        %197 = sbr.rel (%p195) target = $region32
      $region31: #{_lambda_.26} parent=23 // pred_region
        %s198 = smul.u32 32, %s17
        %p199 = scmp.lt.s32.totalorder %s198, 63
        %s200 = scalar_select %p199, %s198, 63
        %s201 = smul.addr %s200, 4
        %s202 = scalar_lea.vmem %s3, %s201
        %s203 = smul.u32 32, %s17
      $region32: #{_lambda_.26} parent=23 // pred_fallthru
        _
    $region24: #{_lambda_.26} parent=5 // pred_fallthru
      _
    %p204 = scmp.le.s32.totalorder 1, %s10
    %p205 = scmp.lt.s32.totalorder %s10, 3
    %p206 = pnand %p204, %p205
    %p207 = pneg %p206
    // Predicated region
    $region33: #{_lambda_.26} parent=5 // pred_check
      _
    $region34: #{_lambda_.26} parent=5 // pred_check_branch
      %209 = sbr.rel (%p206) target = $region36
    $region35: #{_lambda_.26} parent=5 // pred_region
      %s210 = ssub.s32 %s10, 1
      %s211 = smul.u32 32, %s19
      %s212 = smul.u32 2, %s20
      %p213 = scmp.lt.s32.totalorder %s211, 63
      %s214 = scalar_select %p213, %s211, 63
      %p215 = scmp.lt.s32.totalorder %s212, 1
      %s216 = scalar_select %p215, %s212, 1
      %s217 = smul.addr %s214, 2
      %s218 = sadd.s32 %s216, %s217
      %s219 = smul.addr %s218, 4
      %s220 = scalar_lea.vmem %s0, %s219
      %p221 = pneg %p50
      %p222 = pneg %p47
      %s223 = smul.u32 18, %s20
      %p224 = scmp.lt.s32.totalorder %s223, 17
      %s225 = scalar_select %p224, %s223, 17
      %s226 = smul.addr %s225, 4
      %s227 = scalar_lea.vmem %s1, %s226
      %p228 = pneg %p76
      %p229 = pneg %p73
      %p230 = pneg %p97
      %p231 = pneg %p94
      %s232 = smul.u32 32, %s19
      %p233 = scmp.lt.s32.totalorder %s232, 63
      %s234 = scalar_select %p233, %s232, 63
      %s235 = smul.addr %s234, 4
      %s236 = scalar_lea.vmem %s3, %s235
      %p237 = pneg %p123
      %p238 = pneg %p120
      %p239 = pneg %p149
      %p240 = pneg %p146
      %s241 = smul.u32 32, %s19
      %p242 = scmp.lt.s32.totalorder %s241, 63
      %s243 = scalar_select %p242, %s241, 63
      %s244 = smul.addr %s243, 4
      %s245 = scalar_lea.vmem %s4, %s244
      %s246 = smul.u32 32, %s19
      %s247 = smul.u32 2, %s20
      %p248 = scmp.lt.s32.totalorder %s246, 63
      %s249 = scalar_select %p248, %s246, 63
      %p250 = scmp.lt.s32.totalorder %s247, 1
      %s251 = scalar_select %p250, %s247, 1
      %s252 = smul.addr %s249, 2
      %s253 = sadd.s32 %s251, %s252
      %s254 = smul.addr %s253, 4
      %s255 = scalar_lea.vmem %s0, %s254
      %s256 = smul.u32 32, %s19
      %s257 = smul.u32 2, %s20
      %s258 = smul.u32 18, %s20
      %p259 = scmp.lt.s32.totalorder %s258, 17
      %s260 = scalar_select %p259, %s258, 17
      %s261 = smul.addr %s260, 4
      %s262 = scalar_lea.vmem %s1, %s261
      %s263 = smul.u32 18, %s20
      %s264 = smul.u32 32, %s19
      %p265 = scmp.lt.s32.totalorder %s264, 63
      %s266 = scalar_select %p265, %s264, 63
      %s267 = smul.addr %s266, 4
      %s268 = scalar_lea.vmem %s3, %s267
      %s269 = smul.u32 32, %s19
      %s270 = smul.u32 32, %s19
      %p271 = scmp.lt.s32.totalorder %s270, 63
      %s272 = scalar_select %p271, %s270, 63
      %s273 = smul.addr %s272, 4
      %s274 = scalar_lea.vmem %s4, %s273
      %s275 = smul.u32 32, %s19
      %v277 = vld [vmem:[%s255] sm:$0xff]
      %v278 = vld [vmem:[%s255 + $0x8] sm:$0xff]
      %v279 = vld [vmem:[%s255 + $0x10] sm:$0xff]
      %v280 = vld [vmem:[%s255 + $0x18] sm:$0xff]
      %v281 = vld [vmem:[%s255 + $0x20] sm:$0xff]
      %v282 = vld [vmem:[%s255 + $0x28] sm:$0xff]
      %v283 = vld [vmem:[%s255 + $0x30] sm:$0xff]
      %v284 = vld [vmem:[%s255 + $0x38] sm:$0xff]
      %v285 = vld [vmem:[%s255 + $0x40] sm:$0xff]
      %v286 = vld [vmem:[%s255 + $0x48] sm:$0xff]
      %v287 = vld [vmem:[%s255 + $0x50] sm:$0xff]
      %v288 = vld [vmem:[%s255 + $0x58] sm:$0xff]
      %v289 = vld [vmem:[%s255 + $0x60] sm:$0xff]
      %v290 = vld [vmem:[%s255 + $0x68] sm:$0xff]
      %v291 = vld [vmem:[%s255 + $0x70] sm:$0xff]
      %v292 = vld [vmem:[%s255 + $0x78] sm:$0xff]
      %v293 = vld [vmem:[%s255 + $0x80] sm:$0xff]
      %v294 = vld [vmem:[%s255 + $0x88] sm:$0xff]
      %v295 = vld [vmem:[%s255 + $0x90] sm:$0xff]
      %v296 = vld [vmem:[%s255 + $0x98] sm:$0xff]
      %v297 = vld [vmem:[%s255 + $0xa0] sm:$0xff]
      %v298 = vld [vmem:[%s255 + $0xa8] sm:$0xff]
      %v299 = vld [vmem:[%s255 + $0xb0] sm:$0xff]
      %v300 = vld [vmem:[%s255 + $0xb8] sm:$0xff]
      %v301 = vld [vmem:[%s255 + $0xc0] sm:$0xff]
      %v302 = vld [vmem:[%s255 + $0xc8] sm:$0xff]
      %v303 = vld [vmem:[%s255 + $0xd0] sm:$0xff]
      %v304 = vld [vmem:[%s255 + $0xd8] sm:$0xff]
      %v305 = vld [vmem:[%s255 + $0xe0] sm:$0xff]
      %v306 = vld [vmem:[%s255 + $0xe8] sm:$0xff]
      %v307 = vld [vmem:[%s255 + $0xf0] sm:$0xff]
      %v308 = vld [vmem:[%s255 + $0xf8] sm:$0xff]
      %v309 = vld [vmem:[%s262] sm:$0xf]
      %v310 = vld [vmem:[%s262 + $0x4] sm:$0xf]
      %v311 = vld [vmem:[%s262 + $0x8] sm:$0xf]
      %v312 = vld [vmem:[%s262 + $0xc] sm:$0xf]
      %v313 = vld [vmem:[%s262 + $0x10] sm:$0xf]
      %v314 = vld [vmem:[%s262 + $0x14] sm:$0xf]
      %v315 = vld [vmem:[%s262 + $0x18] sm:$0xf]
      %v316 = vld [vmem:[%s262 + $0x1c] sm:$0xf]
      %v317 = vld [vmem:[%s262 + $0x20] sm:$0xf]
      %v318 = vld [vmem:[%s262 + $0x24] sm:$0xf]
      %v319 = vld [vmem:[%s262 + $0x28] sm:$0xf]
      %v320 = vld [vmem:[%s262 + $0x2c] sm:$0xf]
      %v321 = vld [vmem:[%s262 + $0x30] sm:$0xf]
      %v322 = vld [vmem:[%s262 + $0x34] sm:$0xf]
      %v323 = vld [vmem:[%s262 + $0x38] sm:$0xf]
      %v324 = vld [vmem:[%s262 + $0x3c] sm:$0xf]
      %v325 = vld [vmem:[%s262 + $0x40] sm:$0xf]
      %v326 = vld [vmem:[%s262 + $0x44] sm:$0xf]
      %v327 = vld [vmem:[%s2] sm:$0x1]
      %v329 = vlaneseq
      %v330 = vshrl.u32 %v329, 7
      %v331 = vsub.s32 0, %v330
      %v332 = vrot.slane %v327, %v331
      %v366 = vunpack.c.l.b16 %v277
      %v367 = vunpack.c.h.b16 %v277
      %v368 = vunpack.c.l.b16 %v278
      %v369 = vunpack.c.h.b16 %v278
      %v370 = vunpack.c.l.b16 %v279
      %v371 = vunpack.c.h.b16 %v279
      %v372 = vunpack.c.l.b16 %v280
      %v373 = vunpack.c.h.b16 %v280
      %v374 = vunpack.c.l.b16 %v281
      %v375 = vunpack.c.h.b16 %v281
      %v376 = vunpack.c.l.b16 %v282
      %v377 = vunpack.c.h.b16 %v282
      %v378 = vunpack.c.l.b16 %v283
      %v379 = vunpack.c.h.b16 %v283
      %v380 = vunpack.c.l.b16 %v284
      %v381 = vunpack.c.h.b16 %v284
      %v382 = vunpack.c.l.b16 %v285
      %v383 = vunpack.c.h.b16 %v285
      %v384 = vunpack.c.l.b16 %v286
      %v385 = vunpack.c.h.b16 %v286
      %v386 = vunpack.c.l.b16 %v287
      %v387 = vunpack.c.h.b16 %v287
      %v388 = vunpack.c.l.b16 %v288
      %v389 = vunpack.c.h.b16 %v288
      %v390 = vunpack.c.l.b16 %v289
      %v391 = vunpack.c.h.b16 %v289
      %v392 = vunpack.c.l.b16 %v290
      %v393 = vunpack.c.h.b16 %v290
      %v394 = vunpack.c.l.b16 %v291
      %v395 = vunpack.c.h.b16 %v291
      %v396 = vunpack.c.l.b16 %v292
      %v397 = vunpack.c.h.b16 %v292
      %v398 = vunpack.c.l.b16 %v293
      %v399 = vunpack.c.h.b16 %v293
      %v400 = vunpack.c.l.b16 %v294
      %v401 = vunpack.c.h.b16 %v294
      %v402 = vunpack.c.l.b16 %v295
      %v403 = vunpack.c.h.b16 %v295
      %v404 = vunpack.c.l.b16 %v296
      %v405 = vunpack.c.h.b16 %v296
      %v406 = vunpack.c.l.b16 %v297
      %v407 = vunpack.c.h.b16 %v297
      %v408 = vunpack.c.l.b16 %v298
      %v409 = vunpack.c.h.b16 %v298
      %v410 = vunpack.c.l.b16 %v299
      %v411 = vunpack.c.h.b16 %v299
      %v412 = vunpack.c.l.b16 %v300
      %v413 = vunpack.c.h.b16 %v300
      %v414 = vunpack.c.l.b16 %v301
      %v415 = vunpack.c.h.b16 %v301
      %v416 = vunpack.c.l.b16 %v302
      %v417 = vunpack.c.h.b16 %v302
      %v418 = vunpack.c.l.b16 %v303
      %v419 = vunpack.c.h.b16 %v303
      %v420 = vunpack.c.l.b16 %v304
      %v421 = vunpack.c.h.b16 %v304
      %v422 = vunpack.c.l.b16 %v305
      %v423 = vunpack.c.h.b16 %v305
      %v424 = vunpack.c.l.b16 %v306
      %v425 = vunpack.c.h.b16 %v306
      %v426 = vunpack.c.l.b16 %v307
      %v427 = vunpack.c.h.b16 %v307
      %v428 = vunpack.c.l.b16 %v308
      %v429 = vunpack.c.h.b16 %v308
      %v430 = vpack.c.b16 %v368, %v366
      %v431 = vpack.c.b16 %v369, %v367
      %v432 = vpack.c.b16 %v372, %v370
      %v433 = vpack.c.b16 %v373, %v371
      %v434 = vpack.c.b16 %v376, %v374
      %v435 = vpack.c.b16 %v377, %v375
      %v436 = vpack.c.b16 %v380, %v378
      %v437 = vpack.c.b16 %v381, %v379
      %v438 = vpack.c.b16 %v384, %v382
      %v439 = vpack.c.b16 %v385, %v383
      %v440 = vpack.c.b16 %v388, %v386
      %v441 = vpack.c.b16 %v389, %v387
      %v442 = vpack.c.b16 %v392, %v390
      %v443 = vpack.c.b16 %v393, %v391
      %v444 = vpack.c.b16 %v396, %v394
      %v445 = vpack.c.b16 %v397, %v395
      %v446 = vpack.c.b16 %v400, %v398
      %v447 = vpack.c.b16 %v401, %v399
      %v448 = vpack.c.b16 %v404, %v402
      %v449 = vpack.c.b16 %v405, %v403
      %v450 = vpack.c.b16 %v408, %v406
      %v451 = vpack.c.b16 %v409, %v407
      %v452 = vpack.c.b16 %v412, %v410
      %v453 = vpack.c.b16 %v413, %v411
      %v454 = vpack.c.b16 %v416, %v414
      %v455 = vpack.c.b16 %v417, %v415
      %v456 = vpack.c.b16 %v420, %v418
      %v457 = vpack.c.b16 %v421, %v419
      %v458 = vpack.c.b16 %v424, %v422
      %v459 = vpack.c.b16 %v425, %v423
      %v460 = vpack.c.b16 %v428, %v426
      %v461 = vpack.c.b16 %v429, %v427
      %v496 = vunpack.c.l.b16 %v309
      %v497 = vunpack.c.l.b16 %v310
      %v498 = vunpack.c.l.b16 %v311
      %v499 = vunpack.c.l.b16 %v312
      %v500 = vunpack.c.l.b16 %v313
      %v501 = vunpack.c.l.b16 %v314
      %v502 = vunpack.c.l.b16 %v315
      %v503 = vunpack.c.l.b16 %v316
      %v504 = vunpack.c.l.b16 %v317
      %v505 = vunpack.c.l.b16 %v318
      %v506 = vunpack.c.l.b16 %v319
      %v507 = vunpack.c.l.b16 %v320
      %v508 = vunpack.c.l.b16 %v321
      %v509 = vunpack.c.l.b16 %v322
      %v510 = vunpack.c.l.b16 %v323
      %v511 = vunpack.c.l.b16 %v324
      %v512 = vunpack.c.l.b16 %v325
      %v513 = vunpack.c.l.b16 %v326
      %v514 = vpack.c.b16 %v497, %v496
      %v515 = vpack.c.b16 %v499, %v498
      %v516 = vpack.c.b16 %v501, %v500
      %v517 = vpack.c.b16 %v503, %v502
      %v518 = vpack.c.b16 %v505, %v504
      %v519 = vpack.c.b16 %v507, %v506
      %v520 = vpack.c.b16 %v509, %v508
      %v521 = vpack.c.b16 %v511, %v510
      %v522 = vpack.c.b16 %v513, %v512
      %vm532 = vcmask 130048
      %v534 = vsel %vm532, %v431, 0
      %v537 = vsel %vm532, %v433, 0
      %v540 = vsel %vm532, %v435, 0
      %v543 = vsel %vm532, %v437, 0
      %v546 = vsel %vm532, %v439, 0
      %v549 = vsel %vm532, %v441, 0
      %v552 = vsel %vm532, %v443, 0
      %v555 = vsel %vm532, %v445, 0
      %v558 = vsel %vm532, %v447, 0
      %v561 = vsel %vm532, %v449, 0
      %v564 = vsel %vm532, %v451, 0
      %v567 = vsel %vm532, %v453, 0
      %v570 = vsel %vm532, %v455, 0
      %v573 = vsel %vm532, %v457, 0
      %v576 = vsel %vm532, %v459, 0
      %v579 = vsel %vm532, %v461, 0
      %581 = vmatprep.subr.bf16.mxu0 0
      %582 = vmatpush1.bf16.msra.mxu0 %v514
      %583 = vmatprep.subr.bf16.mxu0 0
      %584 = vmatpush1.bf16.msra.mxu0 %v515
      %585 = vmatprep.subr.bf16.mxu0 0
      %586 = vmatpush1.bf16.msra.mxu0 %v516
      %587 = vmatprep.subr.bf16.mxu0 0
      %588 = vmatpush1.bf16.msra.mxu0 %v517
      %589 = vmatprep.subr.bf16.mxu0 0
      %590 = vmatpush1.bf16.msra.mxu0 %v518
      %591 = vmatprep.subr.bf16.mxu0 0
      %592 = vmatpush1.bf16.msra.mxu0 %v519
      %593 = vmatprep.subr.bf16.mxu0 0
      %594 = vmatpush1.bf16.msra.mxu0 %v520
      %595 = vmatprep.subr.bf16.mxu0 0
      %596 = vmatpush1.bf16.msra.mxu0 %v521
      %597 = vmatprep.subr.bf16.mxu0 0
      %598 = vmatpush1.bf16.msra.mxu0 %v522
      %599 = vmatprep.subr.bf16.mxu0 0
      %600 = vmatpush1.bf16.msra.mxu0 0
      %601 = vmatprep.subr.bf16.mxu0 0
      %602 = vmatpush1.bf16.msra.mxu0 0
      %603 = vmatprep.subr.bf16.mxu0 0
      %604 = vmatpush1.bf16.msra.mxu0 0
      %605 = vmatprep.subr.bf16.mxu0 0
      %606 = vmatpush1.bf16.msra.mxu0 0
      %607 = vmatprep.subr.bf16.mxu0 0
      %608 = vmatpush1.bf16.msra.mxu0 0
      %609 = vmatprep.subr.bf16.mxu0 0
      %610 = vmatpush1.bf16.msra.mxu0 0
      %611 = vmatprep.subr.bf16.mxu0 0
      %612 = vmatpush1.bf16.msra.mxu0 0
      %613 = vmatprep.mubr.bf16.mxu0 %v534
      %614 = vmatmul.mubr.bf16.gmra.mrb[0].mxu0 %v430
      %v615 = vpop.f32.mrb[0].mxu0
      %v616 = vadd.f32 %v332, %v615
      %v617 = vpop.f32.mrb[0].mxu0
      %v618 = vpop.f32.mrb[0].mxu0
      %v619 = vadd.f32 %v332, %v618
      %v620 = vpop.f32.mrb[0].mxu0
      %621 = vmatprep.mubr.bf16.mxu0 %v537
      %622 = vmatmul.mubr.bf16.gmra.mrb[0].mxu0 %v432
      %v623 = vpop.f32.mrb[0].mxu0
      %v624 = vadd.f32 %v332, %v623
      %v625 = vpop.f32.mrb[0].mxu0
      %v626 = vpop.f32.mrb[0].mxu0
      %v627 = vadd.f32 %v332, %v626
      %v628 = vpop.f32.mrb[0].mxu0
      %629 = vmatprep.mubr.bf16.mxu0 %v540
      %630 = vmatmul.mubr.bf16.gmra.mrb[0].mxu0 %v434
      %v631 = vpop.f32.mrb[0].mxu0
      %v632 = vadd.f32 %v332, %v631
      %v633 = vpop.f32.mrb[0].mxu0
      %v634 = vpop.f32.mrb[0].mxu0
      %v635 = vadd.f32 %v332, %v634
      %v636 = vpop.f32.mrb[0].mxu0
      %637 = vmatprep.mubr.bf16.mxu0 %v543
      %638 = vmatmul.mubr.bf16.gmra.mrb[0].mxu0 %v436
      %v639 = vpop.f32.mrb[0].mxu0
      %v640 = vadd.f32 %v332, %v639
      %v641 = vpop.f32.mrb[0].mxu0
      %v642 = vpop.f32.mrb[0].mxu0
      %v643 = vadd.f32 %v332, %v642
      %v644 = vpop.f32.mrb[0].mxu0
      %645 = vmatprep.mubr.bf16.mxu0 %v546
      %646 = vmatmul.mubr.bf16.gmra.mrb[0].mxu0 %v438
      %v647 = vpop.f32.mrb[0].mxu0
      %v648 = vadd.f32 %v332, %v647
      %v649 = vpop.f32.mrb[0].mxu0
      %v650 = vpop.f32.mrb[0].mxu0
      %v651 = vadd.f32 %v332, %v650
      %v652 = vpop.f32.mrb[0].mxu0
      %653 = vmatprep.mubr.bf16.mxu0 %v549
      %654 = vmatmul.mubr.bf16.gmra.mrb[0].mxu0 %v440
      %v655 = vpop.f32.mrb[0].mxu0
      %v656 = vadd.f32 %v332, %v655
      %v657 = vpop.f32.mrb[0].mxu0
      %v658 = vpop.f32.mrb[0].mxu0
      %v659 = vadd.f32 %v332, %v658
      %v660 = vpop.f32.mrb[0].mxu0
      %661 = vmatprep.mubr.bf16.mxu0 %v552
      %662 = vmatmul.mubr.bf16.gmra.mrb[0].mxu0 %v442
      %v663 = vpop.f32.mrb[0].mxu0
      %v664 = vadd.f32 %v332, %v663
      %v665 = vpop.f32.mrb[0].mxu0
      %v666 = vpop.f32.mrb[0].mxu0
      %v667 = vadd.f32 %v332, %v666
      %v668 = vpop.f32.mrb[0].mxu0
      %669 = vmatprep.mubr.bf16.mxu0 %v555
      %670 = vmatmul.mubr.bf16.gmra.mrb[0].mxu0 %v444
      %v671 = vpop.f32.mrb[0].mxu0
      %v672 = vadd.f32 %v332, %v671
      %v673 = vpop.f32.mrb[0].mxu0
      %v674 = vpop.f32.mrb[0].mxu0
      %v675 = vadd.f32 %v332, %v674
      %v676 = vpop.f32.mrb[0].mxu0
      %677 = vmatprep.mubr.bf16.mxu0 %v558
      %678 = vmatmul.mubr.bf16.gmra.mrb[0].mxu0 %v446
      %v679 = vpop.f32.mrb[0].mxu0
      %v680 = vadd.f32 %v332, %v679
      %v681 = vpop.f32.mrb[0].mxu0
      %v682 = vpop.f32.mrb[0].mxu0
      %v683 = vadd.f32 %v332, %v682
      %v684 = vpop.f32.mrb[0].mxu0
      %685 = vmatprep.mubr.bf16.mxu0 %v561
      %686 = vmatmul.mubr.bf16.gmra.mrb[0].mxu0 %v448
      %v687 = vpop.f32.mrb[0].mxu0
      %v688 = vadd.f32 %v332, %v687
      %v689 = vpop.f32.mrb[0].mxu0
      %v690 = vpop.f32.mrb[0].mxu0
      %v691 = vadd.f32 %v332, %v690
      %v692 = vpop.f32.mrb[0].mxu0
      %693 = vmatprep.mubr.bf16.mxu0 %v564
      %694 = vmatmul.mubr.bf16.gmra.mrb[0].mxu0 %v450
      %v695 = vpop.f32.mrb[0].mxu0
      %v696 = vadd.f32 %v332, %v695
      %v697 = vpop.f32.mrb[0].mxu0
      %v698 = vpop.f32.mrb[0].mxu0
      %v699 = vadd.f32 %v332, %v698
      %v700 = vpop.f32.mrb[0].mxu0
      %701 = vmatprep.mubr.bf16.mxu0 %v567
      %702 = vmatmul.mubr.bf16.gmra.mrb[0].mxu0 %v452
      %v703 = vpop.f32.mrb[0].mxu0
      %v704 = vadd.f32 %v332, %v703
      %v705 = vpop.f32.mrb[0].mxu0
      %v706 = vpop.f32.mrb[0].mxu0
      %v707 = vadd.f32 %v332, %v706
      %v708 = vpop.f32.mrb[0].mxu0
      %709 = vmatprep.mubr.bf16.mxu0 %v570
      %710 = vmatmul.mubr.bf16.gmra.mrb[0].mxu0 %v454
      %v711 = vpop.f32.mrb[0].mxu0
      %v712 = vadd.f32 %v332, %v711
      %v713 = vpop.f32.mrb[0].mxu0
      %v714 = vpop.f32.mrb[0].mxu0
      %v715 = vadd.f32 %v332, %v714
      %v716 = vpop.f32.mrb[0].mxu0
      %717 = vmatprep.mubr.bf16.mxu0 %v573
      %718 = vmatmul.mubr.bf16.gmra.mrb[0].mxu0 %v456
      %v719 = vpop.f32.mrb[0].mxu0
      %v720 = vadd.f32 %v332, %v719
      %v721 = vpop.f32.mrb[0].mxu0
      %v722 = vpop.f32.mrb[0].mxu0
      %v723 = vadd.f32 %v332, %v722
      %v724 = vpop.f32.mrb[0].mxu0
      %725 = vmatprep.mubr.bf16.mxu0 %v576
      %726 = vmatmul.mubr.bf16.gmra.mrb[0].mxu0 %v458
      %v727 = vpop.f32.mrb[0].mxu0
      %v728 = vadd.f32 %v332, %v727
      %v729 = vpop.f32.mrb[0].mxu0
      %v730 = vpop.f32.mrb[0].mxu0
      %v731 = vadd.f32 %v332, %v730
      %v732 = vpop.f32.mrb[0].mxu0
      %733 = vmatprep.mubr.bf16.mxu0 %v579
      %734 = vmatmul.mubr.bf16.gmra.mrb[0].mxu0 %v460
      %v735 = vpop.f32.mrb[0].mxu0
      %v736 = vadd.f32 %v332, %v735
      %v737 = vpop.f32.mrb[0].mxu0
      %v738 = vpop.f32.mrb[0].mxu0
      %v739 = vadd.f32 %v332, %v738
      %v740 = vpop.f32.mrb[0].mxu0
      %741 = vdwg.mxu0
      %v742 = vld [vmem:[%s268] sm:$0xf]
      %v743 = vld [vmem:[%s268 + $0x4] sm:$0xf]
      %v744 = vld [vmem:[%s268 + $0x8] sm:$0xf]
      %v745 = vld [vmem:[%s268 + $0xc] sm:$0xf]
      %v746 = vld [vmem:[%s268 + $0x10] sm:$0xf]
      %v747 = vld [vmem:[%s268 + $0x14] sm:$0xf]
      %v748 = vld [vmem:[%s268 + $0x18] sm:$0xf]
      %v749 = vld [vmem:[%s268 + $0x1c] sm:$0xf]
      %v750 = vld [vmem:[%s268 + $0x20] sm:$0xf]
      %v751 = vld [vmem:[%s268 + $0x24] sm:$0xf]
      %v752 = vld [vmem:[%s268 + $0x28] sm:$0xf]
      %v753 = vld [vmem:[%s268 + $0x2c] sm:$0xf]
      %v754 = vld [vmem:[%s268 + $0x30] sm:$0xf]
      %v755 = vld [vmem:[%s268 + $0x34] sm:$0xf]
      %v756 = vld [vmem:[%s268 + $0x38] sm:$0xf]
      %v757 = vld [vmem:[%s268 + $0x3c] sm:$0xf]
      %v758 = vld [vmem:[%s268 + $0x40] sm:$0xf]
      %v759 = vld [vmem:[%s268 + $0x44] sm:$0xf]
      %v760 = vld [vmem:[%s268 + $0x48] sm:$0xf]
      %v761 = vld [vmem:[%s268 + $0x4c] sm:$0xf]
      %v762 = vld [vmem:[%s268 + $0x50] sm:$0xf]
      %v763 = vld [vmem:[%s268 + $0x54] sm:$0xf]
      %v764 = vld [vmem:[%s268 + $0x58] sm:$0xf]
      %v765 = vld [vmem:[%s268 + $0x5c] sm:$0xf]
      %v766 = vld [vmem:[%s268 + $0x60] sm:$0xf]
      %v767 = vld [vmem:[%s268 + $0x64] sm:$0xf]
      %v768 = vld [vmem:[%s268 + $0x68] sm:$0xf]
      %v769 = vld [vmem:[%s268 + $0x6c] sm:$0xf]
      %v770 = vld [vmem:[%s268 + $0x70] sm:$0xf]
      %v771 = vld [vmem:[%s268 + $0x74] sm:$0xf]
      %v772 = vld [vmem:[%s268 + $0x78] sm:$0xf]
      %v773 = vld [vmem:[%s268 + $0x7c] sm:$0xf]
      %v774 = vunpack.c.l.bf16 %v742
      %v775 = vunpack.c.l.bf16 %v743
      %v776 = vunpack.c.l.bf16 %v744
      %v777 = vunpack.c.l.bf16 %v745
      %v778 = vunpack.c.l.bf16 %v746
      %v779 = vunpack.c.l.bf16 %v747
      %v780 = vunpack.c.l.bf16 %v748
      %v781 = vunpack.c.l.bf16 %v749
      %v782 = vunpack.c.l.bf16 %v750
      %v783 = vunpack.c.l.bf16 %v751
      %v784 = vunpack.c.l.bf16 %v752
      %v785 = vunpack.c.l.bf16 %v753
      %v786 = vunpack.c.l.bf16 %v754
      %v787 = vunpack.c.l.bf16 %v755
      %v788 = vunpack.c.l.bf16 %v756
      %v789 = vunpack.c.l.bf16 %v757
      %v790 = vunpack.c.l.bf16 %v758
      %v791 = vunpack.c.l.bf16 %v759
      %v792 = vunpack.c.l.bf16 %v760
      %v793 = vunpack.c.l.bf16 %v761
      %v794 = vunpack.c.l.bf16 %v762
      %v795 = vunpack.c.l.bf16 %v763
      %v796 = vunpack.c.l.bf16 %v764
      %v797 = vunpack.c.l.bf16 %v765
      %v798 = vunpack.c.l.bf16 %v766
      %v799 = vunpack.c.l.bf16 %v767
      %v800 = vunpack.c.l.bf16 %v768
      %v801 = vunpack.c.l.bf16 %v769
      %v802 = vunpack.c.l.bf16 %v770
      %v803 = vunpack.c.l.bf16 %v771
      %v804 = vunpack.c.l.bf16 %v772
      %v805 = vunpack.c.l.bf16 %v773
      %v806 = vadd.f32 %v616, %v774
      %v807 = vadd.f32 %v619, %v775
      %v808 = vadd.f32 %v624, %v776
      %v809 = vadd.f32 %v627, %v777
      %v810 = vadd.f32 %v632, %v778
      %v811 = vadd.f32 %v635, %v779
      %v812 = vadd.f32 %v640, %v780
      %v813 = vadd.f32 %v643, %v781
      %v814 = vadd.f32 %v648, %v782
      %v815 = vadd.f32 %v651, %v783
      %v816 = vadd.f32 %v656, %v784
      %v817 = vadd.f32 %v659, %v785
      %v818 = vadd.f32 %v664, %v786
      %v819 = vadd.f32 %v667, %v787
      %v820 = vadd.f32 %v672, %v788
      %v821 = vadd.f32 %v675, %v789
      %v822 = vadd.f32 %v680, %v790
      %v823 = vadd.f32 %v683, %v791
      %v824 = vadd.f32 %v688, %v792
      %v825 = vadd.f32 %v691, %v793
      %v826 = vadd.f32 %v696, %v794
      %v827 = vadd.f32 %v699, %v795
      %v828 = vadd.f32 %v704, %v796
      %v829 = vadd.f32 %v707, %v797
      %v830 = vadd.f32 %v712, %v798
      %v831 = vadd.f32 %v715, %v799
      %v832 = vadd.f32 %v720, %v800
      %v833 = vadd.f32 %v723, %v801
      %v834 = vadd.f32 %v728, %v802
      %v835 = vadd.f32 %v731, %v803
      %v836 = vadd.f32 %v736, %v804
      %v837 = vadd.f32 %v739, %v805
      %v838 = vmax.f32 %v806, 0.0
      %v839 = vmax.f32 %v807, 0.0
      %v840 = vmax.f32 %v808, 0.0
      %v841 = vmax.f32 %v809, 0.0
      %v842 = vmax.f32 %v810, 0.0
      %v843 = vmax.f32 %v811, 0.0
      %v844 = vmax.f32 %v812, 0.0
      %v845 = vmax.f32 %v813, 0.0
      %v846 = vmax.f32 %v814, 0.0
      %v847 = vmax.f32 %v815, 0.0
      %v848 = vmax.f32 %v816, 0.0
      %v849 = vmax.f32 %v817, 0.0
      %v850 = vmax.f32 %v818, 0.0
      %v851 = vmax.f32 %v819, 0.0
      %v852 = vmax.f32 %v820, 0.0
      %v853 = vmax.f32 %v821, 0.0
      %v854 = vmax.f32 %v822, 0.0
      %v855 = vmax.f32 %v823, 0.0
      %v856 = vmax.f32 %v824, 0.0
      %v857 = vmax.f32 %v825, 0.0
      %v858 = vmax.f32 %v826, 0.0
      %v859 = vmax.f32 %v827, 0.0
      %v860 = vmax.f32 %v828, 0.0
      %v861 = vmax.f32 %v829, 0.0
      %v862 = vmax.f32 %v830, 0.0
      %v863 = vmax.f32 %v831, 0.0
      %v864 = vmax.f32 %v832, 0.0
      %v865 = vmax.f32 %v833, 0.0
      %v866 = vmax.f32 %v834, 0.0
      %v867 = vmax.f32 %v835, 0.0
      %v868 = vmax.f32 %v836, 0.0
      %v869 = vmax.f32 %v837, 0.0
      %v870 = vpack.c.bf16 %v839, %v838
      %v871 = vpack.c.bf16 %v841, %v840
      %v872 = vpack.c.bf16 %v843, %v842
      %v873 = vpack.c.bf16 %v845, %v844
      %v874 = vpack.c.bf16 %v847, %v846
      %v875 = vpack.c.bf16 %v849, %v848
      %v876 = vpack.c.bf16 %v851, %v850
      %v877 = vpack.c.bf16 %v853, %v852
      %v878 = vpack.c.bf16 %v855, %v854
      %v879 = vpack.c.bf16 %v857, %v856
      %v880 = vpack.c.bf16 %v859, %v858
      %v881 = vpack.c.bf16 %v861, %v860
      %v882 = vpack.c.bf16 %v863, %v862
      %v883 = vpack.c.bf16 %v865, %v864
      %v884 = vpack.c.bf16 %v867, %v866
      %v885 = vpack.c.bf16 %v869, %v868
      %v902 = vunpack.c.l.b16 %v870
      %v903 = vunpack.c.h.b16 %v870
      %v904 = vunpack.c.l.b16 %v871
      %v905 = vunpack.c.h.b16 %v871
      %v906 = vunpack.c.l.b16 %v872
      %v907 = vunpack.c.h.b16 %v872
      %v908 = vunpack.c.l.b16 %v873
      %v909 = vunpack.c.h.b16 %v873
      %v910 = vunpack.c.l.b16 %v874
      %v911 = vunpack.c.h.b16 %v874
      %v912 = vunpack.c.l.b16 %v875
      %v913 = vunpack.c.h.b16 %v875
      %v914 = vunpack.c.l.b16 %v876
      %v915 = vunpack.c.h.b16 %v876
      %v916 = vunpack.c.l.b16 %v877
      %v917 = vunpack.c.h.b16 %v877
      %v918 = vunpack.c.l.b16 %v878
      %v919 = vunpack.c.h.b16 %v878
      %v920 = vunpack.c.l.b16 %v879
      %v921 = vunpack.c.h.b16 %v879
      %v922 = vunpack.c.l.b16 %v880
      %v923 = vunpack.c.h.b16 %v880
      %v924 = vunpack.c.l.b16 %v881
      %v925 = vunpack.c.h.b16 %v881
      %v926 = vunpack.c.l.b16 %v882
      %v927 = vunpack.c.h.b16 %v882
      %v928 = vunpack.c.l.b16 %v883
      %v929 = vunpack.c.h.b16 %v883
      %v930 = vunpack.c.l.b16 %v884
      %v931 = vunpack.c.h.b16 %v884
      %v932 = vunpack.c.l.b16 %v885
      %v933 = vunpack.c.h.b16 %v885
      %v934 = vpack.c.b16 %v902, %v902
      %v935 = vpack.c.b16 %v903, %v903
      %v936 = vpack.c.b16 %v904, %v904
      %v937 = vpack.c.b16 %v905, %v905
      %v938 = vpack.c.b16 %v906, %v906
      %v939 = vpack.c.b16 %v907, %v907
      %v940 = vpack.c.b16 %v908, %v908
      %v941 = vpack.c.b16 %v909, %v909
      %v942 = vpack.c.b16 %v910, %v910
      %v943 = vpack.c.b16 %v911, %v911
      %v944 = vpack.c.b16 %v912, %v912
      %v945 = vpack.c.b16 %v913, %v913
      %v946 = vpack.c.b16 %v914, %v914
      %v947 = vpack.c.b16 %v915, %v915
      %v948 = vpack.c.b16 %v916, %v916
      %v949 = vpack.c.b16 %v917, %v917
      %v950 = vpack.c.b16 %v918, %v918
      %v951 = vpack.c.b16 %v919, %v919
      %v952 = vpack.c.b16 %v920, %v920
      %v953 = vpack.c.b16 %v921, %v921
      %v954 = vpack.c.b16 %v922, %v922
      %v955 = vpack.c.b16 %v923, %v923
      %v956 = vpack.c.b16 %v924, %v924
      %v957 = vpack.c.b16 %v925, %v925
      %v958 = vpack.c.b16 %v926, %v926
      %v959 = vpack.c.b16 %v927, %v927
      %v960 = vpack.c.b16 %v928, %v928
      %v961 = vpack.c.b16 %v929, %v929
      %v962 = vpack.c.b16 %v930, %v930
      %v963 = vpack.c.b16 %v931, %v931
      %v964 = vpack.c.b16 %v932, %v932
      %v965 = vpack.c.b16 %v933, %v933
      %vm998 = vcmask 125952
      %999 = vst.msk [vmem:[%s274] sm:$0xf] %vm998, %v934
      %1000 = vst.msk [vmem:[%s274 + $0x4] sm:$0xf] %vm998, %v935
      %1001 = vst.msk [vmem:[%s274 + $0x8] sm:$0xf] %vm998, %v936
      %1002 = vst.msk [vmem:[%s274 + $0xc] sm:$0xf] %vm998, %v937
      %1003 = vst.msk [vmem:[%s274 + $0x10] sm:$0xf] %vm998, %v938
      %1004 = vst.msk [vmem:[%s274 + $0x14] sm:$0xf] %vm998, %v939
      %1005 = vst.msk [vmem:[%s274 + $0x18] sm:$0xf] %vm998, %v940
      %1006 = vst.msk [vmem:[%s274 + $0x1c] sm:$0xf] %vm998, %v941
      %1007 = vst.msk [vmem:[%s274 + $0x20] sm:$0xf] %vm998, %v942
      %1008 = vst.msk [vmem:[%s274 + $0x24] sm:$0xf] %vm998, %v943
      %1009 = vst.msk [vmem:[%s274 + $0x28] sm:$0xf] %vm998, %v944
      %1010 = vst.msk [vmem:[%s274 + $0x2c] sm:$0xf] %vm998, %v945
      %1011 = vst.msk [vmem:[%s274 + $0x30] sm:$0xf] %vm998, %v946
      %1012 = vst.msk [vmem:[%s274 + $0x34] sm:$0xf] %vm998, %v947
      %1013 = vst.msk [vmem:[%s274 + $0x38] sm:$0xf] %vm998, %v948
      %1014 = vst.msk [vmem:[%s274 + $0x3c] sm:$0xf] %vm998, %v949
      %1015 = vst.msk [vmem:[%s274 + $0x40] sm:$0xf] %vm998, %v950
      %1016 = vst.msk [vmem:[%s274 + $0x44] sm:$0xf] %vm998, %v951
      %1017 = vst.msk [vmem:[%s274 + $0x48] sm:$0xf] %vm998, %v952
      %1018 = vst.msk [vmem:[%s274 + $0x4c] sm:$0xf] %vm998, %v953
      %1019 = vst.msk [vmem:[%s274 + $0x50] sm:$0xf] %vm998, %v954
      %1020 = vst.msk [vmem:[%s274 + $0x54] sm:$0xf] %vm998, %v955
      %1021 = vst.msk [vmem:[%s274 + $0x58] sm:$0xf] %vm998, %v956
      %1022 = vst.msk [vmem:[%s274 + $0x5c] sm:$0xf] %vm998, %v957
      %1023 = vst.msk [vmem:[%s274 + $0x60] sm:$0xf] %vm998, %v958
      %1024 = vst.msk [vmem:[%s274 + $0x64] sm:$0xf] %vm998, %v959
      %1025 = vst.msk [vmem:[%s274 + $0x68] sm:$0xf] %vm998, %v960
      %1026 = vst.msk [vmem:[%s274 + $0x6c] sm:$0xf] %vm998, %v961
      %1027 = vst.msk [vmem:[%s274 + $0x70] sm:$0xf] %vm998, %v962
      %1028 = vst.msk [vmem:[%s274 + $0x74] sm:$0xf] %vm998, %v963
      %1029 = vst.msk [vmem:[%s274 + $0x78] sm:$0xf] %vm998, %v964
      %1030 = vst.msk [vmem:[%s274 + $0x7c] sm:$0xf] %vm998, %v965
      %s1031 = smul.u32 32, %s19
      %p1032 = scmp.lt.s32.totalorder %s1031, 63
      %s1033 = scalar_select %p1032, %s1031, 63
      %s1034 = smul.addr %s1033, 4
      %s1035 = scalar_lea.vmem %s4, %s1034
      // Predicated region
      $region37: #{_lambda_.26} parent=35 // pred_check
        %p1036 = pneg %p146
      $region38: #{_lambda_.26} parent=35 // pred_check_branch
        %1038 = sbr.rel (%p1036) target = $region40
      $region39: #{_lambda_.26} parent=35 // pred_region
        %s1039 = smul.u32 32, %s19
      $region40: #{_lambda_.26} parent=35 // pred_fallthru
        _
    $region36: #{_lambda_.26} parent=5 // pred_fallthru
      _
    %p1040 = scmp.le.s32.totalorder 2, %s10
    // Predicated region
    $region41: #{_lambda_.26} parent=5 // pred_check
      %p1041 = pneg %p1040
    $region42: #{_lambda_.26} parent=5 // pred_check_branch
      %1043 = sbr.rel (%p1041) target = $region44
    $region43: #{_lambda_.26} parent=5 // pred_region
      %s1044 = ssub.s32 %s10, 2
      // Predicated region
      $region45: #{_lambda_.26} parent=43 // pred_check
        %p1045 = pneg %p152
      $region46: #{_lambda_.26} parent=43 // pred_check_branch
        %1047 = sbr.rel (%p1045) target = $region48
      $region47: #{_lambda_.26} parent=43 // pred_region
        %s1048 = smul.u32 32, %s21
        %p1049 = scmp.lt.s32.totalorder %s1048, 63
        %s1050 = scalar_select %p1049, %s1048, 63
        %s1051 = smul.addr %s1050, 4
        %s1052 = scalar_lea.vmem %s4, %s1051
      $region48: #{_lambda_.26} parent=43 // pred_fallthru
        _
    $region44: #{_lambda_.26} parent=5 // pred_fallthru
      _
  $region6: #{_lambda_.26} parent=0 // loop_footer
    %s14 = sadd.s32 1, %s10
  $region7: #{_lambda_.26} parent=0 // loop_footer_branch
    %9 = sbr.rel target = $region3
  $region8: #{_lambda_.26} parent=0 // loop_exit
    _

// kernel: _lambda_.29
$region0: #{_lambda_.29}
  #allocation0 [shape = 'u32[]', space=smem, size = 0x4, offset = 0x4, fixed_abs, tag = 'smem constant byte address 0x4 - core index']
  #allocation1 [shape = 'u32[144,128]{1,0:T(1,128)}', space=vmem, size = 0x12000, scoped, tag = 'internal scratch']
  %s0 = inlined_call_operand.vmem [shape: bf16[128,144], index: 0, kind: input, shape index: {}]
  %s1 = inlined_call_operand.vmem [shape: bf16[144,32], index: 1, kind: input, shape index: {}]
  %s2 = inlined_call_operand.vmem [shape: f32[1,32], index: 2, kind: input, shape index: {}]
  %s3 = inlined_call_operand.vmem [shape: bf16[128,32], index: 3, kind: output, shape index: {}]
  %s4 = sld [smem:[#allocation0]]
  $region22: #{_lambda_.29} parent=0
    _
  %s6 = ssub.s32 1, %s4
  %s7 = scalar_select 0, %s6, %s4
  // Predicated region
  $region2: #{_lambda_.29} parent=0 // pred_check
    _
  $region3: #{_lambda_.29} parent=0 // pred_check_branch
    %9 = sbr.rel (0) target = $region5
  $region4: #{_lambda_.29} parent=0 // pred_region
    _
  $region5: #{_lambda_.29} parent=0 // pred_fallthru
    _
  // Predicated region
  $region6: #{_lambda_.29} parent=0 // pred_check
    _
  $region7: #{_lambda_.29} parent=0 // pred_check_branch
    %11 = sbr.rel (0) target = $region9
  $region8: #{_lambda_.29} parent=0 // pred_region
    _
  $region9: #{_lambda_.29} parent=0 // pred_fallthru
    _
  // Predicated region
  $region10: #{_lambda_.29} parent=0 // pred_check
    _
  $region11: #{_lambda_.29} parent=0 // pred_check_branch
    %13 = sbr.rel (0) target = $region13
  $region12: #{_lambda_.29} parent=0 // pred_region
    _
  $region13: #{_lambda_.29} parent=0 // pred_fallthru
    _
  %v15 = vld [vmem:[%s0] sm:$0xff]
  %v16 = vld [vmem:[%s0 + $0x8] sm:$0xff]
  %v17 = vld [vmem:[%s0 + $0x10] sm:$0xff]
  %v18 = vld [vmem:[%s0 + $0x18] sm:$0xff]
  %v19 = vld [vmem:[%s0 + $0x20] sm:$0xff]
  %v20 = vld [vmem:[%s0 + $0x28] sm:$0xff]
  %v21 = vld [vmem:[%s0 + $0x30] sm:$0xff]
  %v22 = vld [vmem:[%s0 + $0x38] sm:$0xff]
  %v23 = vld [vmem:[%s0 + $0x40] sm:$0xff]
  %v24 = vld [vmem:[%s0 + $0x48] sm:$0xff]
  %v25 = vld [vmem:[%s0 + $0x50] sm:$0xff]
  %v26 = vld [vmem:[%s0 + $0x58] sm:$0xff]
  %v27 = vld [vmem:[%s0 + $0x60] sm:$0xff]
  %v28 = vld [vmem:[%s0 + $0x68] sm:$0xff]
  %v29 = vld [vmem:[%s0 + $0x70] sm:$0xff]
  %v30 = vld [vmem:[%s0 + $0x78] sm:$0xff]
  %v31 = vld [vmem:[%s1] sm:$0xf]
  %v32 = vld [vmem:[%s1 + $0x4] sm:$0xf]
  %v33 = vld [vmem:[%s1 + $0x8] sm:$0xf]
  %v34 = vld [vmem:[%s1 + $0xc] sm:$0xf]
  %v35 = vld [vmem:[%s1 + $0x10] sm:$0xf]
  %v36 = vld [vmem:[%s1 + $0x14] sm:$0xf]
  %v37 = vld [vmem:[%s1 + $0x18] sm:$0xf]
  %v38 = vld [vmem:[%s1 + $0x1c] sm:$0xf]
  %v39 = vld [vmem:[%s1 + $0x20] sm:$0xf]
  %v40 = vld [vmem:[%s1 + $0x24] sm:$0xf]
  %v41 = vld [vmem:[%s1 + $0x28] sm:$0xf]
  %v42 = vld [vmem:[%s1 + $0x2c] sm:$0xf]
  %v43 = vld [vmem:[%s1 + $0x30] sm:$0xf]
  %v44 = vld [vmem:[%s1 + $0x34] sm:$0xf]
  %v45 = vld [vmem:[%s1 + $0x38] sm:$0xf]
  %v46 = vld [vmem:[%s1 + $0x3c] sm:$0xf]
  %v47 = vld [vmem:[%s1 + $0x40] sm:$0xf]
  %v48 = vld [vmem:[%s1 + $0x44] sm:$0xf]
  %v49 = vld [vmem:[%s2] sm:$0x1]
  %v51 = vlaneseq
  %v52 = vshrl.u32 %v51, 7
  %v53 = vsub.s32 0, %v52
  %v54 = vrot.slane %v49, %v53
  %v72 = vunpack.c.l.b16 %v15
  %v73 = vunpack.c.h.b16 %v15
  %v74 = vunpack.c.l.b16 %v16
  %v75 = vunpack.c.h.b16 %v16
  %v76 = vunpack.c.l.b16 %v17
  %v77 = vunpack.c.h.b16 %v17
  %v78 = vunpack.c.l.b16 %v18
  %v79 = vunpack.c.h.b16 %v18
  %v80 = vunpack.c.l.b16 %v19
  %v81 = vunpack.c.h.b16 %v19
  %v82 = vunpack.c.l.b16 %v20
  %v83 = vunpack.c.h.b16 %v20
  %v84 = vunpack.c.l.b16 %v21
  %v85 = vunpack.c.h.b16 %v21
  %v86 = vunpack.c.l.b16 %v22
  %v87 = vunpack.c.h.b16 %v22
  %v88 = vunpack.c.l.b16 %v23
  %v89 = vunpack.c.h.b16 %v23
  %v90 = vunpack.c.l.b16 %v24
  %v91 = vunpack.c.h.b16 %v24
  %v92 = vunpack.c.l.b16 %v25
  %v93 = vunpack.c.h.b16 %v25
  %v94 = vunpack.c.l.b16 %v26
  %v95 = vunpack.c.h.b16 %v26
  %v96 = vunpack.c.l.b16 %v27
  %v97 = vunpack.c.h.b16 %v27
  %v98 = vunpack.c.l.b16 %v28
  %v99 = vunpack.c.h.b16 %v28
  %v100 = vunpack.c.l.b16 %v29
  %v101 = vunpack.c.h.b16 %v29
  %v102 = vunpack.c.l.b16 %v30
  %v103 = vunpack.c.h.b16 %v30
  %v104 = vpack.c.b16 %v74, %v72
  %v105 = vpack.c.b16 %v75, %v73
  %v106 = vpack.c.b16 %v78, %v76
  %v107 = vpack.c.b16 %v79, %v77
  %v108 = vpack.c.b16 %v82, %v80
  %v109 = vpack.c.b16 %v83, %v81
  %v110 = vpack.c.b16 %v86, %v84
  %v111 = vpack.c.b16 %v87, %v85
  %v112 = vpack.c.b16 %v90, %v88
  %v113 = vpack.c.b16 %v91, %v89
  %v114 = vpack.c.b16 %v94, %v92
  %v115 = vpack.c.b16 %v95, %v93
  %v116 = vpack.c.b16 %v98, %v96
  %v117 = vpack.c.b16 %v99, %v97
  %v118 = vpack.c.b16 %v102, %v100
  %v119 = vpack.c.b16 %v103, %v101
  %v146 = vunpack.c.l.b16 %v31
  %v147 = vunpack.c.l.b16 %v32
  %v148 = vunpack.c.l.b16 %v33
  %v149 = vunpack.c.l.b16 %v34
  %v150 = vunpack.c.l.b16 %v35
  %v151 = vunpack.c.l.b16 %v36
  %v152 = vunpack.c.l.b16 %v37
  %v153 = vunpack.c.l.b16 %v38
  %v154 = vunpack.c.l.b16 %v39
  %v155 = vunpack.c.l.b16 %v40
  %v156 = vunpack.c.l.b16 %v41
  %v157 = vunpack.c.l.b16 %v42
  %v158 = vunpack.c.l.b16 %v43
  %v159 = vunpack.c.l.b16 %v44
  %v160 = vunpack.c.l.b16 %v45
  %v161 = vunpack.c.l.b16 %v46
  %v162 = vunpack.c.l.b16 %v47
  %v163 = vunpack.c.l.b16 %v48
  %v164 = vpack.c.b16 %v147, %v146
  %v165 = vpack.c.b16 %v149, %v148
  %v166 = vpack.c.b16 %v151, %v150
  %v167 = vpack.c.b16 %v153, %v152
  %v168 = vpack.c.b16 %v155, %v154
  %v169 = vpack.c.b16 %v157, %v156
  %v170 = vpack.c.b16 %v159, %v158
  %v171 = vpack.c.b16 %v161, %v160
  %v172 = vpack.c.b16 %v163, %v162
  %vm182 = vcmask 130048
  %v184 = vsel %vm182, %v105, 0
  %v187 = vsel %vm182, %v107, 0
  %v190 = vsel %vm182, %v109, 0
  %v193 = vsel %vm182, %v111, 0
  %v196 = vsel %vm182, %v113, 0
  %v199 = vsel %vm182, %v115, 0
  %v202 = vsel %vm182, %v117, 0
  %v205 = vsel %vm182, %v119, 0
  %207 = vmatprep.subr.bf16.mxu0 0
  %208 = vmatpush1.bf16.msra.mxu0 %v164
  %209 = vmatprep.subr.bf16.mxu0 0
  %210 = vmatpush1.bf16.msra.mxu0 %v165
  %211 = vmatprep.subr.bf16.mxu0 0
  %212 = vmatpush1.bf16.msra.mxu0 %v166
  %213 = vmatprep.subr.bf16.mxu0 0
  %214 = vmatpush1.bf16.msra.mxu0 %v167
  %215 = vmatprep.subr.bf16.mxu0 0
  %216 = vmatpush1.bf16.msra.mxu0 %v168
  %217 = vmatprep.subr.bf16.mxu0 0
  %218 = vmatpush1.bf16.msra.mxu0 %v169
  %219 = vmatprep.subr.bf16.mxu0 0
  %220 = vmatpush1.bf16.msra.mxu0 %v170
  %221 = vmatprep.subr.bf16.mxu0 0
  %222 = vmatpush1.bf16.msra.mxu0 %v171
  %223 = vmatprep.subr.bf16.mxu0 0
  %224 = vmatpush1.bf16.msra.mxu0 %v172
  %225 = vmatprep.subr.bf16.mxu0 0
  %226 = vmatpush1.bf16.msra.mxu0 0
  %227 = vmatprep.subr.bf16.mxu0 0
  %228 = vmatpush1.bf16.msra.mxu0 0
  %229 = vmatprep.subr.bf16.mxu0 0
  %230 = vmatpush1.bf16.msra.mxu0 0
  %231 = vmatprep.subr.bf16.mxu0 0
  %232 = vmatpush1.bf16.msra.mxu0 0
  %233 = vmatprep.subr.bf16.mxu0 0
  %234 = vmatpush1.bf16.msra.mxu0 0
  %235 = vmatprep.subr.bf16.mxu0 0
  %236 = vmatpush1.bf16.msra.mxu0 0
  %237 = vmatprep.subr.bf16.mxu0 0
  %238 = vmatpush1.bf16.msra.mxu0 0
  %239 = vmatprep.mubr.bf16.mxu0 %v184
  %240 = vmatmul.mubr.bf16.gmra.mrb[0].mxu0 %v104
  %v241 = vpop.f32.mrb[0].mxu0
  %v242 = vadd.f32 %v54, %v241
  %v243 = vpop.f32.mrb[0].mxu0
  %v244 = vpop.f32.mrb[0].mxu0
  %v245 = vadd.f32 %v54, %v244
  %v246 = vpop.f32.mrb[0].mxu0
  %247 = vmatprep.mubr.bf16.mxu0 %v187
  %248 = vmatmul.mubr.bf16.gmra.mrb[0].mxu0 %v106
  %v249 = vpop.f32.mrb[0].mxu0
  %v250 = vadd.f32 %v54, %v249
  %v251 = vpop.f32.mrb[0].mxu0
  %v252 = vpop.f32.mrb[0].mxu0
  %v253 = vadd.f32 %v54, %v252
  %v254 = vpop.f32.mrb[0].mxu0
  %255 = vmatprep.mubr.bf16.mxu0 %v190
  %256 = vmatmul.mubr.bf16.gmra.mrb[0].mxu0 %v108
  %v257 = vpop.f32.mrb[0].mxu0
  %v258 = vadd.f32 %v54, %v257
  %v259 = vpop.f32.mrb[0].mxu0
  %v260 = vpop.f32.mrb[0].mxu0
  %v261 = vadd.f32 %v54, %v260
  %v262 = vpop.f32.mrb[0].mxu0
  %263 = vmatprep.mubr.bf16.mxu0 %v193
  %264 = vmatmul.mubr.bf16.gmra.mrb[0].mxu0 %v110
  %v265 = vpop.f32.mrb[0].mxu0
  %v266 = vadd.f32 %v54, %v265
  %v267 = vpop.f32.mrb[0].mxu0
  %v268 = vpop.f32.mrb[0].mxu0
  %v269 = vadd.f32 %v54, %v268
  %v270 = vpop.f32.mrb[0].mxu0
  %271 = vmatprep.mubr.bf16.mxu0 %v196
  %272 = vmatmul.mubr.bf16.gmra.mrb[0].mxu0 %v112
  %v273 = vpop.f32.mrb[0].mxu0
  %v274 = vadd.f32 %v54, %v273
  %v275 = vpop.f32.mrb[0].mxu0
  %v276 = vpop.f32.mrb[0].mxu0
  %v277 = vadd.f32 %v54, %v276
  %v278 = vpop.f32.mrb[0].mxu0
  %279 = vmatprep.mubr.bf16.mxu0 %v199
  %280 = vmatmul.mubr.bf16.gmra.mrb[0].mxu0 %v114
  %v281 = vpop.f32.mrb[0].mxu0
  %v282 = vadd.f32 %v54, %v281
  %v283 = vpop.f32.mrb[0].mxu0
  %v284 = vpop.f32.mrb[0].mxu0
  %v285 = vadd.f32 %v54, %v284
  %v286 = vpop.f32.mrb[0].mxu0
  %287 = vmatprep.mubr.bf16.mxu0 %v202
  %288 = vmatmul.mubr.bf16.gmra.mrb[0].mxu0 %v116
  %v289 = vpop.f32.mrb[0].mxu0
  %v290 = vadd.f32 %v54, %v289
  %v291 = vpop.f32.mrb[0].mxu0
  %v292 = vpop.f32.mrb[0].mxu0
  %v293 = vadd.f32 %v54, %v292
  %v294 = vpop.f32.mrb[0].mxu0
  %295 = vmatprep.mubr.bf16.mxu0 %v205
  %296 = vmatmul.mubr.bf16.gmra.mrb[0].mxu0 %v118
  %v297 = vpop.f32.mrb[0].mxu0
  %v298 = vadd.f32 %v54, %v297
  %v299 = vpop.f32.mrb[0].mxu0
  %v300 = vpop.f32.mrb[0].mxu0
  %v301 = vadd.f32 %v54, %v300
  %v302 = vpop.f32.mrb[0].mxu0
  %303 = vdwg.mxu0
  %v304 = vmax.f32 %v242, 0.0
  %v305 = vmax.f32 %v245, 0.0
  %v306 = vmax.f32 %v250, 0.0
  %v307 = vmax.f32 %v253, 0.0
  %v308 = vmax.f32 %v258, 0.0
  %v309 = vmax.f32 %v261, 0.0
  %v310 = vmax.f32 %v266, 0.0
  %v311 = vmax.f32 %v269, 0.0
  %v312 = vmax.f32 %v274, 0.0
  %v313 = vmax.f32 %v277, 0.0
  %v314 = vmax.f32 %v282, 0.0
  %v315 = vmax.f32 %v285, 0.0
  %v316 = vmax.f32 %v290, 0.0
  %v317 = vmax.f32 %v293, 0.0
  %v318 = vmax.f32 %v298, 0.0
  %v319 = vmax.f32 %v301, 0.0
  %v320 = vpack.c.bf16 %v305, %v304
  %v321 = vpack.c.bf16 %v307, %v306
  %v322 = vpack.c.bf16 %v309, %v308
  %v323 = vpack.c.bf16 %v311, %v310
  %v324 = vpack.c.bf16 %v313, %v312
  %v325 = vpack.c.bf16 %v315, %v314
  %v326 = vpack.c.bf16 %v317, %v316
  %v327 = vpack.c.bf16 %v319, %v318
  %v336 = vunpack.c.l.b16 %v320
  %v337 = vunpack.c.h.b16 %v320
  %v338 = vunpack.c.l.b16 %v321
  %v339 = vunpack.c.h.b16 %v321
  %v340 = vunpack.c.l.b16 %v322
  %v341 = vunpack.c.h.b16 %v322
  %v342 = vunpack.c.l.b16 %v323
  %v343 = vunpack.c.h.b16 %v323
  %v344 = vunpack.c.l.b16 %v324
  %v345 = vunpack.c.h.b16 %v324
  %v346 = vunpack.c.l.b16 %v325
  %v347 = vunpack.c.h.b16 %v325
  %v348 = vunpack.c.l.b16 %v326
  %v349 = vunpack.c.h.b16 %v326
  %v350 = vunpack.c.l.b16 %v327
  %v351 = vunpack.c.h.b16 %v327
  %v352 = vpack.c.b16 %v336, %v336
  %v353 = vpack.c.b16 %v337, %v337
  %v354 = vpack.c.b16 %v338, %v338
  %v355 = vpack.c.b16 %v339, %v339
  %v356 = vpack.c.b16 %v340, %v340
  %v357 = vpack.c.b16 %v341, %v341
  %v358 = vpack.c.b16 %v342, %v342
  %v359 = vpack.c.b16 %v343, %v343
  %v360 = vpack.c.b16 %v344, %v344
  %v361 = vpack.c.b16 %v345, %v345
  %v362 = vpack.c.b16 %v346, %v346
  %v363 = vpack.c.b16 %v347, %v347
  %v364 = vpack.c.b16 %v348, %v348
  %v365 = vpack.c.b16 %v349, %v349
  %v366 = vpack.c.b16 %v350, %v350
  %v367 = vpack.c.b16 %v351, %v351
  %vm384 = vcmask 257024
  %385 = vst.msk [vmem:[%s3] sm:$0xf] %vm384, %v352
  %386 = vst.msk [vmem:[%s3 + $0x4] sm:$0xf] %vm384, %v353
  %387 = vst.msk [vmem:[%s3 + $0x8] sm:$0xf] %vm384, %v354
  %388 = vst.msk [vmem:[%s3 + $0xc] sm:$0xf] %vm384, %v355
  %389 = vst.msk [vmem:[%s3 + $0x10] sm:$0xf] %vm384, %v356
  %390 = vst.msk [vmem:[%s3 + $0x14] sm:$0xf] %vm384, %v357
  %391 = vst.msk [vmem:[%s3 + $0x18] sm:$0xf] %vm384, %v358
  %392 = vst.msk [vmem:[%s3 + $0x1c] sm:$0xf] %vm384, %v359
  %393 = vst.msk [vmem:[%s3 + $0x20] sm:$0xf] %vm384, %v360
  %394 = vst.msk [vmem:[%s3 + $0x24] sm:$0xf] %vm384, %v361
  %395 = vst.msk [vmem:[%s3 + $0x28] sm:$0xf] %vm384, %v362
  %396 = vst.msk [vmem:[%s3 + $0x2c] sm:$0xf] %vm384, %v363
  %397 = vst.msk [vmem:[%s3 + $0x30] sm:$0xf] %vm384, %v364
  %398 = vst.msk [vmem:[%s3 + $0x34] sm:$0xf] %vm384, %v365
  %399 = vst.msk [vmem:[%s3 + $0x38] sm:$0xf] %vm384, %v366
  %400 = vst.msk [vmem:[%s3 + $0x3c] sm:$0xf] %vm384, %v367
  // Predicated region
  $region14: #{_lambda_.29} parent=0 // pred_check
    _
  $region15: #{_lambda_.29} parent=0 // pred_check_branch
    %402 = sbr.rel (0) target = $region17
  $region16: #{_lambda_.29} parent=0 // pred_region
    _
  $region17: #{_lambda_.29} parent=0 // pred_fallthru
    _
  // Predicated region
  $region18: #{_lambda_.29} parent=0 // pred_check
    _
  $region19: #{_lambda_.29} parent=0 // pred_check_branch
    %404 = sbr.rel (0) target = $region21
  $region20: #{_lambda_.29} parent=0 // pred_region
    _
  $region21: #{_lambda_.29} parent=0 // pred_fallthru
    _

// kernel: _lambda_.30
$region0: #{_lambda_.30}
  #allocation0 [shape = 'u32[]', space=smem, size = 0x4, offset = 0x4, fixed_abs, tag = 'smem constant byte address 0x4 - core index']
  #allocation1 [shape = 'u32[144,128]{1,0:T(1,128)}', space=vmem, size = 0x12000, scoped, tag = 'internal scratch']
  %s0 = inlined_call_operand.vmem [shape: bf16[128,16], index: 0, kind: input, shape index: {}]
  %s1 = inlined_call_operand.vmem [shape: bf16[16,32], index: 1, kind: input, shape index: {}]
  %s2 = inlined_call_operand.vmem [shape: f32[1,32], index: 2, kind: input, shape index: {}]
  %s3 = inlined_call_operand.vmem [shape: bf16[128,32], index: 3, kind: output, shape index: {}]
  %s4 = sld [smem:[#allocation0]]
  $region22: #{_lambda_.30} parent=0
    _
  %s6 = ssub.s32 1, %s4
  %s7 = scalar_select 0, %s6, %s4
  // Predicated region
  $region2: #{_lambda_.30} parent=0 // pred_check
    _
  $region3: #{_lambda_.30} parent=0 // pred_check_branch
    %9 = sbr.rel (0) target = $region5
  $region4: #{_lambda_.30} parent=0 // pred_region
    _
  $region5: #{_lambda_.30} parent=0 // pred_fallthru
    _
  // Predicated region
  $region6: #{_lambda_.30} parent=0 // pred_check
    _
  $region7: #{_lambda_.30} parent=0 // pred_check_branch
    %11 = sbr.rel (0) target = $region9
  $region8: #{_lambda_.30} parent=0 // pred_region
    _
  $region9: #{_lambda_.30} parent=0 // pred_fallthru
    _
  // Predicated region
  $region10: #{_lambda_.30} parent=0 // pred_check
    _
  $region11: #{_lambda_.30} parent=0 // pred_check_branch
    %13 = sbr.rel (0) target = $region13
  $region12: #{_lambda_.30} parent=0 // pred_region
    _
  $region13: #{_lambda_.30} parent=0 // pred_fallthru
    _
  %v15 = vld [vmem:[%s0] sm:$0xf]
  %v16 = vld [vmem:[%s0 + $0x4] sm:$0xf]
  %v17 = vld [vmem:[%s0 + $0x8] sm:$0xf]
  %v18 = vld [vmem:[%s0 + $0xc] sm:$0xf]
  %v19 = vld [vmem:[%s0 + $0x10] sm:$0xf]
  %v20 = vld [vmem:[%s0 + $0x14] sm:$0xf]
  %v21 = vld [vmem:[%s0 + $0x18] sm:$0xf]
  %v22 = vld [vmem:[%s0 + $0x1c] sm:$0xf]
  %v23 = vld [vmem:[%s0 + $0x20] sm:$0xf]
  %v24 = vld [vmem:[%s0 + $0x24] sm:$0xf]
  %v25 = vld [vmem:[%s0 + $0x28] sm:$0xf]
  %v26 = vld [vmem:[%s0 + $0x2c] sm:$0xf]
  %v27 = vld [vmem:[%s0 + $0x30] sm:$0xf]
  %v28 = vld [vmem:[%s0 + $0x34] sm:$0xf]
  %v29 = vld [vmem:[%s0 + $0x38] sm:$0xf]
  %v30 = vld [vmem:[%s0 + $0x3c] sm:$0xf]
  %v31 = vld [vmem:[%s1] sm:$0xf]
  %v32 = vld [vmem:[%s1 + $0x4] sm:$0xf]
  %v33 = vld [vmem:[%s2] sm:$0x1]
  %v35 = vlaneseq
  %v36 = vshrl.u32 %v35, 7
  %v37 = vsub.s32 0, %v36
  %v38 = vrot.slane %v33, %v37
  %v56 = vunpack.c.l.b16 %v15
  %v57 = vunpack.c.l.b16 %v16
  %v58 = vunpack.c.l.b16 %v17
  %v59 = vunpack.c.l.b16 %v18
  %v60 = vunpack.c.l.b16 %v19
  %v61 = vunpack.c.l.b16 %v20
  %v62 = vunpack.c.l.b16 %v21
  %v63 = vunpack.c.l.b16 %v22
  %v64 = vunpack.c.l.b16 %v23
  %v65 = vunpack.c.l.b16 %v24
  %v66 = vunpack.c.l.b16 %v25
  %v67 = vunpack.c.l.b16 %v26
  %v68 = vunpack.c.l.b16 %v27
  %v69 = vunpack.c.l.b16 %v28
  %v70 = vunpack.c.l.b16 %v29
  %v71 = vunpack.c.l.b16 %v30
  %v72 = vpack.c.b16 %v57, %v56
  %v73 = vpack.c.b16 %v59, %v58
  %v74 = vpack.c.b16 %v61, %v60
  %v75 = vpack.c.b16 %v63, %v62
  %v76 = vpack.c.b16 %v65, %v64
  %v77 = vpack.c.b16 %v67, %v66
  %v78 = vpack.c.b16 %v69, %v68
  %v79 = vpack.c.b16 %v71, %v70
  %v82 = vunpack.c.l.b16 %v31
  %v83 = vunpack.c.l.b16 %v32
  %v84 = vpack.c.b16 %v83, %v82
  %vm86 = vcmask 130048
  %v88 = vsel %vm86, %v72, 0
  %v91 = vsel %vm86, %v73, 0
  %v94 = vsel %vm86, %v74, 0
  %v97 = vsel %vm86, %v75, 0
  %v100 = vsel %vm86, %v76, 0
  %v103 = vsel %vm86, %v77, 0
  %v106 = vsel %vm86, %v78, 0
  %v109 = vsel %vm86, %v79, 0
  %111 = vmatprep.subr.bf16.mxu0 0
  %112 = vmatpush1.bf16.msra.mxu0 %v84
  %113 = vmatprep.subr.bf16.mxu0 0
  %114 = vmatpush1.bf16.msra.mxu0 0
  %115 = vmatprep.subr.bf16.mxu0 0
  %116 = vmatpush1.bf16.msra.mxu0 0
  %117 = vmatprep.subr.bf16.mxu0 0
  %118 = vmatpush1.bf16.msra.mxu0 0
  %119 = vmatprep.subr.bf16.mxu0 0
  %120 = vmatpush1.bf16.msra.mxu0 0
  %121 = vmatprep.subr.bf16.mxu0 0
  %122 = vmatpush1.bf16.msra.mxu0 0
  %123 = vmatprep.subr.bf16.mxu0 0
  %124 = vmatpush1.bf16.msra.mxu0 0
  %125 = vmatprep.subr.bf16.mxu0 0
  %126 = vmatpush1.bf16.msra.mxu0 0
  %127 = vmatprep.subr.bf16.mxu0 0
  %128 = vmatpush1.bf16.msra.mxu0 0
  %129 = vmatprep.subr.bf16.mxu0 0
  %130 = vmatpush1.bf16.msra.mxu0 0
  %131 = vmatprep.subr.bf16.mxu0 0
  %132 = vmatpush1.bf16.msra.mxu0 0
  %133 = vmatprep.subr.bf16.mxu0 0
  %134 = vmatpush1.bf16.msra.mxu0 0
  %135 = vmatprep.subr.bf16.mxu0 0
  %136 = vmatpush1.bf16.msra.mxu0 0
  %137 = vmatprep.subr.bf16.mxu0 0
  %138 = vmatpush1.bf16.msra.mxu0 0
  %139 = vmatprep.subr.bf16.mxu0 0
  %140 = vmatpush1.bf16.msra.mxu0 0
  %141 = vmatprep.subr.bf16.mxu0 0
  %142 = vmatpush1.bf16.msra.mxu0 0
  %143 = vmatprep.mubr.bf16.mxu0 0
  %144 = vmatmul.mubr.bf16.gmra.mrb[0].mxu0 %v88
  %v145 = vpop.f32.mrb[0].mxu0
  %v146 = vadd.f32 %v38, %v145
  %v147 = vpop.f32.mrb[0].mxu0
  %v148 = vpop.f32.mrb[0].mxu0
  %v149 = vadd.f32 %v38, %v148
  %v150 = vpop.f32.mrb[0].mxu0
  %151 = vmatprep.mubr.bf16.mxu0 0
  %152 = vmatmul.mubr.bf16.gmra.mrb[0].mxu0 %v91
  %v153 = vpop.f32.mrb[0].mxu0
  %v154 = vadd.f32 %v38, %v153
  %v155 = vpop.f32.mrb[0].mxu0
  %v156 = vpop.f32.mrb[0].mxu0
  %v157 = vadd.f32 %v38, %v156
  %v158 = vpop.f32.mrb[0].mxu0
  %159 = vmatprep.mubr.bf16.mxu0 0
  %160 = vmatmul.mubr.bf16.gmra.mrb[0].mxu0 %v94
  %v161 = vpop.f32.mrb[0].mxu0
  %v162 = vadd.f32 %v38, %v161
  %v163 = vpop.f32.mrb[0].mxu0
  %v164 = vpop.f32.mrb[0].mxu0
  %v165 = vadd.f32 %v38, %v164
  %v166 = vpop.f32.mrb[0].mxu0
  %167 = vmatprep.mubr.bf16.mxu0 0
  %168 = vmatmul.mubr.bf16.gmra.mrb[0].mxu0 %v97
  %v169 = vpop.f32.mrb[0].mxu0
  %v170 = vadd.f32 %v38, %v169
  %v171 = vpop.f32.mrb[0].mxu0
  %v172 = vpop.f32.mrb[0].mxu0
  %v173 = vadd.f32 %v38, %v172
  %v174 = vpop.f32.mrb[0].mxu0
  %175 = vmatprep.mubr.bf16.mxu0 0
  %176 = vmatmul.mubr.bf16.gmra.mrb[0].mxu0 %v100
  %v177 = vpop.f32.mrb[0].mxu0
  %v178 = vadd.f32 %v38, %v177
  %v179 = vpop.f32.mrb[0].mxu0
  %v180 = vpop.f32.mrb[0].mxu0
  %v181 = vadd.f32 %v38, %v180
  %v182 = vpop.f32.mrb[0].mxu0
  %183 = vmatprep.mubr.bf16.mxu0 0
  %184 = vmatmul.mubr.bf16.gmra.mrb[0].mxu0 %v103
  %v185 = vpop.f32.mrb[0].mxu0
  %v186 = vadd.f32 %v38, %v185
  %v187 = vpop.f32.mrb[0].mxu0
  %v188 = vpop.f32.mrb[0].mxu0
  %v189 = vadd.f32 %v38, %v188
  %v190 = vpop.f32.mrb[0].mxu0
  %191 = vmatprep.mubr.bf16.mxu0 0
  %192 = vmatmul.mubr.bf16.gmra.mrb[0].mxu0 %v106
  %v193 = vpop.f32.mrb[0].mxu0
  %v194 = vadd.f32 %v38, %v193
  %v195 = vpop.f32.mrb[0].mxu0
  %v196 = vpop.f32.mrb[0].mxu0
  %v197 = vadd.f32 %v38, %v196
  %v198 = vpop.f32.mrb[0].mxu0
  %199 = vmatprep.mubr.bf16.mxu0 0
  %200 = vmatmul.mubr.bf16.gmra.mrb[0].mxu0 %v109
  %v201 = vpop.f32.mrb[0].mxu0
  %v202 = vadd.f32 %v38, %v201
  %v203 = vpop.f32.mrb[0].mxu0
  %v204 = vpop.f32.mrb[0].mxu0
  %v205 = vadd.f32 %v38, %v204
  %v206 = vpop.f32.mrb[0].mxu0
  %207 = vdwg.mxu0
  %v208 = vpack.c.bf16 %v149, %v146
  %v209 = vpack.c.bf16 %v157, %v154
  %v210 = vpack.c.bf16 %v165, %v162
  %v211 = vpack.c.bf16 %v173, %v170
  %v212 = vpack.c.bf16 %v181, %v178
  %v213 = vpack.c.bf16 %v189, %v186
  %v214 = vpack.c.bf16 %v197, %v194
  %v215 = vpack.c.bf16 %v205, %v202
  %v224 = vunpack.c.l.b16 %v208
  %v225 = vunpack.c.h.b16 %v208
  %v226 = vunpack.c.l.b16 %v209
  %v227 = vunpack.c.h.b16 %v209
  %v228 = vunpack.c.l.b16 %v210
  %v229 = vunpack.c.h.b16 %v210
  %v230 = vunpack.c.l.b16 %v211
  %v231 = vunpack.c.h.b16 %v211
  %v232 = vunpack.c.l.b16 %v212
  %v233 = vunpack.c.h.b16 %v212
  %v234 = vunpack.c.l.b16 %v213
  %v235 = vunpack.c.h.b16 %v213
  %v236 = vunpack.c.l.b16 %v214
  %v237 = vunpack.c.h.b16 %v214
  %v238 = vunpack.c.l.b16 %v215
  %v239 = vunpack.c.h.b16 %v215
  %v240 = vpack.c.b16 %v224, %v224
  %v241 = vpack.c.b16 %v225, %v225
  %v242 = vpack.c.b16 %v226, %v226
  %v243 = vpack.c.b16 %v227, %v227
  %v244 = vpack.c.b16 %v228, %v228
  %v245 = vpack.c.b16 %v229, %v229
  %v246 = vpack.c.b16 %v230, %v230
  %v247 = vpack.c.b16 %v231, %v231
  %v248 = vpack.c.b16 %v232, %v232
  %v249 = vpack.c.b16 %v233, %v233
  %v250 = vpack.c.b16 %v234, %v234
  %v251 = vpack.c.b16 %v235, %v235
  %v252 = vpack.c.b16 %v236, %v236
  %v253 = vpack.c.b16 %v237, %v237
  %v254 = vpack.c.b16 %v238, %v238
  %v255 = vpack.c.b16 %v239, %v239
  %vm272 = vcmask 257024
  %273 = vst.msk [vmem:[%s3] sm:$0xf] %vm272, %v240
  %274 = vst.msk [vmem:[%s3 + $0x4] sm:$0xf] %vm272, %v241
  %275 = vst.msk [vmem:[%s3 + $0x8] sm:$0xf] %vm272, %v242
  %276 = vst.msk [vmem:[%s3 + $0xc] sm:$0xf] %vm272, %v243
  %277 = vst.msk [vmem:[%s3 + $0x10] sm:$0xf] %vm272, %v244
  %278 = vst.msk [vmem:[%s3 + $0x14] sm:$0xf] %vm272, %v245
  %279 = vst.msk [vmem:[%s3 + $0x18] sm:$0xf] %vm272, %v246
  %280 = vst.msk [vmem:[%s3 + $0x1c] sm:$0xf] %vm272, %v247
  %281 = vst.msk [vmem:[%s3 + $0x20] sm:$0xf] %vm272, %v248
  %282 = vst.msk [vmem:[%s3 + $0x24] sm:$0xf] %vm272, %v249
  %283 = vst.msk [vmem:[%s3 + $0x28] sm:$0xf] %vm272, %v250
  %284 = vst.msk [vmem:[%s3 + $0x2c] sm:$0xf] %vm272, %v251
  %285 = vst.msk [vmem:[%s3 + $0x30] sm:$0xf] %vm272, %v252
  %286 = vst.msk [vmem:[%s3 + $0x34] sm:$0xf] %vm272, %v253
  %287 = vst.msk [vmem:[%s3 + $0x38] sm:$0xf] %vm272, %v254
  %288 = vst.msk [vmem:[%s3 + $0x3c] sm:$0xf] %vm272, %v255
  // Predicated region
  $region14: #{_lambda_.30} parent=0 // pred_check
    _
  $region15: #{_lambda_.30} parent=0 // pred_check_branch
    %290 = sbr.rel (0) target = $region17
  $region16: #{_lambda_.30} parent=0 // pred_region
    _
  $region17: #{_lambda_.30} parent=0 // pred_fallthru
    _
  // Predicated region
  $region18: #{_lambda_.30} parent=0 // pred_check
    _
  $region19: #{_lambda_.30} parent=0 // pred_check_branch
    %292 = sbr.rel (0) target = $region21
  $region20: #{_lambda_.30} parent=0 // pred_region
    _
  $region21: #{_lambda_.30} parent=0 // pred_fallthru
    _

// kernel: _lambda_.31
$region0: #{_lambda_.31}
  #allocation0 [shape = 'u32[]', space=smem, size = 0x4, offset = 0x4, fixed_abs, tag = 'smem constant byte address 0x4 - core index']
  #allocation1 [shape = 'u32[144,128]{1,0:T(1,128)}', space=vmem, size = 0x12000, scoped, tag = 'internal scratch']
  %s0 = inlined_call_operand.vmem [shape: bf16[128,288], index: 0, kind: input, shape index: {}]
  %s1 = inlined_call_operand.vmem [shape: bf16[288,32], index: 1, kind: input, shape index: {}]
  %s2 = inlined_call_operand.vmem [shape: f32[1,32], index: 2, kind: input, shape index: {}]
  %s3 = inlined_call_operand.vmem [shape: bf16[128,32], index: 3, kind: input, shape index: {}]
  %s4 = inlined_call_operand.vmem [shape: bf16[128,32], index: 4, kind: output, shape index: {}]
  %s5 = sld [smem:[#allocation0]]
  $region26: #{_lambda_.31} parent=0
    _
  %s7 = ssub.s32 1, %s5
  %s8 = scalar_select 0, %s7, %s5
  // Predicated region
  $region2: #{_lambda_.31} parent=0 // pred_check
    _
  $region3: #{_lambda_.31} parent=0 // pred_check_branch
    %10 = sbr.rel (0) target = $region5
  $region4: #{_lambda_.31} parent=0 // pred_region
    _
  $region5: #{_lambda_.31} parent=0 // pred_fallthru
    _
  // Predicated region
  $region6: #{_lambda_.31} parent=0 // pred_check
    _
  $region7: #{_lambda_.31} parent=0 // pred_check_branch
    %12 = sbr.rel (0) target = $region9
  $region8: #{_lambda_.31} parent=0 // pred_region
    _
  $region9: #{_lambda_.31} parent=0 // pred_fallthru
    _
  // Predicated region
  $region10: #{_lambda_.31} parent=0 // pred_check
    _
  $region11: #{_lambda_.31} parent=0 // pred_check_branch
    %14 = sbr.rel (0) target = $region13
  $region12: #{_lambda_.31} parent=0 // pred_region
    _
  $region13: #{_lambda_.31} parent=0 // pred_fallthru
    _
  // Predicated region
  $region14: #{_lambda_.31} parent=0 // pred_check
    _
  $region15: #{_lambda_.31} parent=0 // pred_check_branch
    %16 = sbr.rel (0) target = $region17
  $region16: #{_lambda_.31} parent=0 // pred_region
    _
  $region17: #{_lambda_.31} parent=0 // pred_fallthru
    _
  %v18 = vld [vmem:[%s0] sm:$0xff]
  %v19 = vld [vmem:[%s0 + $0x8] sm:$0xf]
  %v20 = vld [vmem:[%s0 + $0xc] sm:$0xff]
  %v21 = vld [vmem:[%s0 + $0x14] sm:$0xf]
  %v22 = vld [vmem:[%s0 + $0x18] sm:$0xff]
  %v23 = vld [vmem:[%s0 + $0x20] sm:$0xf]
  %v24 = vld [vmem:[%s0 + $0x24] sm:$0xff]
  %v25 = vld [vmem:[%s0 + $0x2c] sm:$0xf]
  %v26 = vld [vmem:[%s0 + $0x30] sm:$0xff]
  %v27 = vld [vmem:[%s0 + $0x38] sm:$0xf]
  %v28 = vld [vmem:[%s0 + $0x3c] sm:$0xff]
  %v29 = vld [vmem:[%s0 + $0x44] sm:$0xf]
  %v30 = vld [vmem:[%s0 + $0x48] sm:$0xff]
  %v31 = vld [vmem:[%s0 + $0x50] sm:$0xf]
  %v32 = vld [vmem:[%s0 + $0x54] sm:$0xff]
  %v33 = vld [vmem:[%s0 + $0x5c] sm:$0xf]
  %v34 = vld [vmem:[%s0 + $0x60] sm:$0xff]
  %v35 = vld [vmem:[%s0 + $0x68] sm:$0xf]
  %v36 = vld [vmem:[%s0 + $0x6c] sm:$0xff]
  %v37 = vld [vmem:[%s0 + $0x74] sm:$0xf]
  %v38 = vld [vmem:[%s0 + $0x78] sm:$0xff]
  %v39 = vld [vmem:[%s0 + $0x80] sm:$0xf]
  %v40 = vld [vmem:[%s0 + $0x84] sm:$0xff]
  %v41 = vld [vmem:[%s0 + $0x8c] sm:$0xf]
  %v42 = vld [vmem:[%s0 + $0x90] sm:$0xff]
  %v43 = vld [vmem:[%s0 + $0x98] sm:$0xf]
  %v44 = vld [vmem:[%s0 + $0x9c] sm:$0xff]
  %v45 = vld [vmem:[%s0 + $0xa4] sm:$0xf]
  %v46 = vld [vmem:[%s0 + $0xa8] sm:$0xff]
  %v47 = vld [vmem:[%s0 + $0xb0] sm:$0xf]
  %v48 = vld [vmem:[%s0 + $0xb4] sm:$0xff]
  %v49 = vld [vmem:[%s0 + $0xbc] sm:$0xf]
  %v50 = vld [vmem:[%s1] sm:$0xf]
  %v51 = vld [vmem:[%s1 + $0x4] sm:$0xf]
  %v52 = vld [vmem:[%s1 + $0x8] sm:$0xf]
  %v53 = vld [vmem:[%s1 + $0xc] sm:$0xf]
  %v54 = vld [vmem:[%s1 + $0x10] sm:$0xf]
  %v55 = vld [vmem:[%s1 + $0x14] sm:$0xf]
  %v56 = vld [vmem:[%s1 + $0x18] sm:$0xf]
  %v57 = vld [vmem:[%s1 + $0x1c] sm:$0xf]
  %v58 = vld [vmem:[%s1 + $0x20] sm:$0xf]
  %v59 = vld [vmem:[%s1 + $0x24] sm:$0xf]
  %v60 = vld [vmem:[%s1 + $0x28] sm:$0xf]
  %v61 = vld [vmem:[%s1 + $0x2c] sm:$0xf]
  %v62 = vld [vmem:[%s1 + $0x30] sm:$0xf]
  %v63 = vld [vmem:[%s1 + $0x34] sm:$0xf]
  %v64 = vld [vmem:[%s1 + $0x38] sm:$0xf]
  %v65 = vld [vmem:[%s1 + $0x3c] sm:$0xf]
  %v66 = vld [vmem:[%s1 + $0x40] sm:$0xf]
  %v67 = vld [vmem:[%s1 + $0x44] sm:$0xf]
  %v68 = vld [vmem:[%s1 + $0x48] sm:$0xf]
  %v69 = vld [vmem:[%s1 + $0x4c] sm:$0xf]
  %v70 = vld [vmem:[%s1 + $0x50] sm:$0xf]
  %v71 = vld [vmem:[%s1 + $0x54] sm:$0xf]
  %v72 = vld [vmem:[%s1 + $0x58] sm:$0xf]
  %v73 = vld [vmem:[%s1 + $0x5c] sm:$0xf]
  %v74 = vld [vmem:[%s1 + $0x60] sm:$0xf]
  %v75 = vld [vmem:[%s1 + $0x64] sm:$0xf]
  %v76 = vld [vmem:[%s1 + $0x68] sm:$0xf]
  %v77 = vld [vmem:[%s1 + $0x6c] sm:$0xf]
  %v78 = vld [vmem:[%s1 + $0x70] sm:$0xf]
  %v79 = vld [vmem:[%s1 + $0x74] sm:$0xf]
  %v80 = vld [vmem:[%s1 + $0x78] sm:$0xf]
  %v81 = vld [vmem:[%s1 + $0x7c] sm:$0xf]
  %v82 = vld [vmem:[%s1 + $0x80] sm:$0xf]
  %v83 = vld [vmem:[%s1 + $0x84] sm:$0xf]
  %v84 = vld [vmem:[%s1 + $0x88] sm:$0xf]
  %v85 = vld [vmem:[%s1 + $0x8c] sm:$0xf]
  %v86 = vld [vmem:[%s2] sm:$0x1]
  %v88 = vlaneseq
  %v89 = vshrl.u32 %v88, 7
  %v90 = vsub.s32 0, %v89
  %v91 = vrot.slane %v86, %v90
  %v125 = vunpack.c.l.b16 %v18
  %v126 = vunpack.c.h.b16 %v18
  %v127 = vunpack.c.l.b16 %v19
  %v128 = vunpack.c.l.b16 %v20
  %v129 = vunpack.c.h.b16 %v20
  %v130 = vunpack.c.l.b16 %v21
  %v131 = vunpack.c.l.b16 %v22
  %v132 = vunpack.c.h.b16 %v22
  %v133 = vunpack.c.l.b16 %v23
  %v134 = vunpack.c.l.b16 %v24
  %v135 = vunpack.c.h.b16 %v24
  %v136 = vunpack.c.l.b16 %v25
  %v137 = vunpack.c.l.b16 %v26
  %v138 = vunpack.c.h.b16 %v26
  %v139 = vunpack.c.l.b16 %v27
  %v140 = vunpack.c.l.b16 %v28
  %v141 = vunpack.c.h.b16 %v28
  %v142 = vunpack.c.l.b16 %v29
  %v143 = vunpack.c.l.b16 %v30
  %v144 = vunpack.c.h.b16 %v30
  %v145 = vunpack.c.l.b16 %v31
  %v146 = vunpack.c.l.b16 %v32
  %v147 = vunpack.c.h.b16 %v32
  %v148 = vunpack.c.l.b16 %v33
  %v149 = vunpack.c.l.b16 %v34
  %v150 = vunpack.c.h.b16 %v34
  %v151 = vunpack.c.l.b16 %v35
  %v152 = vunpack.c.l.b16 %v36
  %v153 = vunpack.c.h.b16 %v36
  %v154 = vunpack.c.l.b16 %v37
  %v155 = vunpack.c.l.b16 %v38
  %v156 = vunpack.c.h.b16 %v38
  %v157 = vunpack.c.l.b16 %v39
  %v158 = vunpack.c.l.b16 %v40
  %v159 = vunpack.c.h.b16 %v40
  %v160 = vunpack.c.l.b16 %v41
  %v161 = vunpack.c.l.b16 %v42
  %v162 = vunpack.c.h.b16 %v42
  %v163 = vunpack.c.l.b16 %v43
  %v164 = vunpack.c.l.b16 %v44
  %v165 = vunpack.c.h.b16 %v44
  %v166 = vunpack.c.l.b16 %v45
  %v167 = vunpack.c.l.b16 %v46
  %v168 = vunpack.c.h.b16 %v46
  %v169 = vunpack.c.l.b16 %v47
  %v170 = vunpack.c.l.b16 %v48
  %v171 = vunpack.c.h.b16 %v48
  %v172 = vunpack.c.l.b16 %v49
  %v173 = vpack.c.b16 %v128, %v125
  %v174 = vpack.c.b16 %v129, %v126
  %v175 = vpack.c.b16 %v130, %v127
  %v176 = vpack.c.b16 %v134, %v131
  %v177 = vpack.c.b16 %v135, %v132
  %v178 = vpack.c.b16 %v136, %v133
  %v179 = vpack.c.b16 %v140, %v137
  %v180 = vpack.c.b16 %v141, %v138
  %v181 = vpack.c.b16 %v142, %v139
  %v182 = vpack.c.b16 %v146, %v143
  %v183 = vpack.c.b16 %v147, %v144
  %v184 = vpack.c.b16 %v148, %v145
  %v185 = vpack.c.b16 %v152, %v149
  %v186 = vpack.c.b16 %v153, %v150
  %v187 = vpack.c.b16 %v154, %v151
  %v188 = vpack.c.b16 %v158, %v155
  %v189 = vpack.c.b16 %v159, %v156
  %v190 = vpack.c.b16 %v160, %v157
  %v191 = vpack.c.b16 %v164, %v161
  %v192 = vpack.c.b16 %v165, %v162
  %v193 = vpack.c.b16 %v166, %v163
  %v194 = vpack.c.b16 %v170, %v167
  %v195 = vpack.c.b16 %v171, %v168
  %v196 = vpack.c.b16 %v172, %v169
  %v249 = vunpack.c.l.b16 %v50
  %v250 = vunpack.c.l.b16 %v51
  %v251 = vunpack.c.l.b16 %v52
  %v252 = vunpack.c.l.b16 %v53
  %v253 = vunpack.c.l.b16 %v54
  %v254 = vunpack.c.l.b16 %v55
  %v255 = vunpack.c.l.b16 %v56
  %v256 = vunpack.c.l.b16 %v57
  %v257 = vunpack.c.l.b16 %v58
  %v258 = vunpack.c.l.b16 %v59
  %v259 = vunpack.c.l.b16 %v60
  %v260 = vunpack.c.l.b16 %v61
  %v261 = vunpack.c.l.b16 %v62
  %v262 = vunpack.c.l.b16 %v63
  %v263 = vunpack.c.l.b16 %v64
  %v264 = vunpack.c.l.b16 %v65
  %v265 = vunpack.c.l.b16 %v66
  %v266 = vunpack.c.l.b16 %v67
  %v267 = vunpack.c.l.b16 %v68
  %v268 = vunpack.c.l.b16 %v69
  %v269 = vunpack.c.l.b16 %v70
  %v270 = vunpack.c.l.b16 %v71
  %v271 = vunpack.c.l.b16 %v72
  %v272 = vunpack.c.l.b16 %v73
  %v273 = vunpack.c.l.b16 %v74
  %v274 = vunpack.c.l.b16 %v75
  %v275 = vunpack.c.l.b16 %v76
  %v276 = vunpack.c.l.b16 %v77
  %v277 = vunpack.c.l.b16 %v78
  %v278 = vunpack.c.l.b16 %v79
  %v279 = vunpack.c.l.b16 %v80
  %v280 = vunpack.c.l.b16 %v81
  %v281 = vunpack.c.l.b16 %v82
  %v282 = vunpack.c.l.b16 %v83
  %v283 = vunpack.c.l.b16 %v84
  %v284 = vunpack.c.l.b16 %v85
  %v285 = vpack.c.b16 %v250, %v249
  %v286 = vpack.c.b16 %v252, %v251
  %v287 = vpack.c.b16 %v254, %v253
  %v288 = vpack.c.b16 %v256, %v255
  %v289 = vpack.c.b16 %v258, %v257
  %v290 = vpack.c.b16 %v260, %v259
  %v291 = vpack.c.b16 %v262, %v261
  %v292 = vpack.c.b16 %v264, %v263
  %v293 = vpack.c.b16 %v266, %v265
  %v294 = vpack.c.b16 %v268, %v267
  %v295 = vpack.c.b16 %v270, %v269
  %v296 = vpack.c.b16 %v272, %v271
  %v297 = vpack.c.b16 %v274, %v273
  %v298 = vpack.c.b16 %v276, %v275
  %v299 = vpack.c.b16 %v278, %v277
  %v300 = vpack.c.b16 %v280, %v279
  %v301 = vpack.c.b16 %v282, %v281
  %v302 = vpack.c.b16 %v284, %v283
  %vm321 = vcmask 261120
  %v323 = vsel %vm321, %v175, 0
  %v326 = vsel %vm321, %v178, 0
  %v329 = vsel %vm321, %v181, 0
  %v332 = vsel %vm321, %v184, 0
  %v335 = vsel %vm321, %v187, 0
  %v338 = vsel %vm321, %v190, 0
  %v341 = vsel %vm321, %v193, 0
  %v344 = vsel %vm321, %v196, 0
  %346 = vmatprep.subr.bf16.mxu0 0
  %347 = vmatpush1.bf16.msra.mxu0 %v285
  %348 = vmatprep.subr.bf16.mxu0 0
  %349 = vmatpush1.bf16.msra.mxu0 %v286
  %350 = vmatprep.subr.bf16.mxu0 0
  %351 = vmatpush1.bf16.msra.mxu0 %v287
  %352 = vmatprep.subr.bf16.mxu0 0
  %353 = vmatpush1.bf16.msra.mxu0 %v288
  %354 = vmatprep.subr.bf16.mxu0 0
  %355 = vmatpush1.bf16.msra.mxu0 %v289
  %356 = vmatprep.subr.bf16.mxu0 0
  %357 = vmatpush1.bf16.msra.mxu0 %v290
  %358 = vmatprep.subr.bf16.mxu0 0
  %359 = vmatpush1.bf16.msra.mxu0 %v291
  %360 = vmatprep.subr.bf16.mxu0 0
  %361 = vmatpush1.bf16.msra.mxu0 %v292
  %362 = vmatprep.subr.bf16.mxu0 0
  %363 = vmatpush1.bf16.msra.mxu0 %v293
  %364 = vmatprep.subr.bf16.mxu0 0
  %365 = vmatpush1.bf16.msra.mxu0 %v294
  %366 = vmatprep.subr.bf16.mxu0 0
  %367 = vmatpush1.bf16.msra.mxu0 %v295
  %368 = vmatprep.subr.bf16.mxu0 0
  %369 = vmatpush1.bf16.msra.mxu0 %v296
  %370 = vmatprep.subr.bf16.mxu0 0
  %371 = vmatpush1.bf16.msra.mxu0 %v297
  %372 = vmatprep.subr.bf16.mxu0 0
  %373 = vmatpush1.bf16.msra.mxu0 %v298
  %374 = vmatprep.subr.bf16.mxu0 0
  %375 = vmatpush1.bf16.msra.mxu0 %v299
  %376 = vmatprep.subr.bf16.mxu0 0
  %377 = vmatpush1.bf16.msra.mxu0 %v300
  %378 = vmatprep.mubr.bf16.mxu0 %v174
  %379 = vmatmul.mubr.bf16.gmra.mrb[0].mxu0 %v173
  %v380 = vpop.f32.mrb[0].mxu0
  %v381 = vadd.f32 %v91, %v380
  %v382 = vpop.f32.mrb[0].mxu0
  %v383 = vpop.f32.mrb[0].mxu0
  %v384 = vadd.f32 %v91, %v383
  %v385 = vpop.f32.mrb[0].mxu0
  %386 = vmatprep.mubr.bf16.mxu0 %v177
  %387 = vmatmul.mubr.bf16.gmra.mrb[0].mxu0 %v176
  %v388 = vpop.f32.mrb[0].mxu0
  %v389 = vadd.f32 %v91, %v388
  %v390 = vpop.f32.mrb[0].mxu0
  %v391 = vpop.f32.mrb[0].mxu0
  %v392 = vadd.f32 %v91, %v391
  %v393 = vpop.f32.mrb[0].mxu0
  %394 = vmatprep.mubr.bf16.mxu0 %v180
  %395 = vmatmul.mubr.bf16.gmra.mrb[0].mxu0 %v179
  %v396 = vpop.f32.mrb[0].mxu0
  %v397 = vadd.f32 %v91, %v396
  %v398 = vpop.f32.mrb[0].mxu0
  %v399 = vpop.f32.mrb[0].mxu0
  %v400 = vadd.f32 %v91, %v399
  %v401 = vpop.f32.mrb[0].mxu0
  %402 = vmatprep.mubr.bf16.mxu0 %v183
  %403 = vmatmul.mubr.bf16.gmra.mrb[0].mxu0 %v182
  %v404 = vpop.f32.mrb[0].mxu0
  %v405 = vadd.f32 %v91, %v404
  %v406 = vpop.f32.mrb[0].mxu0
  %v407 = vpop.f32.mrb[0].mxu0
  %v408 = vadd.f32 %v91, %v407
  %v409 = vpop.f32.mrb[0].mxu0
  %410 = vmatprep.mubr.bf16.mxu0 %v186
  %411 = vmatmul.mubr.bf16.gmra.mrb[0].mxu0 %v185
  %v412 = vpop.f32.mrb[0].mxu0
  %v413 = vadd.f32 %v91, %v412
  %v414 = vpop.f32.mrb[0].mxu0
  %v415 = vpop.f32.mrb[0].mxu0
  %v416 = vadd.f32 %v91, %v415
  %v417 = vpop.f32.mrb[0].mxu0
  %418 = vmatprep.mubr.bf16.mxu0 %v189
  %419 = vmatmul.mubr.bf16.gmra.mrb[0].mxu0 %v188
  %v420 = vpop.f32.mrb[0].mxu0
  %v421 = vadd.f32 %v91, %v420
  %v422 = vpop.f32.mrb[0].mxu0
  %v423 = vpop.f32.mrb[0].mxu0
  %v424 = vadd.f32 %v91, %v423
  %v425 = vpop.f32.mrb[0].mxu0
  %426 = vmatprep.mubr.bf16.mxu0 %v192
  %427 = vmatmul.mubr.bf16.gmra.mrb[0].mxu0 %v191
  %v428 = vpop.f32.mrb[0].mxu0
  %v429 = vadd.f32 %v91, %v428
  %v430 = vpop.f32.mrb[0].mxu0
  %v431 = vpop.f32.mrb[0].mxu0
  %v432 = vadd.f32 %v91, %v431
  %v433 = vpop.f32.mrb[0].mxu0
  %434 = vmatprep.mubr.bf16.mxu0 %v195
  %435 = vmatmul.mubr.bf16.gmra.mrb[0].mxu0 %v194
  %v436 = vpop.f32.mrb[0].mxu0
  %v437 = vadd.f32 %v91, %v436
  %v438 = vpop.f32.mrb[0].mxu0
  %v439 = vpop.f32.mrb[0].mxu0
  %v440 = vadd.f32 %v91, %v439
  %v441 = vpop.f32.mrb[0].mxu0
  %442 = vdwg.mxu0
  %443 = vmatprep.subr.bf16.mxu0 0
  %444 = vmatpush1.bf16.msra.mxu0 %v301
  %445 = vmatprep.subr.bf16.mxu0 0
  %446 = vmatpush1.bf16.msra.mxu0 %v302
  %447 = vmatprep.subr.bf16.mxu0 0
  %448 = vmatpush1.bf16.msra.mxu0 0
  %449 = vmatprep.subr.bf16.mxu0 0
  %450 = vmatpush1.bf16.msra.mxu0 0
  %451 = vmatprep.subr.bf16.mxu0 0
  %452 = vmatpush1.bf16.msra.mxu0 0
  %453 = vmatprep.subr.bf16.mxu0 0
  %454 = vmatpush1.bf16.msra.mxu0 0
  %455 = vmatprep.subr.bf16.mxu0 0
  %456 = vmatpush1.bf16.msra.mxu0 0
  %457 = vmatprep.subr.bf16.mxu0 0
  %458 = vmatpush1.bf16.msra.mxu0 0
  %459 = vmatprep.subr.bf16.mxu0 0
  %460 = vmatpush1.bf16.msra.mxu0 0
  %461 = vmatprep.subr.bf16.mxu0 0
  %462 = vmatpush1.bf16.msra.mxu0 0
  %463 = vmatprep.subr.bf16.mxu0 0
  %464 = vmatpush1.bf16.msra.mxu0 0
  %465 = vmatprep.subr.bf16.mxu0 0
  %466 = vmatpush1.bf16.msra.mxu0 0
  %467 = vmatprep.subr.bf16.mxu0 0
  %468 = vmatpush1.bf16.msra.mxu0 0
  %469 = vmatprep.subr.bf16.mxu0 0
  %470 = vmatpush1.bf16.msra.mxu0 0
  %471 = vmatprep.subr.bf16.mxu0 0
  %472 = vmatpush1.bf16.msra.mxu0 0
  %473 = vmatprep.subr.bf16.mxu0 0
  %474 = vmatpush1.bf16.msra.mxu0 0
  %475 = vmatprep.mubr.bf16.mxu0 0
  %476 = vmatmul.mubr.bf16.gmra.mrb[0].mxu0 %v323
  %v477 = vpop.f32.mrb[0].mxu0
  %v478 = vadd.f32 %v381, %v477
  %v479 = vpop.f32.mrb[0].mxu0
  %v480 = vpop.f32.mrb[0].mxu0
  %v481 = vadd.f32 %v384, %v480
  %v482 = vpop.f32.mrb[0].mxu0
  %483 = vmatprep.mubr.bf16.mxu0 0
  %484 = vmatmul.mubr.bf16.gmra.mrb[0].mxu0 %v326
  %v485 = vpop.f32.mrb[0].mxu0
  %v486 = vadd.f32 %v389, %v485
  %v487 = vpop.f32.mrb[0].mxu0
  %v488 = vpop.f32.mrb[0].mxu0
  %v489 = vadd.f32 %v392, %v488
  %v490 = vpop.f32.mrb[0].mxu0
  %491 = vmatprep.mubr.bf16.mxu0 0
  %492 = vmatmul.mubr.bf16.gmra.mrb[0].mxu0 %v329
  %v493 = vpop.f32.mrb[0].mxu0
  %v494 = vadd.f32 %v397, %v493
  %v495 = vpop.f32.mrb[0].mxu0
  %v496 = vpop.f32.mrb[0].mxu0
  %v497 = vadd.f32 %v400, %v496
  %v498 = vpop.f32.mrb[0].mxu0
  %499 = vmatprep.mubr.bf16.mxu0 0
  %500 = vmatmul.mubr.bf16.gmra.mrb[0].mxu0 %v332
  %v501 = vpop.f32.mrb[0].mxu0
  %v502 = vadd.f32 %v405, %v501
  %v503 = vpop.f32.mrb[0].mxu0
  %v504 = vpop.f32.mrb[0].mxu0
  %v505 = vadd.f32 %v408, %v504
  %v506 = vpop.f32.mrb[0].mxu0
  %507 = vmatprep.mubr.bf16.mxu0 0
  %508 = vmatmul.mubr.bf16.gmra.mrb[0].mxu0 %v335
  %v509 = vpop.f32.mrb[0].mxu0
  %v510 = vadd.f32 %v413, %v509
  %v511 = vpop.f32.mrb[0].mxu0
  %v512 = vpop.f32.mrb[0].mxu0
  %v513 = vadd.f32 %v416, %v512
  %v514 = vpop.f32.mrb[0].mxu0
  %515 = vmatprep.mubr.bf16.mxu0 0
  %516 = vmatmul.mubr.bf16.gmra.mrb[0].mxu0 %v338
  %v517 = vpop.f32.mrb[0].mxu0
  %v518 = vadd.f32 %v421, %v517
  %v519 = vpop.f32.mrb[0].mxu0
  %v520 = vpop.f32.mrb[0].mxu0
  %v521 = vadd.f32 %v424, %v520
  %v522 = vpop.f32.mrb[0].mxu0
  %523 = vmatprep.mubr.bf16.mxu0 0
  %524 = vmatmul.mubr.bf16.gmra.mrb[0].mxu0 %v341
  %v525 = vpop.f32.mrb[0].mxu0
  %v526 = vadd.f32 %v429, %v525
  %v527 = vpop.f32.mrb[0].mxu0
  %v528 = vpop.f32.mrb[0].mxu0
  %v529 = vadd.f32 %v432, %v528
  %v530 = vpop.f32.mrb[0].mxu0
  %531 = vmatprep.mubr.bf16.mxu0 0
  %532 = vmatmul.mubr.bf16.gmra.mrb[0].mxu0 %v344
  %v533 = vpop.f32.mrb[0].mxu0
  %v534 = vadd.f32 %v437, %v533
  %v535 = vpop.f32.mrb[0].mxu0
  %v536 = vpop.f32.mrb[0].mxu0
  %v537 = vadd.f32 %v440, %v536
  %v538 = vpop.f32.mrb[0].mxu0
  %539 = vdwg.mxu0
  %v540 = vld [vmem:[%s3] sm:$0xf]
  %v541 = vld [vmem:[%s3 + $0x4] sm:$0xf]
  %v542 = vld [vmem:[%s3 + $0x8] sm:$0xf]
  %v543 = vld [vmem:[%s3 + $0xc] sm:$0xf]
  %v544 = vld [vmem:[%s3 + $0x10] sm:$0xf]
  %v545 = vld [vmem:[%s3 + $0x14] sm:$0xf]
  %v546 = vld [vmem:[%s3 + $0x18] sm:$0xf]
  %v547 = vld [vmem:[%s3 + $0x1c] sm:$0xf]
  %v548 = vld [vmem:[%s3 + $0x20] sm:$0xf]
  %v549 = vld [vmem:[%s3 + $0x24] sm:$0xf]
  %v550 = vld [vmem:[%s3 + $0x28] sm:$0xf]
  %v551 = vld [vmem:[%s3 + $0x2c] sm:$0xf]
  %v552 = vld [vmem:[%s3 + $0x30] sm:$0xf]
  %v553 = vld [vmem:[%s3 + $0x34] sm:$0xf]
  %v554 = vld [vmem:[%s3 + $0x38] sm:$0xf]
  %v555 = vld [vmem:[%s3 + $0x3c] sm:$0xf]
  %v556 = vunpack.c.l.bf16 %v540
  %v557 = vunpack.c.l.bf16 %v541
  %v558 = vunpack.c.l.bf16 %v542
  %v559 = vunpack.c.l.bf16 %v543
  %v560 = vunpack.c.l.bf16 %v544
  %v561 = vunpack.c.l.bf16 %v545
  %v562 = vunpack.c.l.bf16 %v546
  %v563 = vunpack.c.l.bf16 %v547
  %v564 = vunpack.c.l.bf16 %v548
  %v565 = vunpack.c.l.bf16 %v549
  %v566 = vunpack.c.l.bf16 %v550
  %v567 = vunpack.c.l.bf16 %v551
  %v568 = vunpack.c.l.bf16 %v552
  %v569 = vunpack.c.l.bf16 %v553
  %v570 = vunpack.c.l.bf16 %v554
  %v571 = vunpack.c.l.bf16 %v555
  %v572 = vadd.f32 %v478, %v556
  %v573 = vadd.f32 %v481, %v557
  %v574 = vadd.f32 %v486, %v558
  %v575 = vadd.f32 %v489, %v559
  %v576 = vadd.f32 %v494, %v560
  %v577 = vadd.f32 %v497, %v561
  %v578 = vadd.f32 %v502, %v562
  %v579 = vadd.f32 %v505, %v563
  %v580 = vadd.f32 %v510, %v564
  %v581 = vadd.f32 %v513, %v565
  %v582 = vadd.f32 %v518, %v566
  %v583 = vadd.f32 %v521, %v567
  %v584 = vadd.f32 %v526, %v568
  %v585 = vadd.f32 %v529, %v569
  %v586 = vadd.f32 %v534, %v570
  %v587 = vadd.f32 %v537, %v571
  %v588 = vmax.f32 %v572, 0.0
  %v589 = vmax.f32 %v573, 0.0
  %v590 = vmax.f32 %v574, 0.0
  %v591 = vmax.f32 %v575, 0.0
  %v592 = vmax.f32 %v576, 0.0
  %v593 = vmax.f32 %v577, 0.0
  %v594 = vmax.f32 %v578, 0.0
  %v595 = vmax.f32 %v579, 0.0
  %v596 = vmax.f32 %v580, 0.0
  %v597 = vmax.f32 %v581, 0.0
  %v598 = vmax.f32 %v582, 0.0
  %v599 = vmax.f32 %v583, 0.0
  %v600 = vmax.f32 %v584, 0.0
  %v601 = vmax.f32 %v585, 0.0
  %v602 = vmax.f32 %v586, 0.0
  %v603 = vmax.f32 %v587, 0.0
  %v604 = vpack.c.bf16 %v589, %v588
  %v605 = vpack.c.bf16 %v591, %v590
  %v606 = vpack.c.bf16 %v593, %v592
  %v607 = vpack.c.bf16 %v595, %v594
  %v608 = vpack.c.bf16 %v597, %v596
  %v609 = vpack.c.bf16 %v599, %v598
  %v610 = vpack.c.bf16 %v601, %v600
  %v611 = vpack.c.bf16 %v603, %v602
  %v620 = vunpack.c.l.b16 %v604
  %v621 = vunpack.c.h.b16 %v604
  %v622 = vunpack.c.l.b16 %v605
  %v623 = vunpack.c.h.b16 %v605
  %v624 = vunpack.c.l.b16 %v606
  %v625 = vunpack.c.h.b16 %v606
  %v626 = vunpack.c.l.b16 %v607
  %v627 = vunpack.c.h.b16 %v607
  %v628 = vunpack.c.l.b16 %v608
  %v629 = vunpack.c.h.b16 %v608
  %v630 = vunpack.c.l.b16 %v609
  %v631 = vunpack.c.h.b16 %v609
  %v632 = vunpack.c.l.b16 %v610
  %v633 = vunpack.c.h.b16 %v610
  %v634 = vunpack.c.l.b16 %v611
  %v635 = vunpack.c.h.b16 %v611
  %v636 = vpack.c.b16 %v620, %v620
  %v637 = vpack.c.b16 %v621, %v621
  %v638 = vpack.c.b16 %v622, %v622
  %v639 = vpack.c.b16 %v623, %v623
  %v640 = vpack.c.b16 %v624, %v624
  %v641 = vpack.c.b16 %v625, %v625
  %v642 = vpack.c.b16 %v626, %v626
  %v643 = vpack.c.b16 %v627, %v627
  %v644 = vpack.c.b16 %v628, %v628
  %v645 = vpack.c.b16 %v629, %v629
  %v646 = vpack.c.b16 %v630, %v630
  %v647 = vpack.c.b16 %v631, %v631
  %v648 = vpack.c.b16 %v632, %v632
  %v649 = vpack.c.b16 %v633, %v633
  %v650 = vpack.c.b16 %v634, %v634
  %v651 = vpack.c.b16 %v635, %v635
  %vm668 = vcmask 257024
  %669 = vst.msk [vmem:[%s4] sm:$0xf] %vm668, %v636
  %670 = vst.msk [vmem:[%s4 + $0x4] sm:$0xf] %vm668, %v637
  %671 = vst.msk [vmem:[%s4 + $0x8] sm:$0xf] %vm668, %v638
  %672 = vst.msk [vmem:[%s4 + $0xc] sm:$0xf] %vm668, %v639
  %673 = vst.msk [vmem:[%s4 + $0x10] sm:$0xf] %vm668, %v640
  %674 = vst.msk [vmem:[%s4 + $0x14] sm:$0xf] %vm668, %v641
  %675 = vst.msk [vmem:[%s4 + $0x18] sm:$0xf] %vm668, %v642
  %676 = vst.msk [vmem:[%s4 + $0x1c] sm:$0xf] %vm668, %v643
  %677 = vst.msk [vmem:[%s4 + $0x20] sm:$0xf] %vm668, %v644
  %678 = vst.msk [vmem:[%s4 + $0x24] sm:$0xf] %vm668, %v645
  %679 = vst.msk [vmem:[%s4 + $0x28] sm:$0xf] %vm668, %v646
  %680 = vst.msk [vmem:[%s4 + $0x2c] sm:$0xf] %vm668, %v647
  %681 = vst.msk [vmem:[%s4 + $0x30] sm:$0xf] %vm668, %v648
  %682 = vst.msk [vmem:[%s4 + $0x34] sm:$0xf] %vm668, %v649
  %683 = vst.msk [vmem:[%s4 + $0x38] sm:$0xf] %vm668, %v650
  %684 = vst.msk [vmem:[%s4 + $0x3c] sm:$0xf] %vm668, %v651
  // Predicated region
  $region18: #{_lambda_.31} parent=0 // pred_check
    _
  $region19: #{_lambda_.31} parent=0 // pred_check_branch
    %686 = sbr.rel (0) target = $region21
  $region20: #{_lambda_.31} parent=0 // pred_region
    _
  $region21: #{_lambda_.31} parent=0 // pred_fallthru
    _
  // Predicated region
  $region22: #{_lambda_.31} parent=0 // pred_check
    _
  $region23: #{_lambda_.31} parent=0 // pred_check_branch
    %688 = sbr.rel (0) target = $region25
  $region24: #{_lambda_.31} parent=0 // pred_region
    _
  $region25: #{_lambda_.31} parent=0 // pred_fallthru
    _

// kernel: _lambda_.32
$region0: #{_lambda_.32}
  #allocation0 [shape = 'u32[]', space=smem, size = 0x4, offset = 0x4, fixed_abs, tag = 'smem constant byte address 0x4 - core index']
  #allocation1 [shape = 'u32[144,128]{1,0:T(1,128)}', space=vmem, size = 0x12000, scoped, tag = 'internal scratch']
  %s0 = inlined_call_operand.vmem [shape: bf16[128,288], index: 0, kind: input, shape index: {}]
  %s1 = inlined_call_operand.vmem [shape: bf16[288,32], index: 1, kind: input, shape index: {}]
  %s2 = inlined_call_operand.vmem [shape: f32[1,32], index: 2, kind: input, shape index: {}]
  %s3 = inlined_call_operand.vmem [shape: bf16[128,32], index: 3, kind: output, shape index: {}]
  %s4 = sld [smem:[#allocation0]]
  $region22: #{_lambda_.32} parent=0
    _
  %s6 = ssub.s32 1, %s4
  %s7 = scalar_select 0, %s6, %s4
  // Predicated region
  $region2: #{_lambda_.32} parent=0 // pred_check
    _
  $region3: #{_lambda_.32} parent=0 // pred_check_branch
    %9 = sbr.rel (0) target = $region5
  $region4: #{_lambda_.32} parent=0 // pred_region
    _
  $region5: #{_lambda_.32} parent=0 // pred_fallthru
    _
  // Predicated region
  $region6: #{_lambda_.32} parent=0 // pred_check
    _
  $region7: #{_lambda_.32} parent=0 // pred_check_branch
    %11 = sbr.rel (0) target = $region9
  $region8: #{_lambda_.32} parent=0 // pred_region
    _
  $region9: #{_lambda_.32} parent=0 // pred_fallthru
    _
  // Predicated region
  $region10: #{_lambda_.32} parent=0 // pred_check
    _
  $region11: #{_lambda_.32} parent=0 // pred_check_branch
    %13 = sbr.rel (0) target = $region13
  $region12: #{_lambda_.32} parent=0 // pred_region
    _
  $region13: #{_lambda_.32} parent=0 // pred_fallthru
    _
  %v15 = vld [vmem:[%s0] sm:$0xff]
  %v16 = vld [vmem:[%s0 + $0x8] sm:$0xf]
  %v17 = vld [vmem:[%s0 + $0xc] sm:$0xff]
  %v18 = vld [vmem:[%s0 + $0x14] sm:$0xf]
  %v19 = vld [vmem:[%s0 + $0x18] sm:$0xff]
  %v20 = vld [vmem:[%s0 + $0x20] sm:$0xf]
  %v21 = vld [vmem:[%s0 + $0x24] sm:$0xff]
  %v22 = vld [vmem:[%s0 + $0x2c] sm:$0xf]
  %v23 = vld [vmem:[%s0 + $0x30] sm:$0xff]
  %v24 = vld [vmem:[%s0 + $0x38] sm:$0xf]
  %v25 = vld [vmem:[%s0 + $0x3c] sm:$0xff]
  %v26 = vld [vmem:[%s0 + $0x44] sm:$0xf]
  %v27 = vld [vmem:[%s0 + $0x48] sm:$0xff]
  %v28 = vld [vmem:[%s0 + $0x50] sm:$0xf]
  %v29 = vld [vmem:[%s0 + $0x54] sm:$0xff]
  %v30 = vld [vmem:[%s0 + $0x5c] sm:$0xf]
  %v31 = vld [vmem:[%s0 + $0x60] sm:$0xff]
  %v32 = vld [vmem:[%s0 + $0x68] sm:$0xf]
  %v33 = vld [vmem:[%s0 + $0x6c] sm:$0xff]
  %v34 = vld [vmem:[%s0 + $0x74] sm:$0xf]
  %v35 = vld [vmem:[%s0 + $0x78] sm:$0xff]
  %v36 = vld [vmem:[%s0 + $0x80] sm:$0xf]
  %v37 = vld [vmem:[%s0 + $0x84] sm:$0xff]
  %v38 = vld [vmem:[%s0 + $0x8c] sm:$0xf]
  %v39 = vld [vmem:[%s0 + $0x90] sm:$0xff]
  %v40 = vld [vmem:[%s0 + $0x98] sm:$0xf]
  %v41 = vld [vmem:[%s0 + $0x9c] sm:$0xff]
  %v42 = vld [vmem:[%s0 + $0xa4] sm:$0xf]
  %v43 = vld [vmem:[%s0 + $0xa8] sm:$0xff]
  %v44 = vld [vmem:[%s0 + $0xb0] sm:$0xf]
  %v45 = vld [vmem:[%s0 + $0xb4] sm:$0xff]
  %v46 = vld [vmem:[%s0 + $0xbc] sm:$0xf]
  %v47 = vld [vmem:[%s1] sm:$0xf]
  %v48 = vld [vmem:[%s1 + $0x4] sm:$0xf]
  %v49 = vld [vmem:[%s1 + $0x8] sm:$0xf]
  %v50 = vld [vmem:[%s1 + $0xc] sm:$0xf]
  %v51 = vld [vmem:[%s1 + $0x10] sm:$0xf]
  %v52 = vld [vmem:[%s1 + $0x14] sm:$0xf]
  %v53 = vld [vmem:[%s1 + $0x18] sm:$0xf]
  %v54 = vld [vmem:[%s1 + $0x1c] sm:$0xf]
  %v55 = vld [vmem:[%s1 + $0x20] sm:$0xf]
  %v56 = vld [vmem:[%s1 + $0x24] sm:$0xf]
  %v57 = vld [vmem:[%s1 + $0x28] sm:$0xf]
  %v58 = vld [vmem:[%s1 + $0x2c] sm:$0xf]
  %v59 = vld [vmem:[%s1 + $0x30] sm:$0xf]
  %v60 = vld [vmem:[%s1 + $0x34] sm:$0xf]
  %v61 = vld [vmem:[%s1 + $0x38] sm:$0xf]
  %v62 = vld [vmem:[%s1 + $0x3c] sm:$0xf]
  %v63 = vld [vmem:[%s1 + $0x40] sm:$0xf]
  %v64 = vld [vmem:[%s1 + $0x44] sm:$0xf]
  %v65 = vld [vmem:[%s1 + $0x48] sm:$0xf]
  %v66 = vld [vmem:[%s1 + $0x4c] sm:$0xf]
  %v67 = vld [vmem:[%s1 + $0x50] sm:$0xf]
  %v68 = vld [vmem:[%s1 + $0x54] sm:$0xf]
  %v69 = vld [vmem:[%s1 + $0x58] sm:$0xf]
  %v70 = vld [vmem:[%s1 + $0x5c] sm:$0xf]
  %v71 = vld [vmem:[%s1 + $0x60] sm:$0xf]
  %v72 = vld [vmem:[%s1 + $0x64] sm:$0xf]
  %v73 = vld [vmem:[%s1 + $0x68] sm:$0xf]
  %v74 = vld [vmem:[%s1 + $0x6c] sm:$0xf]
  %v75 = vld [vmem:[%s1 + $0x70] sm:$0xf]
  %v76 = vld [vmem:[%s1 + $0x74] sm:$0xf]
  %v77 = vld [vmem:[%s1 + $0x78] sm:$0xf]
  %v78 = vld [vmem:[%s1 + $0x7c] sm:$0xf]
  %v79 = vld [vmem:[%s1 + $0x80] sm:$0xf]
  %v80 = vld [vmem:[%s1 + $0x84] sm:$0xf]
  %v81 = vld [vmem:[%s1 + $0x88] sm:$0xf]
  %v82 = vld [vmem:[%s1 + $0x8c] sm:$0xf]
  %v83 = vld [vmem:[%s2] sm:$0x1]
  %v85 = vlaneseq
  %v86 = vshrl.u32 %v85, 7
  %v87 = vsub.s32 0, %v86
  %v88 = vrot.slane %v83, %v87
  %v122 = vunpack.c.l.b16 %v15
  %v123 = vunpack.c.h.b16 %v15
  %v124 = vunpack.c.l.b16 %v16
  %v125 = vunpack.c.l.b16 %v17
  %v126 = vunpack.c.h.b16 %v17
  %v127 = vunpack.c.l.b16 %v18
  %v128 = vunpack.c.l.b16 %v19
  %v129 = vunpack.c.h.b16 %v19
  %v130 = vunpack.c.l.b16 %v20
  %v131 = vunpack.c.l.b16 %v21
  %v132 = vunpack.c.h.b16 %v21
  %v133 = vunpack.c.l.b16 %v22
  %v134 = vunpack.c.l.b16 %v23
  %v135 = vunpack.c.h.b16 %v23
  %v136 = vunpack.c.l.b16 %v24
  %v137 = vunpack.c.l.b16 %v25
  %v138 = vunpack.c.h.b16 %v25
  %v139 = vunpack.c.l.b16 %v26
  %v140 = vunpack.c.l.b16 %v27
  %v141 = vunpack.c.h.b16 %v27
  %v142 = vunpack.c.l.b16 %v28
  %v143 = vunpack.c.l.b16 %v29
  %v144 = vunpack.c.h.b16 %v29
  %v145 = vunpack.c.l.b16 %v30
  %v146 = vunpack.c.l.b16 %v31
  %v147 = vunpack.c.h.b16 %v31
  %v148 = vunpack.c.l.b16 %v32
  %v149 = vunpack.c.l.b16 %v33
  %v150 = vunpack.c.h.b16 %v33
  %v151 = vunpack.c.l.b16 %v34
  %v152 = vunpack.c.l.b16 %v35
  %v153 = vunpack.c.h.b16 %v35
  %v154 = vunpack.c.l.b16 %v36
  %v155 = vunpack.c.l.b16 %v37
  %v156 = vunpack.c.h.b16 %v37
  %v157 = vunpack.c.l.b16 %v38
  %v158 = vunpack.c.l.b16 %v39
  %v159 = vunpack.c.h.b16 %v39
  %v160 = vunpack.c.l.b16 %v40
  %v161 = vunpack.c.l.b16 %v41
  %v162 = vunpack.c.h.b16 %v41
  %v163 = vunpack.c.l.b16 %v42
  %v164 = vunpack.c.l.b16 %v43
  %v165 = vunpack.c.h.b16 %v43
  %v166 = vunpack.c.l.b16 %v44
  %v167 = vunpack.c.l.b16 %v45
  %v168 = vunpack.c.h.b16 %v45
  %v169 = vunpack.c.l.b16 %v46
  %v170 = vpack.c.b16 %v125, %v122
  %v171 = vpack.c.b16 %v126, %v123
  %v172 = vpack.c.b16 %v127, %v124
  %v173 = vpack.c.b16 %v131, %v128
  %v174 = vpack.c.b16 %v132, %v129
  %v175 = vpack.c.b16 %v133, %v130
  %v176 = vpack.c.b16 %v137, %v134
  %v177 = vpack.c.b16 %v138, %v135
  %v178 = vpack.c.b16 %v139, %v136
  %v179 = vpack.c.b16 %v143, %v140
  %v180 = vpack.c.b16 %v144, %v141
  %v181 = vpack.c.b16 %v145, %v142
  %v182 = vpack.c.b16 %v149, %v146
  %v183 = vpack.c.b16 %v150, %v147
  %v184 = vpack.c.b16 %v151, %v148
  %v185 = vpack.c.b16 %v155, %v152
  %v186 = vpack.c.b16 %v156, %v153
  %v187 = vpack.c.b16 %v157, %v154
  %v188 = vpack.c.b16 %v161, %v158
  %v189 = vpack.c.b16 %v162, %v159
  %v190 = vpack.c.b16 %v163, %v160
  %v191 = vpack.c.b16 %v167, %v164
  %v192 = vpack.c.b16 %v168, %v165
  %v193 = vpack.c.b16 %v169, %v166
  %v246 = vunpack.c.l.b16 %v47
  %v247 = vunpack.c.l.b16 %v48
  %v248 = vunpack.c.l.b16 %v49
  %v249 = vunpack.c.l.b16 %v50
  %v250 = vunpack.c.l.b16 %v51
  %v251 = vunpack.c.l.b16 %v52
  %v252 = vunpack.c.l.b16 %v53
  %v253 = vunpack.c.l.b16 %v54
  %v254 = vunpack.c.l.b16 %v55
  %v255 = vunpack.c.l.b16 %v56
  %v256 = vunpack.c.l.b16 %v57
  %v257 = vunpack.c.l.b16 %v58
  %v258 = vunpack.c.l.b16 %v59
  %v259 = vunpack.c.l.b16 %v60
  %v260 = vunpack.c.l.b16 %v61
  %v261 = vunpack.c.l.b16 %v62
  %v262 = vunpack.c.l.b16 %v63
  %v263 = vunpack.c.l.b16 %v64
  %v264 = vunpack.c.l.b16 %v65
  %v265 = vunpack.c.l.b16 %v66
  %v266 = vunpack.c.l.b16 %v67
  %v267 = vunpack.c.l.b16 %v68
  %v268 = vunpack.c.l.b16 %v69
  %v269 = vunpack.c.l.b16 %v70
  %v270 = vunpack.c.l.b16 %v71
  %v271 = vunpack.c.l.b16 %v72
  %v272 = vunpack.c.l.b16 %v73
  %v273 = vunpack.c.l.b16 %v74
  %v274 = vunpack.c.l.b16 %v75
  %v275 = vunpack.c.l.b16 %v76
  %v276 = vunpack.c.l.b16 %v77
  %v277 = vunpack.c.l.b16 %v78
  %v278 = vunpack.c.l.b16 %v79
  %v279 = vunpack.c.l.b16 %v80
  %v280 = vunpack.c.l.b16 %v81
  %v281 = vunpack.c.l.b16 %v82
  %v282 = vpack.c.b16 %v247, %v246
  %v283 = vpack.c.b16 %v249, %v248
  %v284 = vpack.c.b16 %v251, %v250
  %v285 = vpack.c.b16 %v253, %v252
  %v286 = vpack.c.b16 %v255, %v254
  %v287 = vpack.c.b16 %v257, %v256
  %v288 = vpack.c.b16 %v259, %v258
  %v289 = vpack.c.b16 %v261, %v260
  %v290 = vpack.c.b16 %v263, %v262
  %v291 = vpack.c.b16 %v265, %v264
  %v292 = vpack.c.b16 %v267, %v266
  %v293 = vpack.c.b16 %v269, %v268
  %v294 = vpack.c.b16 %v271, %v270
  %v295 = vpack.c.b16 %v273, %v272
  %v296 = vpack.c.b16 %v275, %v274
  %v297 = vpack.c.b16 %v277, %v276
  %v298 = vpack.c.b16 %v279, %v278
  %v299 = vpack.c.b16 %v281, %v280
  %vm318 = vcmask 261120
  %v320 = vsel %vm318, %v172, 0
  %v323 = vsel %vm318, %v175, 0
  %v326 = vsel %vm318, %v178, 0
  %v329 = vsel %vm318, %v181, 0
  %v332 = vsel %vm318, %v184, 0
  %v335 = vsel %vm318, %v187, 0
  %v338 = vsel %vm318, %v190, 0
  %v341 = vsel %vm318, %v193, 0
  %343 = vmatprep.subr.bf16.mxu0 0
  %344 = vmatpush1.bf16.msra.mxu0 %v282
  %345 = vmatprep.subr.bf16.mxu0 0
  %346 = vmatpush1.bf16.msra.mxu0 %v283
  %347 = vmatprep.subr.bf16.mxu0 0
  %348 = vmatpush1.bf16.msra.mxu0 %v284
  %349 = vmatprep.subr.bf16.mxu0 0
  %350 = vmatpush1.bf16.msra.mxu0 %v285
  %351 = vmatprep.subr.bf16.mxu0 0
  %352 = vmatpush1.bf16.msra.mxu0 %v286
  %353 = vmatprep.subr.bf16.mxu0 0
  %354 = vmatpush1.bf16.msra.mxu0 %v287
  %355 = vmatprep.subr.bf16.mxu0 0
  %356 = vmatpush1.bf16.msra.mxu0 %v288
  %357 = vmatprep.subr.bf16.mxu0 0
  %358 = vmatpush1.bf16.msra.mxu0 %v289
  %359 = vmatprep.subr.bf16.mxu0 0
  %360 = vmatpush1.bf16.msra.mxu0 %v290
  %361 = vmatprep.subr.bf16.mxu0 0
  %362 = vmatpush1.bf16.msra.mxu0 %v291
  %363 = vmatprep.subr.bf16.mxu0 0
  %364 = vmatpush1.bf16.msra.mxu0 %v292
  %365 = vmatprep.subr.bf16.mxu0 0
  %366 = vmatpush1.bf16.msra.mxu0 %v293
  %367 = vmatprep.subr.bf16.mxu0 0
  %368 = vmatpush1.bf16.msra.mxu0 %v294
  %369 = vmatprep.subr.bf16.mxu0 0
  %370 = vmatpush1.bf16.msra.mxu0 %v295
  %371 = vmatprep.subr.bf16.mxu0 0
  %372 = vmatpush1.bf16.msra.mxu0 %v296
  %373 = vmatprep.subr.bf16.mxu0 0
  %374 = vmatpush1.bf16.msra.mxu0 %v297
  %375 = vmatprep.mubr.bf16.mxu0 %v171
  %376 = vmatmul.mubr.bf16.gmra.mrb[0].mxu0 %v170
  %v377 = vpop.f32.mrb[0].mxu0
  %v378 = vadd.f32 %v88, %v377
  %v379 = vpop.f32.mrb[0].mxu0
  %v380 = vpop.f32.mrb[0].mxu0
  %v381 = vadd.f32 %v88, %v380
  %v382 = vpop.f32.mrb[0].mxu0
  %383 = vmatprep.mubr.bf16.mxu0 %v174
  %384 = vmatmul.mubr.bf16.gmra.mrb[0].mxu0 %v173
  %v385 = vpop.f32.mrb[0].mxu0
  %v386 = vadd.f32 %v88, %v385
  %v387 = vpop.f32.mrb[0].mxu0
  %v388 = vpop.f32.mrb[0].mxu0
  %v389 = vadd.f32 %v88, %v388
  %v390 = vpop.f32.mrb[0].mxu0
  %391 = vmatprep.mubr.bf16.mxu0 %v177
  %392 = vmatmul.mubr.bf16.gmra.mrb[0].mxu0 %v176
  %v393 = vpop.f32.mrb[0].mxu0
  %v394 = vadd.f32 %v88, %v393
  %v395 = vpop.f32.mrb[0].mxu0
  %v396 = vpop.f32.mrb[0].mxu0
  %v397 = vadd.f32 %v88, %v396
  %v398 = vpop.f32.mrb[0].mxu0
  %399 = vmatprep.mubr.bf16.mxu0 %v180
  %400 = vmatmul.mubr.bf16.gmra.mrb[0].mxu0 %v179
  %v401 = vpop.f32.mrb[0].mxu0
  %v402 = vadd.f32 %v88, %v401
  %v403 = vpop.f32.mrb[0].mxu0
  %v404 = vpop.f32.mrb[0].mxu0
  %v405 = vadd.f32 %v88, %v404
  %v406 = vpop.f32.mrb[0].mxu0
  %407 = vmatprep.mubr.bf16.mxu0 %v183
  %408 = vmatmul.mubr.bf16.gmra.mrb[0].mxu0 %v182
  %v409 = vpop.f32.mrb[0].mxu0
  %v410 = vadd.f32 %v88, %v409
  %v411 = vpop.f32.mrb[0].mxu0
  %v412 = vpop.f32.mrb[0].mxu0
  %v413 = vadd.f32 %v88, %v412
  %v414 = vpop.f32.mrb[0].mxu0
  %415 = vmatprep.mubr.bf16.mxu0 %v186
  %416 = vmatmul.mubr.bf16.gmra.mrb[0].mxu0 %v185
  %v417 = vpop.f32.mrb[0].mxu0
  %v418 = vadd.f32 %v88, %v417
  %v419 = vpop.f32.mrb[0].mxu0
  %v420 = vpop.f32.mrb[0].mxu0
  %v421 = vadd.f32 %v88, %v420
  %v422 = vpop.f32.mrb[0].mxu0
  %423 = vmatprep.mubr.bf16.mxu0 %v189
  %424 = vmatmul.mubr.bf16.gmra.mrb[0].mxu0 %v188
  %v425 = vpop.f32.mrb[0].mxu0
  %v426 = vadd.f32 %v88, %v425
  %v427 = vpop.f32.mrb[0].mxu0
  %v428 = vpop.f32.mrb[0].mxu0
  %v429 = vadd.f32 %v88, %v428
  %v430 = vpop.f32.mrb[0].mxu0
  %431 = vmatprep.mubr.bf16.mxu0 %v192
  %432 = vmatmul.mubr.bf16.gmra.mrb[0].mxu0 %v191
  %v433 = vpop.f32.mrb[0].mxu0
  %v434 = vadd.f32 %v88, %v433
  %v435 = vpop.f32.mrb[0].mxu0
  %v436 = vpop.f32.mrb[0].mxu0
  %v437 = vadd.f32 %v88, %v436
  %v438 = vpop.f32.mrb[0].mxu0
  %439 = vdwg.mxu0
  %440 = vmatprep.subr.bf16.mxu0 0
  %441 = vmatpush1.bf16.msra.mxu0 %v298
  %442 = vmatprep.subr.bf16.mxu0 0
  %443 = vmatpush1.bf16.msra.mxu0 %v299
  %444 = vmatprep.subr.bf16.mxu0 0
  %445 = vmatpush1.bf16.msra.mxu0 0
  %446 = vmatprep.subr.bf16.mxu0 0
  %447 = vmatpush1.bf16.msra.mxu0 0
  %448 = vmatprep.subr.bf16.mxu0 0
  %449 = vmatpush1.bf16.msra.mxu0 0
  %450 = vmatprep.subr.bf16.mxu0 0
  %451 = vmatpush1.bf16.msra.mxu0 0
  %452 = vmatprep.subr.bf16.mxu0 0
  %453 = vmatpush1.bf16.msra.mxu0 0
  %454 = vmatprep.subr.bf16.mxu0 0
  %455 = vmatpush1.bf16.msra.mxu0 0
  %456 = vmatprep.subr.bf16.mxu0 0
  %457 = vmatpush1.bf16.msra.mxu0 0
  %458 = vmatprep.subr.bf16.mxu0 0
  %459 = vmatpush1.bf16.msra.mxu0 0
  %460 = vmatprep.subr.bf16.mxu0 0
  %461 = vmatpush1.bf16.msra.mxu0 0
  %462 = vmatprep.subr.bf16.mxu0 0
  %463 = vmatpush1.bf16.msra.mxu0 0
  %464 = vmatprep.subr.bf16.mxu0 0
  %465 = vmatpush1.bf16.msra.mxu0 0
  %466 = vmatprep.subr.bf16.mxu0 0
  %467 = vmatpush1.bf16.msra.mxu0 0
  %468 = vmatprep.subr.bf16.mxu0 0
  %469 = vmatpush1.bf16.msra.mxu0 0
  %470 = vmatprep.subr.bf16.mxu0 0
  %471 = vmatpush1.bf16.msra.mxu0 0
  %472 = vmatprep.mubr.bf16.mxu0 0
  %473 = vmatmul.mubr.bf16.gmra.mrb[0].mxu0 %v320
  %v474 = vpop.f32.mrb[0].mxu0
  %v475 = vadd.f32 %v378, %v474
  %v476 = vpop.f32.mrb[0].mxu0
  %v477 = vpop.f32.mrb[0].mxu0
  %v478 = vadd.f32 %v381, %v477
  %v479 = vpop.f32.mrb[0].mxu0
  %480 = vmatprep.mubr.bf16.mxu0 0
  %481 = vmatmul.mubr.bf16.gmra.mrb[0].mxu0 %v323
  %v482 = vpop.f32.mrb[0].mxu0
  %v483 = vadd.f32 %v386, %v482
  %v484 = vpop.f32.mrb[0].mxu0
  %v485 = vpop.f32.mrb[0].mxu0
  %v486 = vadd.f32 %v389, %v485
  %v487 = vpop.f32.mrb[0].mxu0
  %488 = vmatprep.mubr.bf16.mxu0 0
  %489 = vmatmul.mubr.bf16.gmra.mrb[0].mxu0 %v326
  %v490 = vpop.f32.mrb[0].mxu0
  %v491 = vadd.f32 %v394, %v490
  %v492 = vpop.f32.mrb[0].mxu0
  %v493 = vpop.f32.mrb[0].mxu0
  %v494 = vadd.f32 %v397, %v493
  %v495 = vpop.f32.mrb[0].mxu0
  %496 = vmatprep.mubr.bf16.mxu0 0
  %497 = vmatmul.mubr.bf16.gmra.mrb[0].mxu0 %v329
  %v498 = vpop.f32.mrb[0].mxu0
  %v499 = vadd.f32 %v402, %v498
  %v500 = vpop.f32.mrb[0].mxu0
  %v501 = vpop.f32.mrb[0].mxu0
  %v502 = vadd.f32 %v405, %v501
  %v503 = vpop.f32.mrb[0].mxu0
  %504 = vmatprep.mubr.bf16.mxu0 0
  %505 = vmatmul.mubr.bf16.gmra.mrb[0].mxu0 %v332
  %v506 = vpop.f32.mrb[0].mxu0
  %v507 = vadd.f32 %v410, %v506
  %v508 = vpop.f32.mrb[0].mxu0
  %v509 = vpop.f32.mrb[0].mxu0
  %v510 = vadd.f32 %v413, %v509
  %v511 = vpop.f32.mrb[0].mxu0
  %512 = vmatprep.mubr.bf16.mxu0 0
  %513 = vmatmul.mubr.bf16.gmra.mrb[0].mxu0 %v335
  %v514 = vpop.f32.mrb[0].mxu0
  %v515 = vadd.f32 %v418, %v514
  %v516 = vpop.f32.mrb[0].mxu0
  %v517 = vpop.f32.mrb[0].mxu0
  %v518 = vadd.f32 %v421, %v517
  %v519 = vpop.f32.mrb[0].mxu0
  %520 = vmatprep.mubr.bf16.mxu0 0
  %521 = vmatmul.mubr.bf16.gmra.mrb[0].mxu0 %v338
  %v522 = vpop.f32.mrb[0].mxu0
  %v523 = vadd.f32 %v426, %v522
  %v524 = vpop.f32.mrb[0].mxu0
  %v525 = vpop.f32.mrb[0].mxu0
  %v526 = vadd.f32 %v429, %v525
  %v527 = vpop.f32.mrb[0].mxu0
  %528 = vmatprep.mubr.bf16.mxu0 0
  %529 = vmatmul.mubr.bf16.gmra.mrb[0].mxu0 %v341
  %v530 = vpop.f32.mrb[0].mxu0
  %v531 = vadd.f32 %v434, %v530
  %v532 = vpop.f32.mrb[0].mxu0
  %v533 = vpop.f32.mrb[0].mxu0
  %v534 = vadd.f32 %v437, %v533
  %v535 = vpop.f32.mrb[0].mxu0
  %536 = vdwg.mxu0
  %v537 = vmax.f32 %v475, 0.0
  %v538 = vmax.f32 %v478, 0.0
  %v539 = vmax.f32 %v483, 0.0
  %v540 = vmax.f32 %v486, 0.0
  %v541 = vmax.f32 %v491, 0.0
  %v542 = vmax.f32 %v494, 0.0
  %v543 = vmax.f32 %v499, 0.0
  %v544 = vmax.f32 %v502, 0.0
  %v545 = vmax.f32 %v507, 0.0
  %v546 = vmax.f32 %v510, 0.0
  %v547 = vmax.f32 %v515, 0.0
  %v548 = vmax.f32 %v518, 0.0
  %v549 = vmax.f32 %v523, 0.0
  %v550 = vmax.f32 %v526, 0.0
  %v551 = vmax.f32 %v531, 0.0
  %v552 = vmax.f32 %v534, 0.0
  %v553 = vpack.c.bf16 %v538, %v537
  %v554 = vpack.c.bf16 %v540, %v539
  %v555 = vpack.c.bf16 %v542, %v541
  %v556 = vpack.c.bf16 %v544, %v543
  %v557 = vpack.c.bf16 %v546, %v545
  %v558 = vpack.c.bf16 %v548, %v547
  %v559 = vpack.c.bf16 %v550, %v549
  %v560 = vpack.c.bf16 %v552, %v551
  %v569 = vunpack.c.l.b16 %v553
  %v570 = vunpack.c.h.b16 %v553
  %v571 = vunpack.c.l.b16 %v554
  %v572 = vunpack.c.h.b16 %v554
  %v573 = vunpack.c.l.b16 %v555
  %v574 = vunpack.c.h.b16 %v555
  %v575 = vunpack.c.l.b16 %v556
  %v576 = vunpack.c.h.b16 %v556
  %v577 = vunpack.c.l.b16 %v557
  %v578 = vunpack.c.h.b16 %v557
  %v579 = vunpack.c.l.b16 %v558
  %v580 = vunpack.c.h.b16 %v558
  %v581 = vunpack.c.l.b16 %v559
  %v582 = vunpack.c.h.b16 %v559
  %v583 = vunpack.c.l.b16 %v560
  %v584 = vunpack.c.h.b16 %v560
  %v585 = vpack.c.b16 %v569, %v569
  %v586 = vpack.c.b16 %v570, %v570
  %v587 = vpack.c.b16 %v571, %v571
  %v588 = vpack.c.b16 %v572, %v572
  %v589 = vpack.c.b16 %v573, %v573
  %v590 = vpack.c.b16 %v574, %v574
  %v591 = vpack.c.b16 %v575, %v575
  %v592 = vpack.c.b16 %v576, %v576
  %v593 = vpack.c.b16 %v577, %v577
  %v594 = vpack.c.b16 %v578, %v578
  %v595 = vpack.c.b16 %v579, %v579
  %v596 = vpack.c.b16 %v580, %v580
  %v597 = vpack.c.b16 %v581, %v581
  %v598 = vpack.c.b16 %v582, %v582
  %v599 = vpack.c.b16 %v583, %v583
  %v600 = vpack.c.b16 %v584, %v584
  %vm617 = vcmask 257024
  %618 = vst.msk [vmem:[%s3] sm:$0xf] %vm617, %v585
  %619 = vst.msk [vmem:[%s3 + $0x4] sm:$0xf] %vm617, %v586
  %620 = vst.msk [vmem:[%s3 + $0x8] sm:$0xf] %vm617, %v587
  %621 = vst.msk [vmem:[%s3 + $0xc] sm:$0xf] %vm617, %v588
  %622 = vst.msk [vmem:[%s3 + $0x10] sm:$0xf] %vm617, %v589
  %623 = vst.msk [vmem:[%s3 + $0x14] sm:$0xf] %vm617, %v590
  %624 = vst.msk [vmem:[%s3 + $0x18] sm:$0xf] %vm617, %v591
  %625 = vst.msk [vmem:[%s3 + $0x1c] sm:$0xf] %vm617, %v592
  %626 = vst.msk [vmem:[%s3 + $0x20] sm:$0xf] %vm617, %v593
  %627 = vst.msk [vmem:[%s3 + $0x24] sm:$0xf] %vm617, %v594
  %628 = vst.msk [vmem:[%s3 + $0x28] sm:$0xf] %vm617, %v595
  %629 = vst.msk [vmem:[%s3 + $0x2c] sm:$0xf] %vm617, %v596
  %630 = vst.msk [vmem:[%s3 + $0x30] sm:$0xf] %vm617, %v597
  %631 = vst.msk [vmem:[%s3 + $0x34] sm:$0xf] %vm617, %v598
  %632 = vst.msk [vmem:[%s3 + $0x38] sm:$0xf] %vm617, %v599
  %633 = vst.msk [vmem:[%s3 + $0x3c] sm:$0xf] %vm617, %v600
  // Predicated region
  $region14: #{_lambda_.32} parent=0 // pred_check
    _
  $region15: #{_lambda_.32} parent=0 // pred_check_branch
    %635 = sbr.rel (0) target = $region17
  $region16: #{_lambda_.32} parent=0 // pred_region
    _
  $region17: #{_lambda_.32} parent=0 // pred_fallthru
    _
  // Predicated region
  $region18: #{_lambda_.32} parent=0 // pred_check
    _
  $region19: #{_lambda_.32} parent=0 // pred_check_branch
    %637 = sbr.rel (0) target = $region21
  $region20: #{_lambda_.32} parent=0 // pred_region
    _
  $region21: #{_lambda_.32} parent=0 // pred_fallthru
    _

// kernel: _lambda_.34
$region0: #{_lambda_.34}
  #allocation0 [shape = 'u32[]', space=smem, size = 0x4, offset = 0x4, fixed_abs, tag = 'smem constant byte address 0x4 - core index']
  #allocation1 [shape = 'u32[144,128]{1,0:T(1,128)}', space=vmem, size = 0x12000, scoped, tag = 'internal scratch']
  %s0 = inlined_call_operand.vmem [shape: bf16[32,288], index: 0, kind: input, shape index: {}]
  %s1 = inlined_call_operand.vmem [shape: bf16[288,64], index: 1, kind: input, shape index: {}]
  %s2 = inlined_call_operand.vmem [shape: f32[1,64], index: 2, kind: input, shape index: {}]
  %s3 = inlined_call_operand.vmem [shape: bf16[32,64], index: 3, kind: output, shape index: {}]
  %s4 = sld [smem:[#allocation0]]
  $region22: #{_lambda_.34} parent=0
    _
  %s6 = ssub.s32 1, %s4
  %s7 = scalar_select 0, %s6, %s4
  // Predicated region
  $region2: #{_lambda_.34} parent=0 // pred_check
    _
  $region3: #{_lambda_.34} parent=0 // pred_check_branch
    %9 = sbr.rel (0) target = $region5
  $region4: #{_lambda_.34} parent=0 // pred_region
    _
  $region5: #{_lambda_.34} parent=0 // pred_fallthru
    _
  // Predicated region
  $region6: #{_lambda_.34} parent=0 // pred_check
    _
  $region7: #{_lambda_.34} parent=0 // pred_check_branch
    %11 = sbr.rel (0) target = $region9
  $region8: #{_lambda_.34} parent=0 // pred_region
    _
  $region9: #{_lambda_.34} parent=0 // pred_fallthru
    _
  // Predicated region
  $region10: #{_lambda_.34} parent=0 // pred_check
    _
  $region11: #{_lambda_.34} parent=0 // pred_check_branch
    %13 = sbr.rel (0) target = $region13
  $region12: #{_lambda_.34} parent=0 // pred_region
    _
  $region13: #{_lambda_.34} parent=0 // pred_fallthru
    _
  %v15 = vld [vmem:[%s0] sm:$0xff]
  %v16 = vld [vmem:[%s0 + $0x8] sm:$0xf]
  %v17 = vld [vmem:[%s0 + $0xc] sm:$0xff]
  %v18 = vld [vmem:[%s0 + $0x14] sm:$0xf]
  %v19 = vld [vmem:[%s0 + $0x18] sm:$0xff]
  %v20 = vld [vmem:[%s0 + $0x20] sm:$0xf]
  %v21 = vld [vmem:[%s0 + $0x24] sm:$0xff]
  %v22 = vld [vmem:[%s0 + $0x2c] sm:$0xf]
  %v23 = vld [vmem:[%s1] sm:$0xf]
  %v24 = vld [vmem:[%s1 + $0x4] sm:$0xf]
  %v25 = vld [vmem:[%s1 + $0x8] sm:$0xf]
  %v26 = vld [vmem:[%s1 + $0xc] sm:$0xf]
  %v27 = vld [vmem:[%s1 + $0x10] sm:$0xf]
  %v28 = vld [vmem:[%s1 + $0x14] sm:$0xf]
  %v29 = vld [vmem:[%s1 + $0x18] sm:$0xf]
  %v30 = vld [vmem:[%s1 + $0x1c] sm:$0xf]
  %v31 = vld [vmem:[%s1 + $0x20] sm:$0xf]
  %v32 = vld [vmem:[%s1 + $0x24] sm:$0xf]
  %v33 = vld [vmem:[%s1 + $0x28] sm:$0xf]
  %v34 = vld [vmem:[%s1 + $0x2c] sm:$0xf]
  %v35 = vld [vmem:[%s1 + $0x30] sm:$0xf]
  %v36 = vld [vmem:[%s1 + $0x34] sm:$0xf]
  %v37 = vld [vmem:[%s1 + $0x38] sm:$0xf]
  %v38 = vld [vmem:[%s1 + $0x3c] sm:$0xf]
  %v39 = vld [vmem:[%s1 + $0x40] sm:$0xf]
  %v40 = vld [vmem:[%s1 + $0x44] sm:$0xf]
  %v41 = vld [vmem:[%s1 + $0x48] sm:$0xf]
  %v42 = vld [vmem:[%s1 + $0x4c] sm:$0xf]
  %v43 = vld [vmem:[%s1 + $0x50] sm:$0xf]
  %v44 = vld [vmem:[%s1 + $0x54] sm:$0xf]
  %v45 = vld [vmem:[%s1 + $0x58] sm:$0xf]
  %v46 = vld [vmem:[%s1 + $0x5c] sm:$0xf]
  %v47 = vld [vmem:[%s1 + $0x60] sm:$0xf]
  %v48 = vld [vmem:[%s1 + $0x64] sm:$0xf]
  %v49 = vld [vmem:[%s1 + $0x68] sm:$0xf]
  %v50 = vld [vmem:[%s1 + $0x6c] sm:$0xf]
  %v51 = vld [vmem:[%s1 + $0x70] sm:$0xf]
  %v52 = vld [vmem:[%s1 + $0x74] sm:$0xf]
  %v53 = vld [vmem:[%s1 + $0x78] sm:$0xf]
  %v54 = vld [vmem:[%s1 + $0x7c] sm:$0xf]
  %v55 = vld [vmem:[%s1 + $0x80] sm:$0xf]
  %v56 = vld [vmem:[%s1 + $0x84] sm:$0xf]
  %v57 = vld [vmem:[%s1 + $0x88] sm:$0xf]
  %v58 = vld [vmem:[%s1 + $0x8c] sm:$0xf]
  %v59 = vld [vmem:[%s2] sm:$0x1]
  %v61 = vlaneseq
  %v62 = vshrl.u32 %v61, 7
  %v63 = vsub.s32 0, %v62
  %v64 = vrot.slane %v59, %v63
  %v74 = vunpack.c.l.b16 %v15
  %v75 = vunpack.c.h.b16 %v15
  %v76 = vunpack.c.l.b16 %v16
  %v77 = vunpack.c.l.b16 %v17
  %v78 = vunpack.c.h.b16 %v17
  %v79 = vunpack.c.l.b16 %v18
  %v80 = vunpack.c.l.b16 %v19
  %v81 = vunpack.c.h.b16 %v19
  %v82 = vunpack.c.l.b16 %v20
  %v83 = vunpack.c.l.b16 %v21
  %v84 = vunpack.c.h.b16 %v21
  %v85 = vunpack.c.l.b16 %v22
  %v86 = vpack.c.b16 %v77, %v74
  %v87 = vpack.c.b16 %v78, %v75
  %v88 = vpack.c.b16 %v79, %v76
  %v89 = vpack.c.b16 %v83, %v80
  %v90 = vpack.c.b16 %v84, %v81
  %v91 = vpack.c.b16 %v85, %v82
  %v132 = vunpack.c.l.b16 %v23
  %v133 = vunpack.c.l.b16 %v24
  %v134 = vunpack.c.l.b16 %v25
  %v135 = vunpack.c.l.b16 %v26
  %v136 = vunpack.c.l.b16 %v27
  %v137 = vunpack.c.l.b16 %v28
  %v138 = vunpack.c.l.b16 %v29
  %v139 = vunpack.c.l.b16 %v30
  %v140 = vunpack.c.l.b16 %v31
  %v141 = vunpack.c.l.b16 %v32
  %v142 = vunpack.c.l.b16 %v33
  %v143 = vunpack.c.l.b16 %v34
  %v144 = vunpack.c.l.b16 %v35
  %v145 = vunpack.c.l.b16 %v36
  %v146 = vunpack.c.l.b16 %v37
  %v147 = vunpack.c.l.b16 %v38
  %v148 = vunpack.c.l.b16 %v39
  %v149 = vunpack.c.l.b16 %v40
  %v150 = vunpack.c.l.b16 %v41
  %v151 = vunpack.c.l.b16 %v42
  %v152 = vunpack.c.l.b16 %v43
  %v153 = vunpack.c.l.b16 %v44
  %v154 = vunpack.c.l.b16 %v45
  %v155 = vunpack.c.l.b16 %v46
  %v156 = vunpack.c.l.b16 %v47
  %v157 = vunpack.c.l.b16 %v48
  %v158 = vunpack.c.l.b16 %v49
  %v159 = vunpack.c.l.b16 %v50
  %v160 = vunpack.c.l.b16 %v51
  %v161 = vunpack.c.l.b16 %v52
  %v162 = vunpack.c.l.b16 %v53
  %v163 = vunpack.c.l.b16 %v54
  %v164 = vunpack.c.l.b16 %v55
  %v165 = vunpack.c.l.b16 %v56
  %v166 = vunpack.c.l.b16 %v57
  %v167 = vunpack.c.l.b16 %v58
  %v168 = vpack.c.b16 %v133, %v132
  %v169 = vpack.c.b16 %v135, %v134
  %v170 = vpack.c.b16 %v137, %v136
  %v171 = vpack.c.b16 %v139, %v138
  %v172 = vpack.c.b16 %v141, %v140
  %v173 = vpack.c.b16 %v143, %v142
  %v174 = vpack.c.b16 %v145, %v144
  %v175 = vpack.c.b16 %v147, %v146
  %v176 = vpack.c.b16 %v149, %v148
  %v177 = vpack.c.b16 %v151, %v150
  %v178 = vpack.c.b16 %v153, %v152
  %v179 = vpack.c.b16 %v155, %v154
  %v180 = vpack.c.b16 %v157, %v156
  %v181 = vpack.c.b16 %v159, %v158
  %v182 = vpack.c.b16 %v161, %v160
  %v183 = vpack.c.b16 %v163, %v162
  %v184 = vpack.c.b16 %v165, %v164
  %v185 = vpack.c.b16 %v167, %v166
  %vm204 = vcmask 261120
  %v206 = vsel %vm204, %v88, 0
  %v209 = vsel %vm204, %v91, 0
  %211 = vmatprep.subr.bf16.mxu0 0
  %212 = vmatpush1.bf16.msra.mxu0 %v168
  %213 = vmatprep.subr.bf16.mxu0 0
  %214 = vmatpush1.bf16.msra.mxu0 %v169
  %215 = vmatprep.subr.bf16.mxu0 0
  %216 = vmatpush1.bf16.msra.mxu0 %v170
  %217 = vmatprep.subr.bf16.mxu0 0
  %218 = vmatpush1.bf16.msra.mxu0 %v171
  %219 = vmatprep.subr.bf16.mxu0 0
  %220 = vmatpush1.bf16.msra.mxu0 %v172
  %221 = vmatprep.subr.bf16.mxu0 0
  %222 = vmatpush1.bf16.msra.mxu0 %v173
  %223 = vmatprep.subr.bf16.mxu0 0
  %224 = vmatpush1.bf16.msra.mxu0 %v174
  %225 = vmatprep.subr.bf16.mxu0 0
  %226 = vmatpush1.bf16.msra.mxu0 %v175
  %227 = vmatprep.subr.bf16.mxu0 0
  %228 = vmatpush1.bf16.msra.mxu0 %v176
  %229 = vmatprep.subr.bf16.mxu0 0
  %230 = vmatpush1.bf16.msra.mxu0 %v177
  %231 = vmatprep.subr.bf16.mxu0 0
  %232 = vmatpush1.bf16.msra.mxu0 %v178
  %233 = vmatprep.subr.bf16.mxu0 0
  %234 = vmatpush1.bf16.msra.mxu0 %v179
  %235 = vmatprep.subr.bf16.mxu0 0
  %236 = vmatpush1.bf16.msra.mxu0 %v180
  %237 = vmatprep.subr.bf16.mxu0 0
  %238 = vmatpush1.bf16.msra.mxu0 %v181
  %239 = vmatprep.subr.bf16.mxu0 0
  %240 = vmatpush1.bf16.msra.mxu0 %v182
  %241 = vmatprep.subr.bf16.mxu0 0
  %242 = vmatpush1.bf16.msra.mxu0 %v183
  %243 = vmatprep.mubr.bf16.mxu0 %v87
  %244 = vmatmul.mubr.bf16.gmra.mrb[0].mxu0 %v86
  %v245 = vpop.f32.mrb[0].mxu0
  %v246 = vadd.f32 %v64, %v245
  %v247 = vpop.f32.mrb[0].mxu0
  %v248 = vpop.f32.mrb[0].mxu0
  %v249 = vadd.f32 %v64, %v248
  %v250 = vpop.f32.mrb[0].mxu0
  %251 = vmatprep.mubr.bf16.mxu0 %v90
  %252 = vmatmul.mubr.bf16.gmra.mrb[0].mxu0 %v89
  %v253 = vpop.f32.mrb[0].mxu0
  %v254 = vadd.f32 %v64, %v253
  %v255 = vpop.f32.mrb[0].mxu0
  %v256 = vpop.f32.mrb[0].mxu0
  %v257 = vadd.f32 %v64, %v256
  %v258 = vpop.f32.mrb[0].mxu0
  %259 = vdwg.mxu0
  %260 = vmatprep.subr.bf16.mxu0 0
  %261 = vmatpush1.bf16.msra.mxu0 %v184
  %262 = vmatprep.subr.bf16.mxu0 0
  %263 = vmatpush1.bf16.msra.mxu0 %v185
  %264 = vmatprep.subr.bf16.mxu0 0
  %265 = vmatpush1.bf16.msra.mxu0 0
  %266 = vmatprep.subr.bf16.mxu0 0
  %267 = vmatpush1.bf16.msra.mxu0 0
  %268 = vmatprep.subr.bf16.mxu0 0
  %269 = vmatpush1.bf16.msra.mxu0 0
  %270 = vmatprep.subr.bf16.mxu0 0
  %271 = vmatpush1.bf16.msra.mxu0 0
  %272 = vmatprep.subr.bf16.mxu0 0
  %273 = vmatpush1.bf16.msra.mxu0 0
  %274 = vmatprep.subr.bf16.mxu0 0
  %275 = vmatpush1.bf16.msra.mxu0 0
  %276 = vmatprep.subr.bf16.mxu0 0
  %277 = vmatpush1.bf16.msra.mxu0 0
  %278 = vmatprep.subr.bf16.mxu0 0
  %279 = vmatpush1.bf16.msra.mxu0 0
  %280 = vmatprep.subr.bf16.mxu0 0
  %281 = vmatpush1.bf16.msra.mxu0 0
  %282 = vmatprep.subr.bf16.mxu0 0
  %283 = vmatpush1.bf16.msra.mxu0 0
  %284 = vmatprep.subr.bf16.mxu0 0
  %285 = vmatpush1.bf16.msra.mxu0 0
  %286 = vmatprep.subr.bf16.mxu0 0
  %287 = vmatpush1.bf16.msra.mxu0 0
  %288 = vmatprep.subr.bf16.mxu0 0
  %289 = vmatpush1.bf16.msra.mxu0 0
  %290 = vmatprep.subr.bf16.mxu0 0
  %291 = vmatpush1.bf16.msra.mxu0 0
  %292 = vmatprep.mubr.bf16.mxu0 0
  %293 = vmatmul.mubr.bf16.gmra.mrb[0].mxu0 %v206
  %v294 = vpop.f32.mrb[0].mxu0
  %v295 = vadd.f32 %v246, %v294
  %v296 = vpop.f32.mrb[0].mxu0
  %v297 = vpop.f32.mrb[0].mxu0
  %v298 = vadd.f32 %v249, %v297
  %v299 = vpop.f32.mrb[0].mxu0
  %300 = vmatprep.mubr.bf16.mxu0 0
  %301 = vmatmul.mubr.bf16.gmra.mrb[0].mxu0 %v209
  %v302 = vpop.f32.mrb[0].mxu0
  %v303 = vadd.f32 %v254, %v302
  %v304 = vpop.f32.mrb[0].mxu0
  %v305 = vpop.f32.mrb[0].mxu0
  %v306 = vadd.f32 %v257, %v305
  %v307 = vpop.f32.mrb[0].mxu0
  %308 = vdwg.mxu0
  %v309 = vmax.f32 %v295, 0.0
  %v310 = vmax.f32 %v298, 0.0
  %v311 = vmax.f32 %v303, 0.0
  %v312 = vmax.f32 %v306, 0.0
  %v313 = vpack.c.bf16 %v310, %v309
  %v314 = vpack.c.bf16 %v312, %v311
  %v317 = vunpack.c.l.b16 %v313
  %v318 = vunpack.c.h.b16 %v313
  %v319 = vunpack.c.l.b16 %v314
  %v320 = vunpack.c.h.b16 %v314
  %v321 = vpack.c.b16 %v317, %v317
  %v322 = vpack.c.b16 %v318, %v318
  %v323 = vpack.c.b16 %v319, %v319
  %v324 = vpack.c.b16 %v320, %v320
  %vm329 = vcmask 519168
  %330 = vst.msk [vmem:[%s3] sm:$0xf] %vm329, %v321
  %331 = vst.msk [vmem:[%s3 + $0x4] sm:$0xf] %vm329, %v322
  %332 = vst.msk [vmem:[%s3 + $0x8] sm:$0xf] %vm329, %v323
  %333 = vst.msk [vmem:[%s3 + $0xc] sm:$0xf] %vm329, %v324
  // Predicated region
  $region14: #{_lambda_.34} parent=0 // pred_check
    _
  $region15: #{_lambda_.34} parent=0 // pred_check_branch
    %335 = sbr.rel (0) target = $region17
  $region16: #{_lambda_.34} parent=0 // pred_region
    _
  $region17: #{_lambda_.34} parent=0 // pred_fallthru
    _
  // Predicated region
  $region18: #{_lambda_.34} parent=0 // pred_check
    _
  $region19: #{_lambda_.34} parent=0 // pred_check_branch
    %337 = sbr.rel (0) target = $region21
  $region20: #{_lambda_.34} parent=0 // pred_region
    _
  $region21: #{_lambda_.34} parent=0 // pred_fallthru
    _

// kernel: _lambda_.36
$region0: #{_lambda_.36}
  #allocation0 [shape = 'u32[]', space=smem, size = 0x4, offset = 0x4, fixed_abs, tag = 'smem constant byte address 0x4 - core index']
  #allocation1 [shape = 'u32[144,128]{1,0:T(1,128)}', space=vmem, size = 0x12000, scoped, tag = 'internal scratch']
  %s0 = inlined_call_operand.vmem [shape: bf16[32,576], index: 0, kind: input, shape index: {}]
  %s1 = inlined_call_operand.vmem [shape: bf16[576,64], index: 1, kind: input, shape index: {}]
  %s2 = inlined_call_operand.vmem [shape: f32[1,64], index: 2, kind: input, shape index: {}]
  %s3 = inlined_call_operand.vmem [shape: bf16[32,64], index: 3, kind: input, shape index: {}]
  %s4 = inlined_call_operand.vmem [shape: bf16[32,64], index: 4, kind: output, shape index: {}]
  %s5 = sld [smem:[#allocation0]]
  $region26: #{_lambda_.36} parent=0
    _
  %s7 = ssub.s32 1, %s5
  %s8 = scalar_select 0, %s7, %s5
  // Predicated region
  $region2: #{_lambda_.36} parent=0 // pred_check
    _
  $region3: #{_lambda_.36} parent=0 // pred_check_branch
    %10 = sbr.rel (0) target = $region5
  $region4: #{_lambda_.36} parent=0 // pred_region
    _
  $region5: #{_lambda_.36} parent=0 // pred_fallthru
    _
  // Predicated region
  $region6: #{_lambda_.36} parent=0 // pred_check
    _
  $region7: #{_lambda_.36} parent=0 // pred_check_branch
    %12 = sbr.rel (0) target = $region9
  $region8: #{_lambda_.36} parent=0 // pred_region
    _
  $region9: #{_lambda_.36} parent=0 // pred_fallthru
    _
  // Predicated region
  $region10: #{_lambda_.36} parent=0 // pred_check
    _
  $region11: #{_lambda_.36} parent=0 // pred_check_branch
    %14 = sbr.rel (0) target = $region13
  $region12: #{_lambda_.36} parent=0 // pred_region
    _
  $region13: #{_lambda_.36} parent=0 // pred_fallthru
    _
  // Predicated region
  $region14: #{_lambda_.36} parent=0 // pred_check
    _
  $region15: #{_lambda_.36} parent=0 // pred_check_branch
    %16 = sbr.rel (0) target = $region17
  $region16: #{_lambda_.36} parent=0 // pred_region
    _
  $region17: #{_lambda_.36} parent=0 // pred_fallthru
    _
  %v18 = vld [vmem:[%s0] sm:$0xff]
  %v19 = vld [vmem:[%s0 + $0x8] sm:$0xff]
  %v20 = vld [vmem:[%s0 + $0x10] sm:$0xf]
  %v21 = vld [vmem:[%s0 + $0x14] sm:$0xff]
  %v22 = vld [vmem:[%s0 + $0x1c] sm:$0xff]
  %v23 = vld [vmem:[%s0 + $0x24] sm:$0xf]
  %v24 = vld [vmem:[%s0 + $0x28] sm:$0xff]
  %v25 = vld [vmem:[%s0 + $0x30] sm:$0xff]
  %v26 = vld [vmem:[%s0 + $0x38] sm:$0xf]
  %v27 = vld [vmem:[%s0 + $0x3c] sm:$0xff]
  %v28 = vld [vmem:[%s0 + $0x44] sm:$0xff]
  %v29 = vld [vmem:[%s0 + $0x4c] sm:$0xf]
  %v30 = vld [vmem:[%s1] sm:$0xf]
  %v31 = vld [vmem:[%s1 + $0x4] sm:$0xf]
  %v32 = vld [vmem:[%s1 + $0x8] sm:$0xf]
  %v33 = vld [vmem:[%s1 + $0xc] sm:$0xf]
  %v34 = vld [vmem:[%s1 + $0x10] sm:$0xf]
  %v35 = vld [vmem:[%s1 + $0x14] sm:$0xf]
  %v36 = vld [vmem:[%s1 + $0x18] sm:$0xf]
  %v37 = vld [vmem:[%s1 + $0x1c] sm:$0xf]
  %v38 = vld [vmem:[%s1 + $0x20] sm:$0xf]
  %v39 = vld [vmem:[%s1 + $0x24] sm:$0xf]
  %v40 = vld [vmem:[%s1 + $0x28] sm:$0xf]
  %v41 = vld [vmem:[%s1 + $0x2c] sm:$0xf]
  %v42 = vld [vmem:[%s1 + $0x30] sm:$0xf]
  %v43 = vld [vmem:[%s1 + $0x34] sm:$0xf]
  %v44 = vld [vmem:[%s1 + $0x38] sm:$0xf]
  %v45 = vld [vmem:[%s1 + $0x3c] sm:$0xf]
  %v46 = vld [vmem:[%s1 + $0x40] sm:$0xf]
  %v47 = vld [vmem:[%s1 + $0x44] sm:$0xf]
  %v48 = vld [vmem:[%s1 + $0x48] sm:$0xf]
  %v49 = vld [vmem:[%s1 + $0x4c] sm:$0xf]
  %v50 = vld [vmem:[%s1 + $0x50] sm:$0xf]
  %v51 = vld [vmem:[%s1 + $0x54] sm:$0xf]
  %v52 = vld [vmem:[%s1 + $0x58] sm:$0xf]
  %v53 = vld [vmem:[%s1 + $0x5c] sm:$0xf]
  %v54 = vld [vmem:[%s1 + $0x60] sm:$0xf]
  %v55 = vld [vmem:[%s1 + $0x64] sm:$0xf]
  %v56 = vld [vmem:[%s1 + $0x68] sm:$0xf]
  %v57 = vld [vmem:[%s1 + $0x6c] sm:$0xf]
  %v58 = vld [vmem:[%s1 + $0x70] sm:$0xf]
  %v59 = vld [vmem:[%s1 + $0x74] sm:$0xf]
  %v60 = vld [vmem:[%s1 + $0x78] sm:$0xf]
  %v61 = vld [vmem:[%s1 + $0x7c] sm:$0xf]
  %v62 = vld [vmem:[%s1 + $0x80] sm:$0xf]
  %v63 = vld [vmem:[%s1 + $0x84] sm:$0xf]
  %v64 = vld [vmem:[%s1 + $0x88] sm:$0xf]
  %v65 = vld [vmem:[%s1 + $0x8c] sm:$0xf]
  %v66 = vld [vmem:[%s1 + $0x90] sm:$0xf]
  %v67 = vld [vmem:[%s1 + $0x94] sm:$0xf]
  %v68 = vld [vmem:[%s1 + $0x98] sm:$0xf]
  %v69 = vld [vmem:[%s1 + $0x9c] sm:$0xf]
  %v70 = vld [vmem:[%s1 + $0xa0] sm:$0xf]
  %v71 = vld [vmem:[%s1 + $0xa4] sm:$0xf]
  %v72 = vld [vmem:[%s1 + $0xa8] sm:$0xf]
  %v73 = vld [vmem:[%s1 + $0xac] sm:$0xf]
  %v74 = vld [vmem:[%s1 + $0xb0] sm:$0xf]
  %v75 = vld [vmem:[%s1 + $0xb4] sm:$0xf]
  %v76 = vld [vmem:[%s1 + $0xb8] sm:$0xf]
  %v77 = vld [vmem:[%s1 + $0xbc] sm:$0xf]
  %v78 = vld [vmem:[%s1 + $0xc0] sm:$0xf]
  %v79 = vld [vmem:[%s1 + $0xc4] sm:$0xf]
  %v80 = vld [vmem:[%s1 + $0xc8] sm:$0xf]
  %v81 = vld [vmem:[%s1 + $0xcc] sm:$0xf]
  %v82 = vld [vmem:[%s1 + $0xd0] sm:$0xf]
  %v83 = vld [vmem:[%s1 + $0xd4] sm:$0xf]
  %v84 = vld [vmem:[%s1 + $0xd8] sm:$0xf]
  %v85 = vld [vmem:[%s1 + $0xdc] sm:$0xf]
  %v86 = vld [vmem:[%s1 + $0xe0] sm:$0xf]
  %v87 = vld [vmem:[%s1 + $0xe4] sm:$0xf]
  %v88 = vld [vmem:[%s1 + $0xe8] sm:$0xf]
  %v89 = vld [vmem:[%s1 + $0xec] sm:$0xf]
  %v90 = vld [vmem:[%s1 + $0xf0] sm:$0xf]
  %v91 = vld [vmem:[%s1 + $0xf4] sm:$0xf]
  %v92 = vld [vmem:[%s1 + $0xf8] sm:$0xf]
  %v93 = vld [vmem:[%s1 + $0xfc] sm:$0xf]
  %v94 = vld [vmem:[%s1 + $0x100] sm:$0xf]
  %v95 = vld [vmem:[%s1 + $0x104] sm:$0xf]
  %v96 = vld [vmem:[%s1 + $0x108] sm:$0xf]
  %v97 = vld [vmem:[%s1 + $0x10c] sm:$0xf]
  %v98 = vld [vmem:[%s1 + $0x110] sm:$0xf]
  %v99 = vld [vmem:[%s1 + $0x114] sm:$0xf]
  %v100 = vld [vmem:[%s1 + $0x118] sm:$0xf]
  %v101 = vld [vmem:[%s1 + $0x11c] sm:$0xf]
  %v102 = vld [vmem:[%s2] sm:$0x1]
  %v104 = vlaneseq
  %v105 = vshrl.u32 %v104, 7
  %v106 = vsub.s32 0, %v105
  %v107 = vrot.slane %v102, %v106
  %v121 = vunpack.c.l.b16 %v18
  %v122 = vunpack.c.h.b16 %v18
  %v123 = vunpack.c.l.b16 %v19
  %v124 = vunpack.c.h.b16 %v19
  %v125 = vunpack.c.l.b16 %v20
  %v126 = vunpack.c.l.b16 %v21
  %v127 = vunpack.c.h.b16 %v21
  %v128 = vunpack.c.l.b16 %v22
  %v129 = vunpack.c.h.b16 %v22
  %v130 = vunpack.c.l.b16 %v23
  %v131 = vunpack.c.l.b16 %v24
  %v132 = vunpack.c.h.b16 %v24
  %v133 = vunpack.c.l.b16 %v25
  %v134 = vunpack.c.h.b16 %v25
  %v135 = vunpack.c.l.b16 %v26
  %v136 = vunpack.c.l.b16 %v27
  %v137 = vunpack.c.h.b16 %v27
  %v138 = vunpack.c.l.b16 %v28
  %v139 = vunpack.c.h.b16 %v28
  %v140 = vunpack.c.l.b16 %v29
  %v141 = vpack.c.b16 %v126, %v121
  %v142 = vpack.c.b16 %v127, %v122
  %v143 = vpack.c.b16 %v128, %v123
  %v144 = vpack.c.b16 %v129, %v124
  %v145 = vpack.c.b16 %v130, %v125
  %v146 = vpack.c.b16 %v136, %v131
  %v147 = vpack.c.b16 %v137, %v132
  %v148 = vpack.c.b16 %v138, %v133
  %v149 = vpack.c.b16 %v139, %v134
  %v150 = vpack.c.b16 %v140, %v135
  %v231 = vunpack.c.l.b16 %v30
  %v232 = vunpack.c.l.b16 %v31
  %v233 = vunpack.c.l.b16 %v32
  %v234 = vunpack.c.l.b16 %v33
  %v235 = vunpack.c.l.b16 %v34
  %v236 = vunpack.c.l.b16 %v35
  %v237 = vunpack.c.l.b16 %v36
  %v238 = vunpack.c.l.b16 %v37
  %v239 = vunpack.c.l.b16 %v38
  %v240 = vunpack.c.l.b16 %v39
  %v241 = vunpack.c.l.b16 %v40
  %v242 = vunpack.c.l.b16 %v41
  %v243 = vunpack.c.l.b16 %v42
  %v244 = vunpack.c.l.b16 %v43
  %v245 = vunpack.c.l.b16 %v44
  %v246 = vunpack.c.l.b16 %v45
  %v247 = vunpack.c.l.b16 %v46
  %v248 = vunpack.c.l.b16 %v47
  %v249 = vunpack.c.l.b16 %v48
  %v250 = vunpack.c.l.b16 %v49
  %v251 = vunpack.c.l.b16 %v50
  %v252 = vunpack.c.l.b16 %v51
  %v253 = vunpack.c.l.b16 %v52
  %v254 = vunpack.c.l.b16 %v53
  %v255 = vunpack.c.l.b16 %v54
  %v256 = vunpack.c.l.b16 %v55
  %v257 = vunpack.c.l.b16 %v56
  %v258 = vunpack.c.l.b16 %v57
  %v259 = vunpack.c.l.b16 %v58
  %v260 = vunpack.c.l.b16 %v59
  %v261 = vunpack.c.l.b16 %v60
  %v262 = vunpack.c.l.b16 %v61
  %v263 = vunpack.c.l.b16 %v62
  %v264 = vunpack.c.l.b16 %v63
  %v265 = vunpack.c.l.b16 %v64
  %v266 = vunpack.c.l.b16 %v65
  %v267 = vunpack.c.l.b16 %v66
  %v268 = vunpack.c.l.b16 %v67
  %v269 = vunpack.c.l.b16 %v68
  %v270 = vunpack.c.l.b16 %v69
  %v271 = vunpack.c.l.b16 %v70
  %v272 = vunpack.c.l.b16 %v71
  %v273 = vunpack.c.l.b16 %v72
  %v274 = vunpack.c.l.b16 %v73
  %v275 = vunpack.c.l.b16 %v74
  %v276 = vunpack.c.l.b16 %v75
  %v277 = vunpack.c.l.b16 %v76
  %v278 = vunpack.c.l.b16 %v77
  %v279 = vunpack.c.l.b16 %v78
  %v280 = vunpack.c.l.b16 %v79
  %v281 = vunpack.c.l.b16 %v80
  %v282 = vunpack.c.l.b16 %v81
  %v283 = vunpack.c.l.b16 %v82
  %v284 = vunpack.c.l.b16 %v83
  %v285 = vunpack.c.l.b16 %v84
  %v286 = vunpack.c.l.b16 %v85
  %v287 = vunpack.c.l.b16 %v86
  %v288 = vunpack.c.l.b16 %v87
  %v289 = vunpack.c.l.b16 %v88
  %v290 = vunpack.c.l.b16 %v89
  %v291 = vunpack.c.l.b16 %v90
  %v292 = vunpack.c.l.b16 %v91
  %v293 = vunpack.c.l.b16 %v92
  %v294 = vunpack.c.l.b16 %v93
  %v295 = vunpack.c.l.b16 %v94
  %v296 = vunpack.c.l.b16 %v95
  %v297 = vunpack.c.l.b16 %v96
  %v298 = vunpack.c.l.b16 %v97
  %v299 = vunpack.c.l.b16 %v98
  %v300 = vunpack.c.l.b16 %v99
  %v301 = vunpack.c.l.b16 %v100
  %v302 = vunpack.c.l.b16 %v101
  %v303 = vpack.c.b16 %v232, %v231
  %v304 = vpack.c.b16 %v234, %v233
  %v305 = vpack.c.b16 %v236, %v235
  %v306 = vpack.c.b16 %v238, %v237
  %v307 = vpack.c.b16 %v240, %v239
  %v308 = vpack.c.b16 %v242, %v241
  %v309 = vpack.c.b16 %v244, %v243
  %v310 = vpack.c.b16 %v246, %v245
  %v311 = vpack.c.b16 %v248, %v247
  %v312 = vpack.c.b16 %v250, %v249
  %v313 = vpack.c.b16 %v252, %v251
  %v314 = vpack.c.b16 %v254, %v253
  %v315 = vpack.c.b16 %v256, %v255
  %v316 = vpack.c.b16 %v258, %v257
  %v317 = vpack.c.b16 %v260, %v259
  %v318 = vpack.c.b16 %v262, %v261
  %v319 = vpack.c.b16 %v264, %v263
  %v320 = vpack.c.b16 %v266, %v265
  %v321 = vpack.c.b16 %v268, %v267
  %v322 = vpack.c.b16 %v270, %v269
  %v323 = vpack.c.b16 %v272, %v271
  %v324 = vpack.c.b16 %v274, %v273
  %v325 = vpack.c.b16 %v276, %v275
  %v326 = vpack.c.b16 %v278, %v277
  %v327 = vpack.c.b16 %v280, %v279
  %v328 = vpack.c.b16 %v282, %v281
  %v329 = vpack.c.b16 %v284, %v283
  %v330 = vpack.c.b16 %v286, %v285
  %v331 = vpack.c.b16 %v288, %v287
  %v332 = vpack.c.b16 %v290, %v289
  %v333 = vpack.c.b16 %v292, %v291
  %v334 = vpack.c.b16 %v294, %v293
  %v335 = vpack.c.b16 %v296, %v295
  %v336 = vpack.c.b16 %v298, %v297
  %v337 = vpack.c.b16 %v300, %v299
  %v338 = vpack.c.b16 %v302, %v301
  %vm375 = vcmask 523264
  %v377 = vsel %vm375, %v145, 0
  %v380 = vsel %vm375, %v150, 0
  %382 = vmatprep.subr.bf16.mxu0 0
  %383 = vmatpush1.bf16.msra.mxu0 %v303
  %384 = vmatprep.subr.bf16.mxu0 0
  %385 = vmatpush1.bf16.msra.mxu0 %v304
  %386 = vmatprep.subr.bf16.mxu0 0
  %387 = vmatpush1.bf16.msra.mxu0 %v305
  %388 = vmatprep.subr.bf16.mxu0 0
  %389 = vmatpush1.bf16.msra.mxu0 %v306
  %390 = vmatprep.subr.bf16.mxu0 0
  %391 = vmatpush1.bf16.msra.mxu0 %v307
  %392 = vmatprep.subr.bf16.mxu0 0
  %393 = vmatpush1.bf16.msra.mxu0 %v308
  %394 = vmatprep.subr.bf16.mxu0 0
  %395 = vmatpush1.bf16.msra.mxu0 %v309
  %396 = vmatprep.subr.bf16.mxu0 0
  %397 = vmatpush1.bf16.msra.mxu0 %v310
  %398 = vmatprep.subr.bf16.mxu0 0
  %399 = vmatpush1.bf16.msra.mxu0 %v311
  %400 = vmatprep.subr.bf16.mxu0 0
  %401 = vmatpush1.bf16.msra.mxu0 %v312
  %402 = vmatprep.subr.bf16.mxu0 0
  %403 = vmatpush1.bf16.msra.mxu0 %v313
  %404 = vmatprep.subr.bf16.mxu0 0
  %405 = vmatpush1.bf16.msra.mxu0 %v314
  %406 = vmatprep.subr.bf16.mxu0 0
  %407 = vmatpush1.bf16.msra.mxu0 %v315
  %408 = vmatprep.subr.bf16.mxu0 0
  %409 = vmatpush1.bf16.msra.mxu0 %v316
  %410 = vmatprep.subr.bf16.mxu0 0
  %411 = vmatpush1.bf16.msra.mxu0 %v317
  %412 = vmatprep.subr.bf16.mxu0 0
  %413 = vmatpush1.bf16.msra.mxu0 %v318
  %414 = vmatprep.mubr.bf16.mxu0 %v142
  %415 = vmatmul.mubr.bf16.gmra.mrb[0].mxu0 %v141
  %v416 = vpop.f32.mrb[0].mxu0
  %v417 = vadd.f32 %v107, %v416
  %v418 = vpop.f32.mrb[0].mxu0
  %v419 = vpop.f32.mrb[0].mxu0
  %v420 = vadd.f32 %v107, %v419
  %v421 = vpop.f32.mrb[0].mxu0
  %422 = vmatprep.mubr.bf16.mxu0 %v147
  %423 = vmatmul.mubr.bf16.gmra.mrb[0].mxu0 %v146
  %v424 = vpop.f32.mrb[0].mxu0
  %v425 = vadd.f32 %v107, %v424
  %v426 = vpop.f32.mrb[0].mxu0
  %v427 = vpop.f32.mrb[0].mxu0
  %v428 = vadd.f32 %v107, %v427
  %v429 = vpop.f32.mrb[0].mxu0
  %430 = vdwg.mxu0
  %431 = vmatprep.subr.bf16.mxu0 0
  %432 = vmatpush1.bf16.msra.mxu0 %v319
  %433 = vmatprep.subr.bf16.mxu0 0
  %434 = vmatpush1.bf16.msra.mxu0 %v320
  %435 = vmatprep.subr.bf16.mxu0 0
  %436 = vmatpush1.bf16.msra.mxu0 %v321
  %437 = vmatprep.subr.bf16.mxu0 0
  %438 = vmatpush1.bf16.msra.mxu0 %v322
  %439 = vmatprep.subr.bf16.mxu0 0
  %440 = vmatpush1.bf16.msra.mxu0 %v323
  %441 = vmatprep.subr.bf16.mxu0 0
  %442 = vmatpush1.bf16.msra.mxu0 %v324
  %443 = vmatprep.subr.bf16.mxu0 0
  %444 = vmatpush1.bf16.msra.mxu0 %v325
  %445 = vmatprep.subr.bf16.mxu0 0
  %446 = vmatpush1.bf16.msra.mxu0 %v326
  %447 = vmatprep.subr.bf16.mxu0 0
  %448 = vmatpush1.bf16.msra.mxu0 %v327
  %449 = vmatprep.subr.bf16.mxu0 0
  %450 = vmatpush1.bf16.msra.mxu0 %v328
  %451 = vmatprep.subr.bf16.mxu0 0
  %452 = vmatpush1.bf16.msra.mxu0 %v329
  %453 = vmatprep.subr.bf16.mxu0 0
  %454 = vmatpush1.bf16.msra.mxu0 %v330
  %455 = vmatprep.subr.bf16.mxu0 0
  %456 = vmatpush1.bf16.msra.mxu0 %v331
  %457 = vmatprep.subr.bf16.mxu0 0
  %458 = vmatpush1.bf16.msra.mxu0 %v332
  %459 = vmatprep.subr.bf16.mxu0 0
  %460 = vmatpush1.bf16.msra.mxu0 %v333
  %461 = vmatprep.subr.bf16.mxu0 0
  %462 = vmatpush1.bf16.msra.mxu0 %v334
  %463 = vmatprep.mubr.bf16.mxu0 %v144
  %464 = vmatmul.mubr.bf16.gmra.mrb[0].mxu0 %v143
  %v465 = vpop.f32.mrb[0].mxu0
  %v466 = vadd.f32 %v417, %v465
  %v467 = vpop.f32.mrb[0].mxu0
  %v468 = vpop.f32.mrb[0].mxu0
  %v469 = vadd.f32 %v420, %v468
  %v470 = vpop.f32.mrb[0].mxu0
  %471 = vmatprep.mubr.bf16.mxu0 %v149
  %472 = vmatmul.mubr.bf16.gmra.mrb[0].mxu0 %v148
  %v473 = vpop.f32.mrb[0].mxu0
  %v474 = vadd.f32 %v425, %v473
  %v475 = vpop.f32.mrb[0].mxu0
  %v476 = vpop.f32.mrb[0].mxu0
  %v477 = vadd.f32 %v428, %v476
  %v478 = vpop.f32.mrb[0].mxu0
  %479 = vdwg.mxu0
  %480 = vmatprep.subr.bf16.mxu0 0
  %481 = vmatpush1.bf16.msra.mxu0 %v335
  %482 = vmatprep.subr.bf16.mxu0 0
  %483 = vmatpush1.bf16.msra.mxu0 %v336
  %484 = vmatprep.subr.bf16.mxu0 0
  %485 = vmatpush1.bf16.msra.mxu0 %v337
  %486 = vmatprep.subr.bf16.mxu0 0
  %487 = vmatpush1.bf16.msra.mxu0 %v338
  %488 = vmatprep.subr.bf16.mxu0 0
  %489 = vmatpush1.bf16.msra.mxu0 0
  %490 = vmatprep.subr.bf16.mxu0 0
  %491 = vmatpush1.bf16.msra.mxu0 0
  %492 = vmatprep.subr.bf16.mxu0 0
  %493 = vmatpush1.bf16.msra.mxu0 0
  %494 = vmatprep.subr.bf16.mxu0 0
  %495 = vmatpush1.bf16.msra.mxu0 0
  %496 = vmatprep.subr.bf16.mxu0 0
  %497 = vmatpush1.bf16.msra.mxu0 0
  %498 = vmatprep.subr.bf16.mxu0 0
  %499 = vmatpush1.bf16.msra.mxu0 0
  %500 = vmatprep.subr.bf16.mxu0 0
  %501 = vmatpush1.bf16.msra.mxu0 0
  %502 = vmatprep.subr.bf16.mxu0 0
  %503 = vmatpush1.bf16.msra.mxu0 0
  %504 = vmatprep.subr.bf16.mxu0 0
  %505 = vmatpush1.bf16.msra.mxu0 0
  %506 = vmatprep.subr.bf16.mxu0 0
  %507 = vmatpush1.bf16.msra.mxu0 0
  %508 = vmatprep.subr.bf16.mxu0 0
  %509 = vmatpush1.bf16.msra.mxu0 0
  %510 = vmatprep.subr.bf16.mxu0 0
  %511 = vmatpush1.bf16.msra.mxu0 0
  %512 = vmatprep.mubr.bf16.mxu0 0
  %513 = vmatmul.mubr.bf16.gmra.mrb[0].mxu0 %v377
  %v514 = vpop.f32.mrb[0].mxu0
  %v515 = vadd.f32 %v466, %v514
  %v516 = vpop.f32.mrb[0].mxu0
  %v517 = vpop.f32.mrb[0].mxu0
  %v518 = vadd.f32 %v469, %v517
  %v519 = vpop.f32.mrb[0].mxu0
  %520 = vmatprep.mubr.bf16.mxu0 0
  %521 = vmatmul.mubr.bf16.gmra.mrb[0].mxu0 %v380
  %v522 = vpop.f32.mrb[0].mxu0
  %v523 = vadd.f32 %v474, %v522
  %v524 = vpop.f32.mrb[0].mxu0
  %v525 = vpop.f32.mrb[0].mxu0
  %v526 = vadd.f32 %v477, %v525
  %v527 = vpop.f32.mrb[0].mxu0
  %528 = vdwg.mxu0
  %v529 = vld [vmem:[%s3] sm:$0xf]
  %v530 = vld [vmem:[%s3 + $0x4] sm:$0xf]
  %v531 = vld [vmem:[%s3 + $0x8] sm:$0xf]
  %v532 = vld [vmem:[%s3 + $0xc] sm:$0xf]
  %v533 = vunpack.c.l.bf16 %v529
  %v534 = vunpack.c.l.bf16 %v530
  %v535 = vunpack.c.l.bf16 %v531
  %v536 = vunpack.c.l.bf16 %v532
  %v537 = vadd.f32 %v515, %v533
  %v538 = vadd.f32 %v518, %v534
  %v539 = vadd.f32 %v523, %v535
  %v540 = vadd.f32 %v526, %v536
  %v541 = vmax.f32 %v537, 0.0
  %v542 = vmax.f32 %v538, 0.0
  %v543 = vmax.f32 %v539, 0.0
  %v544 = vmax.f32 %v540, 0.0
  %v545 = vpack.c.bf16 %v542, %v541
  %v546 = vpack.c.bf16 %v544, %v543
  %v549 = vunpack.c.l.b16 %v545
  %v550 = vunpack.c.h.b16 %v545
  %v551 = vunpack.c.l.b16 %v546
  %v552 = vunpack.c.h.b16 %v546
  %v553 = vpack.c.b16 %v549, %v549
  %v554 = vpack.c.b16 %v550, %v550
  %v555 = vpack.c.b16 %v551, %v551
  %v556 = vpack.c.b16 %v552, %v552
  %vm561 = vcmask 519168
  %562 = vst.msk [vmem:[%s4] sm:$0xf] %vm561, %v553
  %563 = vst.msk [vmem:[%s4 + $0x4] sm:$0xf] %vm561, %v554
  %564 = vst.msk [vmem:[%s4 + $0x8] sm:$0xf] %vm561, %v555
  %565 = vst.msk [vmem:[%s4 + $0xc] sm:$0xf] %vm561, %v556
  // Predicated region
  $region18: #{_lambda_.36} parent=0 // pred_check
    _
  $region19: #{_lambda_.36} parent=0 // pred_check_branch
    %567 = sbr.rel (0) target = $region21
  $region20: #{_lambda_.36} parent=0 // pred_region
    _
  $region21: #{_lambda_.36} parent=0 // pred_fallthru
    _
  // Predicated region
  $region22: #{_lambda_.36} parent=0 // pred_check
    _
  $region23: #{_lambda_.36} parent=0 // pred_check_branch
    %569 = sbr.rel (0) target = $region25
  $region24: #{_lambda_.36} parent=0 // pred_region
    _
  $region25: #{_lambda_.36} parent=0 // pred_fallthru
    _

// kernel: _lambda_.35
$region0: #{_lambda_.35}
  #allocation0 [shape = 'u32[]', space=smem, size = 0x4, offset = 0x4, fixed_abs, tag = 'smem constant byte address 0x4 - core index']
  #allocation1 [shape = 'u32[144,128]{1,0:T(1,128)}', space=vmem, size = 0x12000, scoped, tag = 'internal scratch']
  %s0 = inlined_call_operand.vmem [shape: bf16[32,32], index: 0, kind: input, shape index: {}]
  %s1 = inlined_call_operand.vmem [shape: bf16[32,64], index: 1, kind: input, shape index: {}]
  %s2 = inlined_call_operand.vmem [shape: f32[1,64], index: 2, kind: input, shape index: {}]
  %s3 = inlined_call_operand.vmem [shape: bf16[32,64], index: 3, kind: output, shape index: {}]
  %s4 = sld [smem:[#allocation0]]
  $region22: #{_lambda_.35} parent=0
    _
  %s6 = ssub.s32 1, %s4
  %s7 = scalar_select 0, %s6, %s4
  // Predicated region
  $region2: #{_lambda_.35} parent=0 // pred_check
    _
  $region3: #{_lambda_.35} parent=0 // pred_check_branch
    %9 = sbr.rel (0) target = $region5
  $region4: #{_lambda_.35} parent=0 // pred_region
    _
  $region5: #{_lambda_.35} parent=0 // pred_fallthru
    _
  // Predicated region
  $region6: #{_lambda_.35} parent=0 // pred_check
    _
  $region7: #{_lambda_.35} parent=0 // pred_check_branch
    %11 = sbr.rel (0) target = $region9
  $region8: #{_lambda_.35} parent=0 // pred_region
    _
  $region9: #{_lambda_.35} parent=0 // pred_fallthru
    _
  // Predicated region
  $region10: #{_lambda_.35} parent=0 // pred_check
    _
  $region11: #{_lambda_.35} parent=0 // pred_check_branch
    %13 = sbr.rel (0) target = $region13
  $region12: #{_lambda_.35} parent=0 // pred_region
    _
  $region13: #{_lambda_.35} parent=0 // pred_fallthru
    _
  %v15 = vld [vmem:[%s0] sm:$0xf]
  %v16 = vld [vmem:[%s0 + $0x4] sm:$0xf]
  %v17 = vld [vmem:[%s0 + $0x8] sm:$0xf]
  %v18 = vld [vmem:[%s0 + $0xc] sm:$0xf]
  %v19 = vld [vmem:[%s1] sm:$0xf]
  %v20 = vld [vmem:[%s1 + $0x4] sm:$0xf]
  %v21 = vld [vmem:[%s1 + $0x8] sm:$0xf]
  %v22 = vld [vmem:[%s1 + $0xc] sm:$0xf]
  %v23 = vld [vmem:[%s2] sm:$0x1]
  %v25 = vlaneseq
  %v26 = vshrl.u32 %v25, 7
  %v27 = vsub.s32 0, %v26
  %v28 = vrot.slane %v23, %v27
  %v34 = vunpack.c.l.b16 %v15
  %v35 = vunpack.c.l.b16 %v16
  %v36 = vunpack.c.l.b16 %v17
  %v37 = vunpack.c.l.b16 %v18
  %v38 = vpack.c.b16 %v35, %v34
  %v39 = vpack.c.b16 %v37, %v36
  %v44 = vunpack.c.l.b16 %v19
  %v45 = vunpack.c.l.b16 %v20
  %v46 = vunpack.c.l.b16 %v21
  %v47 = vunpack.c.l.b16 %v22
  %v48 = vpack.c.b16 %v45, %v44
  %v49 = vpack.c.b16 %v47, %v46
  %vm52 = vcmask 261120
  %v54 = vsel %vm52, %v38, 0
  %v57 = vsel %vm52, %v39, 0
  %59 = vmatprep.subr.bf16.mxu0 0
  %60 = vmatpush1.bf16.msra.mxu0 %v48
  %61 = vmatprep.subr.bf16.mxu0 0
  %62 = vmatpush1.bf16.msra.mxu0 %v49
  %63 = vmatprep.subr.bf16.mxu0 0
  %64 = vmatpush1.bf16.msra.mxu0 0
  %65 = vmatprep.subr.bf16.mxu0 0
  %66 = vmatpush1.bf16.msra.mxu0 0
  %67 = vmatprep.subr.bf16.mxu0 0
  %68 = vmatpush1.bf16.msra.mxu0 0
  %69 = vmatprep.subr.bf16.mxu0 0
  %70 = vmatpush1.bf16.msra.mxu0 0
  %71 = vmatprep.subr.bf16.mxu0 0
  %72 = vmatpush1.bf16.msra.mxu0 0
  %73 = vmatprep.subr.bf16.mxu0 0
  %74 = vmatpush1.bf16.msra.mxu0 0
  %75 = vmatprep.subr.bf16.mxu0 0
  %76 = vmatpush1.bf16.msra.mxu0 0
  %77 = vmatprep.subr.bf16.mxu0 0
  %78 = vmatpush1.bf16.msra.mxu0 0
  %79 = vmatprep.subr.bf16.mxu0 0
  %80 = vmatpush1.bf16.msra.mxu0 0
  %81 = vmatprep.subr.bf16.mxu0 0
  %82 = vmatpush1.bf16.msra.mxu0 0
  %83 = vmatprep.subr.bf16.mxu0 0
  %84 = vmatpush1.bf16.msra.mxu0 0
  %85 = vmatprep.subr.bf16.mxu0 0
  %86 = vmatpush1.bf16.msra.mxu0 0
  %87 = vmatprep.subr.bf16.mxu0 0
  %88 = vmatpush1.bf16.msra.mxu0 0
  %89 = vmatprep.subr.bf16.mxu0 0
  %90 = vmatpush1.bf16.msra.mxu0 0
  %91 = vmatprep.mubr.bf16.mxu0 0
  %92 = vmatmul.mubr.bf16.gmra.mrb[0].mxu0 %v54
  %v93 = vpop.f32.mrb[0].mxu0
  %v94 = vadd.f32 %v28, %v93
  %v95 = vpop.f32.mrb[0].mxu0
  %v96 = vpop.f32.mrb[0].mxu0
  %v97 = vadd.f32 %v28, %v96
  %v98 = vpop.f32.mrb[0].mxu0
  %99 = vmatprep.mubr.bf16.mxu0 0
  %100 = vmatmul.mubr.bf16.gmra.mrb[0].mxu0 %v57
  %v101 = vpop.f32.mrb[0].mxu0
  %v102 = vadd.f32 %v28, %v101
  %v103 = vpop.f32.mrb[0].mxu0
  %v104 = vpop.f32.mrb[0].mxu0
  %v105 = vadd.f32 %v28, %v104
  %v106 = vpop.f32.mrb[0].mxu0
  %107 = vdwg.mxu0
  %v108 = vpack.c.bf16 %v97, %v94
  %v109 = vpack.c.bf16 %v105, %v102
  %v112 = vunpack.c.l.b16 %v108
  %v113 = vunpack.c.h.b16 %v108
  %v114 = vunpack.c.l.b16 %v109
  %v115 = vunpack.c.h.b16 %v109
  %v116 = vpack.c.b16 %v112, %v112
  %v117 = vpack.c.b16 %v113, %v113
  %v118 = vpack.c.b16 %v114, %v114
  %v119 = vpack.c.b16 %v115, %v115
  %vm124 = vcmask 519168
  %125 = vst.msk [vmem:[%s3] sm:$0xf] %vm124, %v116
  %126 = vst.msk [vmem:[%s3 + $0x4] sm:$0xf] %vm124, %v117
  %127 = vst.msk [vmem:[%s3 + $0x8] sm:$0xf] %vm124, %v118
  %128 = vst.msk [vmem:[%s3 + $0xc] sm:$0xf] %vm124, %v119
  // Predicated region
  $region14: #{_lambda_.35} parent=0 // pred_check
    _
  $region15: #{_lambda_.35} parent=0 // pred_check_branch
    %130 = sbr.rel (0) target = $region17
  $region16: #{_lambda_.35} parent=0 // pred_region
    _
  $region17: #{_lambda_.35} parent=0 // pred_fallthru
    _
  // Predicated region
  $region18: #{_lambda_.35} parent=0 // pred_check
    _
  $region19: #{_lambda_.35} parent=0 // pred_check_branch
    %132 = sbr.rel (0) target = $region21
  $region20: #{_lambda_.35} parent=0 // pred_region
    _
  $region21: #{_lambda_.35} parent=0 // pred_fallthru
    _

// kernel: _lambda_.39
$region0: #{_lambda_.39}
  #allocation0 [shape = 'u32[]', space=smem, size = 0x4, offset = 0x4, fixed_abs, tag = 'smem constant byte address 0x4 - core index']
  #allocation1 [shape = 'u32[144,128]{1,0:T(1,128)}', space=vmem, size = 0x12000, scoped, tag = 'internal scratch']
  %s0 = inlined_call_operand.vmem [shape: bf16[8,576], index: 0, kind: input, shape index: {}]
  %s1 = inlined_call_operand.vmem [shape: bf16[576,128], index: 1, kind: input, shape index: {}]
  %s2 = inlined_call_operand.vmem [shape: f32[1,128], index: 2, kind: input, shape index: {}]
  %s3 = inlined_call_operand.vmem [shape: bf16[8,128], index: 3, kind: output, shape index: {}]
  %s4 = sld [smem:[#allocation0]]
  $region22: #{_lambda_.39} parent=0
    _
  %s6 = ssub.s32 1, %s4
  %s7 = scalar_select 0, %s6, %s4
  // Predicated region
  $region2: #{_lambda_.39} parent=0 // pred_check
    _
  $region3: #{_lambda_.39} parent=0 // pred_check_branch
    %9 = sbr.rel (0) target = $region5
  $region4: #{_lambda_.39} parent=0 // pred_region
    _
  $region5: #{_lambda_.39} parent=0 // pred_fallthru
    _
  // Predicated region
  $region6: #{_lambda_.39} parent=0 // pred_check
    _
  $region7: #{_lambda_.39} parent=0 // pred_check_branch
    %11 = sbr.rel (0) target = $region9
  $region8: #{_lambda_.39} parent=0 // pred_region
    _
  $region9: #{_lambda_.39} parent=0 // pred_fallthru
    _
  // Predicated region
  $region10: #{_lambda_.39} parent=0 // pred_check
    _
  $region11: #{_lambda_.39} parent=0 // pred_check_branch
    %13 = sbr.rel (0) target = $region13
  $region12: #{_lambda_.39} parent=0 // pred_region
    _
  $region13: #{_lambda_.39} parent=0 // pred_fallthru
    _
  %v15 = vld [vmem:[%s0] sm:$0xff]
  %v16 = vld [vmem:[%s0 + $0x8] sm:$0xff]
  %v17 = vld [vmem:[%s0 + $0x10] sm:$0xf]
  %v18 = vld [vmem:[%s1] sm:$0xf]
  %v19 = vld [vmem:[%s1 + $0x4] sm:$0xf]
  %v20 = vld [vmem:[%s1 + $0x8] sm:$0xf]
  %v21 = vld [vmem:[%s1 + $0xc] sm:$0xf]
  %v22 = vld [vmem:[%s1 + $0x10] sm:$0xf]
  %v23 = vld [vmem:[%s1 + $0x14] sm:$0xf]
  %v24 = vld [vmem:[%s1 + $0x18] sm:$0xf]
  %v25 = vld [vmem:[%s1 + $0x1c] sm:$0xf]
  %v26 = vld [vmem:[%s1 + $0x20] sm:$0xf]
  %v27 = vld [vmem:[%s1 + $0x24] sm:$0xf]
  %v28 = vld [vmem:[%s1 + $0x28] sm:$0xf]
  %v29 = vld [vmem:[%s1 + $0x2c] sm:$0xf]
  %v30 = vld [vmem:[%s1 + $0x30] sm:$0xf]
  %v31 = vld [vmem:[%s1 + $0x34] sm:$0xf]
  %v32 = vld [vmem:[%s1 + $0x38] sm:$0xf]
  %v33 = vld [vmem:[%s1 + $0x3c] sm:$0xf]
  %v34 = vld [vmem:[%s1 + $0x40] sm:$0xf]
  %v35 = vld [vmem:[%s1 + $0x44] sm:$0xf]
  %v36 = vld [vmem:[%s1 + $0x48] sm:$0xf]
  %v37 = vld [vmem:[%s1 + $0x4c] sm:$0xf]
  %v38 = vld [vmem:[%s1 + $0x50] sm:$0xf]
  %v39 = vld [vmem:[%s1 + $0x54] sm:$0xf]
  %v40 = vld [vmem:[%s1 + $0x58] sm:$0xf]
  %v41 = vld [vmem:[%s1 + $0x5c] sm:$0xf]
  %v42 = vld [vmem:[%s1 + $0x60] sm:$0xf]
  %v43 = vld [vmem:[%s1 + $0x64] sm:$0xf]
  %v44 = vld [vmem:[%s1 + $0x68] sm:$0xf]
  %v45 = vld [vmem:[%s1 + $0x6c] sm:$0xf]
  %v46 = vld [vmem:[%s1 + $0x70] sm:$0xf]
  %v47 = vld [vmem:[%s1 + $0x74] sm:$0xf]
  %v48 = vld [vmem:[%s1 + $0x78] sm:$0xf]
  %v49 = vld [vmem:[%s1 + $0x7c] sm:$0xf]
  %v50 = vld [vmem:[%s1 + $0x80] sm:$0xf]
  %v51 = vld [vmem:[%s1 + $0x84] sm:$0xf]
  %v52 = vld [vmem:[%s1 + $0x88] sm:$0xf]
  %v53 = vld [vmem:[%s1 + $0x8c] sm:$0xf]
  %v54 = vld [vmem:[%s1 + $0x90] sm:$0xf]
  %v55 = vld [vmem:[%s1 + $0x94] sm:$0xf]
  %v56 = vld [vmem:[%s1 + $0x98] sm:$0xf]
  %v57 = vld [vmem:[%s1 + $0x9c] sm:$0xf]
  %v58 = vld [vmem:[%s1 + $0xa0] sm:$0xf]
  %v59 = vld [vmem:[%s1 + $0xa4] sm:$0xf]
  %v60 = vld [vmem:[%s1 + $0xa8] sm:$0xf]
  %v61 = vld [vmem:[%s1 + $0xac] sm:$0xf]
  %v62 = vld [vmem:[%s1 + $0xb0] sm:$0xf]
  %v63 = vld [vmem:[%s1 + $0xb4] sm:$0xf]
  %v64 = vld [vmem:[%s1 + $0xb8] sm:$0xf]
  %v65 = vld [vmem:[%s1 + $0xbc] sm:$0xf]
  %v66 = vld [vmem:[%s1 + $0xc0] sm:$0xf]
  %v67 = vld [vmem:[%s1 + $0xc4] sm:$0xf]
  %v68 = vld [vmem:[%s1 + $0xc8] sm:$0xf]
  %v69 = vld [vmem:[%s1 + $0xcc] sm:$0xf]
  %v70 = vld [vmem:[%s1 + $0xd0] sm:$0xf]
  %v71 = vld [vmem:[%s1 + $0xd4] sm:$0xf]
  %v72 = vld [vmem:[%s1 + $0xd8] sm:$0xf]
  %v73 = vld [vmem:[%s1 + $0xdc] sm:$0xf]
  %v74 = vld [vmem:[%s1 + $0xe0] sm:$0xf]
  %v75 = vld [vmem:[%s1 + $0xe4] sm:$0xf]
  %v76 = vld [vmem:[%s1 + $0xe8] sm:$0xf]
  %v77 = vld [vmem:[%s1 + $0xec] sm:$0xf]
  %v78 = vld [vmem:[%s1 + $0xf0] sm:$0xf]
  %v79 = vld [vmem:[%s1 + $0xf4] sm:$0xf]
  %v80 = vld [vmem:[%s1 + $0xf8] sm:$0xf]
  %v81 = vld [vmem:[%s1 + $0xfc] sm:$0xf]
  %v82 = vld [vmem:[%s1 + $0x100] sm:$0xf]
  %v83 = vld [vmem:[%s1 + $0x104] sm:$0xf]
  %v84 = vld [vmem:[%s1 + $0x108] sm:$0xf]
  %v85 = vld [vmem:[%s1 + $0x10c] sm:$0xf]
  %v86 = vld [vmem:[%s1 + $0x110] sm:$0xf]
  %v87 = vld [vmem:[%s1 + $0x114] sm:$0xf]
  %v88 = vld [vmem:[%s1 + $0x118] sm:$0xf]
  %v89 = vld [vmem:[%s1 + $0x11c] sm:$0xf]
  %v90 = vld [vmem:[%s2] sm:$0x1]
  %v92 = vlaneseq
  %v93 = vshrl.u32 %v92, 7
  %v94 = vsub.s32 0, %v93
  %v95 = vrot.slane %v90, %v94
  %v100 = vunpack.c.l.b16 %v15
  %v101 = vunpack.c.h.b16 %v15
  %v102 = vunpack.c.l.b16 %v16
  %v103 = vunpack.c.h.b16 %v16
  %v104 = vunpack.c.l.b16 %v17
  %v105 = vpack.c.b16 %v100, %v100
  %v106 = vpack.c.b16 %v101, %v101
  %v107 = vpack.c.b16 %v102, %v102
  %v108 = vpack.c.b16 %v103, %v103
  %v109 = vpack.c.b16 %v104, %v104
  %v186 = vunpack.c.l.b16 %v18
  %v187 = vunpack.c.l.b16 %v19
  %v188 = vunpack.c.l.b16 %v20
  %v189 = vunpack.c.l.b16 %v21
  %v190 = vunpack.c.l.b16 %v22
  %v191 = vunpack.c.l.b16 %v23
  %v192 = vunpack.c.l.b16 %v24
  %v193 = vunpack.c.l.b16 %v25
  %v194 = vunpack.c.l.b16 %v26
  %v195 = vunpack.c.l.b16 %v27
  %v196 = vunpack.c.l.b16 %v28
  %v197 = vunpack.c.l.b16 %v29
  %v198 = vunpack.c.l.b16 %v30
  %v199 = vunpack.c.l.b16 %v31
  %v200 = vunpack.c.l.b16 %v32
  %v201 = vunpack.c.l.b16 %v33
  %v202 = vunpack.c.l.b16 %v34
  %v203 = vunpack.c.l.b16 %v35
  %v204 = vunpack.c.l.b16 %v36
  %v205 = vunpack.c.l.b16 %v37
  %v206 = vunpack.c.l.b16 %v38
  %v207 = vunpack.c.l.b16 %v39
  %v208 = vunpack.c.l.b16 %v40
  %v209 = vunpack.c.l.b16 %v41
  %v210 = vunpack.c.l.b16 %v42
  %v211 = vunpack.c.l.b16 %v43
  %v212 = vunpack.c.l.b16 %v44
  %v213 = vunpack.c.l.b16 %v45
  %v214 = vunpack.c.l.b16 %v46
  %v215 = vunpack.c.l.b16 %v47
  %v216 = vunpack.c.l.b16 %v48
  %v217 = vunpack.c.l.b16 %v49
  %v218 = vunpack.c.l.b16 %v50
  %v219 = vunpack.c.l.b16 %v51
  %v220 = vunpack.c.l.b16 %v52
  %v221 = vunpack.c.l.b16 %v53
  %v222 = vunpack.c.l.b16 %v54
  %v223 = vunpack.c.l.b16 %v55
  %v224 = vunpack.c.l.b16 %v56
  %v225 = vunpack.c.l.b16 %v57
  %v226 = vunpack.c.l.b16 %v58
  %v227 = vunpack.c.l.b16 %v59
  %v228 = vunpack.c.l.b16 %v60
  %v229 = vunpack.c.l.b16 %v61
  %v230 = vunpack.c.l.b16 %v62
  %v231 = vunpack.c.l.b16 %v63
  %v232 = vunpack.c.l.b16 %v64
  %v233 = vunpack.c.l.b16 %v65
  %v234 = vunpack.c.l.b16 %v66
  %v235 = vunpack.c.l.b16 %v67
  %v236 = vunpack.c.l.b16 %v68
  %v237 = vunpack.c.l.b16 %v69
  %v238 = vunpack.c.l.b16 %v70
  %v239 = vunpack.c.l.b16 %v71
  %v240 = vunpack.c.l.b16 %v72
  %v241 = vunpack.c.l.b16 %v73
  %v242 = vunpack.c.l.b16 %v74
  %v243 = vunpack.c.l.b16 %v75
  %v244 = vunpack.c.l.b16 %v76
  %v245 = vunpack.c.l.b16 %v77
  %v246 = vunpack.c.l.b16 %v78
  %v247 = vunpack.c.l.b16 %v79
  %v248 = vunpack.c.l.b16 %v80
  %v249 = vunpack.c.l.b16 %v81
  %v250 = vunpack.c.l.b16 %v82
  %v251 = vunpack.c.l.b16 %v83
  %v252 = vunpack.c.l.b16 %v84
  %v253 = vunpack.c.l.b16 %v85
  %v254 = vunpack.c.l.b16 %v86
  %v255 = vunpack.c.l.b16 %v87
  %v256 = vunpack.c.l.b16 %v88
  %v257 = vunpack.c.l.b16 %v89
  %v258 = vpack.c.b16 %v187, %v186
  %v259 = vpack.c.b16 %v189, %v188
  %v260 = vpack.c.b16 %v191, %v190
  %v261 = vpack.c.b16 %v193, %v192
  %v262 = vpack.c.b16 %v195, %v194
  %v263 = vpack.c.b16 %v197, %v196
  %v264 = vpack.c.b16 %v199, %v198
  %v265 = vpack.c.b16 %v201, %v200
  %v266 = vpack.c.b16 %v203, %v202
  %v267 = vpack.c.b16 %v205, %v204
  %v268 = vpack.c.b16 %v207, %v206
  %v269 = vpack.c.b16 %v209, %v208
  %v270 = vpack.c.b16 %v211, %v210
  %v271 = vpack.c.b16 %v213, %v212
  %v272 = vpack.c.b16 %v215, %v214
  %v273 = vpack.c.b16 %v217, %v216
  %v274 = vpack.c.b16 %v219, %v218
  %v275 = vpack.c.b16 %v221, %v220
  %v276 = vpack.c.b16 %v223, %v222
  %v277 = vpack.c.b16 %v225, %v224
  %v278 = vpack.c.b16 %v227, %v226
  %v279 = vpack.c.b16 %v229, %v228
  %v280 = vpack.c.b16 %v231, %v230
  %v281 = vpack.c.b16 %v233, %v232
  %v282 = vpack.c.b16 %v235, %v234
  %v283 = vpack.c.b16 %v237, %v236
  %v284 = vpack.c.b16 %v239, %v238
  %v285 = vpack.c.b16 %v241, %v240
  %v286 = vpack.c.b16 %v243, %v242
  %v287 = vpack.c.b16 %v245, %v244
  %v288 = vpack.c.b16 %v247, %v246
  %v289 = vpack.c.b16 %v249, %v248
  %v290 = vpack.c.b16 %v251, %v250
  %v291 = vpack.c.b16 %v253, %v252
  %v292 = vpack.c.b16 %v255, %v254
  %v293 = vpack.c.b16 %v257, %v256
  %vm330 = vcmask 523264
  %v332 = vsel %vm330, %v109, 0
  %334 = vmatprep.subr.bf16.mxu0 0
  %335 = vmatpush1.bf16.msra.mxu0 %v258
  %336 = vmatprep.subr.bf16.mxu0 0
  %337 = vmatpush1.bf16.msra.mxu0 %v259
  %338 = vmatprep.subr.bf16.mxu0 0
  %339 = vmatpush1.bf16.msra.mxu0 %v260
  %340 = vmatprep.subr.bf16.mxu0 0
  %341 = vmatpush1.bf16.msra.mxu0 %v261
  %342 = vmatprep.subr.bf16.mxu0 0
  %343 = vmatpush1.bf16.msra.mxu0 %v262
  %344 = vmatprep.subr.bf16.mxu0 0
  %345 = vmatpush1.bf16.msra.mxu0 %v263
  %346 = vmatprep.subr.bf16.mxu0 0
  %347 = vmatpush1.bf16.msra.mxu0 %v264
  %348 = vmatprep.subr.bf16.mxu0 0
  %349 = vmatpush1.bf16.msra.mxu0 %v265
  %350 = vmatprep.subr.bf16.mxu0 0
  %351 = vmatpush1.bf16.msra.mxu0 %v266
  %352 = vmatprep.subr.bf16.mxu0 0
  %353 = vmatpush1.bf16.msra.mxu0 %v267
  %354 = vmatprep.subr.bf16.mxu0 0
  %355 = vmatpush1.bf16.msra.mxu0 %v268
  %356 = vmatprep.subr.bf16.mxu0 0
  %357 = vmatpush1.bf16.msra.mxu0 %v269
  %358 = vmatprep.subr.bf16.mxu0 0
  %359 = vmatpush1.bf16.msra.mxu0 %v270
  %360 = vmatprep.subr.bf16.mxu0 0
  %361 = vmatpush1.bf16.msra.mxu0 %v271
  %362 = vmatprep.subr.bf16.mxu0 0
  %363 = vmatpush1.bf16.msra.mxu0 %v272
  %364 = vmatprep.subr.bf16.mxu0 0
  %365 = vmatpush1.bf16.msra.mxu0 %v273
  %366 = vmatprep.mubr.bf16.mxu0 %v106
  %367 = vmatmul.mubr.bf16.gmra.mrb[0].mxu0 %v105
  %v368 = vpop.f32.mrb[0].mxu0
  %v369 = vadd.f32 %v95, %v368
  %v370 = vpop.f32.mrb[0].mxu0
  %v371 = vpop.f32.mrb[0].mxu0
  %v372 = vpop.f32.mrb[0].mxu0
  %373 = vdwg.mxu0
  %374 = vmatprep.subr.bf16.mxu0 0
  %375 = vmatpush1.bf16.msra.mxu0 %v274
  %376 = vmatprep.subr.bf16.mxu0 0
  %377 = vmatpush1.bf16.msra.mxu0 %v275
  %378 = vmatprep.subr.bf16.mxu0 0
  %379 = vmatpush1.bf16.msra.mxu0 %v276
  %380 = vmatprep.subr.bf16.mxu0 0
  %381 = vmatpush1.bf16.msra.mxu0 %v277
  %382 = vmatprep.subr.bf16.mxu0 0
  %383 = vmatpush1.bf16.msra.mxu0 %v278
  %384 = vmatprep.subr.bf16.mxu0 0
  %385 = vmatpush1.bf16.msra.mxu0 %v279
  %386 = vmatprep.subr.bf16.mxu0 0
  %387 = vmatpush1.bf16.msra.mxu0 %v280
  %388 = vmatprep.subr.bf16.mxu0 0
  %389 = vmatpush1.bf16.msra.mxu0 %v281
  %390 = vmatprep.subr.bf16.mxu0 0
  %391 = vmatpush1.bf16.msra.mxu0 %v282
  %392 = vmatprep.subr.bf16.mxu0 0
  %393 = vmatpush1.bf16.msra.mxu0 %v283
  %394 = vmatprep.subr.bf16.mxu0 0
  %395 = vmatpush1.bf16.msra.mxu0 %v284
  %396 = vmatprep.subr.bf16.mxu0 0
  %397 = vmatpush1.bf16.msra.mxu0 %v285
  %398 = vmatprep.subr.bf16.mxu0 0
  %399 = vmatpush1.bf16.msra.mxu0 %v286
  %400 = vmatprep.subr.bf16.mxu0 0
  %401 = vmatpush1.bf16.msra.mxu0 %v287
  %402 = vmatprep.subr.bf16.mxu0 0
  %403 = vmatpush1.bf16.msra.mxu0 %v288
  %404 = vmatprep.subr.bf16.mxu0 0
  %405 = vmatpush1.bf16.msra.mxu0 %v289
  %406 = vmatprep.mubr.bf16.mxu0 %v108
  %407 = vmatmul.mubr.bf16.gmra.mrb[0].mxu0 %v107
  %v408 = vpop.f32.mrb[0].mxu0
  %v409 = vadd.f32 %v369, %v408
  %v410 = vpop.f32.mrb[0].mxu0
  %v411 = vpop.f32.mrb[0].mxu0
  %v412 = vpop.f32.mrb[0].mxu0
  %413 = vdwg.mxu0
  %414 = vmatprep.subr.bf16.mxu0 0
  %415 = vmatpush1.bf16.msra.mxu0 %v290
  %416 = vmatprep.subr.bf16.mxu0 0
  %417 = vmatpush1.bf16.msra.mxu0 %v291
  %418 = vmatprep.subr.bf16.mxu0 0
  %419 = vmatpush1.bf16.msra.mxu0 %v292
  %420 = vmatprep.subr.bf16.mxu0 0
  %421 = vmatpush1.bf16.msra.mxu0 %v293
  %422 = vmatprep.subr.bf16.mxu0 0
  %423 = vmatpush1.bf16.msra.mxu0 0
  %424 = vmatprep.subr.bf16.mxu0 0
  %425 = vmatpush1.bf16.msra.mxu0 0
  %426 = vmatprep.subr.bf16.mxu0 0
  %427 = vmatpush1.bf16.msra.mxu0 0
  %428 = vmatprep.subr.bf16.mxu0 0
  %429 = vmatpush1.bf16.msra.mxu0 0
  %430 = vmatprep.subr.bf16.mxu0 0
  %431 = vmatpush1.bf16.msra.mxu0 0
  %432 = vmatprep.subr.bf16.mxu0 0
  %433 = vmatpush1.bf16.msra.mxu0 0
  %434 = vmatprep.subr.bf16.mxu0 0
  %435 = vmatpush1.bf16.msra.mxu0 0
  %436 = vmatprep.subr.bf16.mxu0 0
  %437 = vmatpush1.bf16.msra.mxu0 0
  %438 = vmatprep.subr.bf16.mxu0 0
  %439 = vmatpush1.bf16.msra.mxu0 0
  %440 = vmatprep.subr.bf16.mxu0 0
  %441 = vmatpush1.bf16.msra.mxu0 0
  %442 = vmatprep.subr.bf16.mxu0 0
  %443 = vmatpush1.bf16.msra.mxu0 0
  %444 = vmatprep.subr.bf16.mxu0 0
  %445 = vmatpush1.bf16.msra.mxu0 0
  %446 = vmatprep.mubr.bf16.mxu0 0
  %447 = vmatmul.mubr.bf16.gmra.mrb[0].mxu0 %v332
  %v448 = vpop.f32.mrb[0].mxu0
  %v449 = vadd.f32 %v409, %v448
  %v450 = vpop.f32.mrb[0].mxu0
  %v451 = vpop.f32.mrb[0].mxu0
  %v452 = vpop.f32.mrb[0].mxu0
  %453 = vdwg.mxu0
  %v454 = vmax.f32 %v449, 0.0
  %v455 = vpack.c.bf16 %v454, %v454
  %456 = vst [vmem:[%s3] sm:$0xf] %v455
  // Predicated region
  $region14: #{_lambda_.39} parent=0 // pred_check
    _
  $region15: #{_lambda_.39} parent=0 // pred_check_branch
    %458 = sbr.rel (0) target = $region17
  $region16: #{_lambda_.39} parent=0 // pred_region
    _
  $region17: #{_lambda_.39} parent=0 // pred_fallthru
    _
  // Predicated region
  $region18: #{_lambda_.39} parent=0 // pred_check
    _
  $region19: #{_lambda_.39} parent=0 // pred_check_branch
    %460 = sbr.rel (0) target = $region21
  $region20: #{_lambda_.39} parent=0 // pred_region
    _
  $region21: #{_lambda_.39} parent=0 // pred_fallthru
    _

// kernel: _lambda_.37
$region0: #{_lambda_.37}
  #allocation0 [shape = 'u32[]', space=smem, size = 0x4, offset = 0x4, fixed_abs, tag = 'smem constant byte address 0x4 - core index']
  #allocation1 [shape = 'u32[144,128]{1,0:T(1,128)}', space=vmem, size = 0x12000, scoped, tag = 'internal scratch']
  %s0 = inlined_call_operand.vmem [shape: bf16[32,576], index: 0, kind: input, shape index: {}]
  %s1 = inlined_call_operand.vmem [shape: bf16[576,64], index: 1, kind: input, shape index: {}]
  %s2 = inlined_call_operand.vmem [shape: f32[1,64], index: 2, kind: input, shape index: {}]
  %s3 = inlined_call_operand.vmem [shape: bf16[32,64], index: 3, kind: output, shape index: {}]
  %s4 = sld [smem:[#allocation0]]
  $region22: #{_lambda_.37} parent=0
    _
  %s6 = ssub.s32 1, %s4
  %s7 = scalar_select 0, %s6, %s4
  // Predicated region
  $region2: #{_lambda_.37} parent=0 // pred_check
    _
  $region3: #{_lambda_.37} parent=0 // pred_check_branch
    %9 = sbr.rel (0) target = $region5
  $region4: #{_lambda_.37} parent=0 // pred_region
    _
  $region5: #{_lambda_.37} parent=0 // pred_fallthru
    _
  // Predicated region
  $region6: #{_lambda_.37} parent=0 // pred_check
    _
  $region7: #{_lambda_.37} parent=0 // pred_check_branch
    %11 = sbr.rel (0) target = $region9
  $region8: #{_lambda_.37} parent=0 // pred_region
    _
  $region9: #{_lambda_.37} parent=0 // pred_fallthru
    _
  // Predicated region
  $region10: #{_lambda_.37} parent=0 // pred_check
    _
  $region11: #{_lambda_.37} parent=0 // pred_check_branch
    %13 = sbr.rel (0) target = $region13
  $region12: #{_lambda_.37} parent=0 // pred_region
    _
  $region13: #{_lambda_.37} parent=0 // pred_fallthru
    _
  %v15 = vld [vmem:[%s0] sm:$0xff]
  %v16 = vld [vmem:[%s0 + $0x8] sm:$0xff]
  %v17 = vld [vmem:[%s0 + $0x10] sm:$0xf]
  %v18 = vld [vmem:[%s0 + $0x14] sm:$0xff]
  %v19 = vld [vmem:[%s0 + $0x1c] sm:$0xff]
  %v20 = vld [vmem:[%s0 + $0x24] sm:$0xf]
  %v21 = vld [vmem:[%s0 + $0x28] sm:$0xff]
  %v22 = vld [vmem:[%s0 + $0x30] sm:$0xff]
  %v23 = vld [vmem:[%s0 + $0x38] sm:$0xf]
  %v24 = vld [vmem:[%s0 + $0x3c] sm:$0xff]
  %v25 = vld [vmem:[%s0 + $0x44] sm:$0xff]
  %v26 = vld [vmem:[%s0 + $0x4c] sm:$0xf]
  %v27 = vld [vmem:[%s1] sm:$0xf]
  %v28 = vld [vmem:[%s1 + $0x4] sm:$0xf]
  %v29 = vld [vmem:[%s1 + $0x8] sm:$0xf]
  %v30 = vld [vmem:[%s1 + $0xc] sm:$0xf]
  %v31 = vld [vmem:[%s1 + $0x10] sm:$0xf]
  %v32 = vld [vmem:[%s1 + $0x14] sm:$0xf]
  %v33 = vld [vmem:[%s1 + $0x18] sm:$0xf]
  %v34 = vld [vmem:[%s1 + $0x1c] sm:$0xf]
  %v35 = vld [vmem:[%s1 + $0x20] sm:$0xf]
  %v36 = vld [vmem:[%s1 + $0x24] sm:$0xf]
  %v37 = vld [vmem:[%s1 + $0x28] sm:$0xf]
  %v38 = vld [vmem:[%s1 + $0x2c] sm:$0xf]
  %v39 = vld [vmem:[%s1 + $0x30] sm:$0xf]
  %v40 = vld [vmem:[%s1 + $0x34] sm:$0xf]
  %v41 = vld [vmem:[%s1 + $0x38] sm:$0xf]
  %v42 = vld [vmem:[%s1 + $0x3c] sm:$0xf]
  %v43 = vld [vmem:[%s1 + $0x40] sm:$0xf]
  %v44 = vld [vmem:[%s1 + $0x44] sm:$0xf]
  %v45 = vld [vmem:[%s1 + $0x48] sm:$0xf]
  %v46 = vld [vmem:[%s1 + $0x4c] sm:$0xf]
  %v47 = vld [vmem:[%s1 + $0x50] sm:$0xf]
  %v48 = vld [vmem:[%s1 + $0x54] sm:$0xf]
  %v49 = vld [vmem:[%s1 + $0x58] sm:$0xf]
  %v50 = vld [vmem:[%s1 + $0x5c] sm:$0xf]
  %v51 = vld [vmem:[%s1 + $0x60] sm:$0xf]
  %v52 = vld [vmem:[%s1 + $0x64] sm:$0xf]
  %v53 = vld [vmem:[%s1 + $0x68] sm:$0xf]
  %v54 = vld [vmem:[%s1 + $0x6c] sm:$0xf]
  %v55 = vld [vmem:[%s1 + $0x70] sm:$0xf]
  %v56 = vld [vmem:[%s1 + $0x74] sm:$0xf]
  %v57 = vld [vmem:[%s1 + $0x78] sm:$0xf]
  %v58 = vld [vmem:[%s1 + $0x7c] sm:$0xf]
  %v59 = vld [vmem:[%s1 + $0x80] sm:$0xf]
  %v60 = vld [vmem:[%s1 + $0x84] sm:$0xf]
  %v61 = vld [vmem:[%s1 + $0x88] sm:$0xf]
  %v62 = vld [vmem:[%s1 + $0x8c] sm:$0xf]
  %v63 = vld [vmem:[%s1 + $0x90] sm:$0xf]
  %v64 = vld [vmem:[%s1 + $0x94] sm:$0xf]
  %v65 = vld [vmem:[%s1 + $0x98] sm:$0xf]
  %v66 = vld [vmem:[%s1 + $0x9c] sm:$0xf]
  %v67 = vld [vmem:[%s1 + $0xa0] sm:$0xf]
  %v68 = vld [vmem:[%s1 + $0xa4] sm:$0xf]
  %v69 = vld [vmem:[%s1 + $0xa8] sm:$0xf]
  %v70 = vld [vmem:[%s1 + $0xac] sm:$0xf]
  %v71 = vld [vmem:[%s1 + $0xb0] sm:$0xf]
  %v72 = vld [vmem:[%s1 + $0xb4] sm:$0xf]
  %v73 = vld [vmem:[%s1 + $0xb8] sm:$0xf]
  %v74 = vld [vmem:[%s1 + $0xbc] sm:$0xf]
  %v75 = vld [vmem:[%s1 + $0xc0] sm:$0xf]
  %v76 = vld [vmem:[%s1 + $0xc4] sm:$0xf]
  %v77 = vld [vmem:[%s1 + $0xc8] sm:$0xf]
  %v78 = vld [vmem:[%s1 + $0xcc] sm:$0xf]
  %v79 = vld [vmem:[%s1 + $0xd0] sm:$0xf]
  %v80 = vld [vmem:[%s1 + $0xd4] sm:$0xf]
  %v81 = vld [vmem:[%s1 + $0xd8] sm:$0xf]
  %v82 = vld [vmem:[%s1 + $0xdc] sm:$0xf]
  %v83 = vld [vmem:[%s1 + $0xe0] sm:$0xf]
  %v84 = vld [vmem:[%s1 + $0xe4] sm:$0xf]
  %v85 = vld [vmem:[%s1 + $0xe8] sm:$0xf]
  %v86 = vld [vmem:[%s1 + $0xec] sm:$0xf]
  %v87 = vld [vmem:[%s1 + $0xf0] sm:$0xf]
  %v88 = vld [vmem:[%s1 + $0xf4] sm:$0xf]
  %v89 = vld [vmem:[%s1 + $0xf8] sm:$0xf]
  %v90 = vld [vmem:[%s1 + $0xfc] sm:$0xf]
  %v91 = vld [vmem:[%s1 + $0x100] sm:$0xf]
  %v92 = vld [vmem:[%s1 + $0x104] sm:$0xf]
  %v93 = vld [vmem:[%s1 + $0x108] sm:$0xf]
  %v94 = vld [vmem:[%s1 + $0x10c] sm:$0xf]
  %v95 = vld [vmem:[%s1 + $0x110] sm:$0xf]
  %v96 = vld [vmem:[%s1 + $0x114] sm:$0xf]
  %v97 = vld [vmem:[%s1 + $0x118] sm:$0xf]
  %v98 = vld [vmem:[%s1 + $0x11c] sm:$0xf]
  %v99 = vld [vmem:[%s2] sm:$0x1]
  %v101 = vlaneseq
  %v102 = vshrl.u32 %v101, 7
  %v103 = vsub.s32 0, %v102
  %v104 = vrot.slane %v99, %v103
  %v118 = vunpack.c.l.b16 %v15
  %v119 = vunpack.c.h.b16 %v15
  %v120 = vunpack.c.l.b16 %v16
  %v121 = vunpack.c.h.b16 %v16
  %v122 = vunpack.c.l.b16 %v17
  %v123 = vunpack.c.l.b16 %v18
  %v124 = vunpack.c.h.b16 %v18
  %v125 = vunpack.c.l.b16 %v19
  %v126 = vunpack.c.h.b16 %v19
  %v127 = vunpack.c.l.b16 %v20
  %v128 = vunpack.c.l.b16 %v21
  %v129 = vunpack.c.h.b16 %v21
  %v130 = vunpack.c.l.b16 %v22
  %v131 = vunpack.c.h.b16 %v22
  %v132 = vunpack.c.l.b16 %v23
  %v133 = vunpack.c.l.b16 %v24
  %v134 = vunpack.c.h.b16 %v24
  %v135 = vunpack.c.l.b16 %v25
  %v136 = vunpack.c.h.b16 %v25
  %v137 = vunpack.c.l.b16 %v26
  %v138 = vpack.c.b16 %v123, %v118
  %v139 = vpack.c.b16 %v124, %v119
  %v140 = vpack.c.b16 %v125, %v120
  %v141 = vpack.c.b16 %v126, %v121
  %v142 = vpack.c.b16 %v127, %v122
  %v143 = vpack.c.b16 %v133, %v128
  %v144 = vpack.c.b16 %v134, %v129
  %v145 = vpack.c.b16 %v135, %v130
  %v146 = vpack.c.b16 %v136, %v131
  %v147 = vpack.c.b16 %v137, %v132
  %v228 = vunpack.c.l.b16 %v27
  %v229 = vunpack.c.l.b16 %v28
  %v230 = vunpack.c.l.b16 %v29
  %v231 = vunpack.c.l.b16 %v30
  %v232 = vunpack.c.l.b16 %v31
  %v233 = vunpack.c.l.b16 %v32
  %v234 = vunpack.c.l.b16 %v33
  %v235 = vunpack.c.l.b16 %v34
  %v236 = vunpack.c.l.b16 %v35
  %v237 = vunpack.c.l.b16 %v36
  %v238 = vunpack.c.l.b16 %v37
  %v239 = vunpack.c.l.b16 %v38
  %v240 = vunpack.c.l.b16 %v39
  %v241 = vunpack.c.l.b16 %v40
  %v242 = vunpack.c.l.b16 %v41
  %v243 = vunpack.c.l.b16 %v42
  %v244 = vunpack.c.l.b16 %v43
  %v245 = vunpack.c.l.b16 %v44
  %v246 = vunpack.c.l.b16 %v45
  %v247 = vunpack.c.l.b16 %v46
  %v248 = vunpack.c.l.b16 %v47
  %v249 = vunpack.c.l.b16 %v48
  %v250 = vunpack.c.l.b16 %v49
  %v251 = vunpack.c.l.b16 %v50
  %v252 = vunpack.c.l.b16 %v51
  %v253 = vunpack.c.l.b16 %v52
  %v254 = vunpack.c.l.b16 %v53
  %v255 = vunpack.c.l.b16 %v54
  %v256 = vunpack.c.l.b16 %v55
  %v257 = vunpack.c.l.b16 %v56
  %v258 = vunpack.c.l.b16 %v57
  %v259 = vunpack.c.l.b16 %v58
  %v260 = vunpack.c.l.b16 %v59
  %v261 = vunpack.c.l.b16 %v60
  %v262 = vunpack.c.l.b16 %v61
  %v263 = vunpack.c.l.b16 %v62
  %v264 = vunpack.c.l.b16 %v63
  %v265 = vunpack.c.l.b16 %v64
  %v266 = vunpack.c.l.b16 %v65
  %v267 = vunpack.c.l.b16 %v66
  %v268 = vunpack.c.l.b16 %v67
  %v269 = vunpack.c.l.b16 %v68
  %v270 = vunpack.c.l.b16 %v69
  %v271 = vunpack.c.l.b16 %v70
  %v272 = vunpack.c.l.b16 %v71
  %v273 = vunpack.c.l.b16 %v72
  %v274 = vunpack.c.l.b16 %v73
  %v275 = vunpack.c.l.b16 %v74
  %v276 = vunpack.c.l.b16 %v75
  %v277 = vunpack.c.l.b16 %v76
  %v278 = vunpack.c.l.b16 %v77
  %v279 = vunpack.c.l.b16 %v78
  %v280 = vunpack.c.l.b16 %v79
  %v281 = vunpack.c.l.b16 %v80
  %v282 = vunpack.c.l.b16 %v81
  %v283 = vunpack.c.l.b16 %v82
  %v284 = vunpack.c.l.b16 %v83
  %v285 = vunpack.c.l.b16 %v84
  %v286 = vunpack.c.l.b16 %v85
  %v287 = vunpack.c.l.b16 %v86
  %v288 = vunpack.c.l.b16 %v87
  %v289 = vunpack.c.l.b16 %v88
  %v290 = vunpack.c.l.b16 %v89
  %v291 = vunpack.c.l.b16 %v90
  %v292 = vunpack.c.l.b16 %v91
  %v293 = vunpack.c.l.b16 %v92
  %v294 = vunpack.c.l.b16 %v93
  %v295 = vunpack.c.l.b16 %v94
  %v296 = vunpack.c.l.b16 %v95
  %v297 = vunpack.c.l.b16 %v96
  %v298 = vunpack.c.l.b16 %v97
  %v299 = vunpack.c.l.b16 %v98
  %v300 = vpack.c.b16 %v229, %v228
  %v301 = vpack.c.b16 %v231, %v230
  %v302 = vpack.c.b16 %v233, %v232
  %v303 = vpack.c.b16 %v235, %v234
  %v304 = vpack.c.b16 %v237, %v236
  %v305 = vpack.c.b16 %v239, %v238
  %v306 = vpack.c.b16 %v241, %v240
  %v307 = vpack.c.b16 %v243, %v242
  %v308 = vpack.c.b16 %v245, %v244
  %v309 = vpack.c.b16 %v247, %v246
  %v310 = vpack.c.b16 %v249, %v248
  %v311 = vpack.c.b16 %v251, %v250
  %v312 = vpack.c.b16 %v253, %v252
  %v313 = vpack.c.b16 %v255, %v254
  %v314 = vpack.c.b16 %v257, %v256
  %v315 = vpack.c.b16 %v259, %v258
  %v316 = vpack.c.b16 %v261, %v260
  %v317 = vpack.c.b16 %v263, %v262
  %v318 = vpack.c.b16 %v265, %v264
  %v319 = vpack.c.b16 %v267, %v266
  %v320 = vpack.c.b16 %v269, %v268
  %v321 = vpack.c.b16 %v271, %v270
  %v322 = vpack.c.b16 %v273, %v272
  %v323 = vpack.c.b16 %v275, %v274
  %v324 = vpack.c.b16 %v277, %v276
  %v325 = vpack.c.b16 %v279, %v278
  %v326 = vpack.c.b16 %v281, %v280
  %v327 = vpack.c.b16 %v283, %v282
  %v328 = vpack.c.b16 %v285, %v284
  %v329 = vpack.c.b16 %v287, %v286
  %v330 = vpack.c.b16 %v289, %v288
  %v331 = vpack.c.b16 %v291, %v290
  %v332 = vpack.c.b16 %v293, %v292
  %v333 = vpack.c.b16 %v295, %v294
  %v334 = vpack.c.b16 %v297, %v296
  %v335 = vpack.c.b16 %v299, %v298
  %vm372 = vcmask 523264
  %v374 = vsel %vm372, %v142, 0
  %v377 = vsel %vm372, %v147, 0
  %379 = vmatprep.subr.bf16.mxu0 0
  %380 = vmatpush1.bf16.msra.mxu0 %v300
  %381 = vmatprep.subr.bf16.mxu0 0
  %382 = vmatpush1.bf16.msra.mxu0 %v301
  %383 = vmatprep.subr.bf16.mxu0 0
  %384 = vmatpush1.bf16.msra.mxu0 %v302
  %385 = vmatprep.subr.bf16.mxu0 0
  %386 = vmatpush1.bf16.msra.mxu0 %v303
  %387 = vmatprep.subr.bf16.mxu0 0
  %388 = vmatpush1.bf16.msra.mxu0 %v304
  %389 = vmatprep.subr.bf16.mxu0 0
  %390 = vmatpush1.bf16.msra.mxu0 %v305
  %391 = vmatprep.subr.bf16.mxu0 0
  %392 = vmatpush1.bf16.msra.mxu0 %v306
  %393 = vmatprep.subr.bf16.mxu0 0
  %394 = vmatpush1.bf16.msra.mxu0 %v307
  %395 = vmatprep.subr.bf16.mxu0 0
  %396 = vmatpush1.bf16.msra.mxu0 %v308
  %397 = vmatprep.subr.bf16.mxu0 0
  %398 = vmatpush1.bf16.msra.mxu0 %v309
  %399 = vmatprep.subr.bf16.mxu0 0
  %400 = vmatpush1.bf16.msra.mxu0 %v310
  %401 = vmatprep.subr.bf16.mxu0 0
  %402 = vmatpush1.bf16.msra.mxu0 %v311
  %403 = vmatprep.subr.bf16.mxu0 0
  %404 = vmatpush1.bf16.msra.mxu0 %v312
  %405 = vmatprep.subr.bf16.mxu0 0
  %406 = vmatpush1.bf16.msra.mxu0 %v313
  %407 = vmatprep.subr.bf16.mxu0 0
  %408 = vmatpush1.bf16.msra.mxu0 %v314
  %409 = vmatprep.subr.bf16.mxu0 0
  %410 = vmatpush1.bf16.msra.mxu0 %v315
  %411 = vmatprep.mubr.bf16.mxu0 %v139
  %412 = vmatmul.mubr.bf16.gmra.mrb[0].mxu0 %v138
  %v413 = vpop.f32.mrb[0].mxu0
  %v414 = vadd.f32 %v104, %v413
  %v415 = vpop.f32.mrb[0].mxu0
  %v416 = vpop.f32.mrb[0].mxu0
  %v417 = vadd.f32 %v104, %v416
  %v418 = vpop.f32.mrb[0].mxu0
  %419 = vmatprep.mubr.bf16.mxu0 %v144
  %420 = vmatmul.mubr.bf16.gmra.mrb[0].mxu0 %v143
  %v421 = vpop.f32.mrb[0].mxu0
  %v422 = vadd.f32 %v104, %v421
  %v423 = vpop.f32.mrb[0].mxu0
  %v424 = vpop.f32.mrb[0].mxu0
  %v425 = vadd.f32 %v104, %v424
  %v426 = vpop.f32.mrb[0].mxu0
  %427 = vdwg.mxu0
  %428 = vmatprep.subr.bf16.mxu0 0
  %429 = vmatpush1.bf16.msra.mxu0 %v316
  %430 = vmatprep.subr.bf16.mxu0 0
  %431 = vmatpush1.bf16.msra.mxu0 %v317
  %432 = vmatprep.subr.bf16.mxu0 0
  %433 = vmatpush1.bf16.msra.mxu0 %v318
  %434 = vmatprep.subr.bf16.mxu0 0
  %435 = vmatpush1.bf16.msra.mxu0 %v319
  %436 = vmatprep.subr.bf16.mxu0 0
  %437 = vmatpush1.bf16.msra.mxu0 %v320
  %438 = vmatprep.subr.bf16.mxu0 0
  %439 = vmatpush1.bf16.msra.mxu0 %v321
  %440 = vmatprep.subr.bf16.mxu0 0
  %441 = vmatpush1.bf16.msra.mxu0 %v322
  %442 = vmatprep.subr.bf16.mxu0 0
  %443 = vmatpush1.bf16.msra.mxu0 %v323
  %444 = vmatprep.subr.bf16.mxu0 0
  %445 = vmatpush1.bf16.msra.mxu0 %v324
  %446 = vmatprep.subr.bf16.mxu0 0
  %447 = vmatpush1.bf16.msra.mxu0 %v325
  %448 = vmatprep.subr.bf16.mxu0 0
  %449 = vmatpush1.bf16.msra.mxu0 %v326
  %450 = vmatprep.subr.bf16.mxu0 0
  %451 = vmatpush1.bf16.msra.mxu0 %v327
  %452 = vmatprep.subr.bf16.mxu0 0
  %453 = vmatpush1.bf16.msra.mxu0 %v328
  %454 = vmatprep.subr.bf16.mxu0 0
  %455 = vmatpush1.bf16.msra.mxu0 %v329
  %456 = vmatprep.subr.bf16.mxu0 0
  %457 = vmatpush1.bf16.msra.mxu0 %v330
  %458 = vmatprep.subr.bf16.mxu0 0
  %459 = vmatpush1.bf16.msra.mxu0 %v331
  %460 = vmatprep.mubr.bf16.mxu0 %v141
  %461 = vmatmul.mubr.bf16.gmra.mrb[0].mxu0 %v140
  %v462 = vpop.f32.mrb[0].mxu0
  %v463 = vadd.f32 %v414, %v462
  %v464 = vpop.f32.mrb[0].mxu0
  %v465 = vpop.f32.mrb[0].mxu0
  %v466 = vadd.f32 %v417, %v465
  %v467 = vpop.f32.mrb[0].mxu0
  %468 = vmatprep.mubr.bf16.mxu0 %v146
  %469 = vmatmul.mubr.bf16.gmra.mrb[0].mxu0 %v145
  %v470 = vpop.f32.mrb[0].mxu0
  %v471 = vadd.f32 %v422, %v470
  %v472 = vpop.f32.mrb[0].mxu0
  %v473 = vpop.f32.mrb[0].mxu0
  %v474 = vadd.f32 %v425, %v473
  %v475 = vpop.f32.mrb[0].mxu0
  %476 = vdwg.mxu0
  %477 = vmatprep.subr.bf16.mxu0 0
  %478 = vmatpush1.bf16.msra.mxu0 %v332
  %479 = vmatprep.subr.bf16.mxu0 0
  %480 = vmatpush1.bf16.msra.mxu0 %v333
  %481 = vmatprep.subr.bf16.mxu0 0
  %482 = vmatpush1.bf16.msra.mxu0 %v334
  %483 = vmatprep.subr.bf16.mxu0 0
  %484 = vmatpush1.bf16.msra.mxu0 %v335
  %485 = vmatprep.subr.bf16.mxu0 0
  %486 = vmatpush1.bf16.msra.mxu0 0
  %487 = vmatprep.subr.bf16.mxu0 0
  %488 = vmatpush1.bf16.msra.mxu0 0
  %489 = vmatprep.subr.bf16.mxu0 0
  %490 = vmatpush1.bf16.msra.mxu0 0
  %491 = vmatprep.subr.bf16.mxu0 0
  %492 = vmatpush1.bf16.msra.mxu0 0
  %493 = vmatprep.subr.bf16.mxu0 0
  %494 = vmatpush1.bf16.msra.mxu0 0
  %495 = vmatprep.subr.bf16.mxu0 0
  %496 = vmatpush1.bf16.msra.mxu0 0
  %497 = vmatprep.subr.bf16.mxu0 0
  %498 = vmatpush1.bf16.msra.mxu0 0
  %499 = vmatprep.subr.bf16.mxu0 0
  %500 = vmatpush1.bf16.msra.mxu0 0
  %501 = vmatprep.subr.bf16.mxu0 0
  %502 = vmatpush1.bf16.msra.mxu0 0
  %503 = vmatprep.subr.bf16.mxu0 0
  %504 = vmatpush1.bf16.msra.mxu0 0
  %505 = vmatprep.subr.bf16.mxu0 0
  %506 = vmatpush1.bf16.msra.mxu0 0
  %507 = vmatprep.subr.bf16.mxu0 0
  %508 = vmatpush1.bf16.msra.mxu0 0
  %509 = vmatprep.mubr.bf16.mxu0 0
  %510 = vmatmul.mubr.bf16.gmra.mrb[0].mxu0 %v374
  %v511 = vpop.f32.mrb[0].mxu0
  %v512 = vadd.f32 %v463, %v511
  %v513 = vpop.f32.mrb[0].mxu0
  %v514 = vpop.f32.mrb[0].mxu0
  %v515 = vadd.f32 %v466, %v514
  %v516 = vpop.f32.mrb[0].mxu0
  %517 = vmatprep.mubr.bf16.mxu0 0
  %518 = vmatmul.mubr.bf16.gmra.mrb[0].mxu0 %v377
  %v519 = vpop.f32.mrb[0].mxu0
  %v520 = vadd.f32 %v471, %v519
  %v521 = vpop.f32.mrb[0].mxu0
  %v522 = vpop.f32.mrb[0].mxu0
  %v523 = vadd.f32 %v474, %v522
  %v524 = vpop.f32.mrb[0].mxu0
  %525 = vdwg.mxu0
  %v526 = vmax.f32 %v512, 0.0
  %v527 = vmax.f32 %v515, 0.0
  %v528 = vmax.f32 %v520, 0.0
  %v529 = vmax.f32 %v523, 0.0
  %v530 = vpack.c.bf16 %v527, %v526
  %v531 = vpack.c.bf16 %v529, %v528
  %v534 = vunpack.c.l.b16 %v530
  %v535 = vunpack.c.h.b16 %v530
  %v536 = vunpack.c.l.b16 %v531
  %v537 = vunpack.c.h.b16 %v531
  %v538 = vpack.c.b16 %v534, %v534
  %v539 = vpack.c.b16 %v535, %v535
  %v540 = vpack.c.b16 %v536, %v536
  %v541 = vpack.c.b16 %v537, %v537
  %vm546 = vcmask 519168
  %547 = vst.msk [vmem:[%s3] sm:$0xf] %vm546, %v538
  %548 = vst.msk [vmem:[%s3 + $0x4] sm:$0xf] %vm546, %v539
  %549 = vst.msk [vmem:[%s3 + $0x8] sm:$0xf] %vm546, %v540
  %550 = vst.msk [vmem:[%s3 + $0xc] sm:$0xf] %vm546, %v541
  // Predicated region
  $region14: #{_lambda_.37} parent=0 // pred_check
    _
  $region15: #{_lambda_.37} parent=0 // pred_check_branch
    %552 = sbr.rel (0) target = $region17
  $region16: #{_lambda_.37} parent=0 // pred_region
    _
  $region17: #{_lambda_.37} parent=0 // pred_fallthru
    _
  // Predicated region
  $region18: #{_lambda_.37} parent=0 // pred_check
    _
  $region19: #{_lambda_.37} parent=0 // pred_check_branch
    %554 = sbr.rel (0) target = $region21
  $region20: #{_lambda_.37} parent=0 // pred_region
    _
  $region21: #{_lambda_.37} parent=0 // pred_fallthru
    _

// kernel: _lambda_.40
$region0: #{_lambda_.40}
  #allocation0 [shape = 'u32[]', space=smem, size = 0x4, offset = 0x4, fixed_abs, tag = 'smem constant byte address 0x4 - core index']
  #allocation1 [shape = 'u32[144,128]{1,0:T(1,128)}', space=vmem, size = 0x12000, scoped, tag = 'internal scratch']
  %s0 = inlined_call_operand.vmem [shape: bf16[8,64], index: 0, kind: input, shape index: {}]
  %s1 = inlined_call_operand.vmem [shape: bf16[64,128], index: 1, kind: input, shape index: {}]
  %s2 = inlined_call_operand.vmem [shape: f32[1,128], index: 2, kind: input, shape index: {}]
  %s3 = inlined_call_operand.vmem [shape: bf16[8,128], index: 3, kind: output, shape index: {}]
  %s4 = sld [smem:[#allocation0]]
  $region22: #{_lambda_.40} parent=0
    _
  %s6 = ssub.s32 1, %s4
  %s7 = scalar_select 0, %s6, %s4
  // Predicated region
  $region2: #{_lambda_.40} parent=0 // pred_check
    _
  $region3: #{_lambda_.40} parent=0 // pred_check_branch
    %9 = sbr.rel (0) target = $region5
  $region4: #{_lambda_.40} parent=0 // pred_region
    _
  $region5: #{_lambda_.40} parent=0 // pred_fallthru
    _
  // Predicated region
  $region6: #{_lambda_.40} parent=0 // pred_check
    _
  $region7: #{_lambda_.40} parent=0 // pred_check_branch
    %11 = sbr.rel (0) target = $region9
  $region8: #{_lambda_.40} parent=0 // pred_region
    _
  $region9: #{_lambda_.40} parent=0 // pred_fallthru
    _
  // Predicated region
  $region10: #{_lambda_.40} parent=0 // pred_check
    _
  $region11: #{_lambda_.40} parent=0 // pred_check_branch
    %13 = sbr.rel (0) target = $region13
  $region12: #{_lambda_.40} parent=0 // pred_region
    _
  $region13: #{_lambda_.40} parent=0 // pred_fallthru
    _
  %v15 = vld [vmem:[%s0] sm:$0xf]
  %v16 = vld [vmem:[%s1] sm:$0xf]
  %v17 = vld [vmem:[%s1 + $0x4] sm:$0xf]
  %v18 = vld [vmem:[%s1 + $0x8] sm:$0xf]
  %v19 = vld [vmem:[%s1 + $0xc] sm:$0xf]
  %v20 = vld [vmem:[%s1 + $0x10] sm:$0xf]
  %v21 = vld [vmem:[%s1 + $0x14] sm:$0xf]
  %v22 = vld [vmem:[%s1 + $0x18] sm:$0xf]
  %v23 = vld [vmem:[%s1 + $0x1c] sm:$0xf]
  %v24 = vld [vmem:[%s2] sm:$0x1]
  %v26 = vlaneseq
  %v27 = vshrl.u32 %v26, 7
  %v28 = vsub.s32 0, %v27
  %v29 = vrot.slane %v24, %v28
  %v39 = vunpack.c.l.b16 %v16
  %v40 = vunpack.c.l.b16 %v17
  %v41 = vunpack.c.l.b16 %v18
  %v42 = vunpack.c.l.b16 %v19
  %v43 = vunpack.c.l.b16 %v20
  %v44 = vunpack.c.l.b16 %v21
  %v45 = vunpack.c.l.b16 %v22
  %v46 = vunpack.c.l.b16 %v23
  %v47 = vpack.c.b16 %v40, %v39
  %v48 = vpack.c.b16 %v42, %v41
  %v49 = vpack.c.b16 %v44, %v43
  %v50 = vpack.c.b16 %v46, %v45
  %vm55 = vcmask 523264
  %v57 = vsel %vm55, %v15, 0
  %59 = vmatprep.subr.bf16.mxu0 0
  %60 = vmatpush1.bf16.msra.mxu0 %v47
  %61 = vmatprep.subr.bf16.mxu0 0
  %62 = vmatpush1.bf16.msra.mxu0 %v48
  %63 = vmatprep.subr.bf16.mxu0 0
  %64 = vmatpush1.bf16.msra.mxu0 %v49
  %65 = vmatprep.subr.bf16.mxu0 0
  %66 = vmatpush1.bf16.msra.mxu0 %v50
  %67 = vmatprep.subr.bf16.mxu0 0
  %68 = vmatpush1.bf16.msra.mxu0 0
  %69 = vmatprep.subr.bf16.mxu0 0
  %70 = vmatpush1.bf16.msra.mxu0 0
  %71 = vmatprep.subr.bf16.mxu0 0
  %72 = vmatpush1.bf16.msra.mxu0 0
  %73 = vmatprep.subr.bf16.mxu0 0
  %74 = vmatpush1.bf16.msra.mxu0 0
  %75 = vmatprep.subr.bf16.mxu0 0
  %76 = vmatpush1.bf16.msra.mxu0 0
  %77 = vmatprep.subr.bf16.mxu0 0
  %78 = vmatpush1.bf16.msra.mxu0 0
  %79 = vmatprep.subr.bf16.mxu0 0
  %80 = vmatpush1.bf16.msra.mxu0 0
  %81 = vmatprep.subr.bf16.mxu0 0
  %82 = vmatpush1.bf16.msra.mxu0 0
  %83 = vmatprep.subr.bf16.mxu0 0
  %84 = vmatpush1.bf16.msra.mxu0 0
  %85 = vmatprep.subr.bf16.mxu0 0
  %86 = vmatpush1.bf16.msra.mxu0 0
  %87 = vmatprep.subr.bf16.mxu0 0
  %88 = vmatpush1.bf16.msra.mxu0 0
  %89 = vmatprep.subr.bf16.mxu0 0
  %90 = vmatpush1.bf16.msra.mxu0 0
  %91 = vmatprep.mubr.bf16.mxu0 0
  %92 = vmatmul.mubr.bf16.gmra.mrb[0].mxu0 %v57
  %v93 = vpop.f32.mrb[0].mxu0
  %v94 = vadd.f32 %v29, %v93
  %v95 = vpop.f32.mrb[0].mxu0
  %v96 = vpop.f32.mrb[0].mxu0
  %v97 = vpop.f32.mrb[0].mxu0
  %98 = vdwg.mxu0
  %v99 = vpack.c.bf16 %v94, %v94
  %100 = vst [vmem:[%s3] sm:$0xf] %v99
  // Predicated region
  $region14: #{_lambda_.40} parent=0 // pred_check
    _
  $region15: #{_lambda_.40} parent=0 // pred_check_branch
    %102 = sbr.rel (0) target = $region17
  $region16: #{_lambda_.40} parent=0 // pred_region
    _
  $region17: #{_lambda_.40} parent=0 // pred_fallthru
    _
  // Predicated region
  $region18: #{_lambda_.40} parent=0 // pred_check
    _
  $region19: #{_lambda_.40} parent=0 // pred_check_branch
    %104 = sbr.rel (0) target = $region21
  $region20: #{_lambda_.40} parent=0 // pred_region
    _
  $region21: #{_lambda_.40} parent=0 // pred_fallthru
    _

// kernel: _lambda_.44
$region0: #{_lambda_.44}
  #allocation0 [shape = 'u32[]', space=smem, size = 0x4, offset = 0x4, fixed_abs, tag = 'smem constant byte address 0x4 - core index']
  #allocation1 [shape = 'u32[144,128]{1,0:T(1,128)}', space=vmem, size = 0x12000, scoped, tag = 'internal scratch']
  %s0 = inlined_call_operand.vmem [shape: bf16[8,128], index: 0, kind: input, shape index: {}]
  %s1 = inlined_call_operand.vmem [shape: bf16[128,256], index: 1, kind: input, shape index: {}]
  %s2 = inlined_call_operand.vmem [shape: f32[1,256], index: 2, kind: input, shape index: {}]
  %s3 = inlined_call_operand.vmem [shape: f32[8,256], index: 3, kind: output, shape index: {}]
  %s4 = sld [smem:[#allocation0]]
  $region22: #{_lambda_.44} parent=0
    _
  %s6 = ssub.s32 1, %s4
  %s7 = scalar_select 0, %s6, %s4
  // Predicated region
  $region2: #{_lambda_.44} parent=0 // pred_check
    _
  $region3: #{_lambda_.44} parent=0 // pred_check_branch
    %9 = sbr.rel (0) target = $region5
  $region4: #{_lambda_.44} parent=0 // pred_region
    _
  $region5: #{_lambda_.44} parent=0 // pred_fallthru
    _
  // Predicated region
  $region6: #{_lambda_.44} parent=0 // pred_check
    _
  $region7: #{_lambda_.44} parent=0 // pred_check_branch
    %11 = sbr.rel (0) target = $region9
  $region8: #{_lambda_.44} parent=0 // pred_region
    _
  $region9: #{_lambda_.44} parent=0 // pred_fallthru
    _
  // Predicated region
  $region10: #{_lambda_.44} parent=0 // pred_check
    _
  $region11: #{_lambda_.44} parent=0 // pred_check_branch
    %13 = sbr.rel (0) target = $region13
  $region12: #{_lambda_.44} parent=0 // pred_region
    _
  $region13: #{_lambda_.44} parent=0 // pred_fallthru
    _
  %v15 = vld [vmem:[%s0] sm:$0xf]
  %v16 = vld [vmem:[%s1] sm:$0xff]
  %v17 = vld [vmem:[%s1 + $0x8] sm:$0xff]
  %v18 = vld [vmem:[%s1 + $0x10] sm:$0xff]
  %v19 = vld [vmem:[%s1 + $0x18] sm:$0xff]
  %v20 = vld [vmem:[%s1 + $0x20] sm:$0xff]
  %v21 = vld [vmem:[%s1 + $0x28] sm:$0xff]
  %v22 = vld [vmem:[%s1 + $0x30] sm:$0xff]
  %v23 = vld [vmem:[%s1 + $0x38] sm:$0xff]
  %v24 = vld [vmem:[%s1 + $0x40] sm:$0xff]
  %v25 = vld [vmem:[%s1 + $0x48] sm:$0xff]
  %v26 = vld [vmem:[%s1 + $0x50] sm:$0xff]
  %v27 = vld [vmem:[%s1 + $0x58] sm:$0xff]
  %v28 = vld [vmem:[%s1 + $0x60] sm:$0xff]
  %v29 = vld [vmem:[%s1 + $0x68] sm:$0xff]
  %v30 = vld [vmem:[%s1 + $0x70] sm:$0xff]
  %v31 = vld [vmem:[%s1 + $0x78] sm:$0xff]
  %v32 = vld [vmem:[%s2] sm:$0x3]
  %v34 = vlaneseq
  %v35 = vshrl.u32 %v34, 7
  %v36 = vsub.s32 0, %v35
  %v37 = vrot.slane %v32, %v36
  %v38 = vlaneseq
  %v39 = vshrl.u32 %v38, 7
  %v40 = vsub.s32 1, %v39
  %v41 = vrot.slane %v32, %v40
  %v60 = vunpack.c.l.b16 %v16
  %v61 = vunpack.c.h.b16 %v16
  %v62 = vunpack.c.l.b16 %v17
  %v63 = vunpack.c.h.b16 %v17
  %v64 = vunpack.c.l.b16 %v18
  %v65 = vunpack.c.h.b16 %v18
  %v66 = vunpack.c.l.b16 %v19
  %v67 = vunpack.c.h.b16 %v19
  %v68 = vunpack.c.l.b16 %v20
  %v69 = vunpack.c.h.b16 %v20
  %v70 = vunpack.c.l.b16 %v21
  %v71 = vunpack.c.h.b16 %v21
  %v72 = vunpack.c.l.b16 %v22
  %v73 = vunpack.c.h.b16 %v22
  %v74 = vunpack.c.l.b16 %v23
  %v75 = vunpack.c.h.b16 %v23
  %v76 = vunpack.c.l.b16 %v24
  %v77 = vunpack.c.h.b16 %v24
  %v78 = vunpack.c.l.b16 %v25
  %v79 = vunpack.c.h.b16 %v25
  %v80 = vunpack.c.l.b16 %v26
  %v81 = vunpack.c.h.b16 %v26
  %v82 = vunpack.c.l.b16 %v27
  %v83 = vunpack.c.h.b16 %v27
  %v84 = vunpack.c.l.b16 %v28
  %v85 = vunpack.c.h.b16 %v28
  %v86 = vunpack.c.l.b16 %v29
  %v87 = vunpack.c.h.b16 %v29
  %v88 = vunpack.c.l.b16 %v30
  %v89 = vunpack.c.h.b16 %v30
  %v90 = vunpack.c.l.b16 %v31
  %v91 = vunpack.c.h.b16 %v31
  %v92 = vpack.c.b16 %v62, %v60
  %v93 = vpack.c.b16 %v63, %v61
  %v94 = vpack.c.b16 %v66, %v64
  %v95 = vpack.c.b16 %v67, %v65
  %v96 = vpack.c.b16 %v70, %v68
  %v97 = vpack.c.b16 %v71, %v69
  %v98 = vpack.c.b16 %v74, %v72
  %v99 = vpack.c.b16 %v75, %v73
  %v100 = vpack.c.b16 %v78, %v76
  %v101 = vpack.c.b16 %v79, %v77
  %v102 = vpack.c.b16 %v82, %v80
  %v103 = vpack.c.b16 %v83, %v81
  %v104 = vpack.c.b16 %v86, %v84
  %v105 = vpack.c.b16 %v87, %v85
  %v106 = vpack.c.b16 %v90, %v88
  %v107 = vpack.c.b16 %v91, %v89
  %124 = vmatprep.subr.bf16.mxu0 %v93
  %125 = vmatpush1.bf16.msra.mxu0 %v92
  %126 = vmatprep.subr.bf16.mxu0 %v95
  %127 = vmatpush1.bf16.msra.mxu0 %v94
  %128 = vmatprep.subr.bf16.mxu0 %v97
  %129 = vmatpush1.bf16.msra.mxu0 %v96
  %130 = vmatprep.subr.bf16.mxu0 %v99
  %131 = vmatpush1.bf16.msra.mxu0 %v98
  %132 = vmatprep.subr.bf16.mxu0 %v101
  %133 = vmatpush1.bf16.msra.mxu0 %v100
  %134 = vmatprep.subr.bf16.mxu0 %v103
  %135 = vmatpush1.bf16.msra.mxu0 %v102
  %136 = vmatprep.subr.bf16.mxu0 %v105
  %137 = vmatpush1.bf16.msra.mxu0 %v104
  %138 = vmatprep.subr.bf16.mxu0 %v107
  %139 = vmatpush1.bf16.msra.mxu0 %v106
  %140 = vmatprep.subr.bf16.mxu0 0
  %141 = vmatpush1.bf16.msra.mxu0 0
  %142 = vmatprep.subr.bf16.mxu0 0
  %143 = vmatpush1.bf16.msra.mxu0 0
  %144 = vmatprep.subr.bf16.mxu0 0
  %145 = vmatpush1.bf16.msra.mxu0 0
  %146 = vmatprep.subr.bf16.mxu0 0
  %147 = vmatpush1.bf16.msra.mxu0 0
  %148 = vmatprep.subr.bf16.mxu0 0
  %149 = vmatpush1.bf16.msra.mxu0 0
  %150 = vmatprep.subr.bf16.mxu0 0
  %151 = vmatpush1.bf16.msra.mxu0 0
  %152 = vmatprep.subr.bf16.mxu0 0
  %153 = vmatpush1.bf16.msra.mxu0 0
  %154 = vmatprep.subr.bf16.mxu0 0
  %155 = vmatpush1.bf16.msra.mxu0 0
  %156 = vmatprep.mubr.bf16.mxu0 0
  %157 = vmatmul.mubr.bf16.gmra.mrb[0].mxu0 %v15
  %v158 = vpop.f32.mrb[0].mxu0
  %v159 = vadd.f32 %v37, %v158
  %v160 = vpop.f32.mrb[0].mxu0
  %v161 = vadd.f32 %v41, %v160
  %v162 = vpop.f32.mrb[0].mxu0
  %v163 = vpop.f32.mrb[0].mxu0
  %164 = vdwg.mxu0
  %165 = vst [vmem:[%s3] sm:$0xff] %v159
  %166 = vst [vmem:[%s3 + $0x8] sm:$0xff] %v161
  // Predicated region
  $region14: #{_lambda_.44} parent=0 // pred_check
    _
  $region15: #{_lambda_.44} parent=0 // pred_check_branch
    %168 = sbr.rel (0) target = $region17
  $region16: #{_lambda_.44} parent=0 // pred_region
    _
  $region17: #{_lambda_.44} parent=0 // pred_fallthru
    _
  // Predicated region
  $region18: #{_lambda_.44} parent=0 // pred_check
    _
  $region19: #{_lambda_.44} parent=0 // pred_check_branch
    %170 = sbr.rel (0) target = $region21
  $region20: #{_lambda_.44} parent=0 // pred_region
    _
  $region21: #{_lambda_.44} parent=0 // pred_fallthru
    _

// kernel: _lambda_.41
$region0: #{_lambda_.41}
  #allocation0 [shape = 'u32[]', space=smem, size = 0x4, offset = 0x4, fixed_abs, tag = 'smem constant byte address 0x4 - core index']
  #allocation1 [shape = 'u32[144,128]{1,0:T(1,128)}', space=vmem, size = 0x12000, scoped, tag = 'internal scratch']
  %s0 = inlined_call_operand.vmem [shape: bf16[8,1152], index: 0, kind: input, shape index: {}]
  %s1 = inlined_call_operand.vmem [shape: bf16[1152,128], index: 1, kind: input, shape index: {}]
  %s2 = inlined_call_operand.vmem [shape: f32[1,128], index: 2, kind: input, shape index: {}]
  %s3 = inlined_call_operand.vmem [shape: bf16[8,128], index: 3, kind: input, shape index: {}]
  %s4 = inlined_call_operand.vmem [shape: bf16[8,128], index: 4, kind: output, shape index: {}]
  %s5 = sld [smem:[#allocation0]]
  $region26: #{_lambda_.41} parent=0
    _
  %s7 = ssub.s32 1, %s5
  %s8 = scalar_select 0, %s7, %s5
  // Predicated region
  $region2: #{_lambda_.41} parent=0 // pred_check
    _
  $region3: #{_lambda_.41} parent=0 // pred_check_branch
    %10 = sbr.rel (0) target = $region5
  $region4: #{_lambda_.41} parent=0 // pred_region
    _
  $region5: #{_lambda_.41} parent=0 // pred_fallthru
    _
  // Predicated region
  $region6: #{_lambda_.41} parent=0 // pred_check
    _
  $region7: #{_lambda_.41} parent=0 // pred_check_branch
    %12 = sbr.rel (0) target = $region9
  $region8: #{_lambda_.41} parent=0 // pred_region
    _
  $region9: #{_lambda_.41} parent=0 // pred_fallthru
    _
  // Predicated region
  $region10: #{_lambda_.41} parent=0 // pred_check
    _
  $region11: #{_lambda_.41} parent=0 // pred_check_branch
    %14 = sbr.rel (0) target = $region13
  $region12: #{_lambda_.41} parent=0 // pred_region
    _
  $region13: #{_lambda_.41} parent=0 // pred_fallthru
    _
  // Predicated region
  $region14: #{_lambda_.41} parent=0 // pred_check
    _
  $region15: #{_lambda_.41} parent=0 // pred_check_branch
    %16 = sbr.rel (0) target = $region17
  $region16: #{_lambda_.41} parent=0 // pred_region
    _
  $region17: #{_lambda_.41} parent=0 // pred_fallthru
    _
  %v18 = vld [vmem:[%s0] sm:$0xff]
  %v19 = vld [vmem:[%s0 + $0x8] sm:$0xff]
  %v20 = vld [vmem:[%s0 + $0x10] sm:$0xff]
  %v21 = vld [vmem:[%s0 + $0x18] sm:$0xff]
  %v22 = vld [vmem:[%s0 + $0x20] sm:$0xf]
  %v23 = vld [vmem:[%s1] sm:$0xf]
  %v24 = vld [vmem:[%s1 + $0x4] sm:$0xf]
  %v25 = vld [vmem:[%s1 + $0x8] sm:$0xf]
  %v26 = vld [vmem:[%s1 + $0xc] sm:$0xf]
  %v27 = vld [vmem:[%s1 + $0x10] sm:$0xf]
  %v28 = vld [vmem:[%s1 + $0x14] sm:$0xf]
  %v29 = vld [vmem:[%s1 + $0x18] sm:$0xf]
  %v30 = vld [vmem:[%s1 + $0x1c] sm:$0xf]
  %v31 = vld [vmem:[%s1 + $0x20] sm:$0xf]
  %v32 = vld [vmem:[%s1 + $0x24] sm:$0xf]
  %v33 = vld [vmem:[%s1 + $0x28] sm:$0xf]
  %v34 = vld [vmem:[%s1 + $0x2c] sm:$0xf]
  %v35 = vld [vmem:[%s1 + $0x30] sm:$0xf]
  %v36 = vld [vmem:[%s1 + $0x34] sm:$0xf]
  %v37 = vld [vmem:[%s1 + $0x38] sm:$0xf]
  %v38 = vld [vmem:[%s1 + $0x3c] sm:$0xf]
  %v39 = vld [vmem:[%s1 + $0x40] sm:$0xf]
  %v40 = vld [vmem:[%s1 + $0x44] sm:$0xf]
  %v41 = vld [vmem:[%s1 + $0x48] sm:$0xf]
  %v42 = vld [vmem:[%s1 + $0x4c] sm:$0xf]
  %v43 = vld [vmem:[%s1 + $0x50] sm:$0xf]
  %v44 = vld [vmem:[%s1 + $0x54] sm:$0xf]
  %v45 = vld [vmem:[%s1 + $0x58] sm:$0xf]
  %v46 = vld [vmem:[%s1 + $0x5c] sm:$0xf]
  %v47 = vld [vmem:[%s1 + $0x60] sm:$0xf]
  %v48 = vld [vmem:[%s1 + $0x64] sm:$0xf]
  %v49 = vld [vmem:[%s1 + $0x68] sm:$0xf]
  %v50 = vld [vmem:[%s1 + $0x6c] sm:$0xf]
  %v51 = vld [vmem:[%s1 + $0x70] sm:$0xf]
  %v52 = vld [vmem:[%s1 + $0x74] sm:$0xf]
  %v53 = vld [vmem:[%s1 + $0x78] sm:$0xf]
  %v54 = vld [vmem:[%s1 + $0x7c] sm:$0xf]
  %v55 = vld [vmem:[%s1 + $0x80] sm:$0xf]
  %v56 = vld [vmem:[%s1 + $0x84] sm:$0xf]
  %v57 = vld [vmem:[%s1 + $0x88] sm:$0xf]
  %v58 = vld [vmem:[%s1 + $0x8c] sm:$0xf]
  %v59 = vld [vmem:[%s1 + $0x90] sm:$0xf]
  %v60 = vld [vmem:[%s1 + $0x94] sm:$0xf]
  %v61 = vld [vmem:[%s1 + $0x98] sm:$0xf]
  %v62 = vld [vmem:[%s1 + $0x9c] sm:$0xf]
  %v63 = vld [vmem:[%s1 + $0xa0] sm:$0xf]
  %v64 = vld [vmem:[%s1 + $0xa4] sm:$0xf]
  %v65 = vld [vmem:[%s1 + $0xa8] sm:$0xf]
  %v66 = vld [vmem:[%s1 + $0xac] sm:$0xf]
  %v67 = vld [vmem:[%s1 + $0xb0] sm:$0xf]
  %v68 = vld [vmem:[%s1 + $0xb4] sm:$0xf]
  %v69 = vld [vmem:[%s1 + $0xb8] sm:$0xf]
  %v70 = vld [vmem:[%s1 + $0xbc] sm:$0xf]
  %v71 = vld [vmem:[%s1 + $0xc0] sm:$0xf]
  %v72 = vld [vmem:[%s1 + $0xc4] sm:$0xf]
  %v73 = vld [vmem:[%s1 + $0xc8] sm:$0xf]
  %v74 = vld [vmem:[%s1 + $0xcc] sm:$0xf]
  %v75 = vld [vmem:[%s1 + $0xd0] sm:$0xf]
  %v76 = vld [vmem:[%s1 + $0xd4] sm:$0xf]
  %v77 = vld [vmem:[%s1 + $0xd8] sm:$0xf]
  %v78 = vld [vmem:[%s1 + $0xdc] sm:$0xf]
  %v79 = vld [vmem:[%s1 + $0xe0] sm:$0xf]
  %v80 = vld [vmem:[%s1 + $0xe4] sm:$0xf]
  %v81 = vld [vmem:[%s1 + $0xe8] sm:$0xf]
  %v82 = vld [vmem:[%s1 + $0xec] sm:$0xf]
  %v83 = vld [vmem:[%s1 + $0xf0] sm:$0xf]
  %v84 = vld [vmem:[%s1 + $0xf4] sm:$0xf]
  %v85 = vld [vmem:[%s1 + $0xf8] sm:$0xf]
  %v86 = vld [vmem:[%s1 + $0xfc] sm:$0xf]
  %v87 = vld [vmem:[%s1 + $0x100] sm:$0xf]
  %v88 = vld [vmem:[%s1 + $0x104] sm:$0xf]
  %v89 = vld [vmem:[%s1 + $0x108] sm:$0xf]
  %v90 = vld [vmem:[%s1 + $0x10c] sm:$0xf]
  %v91 = vld [vmem:[%s1 + $0x110] sm:$0xf]
  %v92 = vld [vmem:[%s1 + $0x114] sm:$0xf]
  %v93 = vld [vmem:[%s1 + $0x118] sm:$0xf]
  %v94 = vld [vmem:[%s1 + $0x11c] sm:$0xf]
  %v95 = vld [vmem:[%s1 + $0x120] sm:$0xf]
  %v96 = vld [vmem:[%s1 + $0x124] sm:$0xf]
  %v97 = vld [vmem:[%s1 + $0x128] sm:$0xf]
  %v98 = vld [vmem:[%s1 + $0x12c] sm:$0xf]
  %v99 = vld [vmem:[%s1 + $0x130] sm:$0xf]
  %v100 = vld [vmem:[%s1 + $0x134] sm:$0xf]
  %v101 = vld [vmem:[%s1 + $0x138] sm:$0xf]
  %v102 = vld [vmem:[%s1 + $0x13c] sm:$0xf]
  %v103 = vld [vmem:[%s1 + $0x140] sm:$0xf]
  %v104 = vld [vmem:[%s1 + $0x144] sm:$0xf]
  %v105 = vld [vmem:[%s1 + $0x148] sm:$0xf]
  %v106 = vld [vmem:[%s1 + $0x14c] sm:$0xf]
  %v107 = vld [vmem:[%s1 + $0x150] sm:$0xf]
  %v108 = vld [vmem:[%s1 + $0x154] sm:$0xf]
  %v109 = vld [vmem:[%s1 + $0x158] sm:$0xf]
  %v110 = vld [vmem:[%s1 + $0x15c] sm:$0xf]
  %v111 = vld [vmem:[%s1 + $0x160] sm:$0xf]
  %v112 = vld [vmem:[%s1 + $0x164] sm:$0xf]
  %v113 = vld [vmem:[%s1 + $0x168] sm:$0xf]
  %v114 = vld [vmem:[%s1 + $0x16c] sm:$0xf]
  %v115 = vld [vmem:[%s1 + $0x170] sm:$0xf]
  %v116 = vld [vmem:[%s1 + $0x174] sm:$0xf]
  %v117 = vld [vmem:[%s1 + $0x178] sm:$0xf]
  %v118 = vld [vmem:[%s1 + $0x17c] sm:$0xf]
  %v119 = vld [vmem:[%s1 + $0x180] sm:$0xf]
  %v120 = vld [vmem:[%s1 + $0x184] sm:$0xf]
  %v121 = vld [vmem:[%s1 + $0x188] sm:$0xf]
  %v122 = vld [vmem:[%s1 + $0x18c] sm:$0xf]
  %v123 = vld [vmem:[%s1 + $0x190] sm:$0xf]
  %v124 = vld [vmem:[%s1 + $0x194] sm:$0xf]
  %v125 = vld [vmem:[%s1 + $0x198] sm:$0xf]
  %v126 = vld [vmem:[%s1 + $0x19c] sm:$0xf]
  %v127 = vld [vmem:[%s1 + $0x1a0] sm:$0xf]
  %v128 = vld [vmem:[%s1 + $0x1a4] sm:$0xf]
  %v129 = vld [vmem:[%s1 + $0x1a8] sm:$0xf]
  %v130 = vld [vmem:[%s1 + $0x1ac] sm:$0xf]
  %v131 = vld [vmem:[%s1 + $0x1b0] sm:$0xf]
  %v132 = vld [vmem:[%s1 + $0x1b4] sm:$0xf]
  %v133 = vld [vmem:[%s1 + $0x1b8] sm:$0xf]
  %v134 = vld [vmem:[%s1 + $0x1bc] sm:$0xf]
  %v135 = vld [vmem:[%s1 + $0x1c0] sm:$0xf]
  %v136 = vld [vmem:[%s1 + $0x1c4] sm:$0xf]
  %v137 = vld [vmem:[%s1 + $0x1c8] sm:$0xf]
  %v138 = vld [vmem:[%s1 + $0x1cc] sm:$0xf]
  %v139 = vld [vmem:[%s1 + $0x1d0] sm:$0xf]
  %v140 = vld [vmem:[%s1 + $0x1d4] sm:$0xf]
  %v141 = vld [vmem:[%s1 + $0x1d8] sm:$0xf]
  %v142 = vld [vmem:[%s1 + $0x1dc] sm:$0xf]
  %v143 = vld [vmem:[%s1 + $0x1e0] sm:$0xf]
  %v144 = vld [vmem:[%s1 + $0x1e4] sm:$0xf]
  %v145 = vld [vmem:[%s1 + $0x1e8] sm:$0xf]
  %v146 = vld [vmem:[%s1 + $0x1ec] sm:$0xf]
  %v147 = vld [vmem:[%s1 + $0x1f0] sm:$0xf]
  %v148 = vld [vmem:[%s1 + $0x1f4] sm:$0xf]
  %v149 = vld [vmem:[%s1 + $0x1f8] sm:$0xf]
  %v150 = vld [vmem:[%s1 + $0x1fc] sm:$0xf]
  %v151 = vld [vmem:[%s1 + $0x200] sm:$0xf]
  %v152 = vld [vmem:[%s1 + $0x204] sm:$0xf]
  %v153 = vld [vmem:[%s1 + $0x208] sm:$0xf]
  %v154 = vld [vmem:[%s1 + $0x20c] sm:$0xf]
  %v155 = vld [vmem:[%s1 + $0x210] sm:$0xf]
  %v156 = vld [vmem:[%s1 + $0x214] sm:$0xf]
  %v157 = vld [vmem:[%s1 + $0x218] sm:$0xf]
  %v158 = vld [vmem:[%s1 + $0x21c] sm:$0xf]
  %v159 = vld [vmem:[%s1 + $0x220] sm:$0xf]
  %v160 = vld [vmem:[%s1 + $0x224] sm:$0xf]
  %v161 = vld [vmem:[%s1 + $0x228] sm:$0xf]
  %v162 = vld [vmem:[%s1 + $0x22c] sm:$0xf]
  %v163 = vld [vmem:[%s1 + $0x230] sm:$0xf]
  %v164 = vld [vmem:[%s1 + $0x234] sm:$0xf]
  %v165 = vld [vmem:[%s1 + $0x238] sm:$0xf]
  %v166 = vld [vmem:[%s1 + $0x23c] sm:$0xf]
  %v167 = vld [vmem:[%s2] sm:$0x1]
  %v169 = vlaneseq
  %v170 = vshrl.u32 %v169, 7
  %v171 = vsub.s32 0, %v170
  %v172 = vrot.slane %v167, %v171
  %v179 = vunpack.c.l.b16 %v18
  %v180 = vunpack.c.h.b16 %v18
  %v181 = vunpack.c.l.b16 %v19
  %v182 = vunpack.c.h.b16 %v19
  %v183 = vunpack.c.l.b16 %v20
  %v184 = vunpack.c.h.b16 %v20
  %v185 = vunpack.c.l.b16 %v21
  %v186 = vunpack.c.h.b16 %v21
  %v187 = vunpack.c.l.b16 %v22
  %v188 = vpack.c.b16 %v179, %v179
  %v189 = vpack.c.b16 %v180, %v180
  %v190 = vpack.c.b16 %v181, %v181
  %v191 = vpack.c.b16 %v182, %v182
  %v192 = vpack.c.b16 %v183, %v183
  %v193 = vpack.c.b16 %v184, %v184
  %v194 = vpack.c.b16 %v185, %v185
  %v195 = vpack.c.b16 %v186, %v186
  %v196 = vpack.c.b16 %v187, %v187
  %v350 = vunpack.c.l.b16 %v23
  %v351 = vunpack.c.l.b16 %v24
  %v352 = vunpack.c.l.b16 %v25
  %v353 = vunpack.c.l.b16 %v26
  %v354 = vunpack.c.l.b16 %v27
  %v355 = vunpack.c.l.b16 %v28
  %v356 = vunpack.c.l.b16 %v29
  %v357 = vunpack.c.l.b16 %v30
  %v358 = vunpack.c.l.b16 %v31
  %v359 = vunpack.c.l.b16 %v32
  %v360 = vunpack.c.l.b16 %v33
  %v361 = vunpack.c.l.b16 %v34
  %v362 = vunpack.c.l.b16 %v35
  %v363 = vunpack.c.l.b16 %v36
  %v364 = vunpack.c.l.b16 %v37
  %v365 = vunpack.c.l.b16 %v38
  %v366 = vunpack.c.l.b16 %v39
  %v367 = vunpack.c.l.b16 %v40
  %v368 = vunpack.c.l.b16 %v41
  %v369 = vunpack.c.l.b16 %v42
  %v370 = vunpack.c.l.b16 %v43
  %v371 = vunpack.c.l.b16 %v44
  %v372 = vunpack.c.l.b16 %v45
  %v373 = vunpack.c.l.b16 %v46
  %v374 = vunpack.c.l.b16 %v47
  %v375 = vunpack.c.l.b16 %v48
  %v376 = vunpack.c.l.b16 %v49
  %v377 = vunpack.c.l.b16 %v50
  %v378 = vunpack.c.l.b16 %v51
  %v379 = vunpack.c.l.b16 %v52
  %v380 = vunpack.c.l.b16 %v53
  %v381 = vunpack.c.l.b16 %v54
  %v382 = vunpack.c.l.b16 %v55
  %v383 = vunpack.c.l.b16 %v56
  %v384 = vunpack.c.l.b16 %v57
  %v385 = vunpack.c.l.b16 %v58
  %v386 = vunpack.c.l.b16 %v59
  %v387 = vunpack.c.l.b16 %v60
  %v388 = vunpack.c.l.b16 %v61
  %v389 = vunpack.c.l.b16 %v62
  %v390 = vunpack.c.l.b16 %v63
  %v391 = vunpack.c.l.b16 %v64
  %v392 = vunpack.c.l.b16 %v65
  %v393 = vunpack.c.l.b16 %v66
  %v394 = vunpack.c.l.b16 %v67
  %v395 = vunpack.c.l.b16 %v68
  %v396 = vunpack.c.l.b16 %v69
  %v397 = vunpack.c.l.b16 %v70
  %v398 = vunpack.c.l.b16 %v71
  %v399 = vunpack.c.l.b16 %v72
  %v400 = vunpack.c.l.b16 %v73
  %v401 = vunpack.c.l.b16 %v74
  %v402 = vunpack.c.l.b16 %v75
  %v403 = vunpack.c.l.b16 %v76
  %v404 = vunpack.c.l.b16 %v77
  %v405 = vunpack.c.l.b16 %v78
  %v406 = vunpack.c.l.b16 %v79
  %v407 = vunpack.c.l.b16 %v80
  %v408 = vunpack.c.l.b16 %v81
  %v409 = vunpack.c.l.b16 %v82
  %v410 = vunpack.c.l.b16 %v83
  %v411 = vunpack.c.l.b16 %v84
  %v412 = vunpack.c.l.b16 %v85
  %v413 = vunpack.c.l.b16 %v86
  %v414 = vunpack.c.l.b16 %v87
  %v415 = vunpack.c.l.b16 %v88
  %v416 = vunpack.c.l.b16 %v89
  %v417 = vunpack.c.l.b16 %v90
  %v418 = vunpack.c.l.b16 %v91
  %v419 = vunpack.c.l.b16 %v92
  %v420 = vunpack.c.l.b16 %v93
  %v421 = vunpack.c.l.b16 %v94
  %v422 = vunpack.c.l.b16 %v95
  %v423 = vunpack.c.l.b16 %v96
  %v424 = vunpack.c.l.b16 %v97
  %v425 = vunpack.c.l.b16 %v98
  %v426 = vunpack.c.l.b16 %v99
  %v427 = vunpack.c.l.b16 %v100
  %v428 = vunpack.c.l.b16 %v101
  %v429 = vunpack.c.l.b16 %v102
  %v430 = vunpack.c.l.b16 %v103
  %v431 = vunpack.c.l.b16 %v104
  %v432 = vunpack.c.l.b16 %v105
  %v433 = vunpack.c.l.b16 %v106
  %v434 = vunpack.c.l.b16 %v107
  %v435 = vunpack.c.l.b16 %v108
  %v436 = vunpack.c.l.b16 %v109
  %v437 = vunpack.c.l.b16 %v110
  %v438 = vunpack.c.l.b16 %v111
  %v439 = vunpack.c.l.b16 %v112
  %v440 = vunpack.c.l.b16 %v113
  %v441 = vunpack.c.l.b16 %v114
  %v442 = vunpack.c.l.b16 %v115
  %v443 = vunpack.c.l.b16 %v116
  %v444 = vunpack.c.l.b16 %v117
  %v445 = vunpack.c.l.b16 %v118
  %v446 = vunpack.c.l.b16 %v119
  %v447 = vunpack.c.l.b16 %v120
  %v448 = vunpack.c.l.b16 %v121
  %v449 = vunpack.c.l.b16 %v122
  %v450 = vunpack.c.l.b16 %v123
  %v451 = vunpack.c.l.b16 %v124
  %v452 = vunpack.c.l.b16 %v125
  %v453 = vunpack.c.l.b16 %v126
  %v454 = vunpack.c.l.b16 %v127
  %v455 = vunpack.c.l.b16 %v128
  %v456 = vunpack.c.l.b16 %v129
  %v457 = vunpack.c.l.b16 %v130
  %v458 = vunpack.c.l.b16 %v131
  %v459 = vunpack.c.l.b16 %v132
  %v460 = vunpack.c.l.b16 %v133
  %v461 = vunpack.c.l.b16 %v134
  %v462 = vunpack.c.l.b16 %v135
  %v463 = vunpack.c.l.b16 %v136
  %v464 = vunpack.c.l.b16 %v137
  %v465 = vunpack.c.l.b16 %v138
  %v466 = vunpack.c.l.b16 %v139
  %v467 = vunpack.c.l.b16 %v140
  %v468 = vunpack.c.l.b16 %v141
  %v469 = vunpack.c.l.b16 %v142
  %v470 = vunpack.c.l.b16 %v143
  %v471 = vunpack.c.l.b16 %v144
  %v472 = vunpack.c.l.b16 %v145
  %v473 = vunpack.c.l.b16 %v146
  %v474 = vunpack.c.l.b16 %v147
  %v475 = vunpack.c.l.b16 %v148
  %v476 = vunpack.c.l.b16 %v149
  %v477 = vunpack.c.l.b16 %v150
  %v478 = vunpack.c.l.b16 %v151
  %v479 = vunpack.c.l.b16 %v152
  %v480 = vunpack.c.l.b16 %v153
  %v481 = vunpack.c.l.b16 %v154
  %v482 = vunpack.c.l.b16 %v155
  %v483 = vunpack.c.l.b16 %v156
  %v484 = vunpack.c.l.b16 %v157
  %v485 = vunpack.c.l.b16 %v158
  %v486 = vunpack.c.l.b16 %v159
  %v487 = vunpack.c.l.b16 %v160
  %v488 = vunpack.c.l.b16 %v161
  %v489 = vunpack.c.l.b16 %v162
  %v490 = vunpack.c.l.b16 %v163
  %v491 = vunpack.c.l.b16 %v164
  %v492 = vunpack.c.l.b16 %v165
  %v493 = vunpack.c.l.b16 %v166
  %v494 = vpack.c.b16 %v351, %v350
  %v495 = vpack.c.b16 %v353, %v352
  %v496 = vpack.c.b16 %v355, %v354
  %v497 = vpack.c.b16 %v357, %v356
  %v498 = vpack.c.b16 %v359, %v358
  %v499 = vpack.c.b16 %v361, %v360
  %v500 = vpack.c.b16 %v363, %v362
  %v501 = vpack.c.b16 %v365, %v364
  %v502 = vpack.c.b16 %v367, %v366
  %v503 = vpack.c.b16 %v369, %v368
  %v504 = vpack.c.b16 %v371, %v370
  %v505 = vpack.c.b16 %v373, %v372
  %v506 = vpack.c.b16 %v375, %v374
  %v507 = vpack.c.b16 %v377, %v376
  %v508 = vpack.c.b16 %v379, %v378
  %v509 = vpack.c.b16 %v381, %v380
  %v510 = vpack.c.b16 %v383, %v382
  %v511 = vpack.c.b16 %v385, %v384
  %v512 = vpack.c.b16 %v387, %v386
  %v513 = vpack.c.b16 %v389, %v388
  %v514 = vpack.c.b16 %v391, %v390
  %v515 = vpack.c.b16 %v393, %v392
  %v516 = vpack.c.b16 %v395, %v394
  %v517 = vpack.c.b16 %v397, %v396
  %v518 = vpack.c.b16 %v399, %v398
  %v519 = vpack.c.b16 %v401, %v400
  %v520 = vpack.c.b16 %v403, %v402
  %v521 = vpack.c.b16 %v405, %v404
  %v522 = vpack.c.b16 %v407, %v406
  %v523 = vpack.c.b16 %v409, %v408
  %v524 = vpack.c.b16 %v411, %v410
  %v525 = vpack.c.b16 %v413, %v412
  %v526 = vpack.c.b16 %v415, %v414
  %v527 = vpack.c.b16 %v417, %v416
  %v528 = vpack.c.b16 %v419, %v418
  %v529 = vpack.c.b16 %v421, %v420
  %v530 = vpack.c.b16 %v423, %v422
  %v531 = vpack.c.b16 %v425, %v424
  %v532 = vpack.c.b16 %v427, %v426
  %v533 = vpack.c.b16 %v429, %v428
  %v534 = vpack.c.b16 %v431, %v430
  %v535 = vpack.c.b16 %v433, %v432
  %v536 = vpack.c.b16 %v435, %v434
  %v537 = vpack.c.b16 %v437, %v436
  %v538 = vpack.c.b16 %v439, %v438
  %v539 = vpack.c.b16 %v441, %v440
  %v540 = vpack.c.b16 %v443, %v442
  %v541 = vpack.c.b16 %v445, %v444
  %v542 = vpack.c.b16 %v447, %v446
  %v543 = vpack.c.b16 %v449, %v448
  %v544 = vpack.c.b16 %v451, %v450
  %v545 = vpack.c.b16 %v453, %v452
  %v546 = vpack.c.b16 %v455, %v454
  %v547 = vpack.c.b16 %v457, %v456
  %v548 = vpack.c.b16 %v459, %v458
  %v549 = vpack.c.b16 %v461, %v460
  %v550 = vpack.c.b16 %v463, %v462
  %v551 = vpack.c.b16 %v465, %v464
  %v552 = vpack.c.b16 %v467, %v466
  %v553 = vpack.c.b16 %v469, %v468
  %v554 = vpack.c.b16 %v471, %v470
  %v555 = vpack.c.b16 %v473, %v472
  %v556 = vpack.c.b16 %v475, %v474
  %v557 = vpack.c.b16 %v477, %v476
  %v558 = vpack.c.b16 %v479, %v478
  %v559 = vpack.c.b16 %v481, %v480
  %v560 = vpack.c.b16 %v483, %v482
  %v561 = vpack.c.b16 %v485, %v484
  %v562 = vpack.c.b16 %v487, %v486
  %v563 = vpack.c.b16 %v489, %v488
  %v564 = vpack.c.b16 %v491, %v490
  %v565 = vpack.c.b16 %v493, %v492
  %638 = vmatprep.subr.bf16.mxu0 0
  %639 = vmatpush1.bf16.msra.mxu0 %v494
  %640 = vmatprep.subr.bf16.mxu0 0
  %641 = vmatpush1.bf16.msra.mxu0 %v495
  %642 = vmatprep.subr.bf16.mxu0 0
  %643 = vmatpush1.bf16.msra.mxu0 %v496
  %644 = vmatprep.subr.bf16.mxu0 0
  %645 = vmatpush1.bf16.msra.mxu0 %v497
  %646 = vmatprep.subr.bf16.mxu0 0
  %647 = vmatpush1.bf16.msra.mxu0 %v498
  %648 = vmatprep.subr.bf16.mxu0 0
  %649 = vmatpush1.bf16.msra.mxu0 %v499
  %650 = vmatprep.subr.bf16.mxu0 0
  %651 = vmatpush1.bf16.msra.mxu0 %v500
  %652 = vmatprep.subr.bf16.mxu0 0
  %653 = vmatpush1.bf16.msra.mxu0 %v501
  %654 = vmatprep.subr.bf16.mxu0 0
  %655 = vmatpush1.bf16.msra.mxu0 %v502
  %656 = vmatprep.subr.bf16.mxu0 0
  %657 = vmatpush1.bf16.msra.mxu0 %v503
  %658 = vmatprep.subr.bf16.mxu0 0
  %659 = vmatpush1.bf16.msra.mxu0 %v504
  %660 = vmatprep.subr.bf16.mxu0 0
  %661 = vmatpush1.bf16.msra.mxu0 %v505
  %662 = vmatprep.subr.bf16.mxu0 0
  %663 = vmatpush1.bf16.msra.mxu0 %v506
  %664 = vmatprep.subr.bf16.mxu0 0
  %665 = vmatpush1.bf16.msra.mxu0 %v507
  %666 = vmatprep.subr.bf16.mxu0 0
  %667 = vmatpush1.bf16.msra.mxu0 %v508
  %668 = vmatprep.subr.bf16.mxu0 0
  %669 = vmatpush1.bf16.msra.mxu0 %v509
  %670 = vmatprep.mubr.bf16.mxu0 %v189
  %671 = vmatmul.mubr.bf16.gmra.mrb[0].mxu0 %v188
  %v672 = vpop.f32.mrb[0].mxu0
  %v673 = vadd.f32 %v172, %v672
  %v674 = vpop.f32.mrb[0].mxu0
  %v675 = vpop.f32.mrb[0].mxu0
  %v676 = vpop.f32.mrb[0].mxu0
  %677 = vdwg.mxu0
  %678 = vmatprep.subr.bf16.mxu0 0
  %679 = vmatpush1.bf16.msra.mxu0 %v510
  %680 = vmatprep.subr.bf16.mxu0 0
  %681 = vmatpush1.bf16.msra.mxu0 %v511
  %682 = vmatprep.subr.bf16.mxu0 0
  %683 = vmatpush1.bf16.msra.mxu0 %v512
  %684 = vmatprep.subr.bf16.mxu0 0
  %685 = vmatpush1.bf16.msra.mxu0 %v513
  %686 = vmatprep.subr.bf16.mxu0 0
  %687 = vmatpush1.bf16.msra.mxu0 %v514
  %688 = vmatprep.subr.bf16.mxu0 0
  %689 = vmatpush1.bf16.msra.mxu0 %v515
  %690 = vmatprep.subr.bf16.mxu0 0
  %691 = vmatpush1.bf16.msra.mxu0 %v516
  %692 = vmatprep.subr.bf16.mxu0 0
  %693 = vmatpush1.bf16.msra.mxu0 %v517
  %694 = vmatprep.subr.bf16.mxu0 0
  %695 = vmatpush1.bf16.msra.mxu0 %v518
  %696 = vmatprep.subr.bf16.mxu0 0
  %697 = vmatpush1.bf16.msra.mxu0 %v519
  %698 = vmatprep.subr.bf16.mxu0 0
  %699 = vmatpush1.bf16.msra.mxu0 %v520
  %700 = vmatprep.subr.bf16.mxu0 0
  %701 = vmatpush1.bf16.msra.mxu0 %v521
  %702 = vmatprep.subr.bf16.mxu0 0
  %703 = vmatpush1.bf16.msra.mxu0 %v522
  %704 = vmatprep.subr.bf16.mxu0 0
  %705 = vmatpush1.bf16.msra.mxu0 %v523
  %706 = vmatprep.subr.bf16.mxu0 0
  %707 = vmatpush1.bf16.msra.mxu0 %v524
  %708 = vmatprep.subr.bf16.mxu0 0
  %709 = vmatpush1.bf16.msra.mxu0 %v525
  %710 = vmatprep.mubr.bf16.mxu0 %v191
  %711 = vmatmul.mubr.bf16.gmra.mrb[0].mxu0 %v190
  %v712 = vpop.f32.mrb[0].mxu0
  %v713 = vadd.f32 %v673, %v712
  %v714 = vpop.f32.mrb[0].mxu0
  %v715 = vpop.f32.mrb[0].mxu0
  %v716 = vpop.f32.mrb[0].mxu0
  %717 = vdwg.mxu0
  %718 = vmatprep.subr.bf16.mxu0 0
  %719 = vmatpush1.bf16.msra.mxu0 %v526
  %720 = vmatprep.subr.bf16.mxu0 0
  %721 = vmatpush1.bf16.msra.mxu0 %v527
  %722 = vmatprep.subr.bf16.mxu0 0
  %723 = vmatpush1.bf16.msra.mxu0 %v528
  %724 = vmatprep.subr.bf16.mxu0 0
  %725 = vmatpush1.bf16.msra.mxu0 %v529
  %726 = vmatprep.subr.bf16.mxu0 0
  %727 = vmatpush1.bf16.msra.mxu0 %v530
  %728 = vmatprep.subr.bf16.mxu0 0
  %729 = vmatpush1.bf16.msra.mxu0 %v531
  %730 = vmatprep.subr.bf16.mxu0 0
  %731 = vmatpush1.bf16.msra.mxu0 %v532
  %732 = vmatprep.subr.bf16.mxu0 0
  %733 = vmatpush1.bf16.msra.mxu0 %v533
  %734 = vmatprep.subr.bf16.mxu0 0
  %735 = vmatpush1.bf16.msra.mxu0 %v534
  %736 = vmatprep.subr.bf16.mxu0 0
  %737 = vmatpush1.bf16.msra.mxu0 %v535
  %738 = vmatprep.subr.bf16.mxu0 0
  %739 = vmatpush1.bf16.msra.mxu0 %v536
  %740 = vmatprep.subr.bf16.mxu0 0
  %741 = vmatpush1.bf16.msra.mxu0 %v537
  %742 = vmatprep.subr.bf16.mxu0 0
  %743 = vmatpush1.bf16.msra.mxu0 %v538
  %744 = vmatprep.subr.bf16.mxu0 0
  %745 = vmatpush1.bf16.msra.mxu0 %v539
  %746 = vmatprep.subr.bf16.mxu0 0
  %747 = vmatpush1.bf16.msra.mxu0 %v540
  %748 = vmatprep.subr.bf16.mxu0 0
  %749 = vmatpush1.bf16.msra.mxu0 %v541
  %750 = vmatprep.mubr.bf16.mxu0 %v193
  %751 = vmatmul.mubr.bf16.gmra.mrb[0].mxu0 %v192
  %v752 = vpop.f32.mrb[0].mxu0
  %v753 = vadd.f32 %v713, %v752
  %v754 = vpop.f32.mrb[0].mxu0
  %v755 = vpop.f32.mrb[0].mxu0
  %v756 = vpop.f32.mrb[0].mxu0
  %757 = vdwg.mxu0
  %758 = vmatprep.subr.bf16.mxu0 0
  %759 = vmatpush1.bf16.msra.mxu0 %v542
  %760 = vmatprep.subr.bf16.mxu0 0
  %761 = vmatpush1.bf16.msra.mxu0 %v543
  %762 = vmatprep.subr.bf16.mxu0 0
  %763 = vmatpush1.bf16.msra.mxu0 %v544
  %764 = vmatprep.subr.bf16.mxu0 0
  %765 = vmatpush1.bf16.msra.mxu0 %v545
  %766 = vmatprep.subr.bf16.mxu0 0
  %767 = vmatpush1.bf16.msra.mxu0 %v546
  %768 = vmatprep.subr.bf16.mxu0 0
  %769 = vmatpush1.bf16.msra.mxu0 %v547
  %770 = vmatprep.subr.bf16.mxu0 0
  %771 = vmatpush1.bf16.msra.mxu0 %v548
  %772 = vmatprep.subr.bf16.mxu0 0
  %773 = vmatpush1.bf16.msra.mxu0 %v549
  %774 = vmatprep.subr.bf16.mxu0 0
  %775 = vmatpush1.bf16.msra.mxu0 %v550
  %776 = vmatprep.subr.bf16.mxu0 0
  %777 = vmatpush1.bf16.msra.mxu0 %v551
  %778 = vmatprep.subr.bf16.mxu0 0
  %779 = vmatpush1.bf16.msra.mxu0 %v552
  %780 = vmatprep.subr.bf16.mxu0 0
  %781 = vmatpush1.bf16.msra.mxu0 %v553
  %782 = vmatprep.subr.bf16.mxu0 0
  %783 = vmatpush1.bf16.msra.mxu0 %v554
  %784 = vmatprep.subr.bf16.mxu0 0
  %785 = vmatpush1.bf16.msra.mxu0 %v555
  %786 = vmatprep.subr.bf16.mxu0 0
  %787 = vmatpush1.bf16.msra.mxu0 %v556
  %788 = vmatprep.subr.bf16.mxu0 0
  %789 = vmatpush1.bf16.msra.mxu0 %v557
  %790 = vmatprep.mubr.bf16.mxu0 %v195
  %791 = vmatmul.mubr.bf16.gmra.mrb[0].mxu0 %v194
  %v792 = vpop.f32.mrb[0].mxu0
  %v793 = vadd.f32 %v753, %v792
  %v794 = vpop.f32.mrb[0].mxu0
  %v795 = vpop.f32.mrb[0].mxu0
  %v796 = vpop.f32.mrb[0].mxu0
  %797 = vdwg.mxu0
  %798 = vmatprep.subr.bf16.mxu0 0
  %799 = vmatpush1.bf16.msra.mxu0 %v558
  %800 = vmatprep.subr.bf16.mxu0 0
  %801 = vmatpush1.bf16.msra.mxu0 %v559
  %802 = vmatprep.subr.bf16.mxu0 0
  %803 = vmatpush1.bf16.msra.mxu0 %v560
  %804 = vmatprep.subr.bf16.mxu0 0
  %805 = vmatpush1.bf16.msra.mxu0 %v561
  %806 = vmatprep.subr.bf16.mxu0 0
  %807 = vmatpush1.bf16.msra.mxu0 %v562
  %808 = vmatprep.subr.bf16.mxu0 0
  %809 = vmatpush1.bf16.msra.mxu0 %v563
  %810 = vmatprep.subr.bf16.mxu0 0
  %811 = vmatpush1.bf16.msra.mxu0 %v564
  %812 = vmatprep.subr.bf16.mxu0 0
  %813 = vmatpush1.bf16.msra.mxu0 %v565
  %814 = vmatprep.subr.bf16.mxu0 0
  %815 = vmatpush1.bf16.msra.mxu0 0
  %816 = vmatprep.subr.bf16.mxu0 0
  %817 = vmatpush1.bf16.msra.mxu0 0
  %818 = vmatprep.subr.bf16.mxu0 0
  %819 = vmatpush1.bf16.msra.mxu0 0
  %820 = vmatprep.subr.bf16.mxu0 0
  %821 = vmatpush1.bf16.msra.mxu0 0
  %822 = vmatprep.subr.bf16.mxu0 0
  %823 = vmatpush1.bf16.msra.mxu0 0
  %824 = vmatprep.subr.bf16.mxu0 0
  %825 = vmatpush1.bf16.msra.mxu0 0
  %826 = vmatprep.subr.bf16.mxu0 0
  %827 = vmatpush1.bf16.msra.mxu0 0
  %828 = vmatprep.subr.bf16.mxu0 0
  %829 = vmatpush1.bf16.msra.mxu0 0
  %830 = vmatprep.mubr.bf16.mxu0 0
  %831 = vmatmul.mubr.bf16.gmra.mrb[0].mxu0 %v196
  %v832 = vpop.f32.mrb[0].mxu0
  %v833 = vadd.f32 %v793, %v832
  %v834 = vpop.f32.mrb[0].mxu0
  %v835 = vpop.f32.mrb[0].mxu0
  %v836 = vpop.f32.mrb[0].mxu0
  %837 = vdwg.mxu0
  %v838 = vld [vmem:[%s3] sm:$0xf]
  %v839 = vunpack.c.l.bf16 %v838
  %v840 = vadd.f32 %v833, %v839
  %v841 = vmax.f32 %v840, 0.0
  %v842 = vpack.c.bf16 %v841, %v841
  %843 = vst [vmem:[%s4] sm:$0xf] %v842
  // Predicated region
  $region18: #{_lambda_.41} parent=0 // pred_check
    _
  $region19: #{_lambda_.41} parent=0 // pred_check_branch
    %845 = sbr.rel (0) target = $region21
  $region20: #{_lambda_.41} parent=0 // pred_region
    _
  $region21: #{_lambda_.41} parent=0 // pred_fallthru
    _
  // Predicated region
  $region22: #{_lambda_.41} parent=0 // pred_check
    _
  $region23: #{_lambda_.41} parent=0 // pred_check_branch
    %847 = sbr.rel (0) target = $region25
  $region24: #{_lambda_.41} parent=0 // pred_region
    _
  $region25: #{_lambda_.41} parent=0 // pred_fallthru
    _

// kernel: _lambda_.45
$region0: #{_lambda_.45}
  #allocation0 [shape = 'u32[]', space=smem, size = 0x4, offset = 0x4, fixed_abs, tag = 'smem constant byte address 0x4 - core index']
  #allocation1 [shape = 'u32[144,128]{1,0:T(1,128)}', space=vmem, size = 0x12000, scoped, tag = 'internal scratch']
  #allocation2 [shape = 'f32[2,64]{1,0:T(2,128)}', space=vmem, size = 0x400, scoped, tag = 'scratch operand']
  #allocation3 [shape = 'f32[2,64]{1,0:T(2,128)}', space=vmem, size = 0x400, scoped, tag = 'scratch operand']
  %s0 = inlined_call_operand.vmem [shape: f32[4,2,256], index: 0, kind: input, shape index: {}]
  %s1 = inlined_call_operand.vmem [shape: bf16[64,256], index: 1, kind: input, shape index: {}]
  %s2 = inlined_call_operand.vmem [shape: bf16[64,10], index: 2, kind: input, shape index: {}]
  %s3 = inlined_call_operand.vmem [shape: f32[1,10], index: 3, kind: input, shape index: {}]
  %s4 = inlined_call_operand.hbm [shape: f32[2,10], index: 4, kind: output, shape index: {}]
  %s5 = sld [smem:[#allocation0]]
  $region57: #{_lambda_.45} parent=0
    _
  %s7 = ssub.s32 1, %s5
  %s8 = scalar_select 0, %s7, %s5
  $region1: #{_lambda_.45} parent=0
    #allocation4 [shape = 'u8[1024]{0}', space=vmem, size = 0x400, scoped, tag = 'output window, operand 0, single buffered']
    #allocation5 [shape = 's32[2]{0}', space=sflag, size = 0x8, scoped, tag = 'scoped memory for _lambda_.45']
    %9 = vsyncpa [#allocation5], 0
    loop: start=0, step=1, limit=6
    $region2: #{_lambda_.45} parent=1 // loop_pre_header
      _
    $region3: #{_lambda_.45} parent=1 // loop_header
      %s11 = sphi 0, %s15
      %p12 = scmp.ge.s32.totalorder %s11, 6
      %s21 = sphi 0, %s23
      %s24 = sphi 0, %s21
      %s25 = sphi 0, %s24
      %s41 = sphi 0, %s25
      %s45 = sphi 0, %s45
      %s47 = sphi 0, %s45
      %s48 = sphi 0, %s47
      %s62 = sphi 0, %s48
      %s66 = sphi 0, %s66
      %s68 = sphi 0, %s66
      %s69 = sphi 0, %s68
      %s83 = sphi 0, %s69
      %s87 = sphi 0, %s87
      %s89 = sphi 0, %s87
      %s90 = sphi 0, %s89
      %s104 = sphi 0, %s90
      %s108 = sphi 0, %s108
      %s110 = sphi 0, %s108
      %s111 = sphi 0, %s110
      %s125 = sphi 0, %s111
    $region4: #{_lambda_.45} parent=1 // loop_header_branch
      %14 = sbr.rel (%p12) target = $region8
    $region5: #{_lambda_.45} parent=1 // loop_body
      %s16 = ssub.s32 %s11, 1
      %s17 = ssub.s32 %s11, 2
      %s18 = sadd.s32 %s11, 1
      %s19 = ssub.s32 %s11, %s18
      %p20 = scmp.eq.s32.totalorder %s19, 0
      %s22 = sadd.s32 %s21, 1
      %s23 = scalar_select %p20, %s21, %s22
      %p26 = pneg %p20
      %p27 = scmp.eq.s32.totalorder %s11, 3
      %p28 = por %p26, %p27
      %p29 = scmp.ne.s32.totalorder %s21, %s24
      %p30 = scmp.eq.s32.totalorder %s11, 0
      %p31 = por %p29, %p30
      %p32 = scmp.ne.s32.totalorder %s21, %s24
      %p33 = scmp.eq.s32.totalorder %s16, 3
      %p34 = por %p32, %p33
      %p35 = scmp.ne.s32.totalorder %s24, %s25
      %p36 = scmp.eq.s32.totalorder %s16, 0
      %p37 = por %p35, %p36
      %p38 = scmp.ne.s32.totalorder %s24, %s25
      %p39 = scmp.eq.s32.totalorder %s17, 3
      %p40 = por %p38, %p39
      %p42 = scmp.ne.s32.totalorder %s25, %s41
      %p43 = scmp.eq.s32.totalorder %s17, 0
      %p44 = por %p42, %p43
      %s46 = sadd.s32 %s45, 1
      %p49 = scmp.eq.s32.totalorder %s11, 3
      %p50 = scmp.ne.s32.totalorder %s45, %s47
      %p51 = scmp.eq.s32.totalorder %s11, 0
      %p52 = por %p50, %p51
      %p53 = scmp.ne.s32.totalorder %s45, %s47
      %p54 = scmp.eq.s32.totalorder %s16, 3
      %p55 = por %p53, %p54
      %p56 = scmp.ne.s32.totalorder %s47, %s48
      %p57 = scmp.eq.s32.totalorder %s16, 0
      %p58 = por %p56, %p57
      %p59 = scmp.ne.s32.totalorder %s47, %s48
      %p60 = scmp.eq.s32.totalorder %s17, 3
      %p61 = por %p59, %p60
      %p63 = scmp.ne.s32.totalorder %s48, %s62
      %p64 = scmp.eq.s32.totalorder %s17, 0
      %p65 = por %p63, %p64
      %s67 = sadd.s32 %s66, 1
      %p70 = scmp.eq.s32.totalorder %s11, 3
      %p71 = scmp.ne.s32.totalorder %s66, %s68
      %p72 = scmp.eq.s32.totalorder %s11, 0
      %p73 = por %p71, %p72
      %p74 = scmp.ne.s32.totalorder %s66, %s68
      %p75 = scmp.eq.s32.totalorder %s16, 3
      %p76 = por %p74, %p75
      %p77 = scmp.ne.s32.totalorder %s68, %s69
      %p78 = scmp.eq.s32.totalorder %s16, 0
      %p79 = por %p77, %p78
      %p80 = scmp.ne.s32.totalorder %s68, %s69
      %p81 = scmp.eq.s32.totalorder %s17, 3
      %p82 = por %p80, %p81
      %p84 = scmp.ne.s32.totalorder %s69, %s83
      %p85 = scmp.eq.s32.totalorder %s17, 0
      %p86 = por %p84, %p85
      %s88 = sadd.s32 %s87, 1
      %p91 = scmp.eq.s32.totalorder %s11, 3
      %p92 = scmp.ne.s32.totalorder %s87, %s89
      %p93 = scmp.eq.s32.totalorder %s11, 0
      %p94 = por %p92, %p93
      %p95 = scmp.ne.s32.totalorder %s87, %s89
      %p96 = scmp.eq.s32.totalorder %s16, 3
      %p97 = por %p95, %p96
      %p98 = scmp.ne.s32.totalorder %s89, %s90
      %p99 = scmp.eq.s32.totalorder %s16, 0
      %p100 = por %p98, %p99
      %p101 = scmp.ne.s32.totalorder %s89, %s90
      %p102 = scmp.eq.s32.totalorder %s17, 3
      %p103 = por %p101, %p102
      %p105 = scmp.ne.s32.totalorder %s90, %s104
      %p106 = scmp.eq.s32.totalorder %s17, 0
      %p107 = por %p105, %p106
      %s109 = sadd.s32 %s108, 1
      %p112 = scmp.eq.s32.totalorder %s11, 3
      %p113 = scmp.ne.s32.totalorder %s108, %s110
      %p114 = scmp.eq.s32.totalorder %s11, 0
      %p115 = por %p113, %p114
      %p116 = scmp.ne.s32.totalorder %s108, %s110
      %p117 = scmp.eq.s32.totalorder %s16, 3
      %p118 = por %p116, %p117
      %p119 = scmp.ne.s32.totalorder %s110, %s111
      %p120 = scmp.eq.s32.totalorder %s16, 0
      %p121 = por %p119, %p120
      %p122 = scmp.ne.s32.totalorder %s110, %s111
      %p123 = scmp.eq.s32.totalorder %s17, 3
      %p124 = por %p122, %p123
      %p126 = scmp.ne.s32.totalorder %s111, %s125
      %p127 = scmp.eq.s32.totalorder %s17, 0
      %p128 = por %p126, %p127
      %p129 = scmp.le.s32.totalorder 1, %s11
      %p130 = scmp.lt.s32.totalorder %s11, 5
      %p131 = pnand %p129, %p130
      %p132 = pneg %p131
      // Predicated region
      $region9: #{_lambda_.45} parent=5 // pred_check
        _
      $region10: #{_lambda_.45} parent=5 // pred_check_branch
        %134 = sbr.rel (%p131) target = $region12
      $region11: #{_lambda_.45} parent=5 // pred_region
        %s135 = ssub.s32 %s11, 1
        // Predicated region
        $region13: #{_lambda_.45} parent=11 // pred_check
          %p136 = pneg %p58
        $region14: #{_lambda_.45} parent=11 // pred_check_branch
          %138 = sbr.rel (%p136) target = $region16
        $region15: #{_lambda_.45} parent=11 // pred_region
          _
        $region16: #{_lambda_.45} parent=11 // pred_fallthru
          _
        // Predicated region
        $region17: #{_lambda_.45} parent=11 // pred_check
          %p139 = pneg %p79
        $region18: #{_lambda_.45} parent=11 // pred_check_branch
          %141 = sbr.rel (%p139) target = $region20
        $region19: #{_lambda_.45} parent=11 // pred_region
          _
        $region20: #{_lambda_.45} parent=11 // pred_fallthru
          _
        // Predicated region
        $region21: #{_lambda_.45} parent=11 // pred_check
          %p142 = pneg %p100
        $region22: #{_lambda_.45} parent=11 // pred_check_branch
          %144 = sbr.rel (%p142) target = $region24
        $region23: #{_lambda_.45} parent=11 // pred_region
          _
        $region24: #{_lambda_.45} parent=11 // pred_fallthru
          _
      $region12: #{_lambda_.45} parent=5 // pred_fallthru
        _
      %p145 = scmp.lt.s32.totalorder %s11, 4
      // Predicated region
      $region25: #{_lambda_.45} parent=5 // pred_check
        %p146 = pneg %p145
      $region26: #{_lambda_.45} parent=5 // pred_check_branch
        %148 = sbr.rel (%p146) target = $region28
      $region27: #{_lambda_.45} parent=5 // pred_region
        // Predicated region
        $region29: #{_lambda_.45} parent=27 // pred_check
          %p149 = pneg %p31
        $region30: #{_lambda_.45} parent=27 // pred_check_branch
          %151 = sbr.rel (%p149) target = $region32
        $region31: #{_lambda_.45} parent=27 // pred_region
          %p152 = scmp.lt.s32.totalorder %s11, 3
          %s153 = scalar_select %p152, %s11, 3
          %s154 = smul.addr %s153, 2
          %s155 = smul.addr %s154, 2
          %s156 = scalar_lea.vmem %s0, %s155
        $region32: #{_lambda_.45} parent=27 // pred_fallthru
          _
      $region28: #{_lambda_.45} parent=5 // pred_fallthru
        _
      %p157 = scmp.le.s32.totalorder 1, %s11
      %p158 = scmp.lt.s32.totalorder %s11, 5
      %p159 = pnand %p157, %p158
      %p160 = pneg %p159
      // Predicated region
      $region33: #{_lambda_.45} parent=5 // pred_check
        _
      $region34: #{_lambda_.45} parent=5 // pred_check_branch
        %162 = sbr.rel (%p159) target = $region36
      $region35: #{_lambda_.45} parent=5 // pred_region
        %s163 = ssub.s32 %s11, 1
        %p164 = scmp.lt.s32.totalorder %s16, 3
        %s165 = scalar_select %p164, %s16, 3
        %s166 = smul.addr %s165, 2
        %s167 = smul.addr %s166, 2
        %s168 = scalar_lea.vmem %s0, %s167
        %p169 = pneg %p37
        %p170 = pneg %p34
        %p171 = pneg %p58
        %p172 = pneg %p55
        %p173 = pneg %p79
        %p174 = pneg %p76
        %p175 = pneg %p100
        %p176 = pneg %p97
        %p177 = pneg %p121
        %p178 = pneg %p118
        %p179 = scmp.lt.s32.totalorder %s16, 3
        %s180 = scalar_select %p179, %s16, 3
        %s181 = smul.addr %s180, 2
        %s182 = smul.addr %s181, 2
        %s183 = scalar_lea.vmem %s0, %s182
        %p185 = scmp.eq.s32.totalorder %s16, 0
        // Predicated region
        $region37: #{_lambda_.45} parent=35 // pred_check
          %p186 = pneg %p185
        $region38: #{_lambda_.45} parent=35 // pred_check_branch
          %188 = sbr.rel (%p186) target = $region40
        $region39: #{_lambda_.45} parent=35 // pred_region
          %vm189 = vcmask 517120
          %190 = vst.msk [vmem:[#allocation2] sm:$0x3] %vm189, 0.0
          %191 = vst.msk [vmem:[#allocation3] sm:$0x3] %vm189, 0.0
        $region40: #{_lambda_.45} parent=35 // pred_fallthru
          _
        %v192 = vld [vmem:[%s183] sm:$0xf]
        %v193 = vld [vmem:[#allocation2] sm:$0x3]
        %v194 = vpack.c.bf16 %v193, %v193
        %v195 = vld [vmem:[%s1] sm:$0xff]
        %v196 = vld [vmem:[%s1 + $0x8] sm:$0xff]
        %v197 = vld [vmem:[%s1 + $0x10] sm:$0xff]
        %v198 = vld [vmem:[%s1 + $0x18] sm:$0xff]
        %v199 = vld [vmem:[%s1 + $0x20] sm:$0xff]
        %v200 = vld [vmem:[%s1 + $0x28] sm:$0xff]
        %v201 = vld [vmem:[%s1 + $0x30] sm:$0xff]
        %v202 = vld [vmem:[%s1 + $0x38] sm:$0xff]
        %v211 = vunpack.c.l.b16 %v195
        %v212 = vunpack.c.h.b16 %v195
        %v213 = vunpack.c.l.b16 %v196
        %v214 = vunpack.c.h.b16 %v196
        %v215 = vunpack.c.l.b16 %v197
        %v216 = vunpack.c.h.b16 %v197
        %v217 = vunpack.c.l.b16 %v198
        %v218 = vunpack.c.h.b16 %v198
        %v219 = vunpack.c.l.b16 %v199
        %v220 = vunpack.c.h.b16 %v199
        %v221 = vunpack.c.l.b16 %v200
        %v222 = vunpack.c.h.b16 %v200
        %v223 = vunpack.c.l.b16 %v201
        %v224 = vunpack.c.h.b16 %v201
        %v225 = vunpack.c.l.b16 %v202
        %v226 = vunpack.c.h.b16 %v202
        %v227 = vpack.c.b16 %v213, %v211
        %v228 = vpack.c.b16 %v214, %v212
        %v229 = vpack.c.b16 %v217, %v215
        %v230 = vpack.c.b16 %v218, %v216
        %v231 = vpack.c.b16 %v221, %v219
        %v232 = vpack.c.b16 %v222, %v220
        %v233 = vpack.c.b16 %v225, %v223
        %v234 = vpack.c.b16 %v226, %v224
        %vm243 = vcmask 523264
        %v245 = vsel %vm243, %v194, 0
        %247 = vmatprep.subr.bf16.mxu0 %v228
        %248 = vmatpush1.bf16.msra.mxu0 %v227
        %249 = vmatprep.subr.bf16.mxu0 %v230
        %250 = vmatpush1.bf16.msra.mxu0 %v229
        %251 = vmatprep.subr.bf16.mxu0 %v232
        %252 = vmatpush1.bf16.msra.mxu0 %v231
        %253 = vmatprep.subr.bf16.mxu0 %v234
        %254 = vmatpush1.bf16.msra.mxu0 %v233
        %255 = vmatprep.subr.bf16.mxu0 0
        %256 = vmatpush1.bf16.msra.mxu0 0
        %257 = vmatprep.subr.bf16.mxu0 0
        %258 = vmatpush1.bf16.msra.mxu0 0
        %259 = vmatprep.subr.bf16.mxu0 0
        %260 = vmatpush1.bf16.msra.mxu0 0
        %261 = vmatprep.subr.bf16.mxu0 0
        %262 = vmatpush1.bf16.msra.mxu0 0
        %263 = vmatprep.subr.bf16.mxu0 0
        %264 = vmatpush1.bf16.msra.mxu0 0
        %265 = vmatprep.subr.bf16.mxu0 0
        %266 = vmatpush1.bf16.msra.mxu0 0
        %267 = vmatprep.subr.bf16.mxu0 0
        %268 = vmatpush1.bf16.msra.mxu0 0
        %269 = vmatprep.subr.bf16.mxu0 0
        %270 = vmatpush1.bf16.msra.mxu0 0
        %271 = vmatprep.subr.bf16.mxu0 0
        %272 = vmatpush1.bf16.msra.mxu0 0
        %273 = vmatprep.subr.bf16.mxu0 0
        %274 = vmatpush1.bf16.msra.mxu0 0
        %275 = vmatprep.subr.bf16.mxu0 0
        %276 = vmatpush1.bf16.msra.mxu0 0
        %277 = vmatprep.subr.bf16.mxu0 0
        %278 = vmatpush1.bf16.msra.mxu0 0
        %279 = vmatprep.mubr.bf16.mxu0 0
        %280 = vmatmul.mubr.bf16.gmra.mrb[0].mxu0 %v245
        %v281 = vpop.f32.mrb[0].mxu0
        %v282 = vadd.f32 0.0, %v281
        %v283 = vpop.f32.mrb[0].mxu0
        %v284 = vadd.f32 0.0, %v283
        %v285 = vpop.f32.mrb[0].mxu0
        %v286 = vpop.f32.mrb[0].mxu0
        %287 = vdwg.mxu0
        %v290 = vcombine.low %v282, %v284
        %v292 = vunpack.c.l.s4 1983009808
        %v293 = vunpack.c.0.s8 %v292
        %v294 = vlaneseq
        %v295 = vshrl.u32 %v294, 7
        %v296 = vsub.s32 %v293, %v295
        %v297 = vrot.slane %v290, %v296
        %v299 = vadd.f32 %v192, %v297
        %v300 = vxor.u32 %v299, 2147483648
        %v301 = vmul.f32 %v300, 1.442695
        %v302 = vpow.pop %v301
        %v303 = vadd.f32 %v302, 1.0
        %v304 = vrcp.pop %v303
        %v305 = vmul.f32 1.0, %v304
        %v307 = vrot.slane %v299, 2
        %v309 = vtanh.pop %v307
        %310 = vrot.lane.b32.xlu0 %v299, 64
        %v311 = vpop.permute.xlu0 %310
        %v312 = vrot.slane %v311, 2
        %v314 = vxor.u32 %v312, 2147483648
        %v315 = vmul.f32 %v314, 1.442695
        %v316 = vpow.pop %v315
        %v317 = vadd.f32 %v316, 1.0
        %v318 = vrcp.pop %v317
        %v319 = vmul.f32 1.0, %v318
        %v320 = vld [vmem:[#allocation3] sm:$0x3]
        %v323 = vunpack.c.l.s4 1983009808
        %v324 = vunpack.c.0.s8 %v323
        %v325 = vlaneseq
        %v326 = vshrl.u32 %v325, 7
        %v327 = vsub.s32 %v324, %v326
        %v328 = vrot.slane %v320, %v327
        %329 = vrot.lane.b32.xlu0 %v328, 64
        %v330 = vpop.permute.xlu0 %329
        %v332 = vmul.f32 %v305, %v330
        %v333 = vmul.f32 %v305, %v309
        %335 = vrot.lane.b32.xlu0 %v333, 64
        %v336 = vpop.permute.xlu0 %335
        %v338 = vadd.f32 %v332, %v336
        %v339 = vtanh.pop %v338
        %341 = vrot.lane.b32.xlu0 %v339, 64
        %v342 = vpop.permute.xlu0 %341
        %v344 = vmul.f32 %v319, %v342
        %v347 = vunpack.c.l.s4 1983009808
        %v348 = vunpack.c.0.s8 %v347
        %v349 = vlaneseq
        %v350 = vshrl.u32 %v349, 7
        %v351 = vsub.s32 %v348, %v350
        %v352 = vrot.slane %v338, %v351
        %353 = vrot.lane.b32.xlu0 %v352, 64
        %v354 = vpop.permute.xlu0 %353
        %vm356 = vcmask 517120
        %357 = vst.msk [vmem:[#allocation3] sm:$0x3] %vm356, %v354
        %358 = vst.msk [vmem:[#allocation2] sm:$0x3] %vm356, %v344
        %p359 = scmp.eq.s32.totalorder %s16, 3
        // Predicated region
        $region41: #{_lambda_.45} parent=35 // pred_check
          %p360 = pneg %p359
        $region42: #{_lambda_.45} parent=35 // pred_check_branch
          %362 = sbr.rel (%p360) target = $region44
        $region43: #{_lambda_.45} parent=35 // pred_region
          %v363 = vpack.c.bf16 %v344, %v344
          %v364 = vld [vmem:[%s2] sm:$0xf]
          %v365 = vld [vmem:[%s2 + $0x4] sm:$0xf]
          %v366 = vld [vmem:[%s2 + $0x8] sm:$0xf]
          %v367 = vld [vmem:[%s2 + $0xc] sm:$0xf]
          %v368 = vld [vmem:[%s2 + $0x10] sm:$0xf]
          %v369 = vld [vmem:[%s2 + $0x14] sm:$0xf]
          %v370 = vld [vmem:[%s2 + $0x18] sm:$0xf]
          %v371 = vld [vmem:[%s2 + $0x1c] sm:$0xf]
          %v372 = vld [vmem:[%s3] sm:$0x1]
          %v374 = vlaneseq
          %v375 = vshrl.u32 %v374, 7
          %v376 = vsub.s32 0, %v375
          %v377 = vrot.slane %v372, %v376
          %v387 = vunpack.c.l.b16 %v364
          %v388 = vunpack.c.l.b16 %v365
          %v389 = vunpack.c.l.b16 %v366
          %v390 = vunpack.c.l.b16 %v367
          %v391 = vunpack.c.l.b16 %v368
          %v392 = vunpack.c.l.b16 %v369
          %v393 = vunpack.c.l.b16 %v370
          %v394 = vunpack.c.l.b16 %v371
          %v395 = vpack.c.b16 %v388, %v387
          %v396 = vpack.c.b16 %v390, %v389
          %v397 = vpack.c.b16 %v392, %v391
          %v398 = vpack.c.b16 %v394, %v393
          %v404 = vsel %vm243, %v363, 0
          %406 = vmatprep.subr.bf16.mxu0 0
          %407 = vmatpush1.bf16.msra.mxu0 %v395
          %408 = vmatprep.subr.bf16.mxu0 0
          %409 = vmatpush1.bf16.msra.mxu0 %v396
          %410 = vmatprep.subr.bf16.mxu0 0
          %411 = vmatpush1.bf16.msra.mxu0 %v397
          %412 = vmatprep.subr.bf16.mxu0 0
          %413 = vmatpush1.bf16.msra.mxu0 %v398
          %414 = vmatprep.subr.bf16.mxu0 0
          %415 = vmatpush1.bf16.msra.mxu0 0
          %416 = vmatprep.subr.bf16.mxu0 0
          %417 = vmatpush1.bf16.msra.mxu0 0
          %418 = vmatprep.subr.bf16.mxu0 0
          %419 = vmatpush1.bf16.msra.mxu0 0
          %420 = vmatprep.subr.bf16.mxu0 0
          %421 = vmatpush1.bf16.msra.mxu0 0
          %422 = vmatprep.subr.bf16.mxu0 0
          %423 = vmatpush1.bf16.msra.mxu0 0
          %424 = vmatprep.subr.bf16.mxu0 0
          %425 = vmatpush1.bf16.msra.mxu0 0
          %426 = vmatprep.subr.bf16.mxu0 0
          %427 = vmatpush1.bf16.msra.mxu0 0
          %428 = vmatprep.subr.bf16.mxu0 0
          %429 = vmatpush1.bf16.msra.mxu0 0
          %430 = vmatprep.subr.bf16.mxu0 0
          %431 = vmatpush1.bf16.msra.mxu0 0
          %432 = vmatprep.subr.bf16.mxu0 0
          %433 = vmatpush1.bf16.msra.mxu0 0
          %434 = vmatprep.subr.bf16.mxu0 0
          %435 = vmatpush1.bf16.msra.mxu0 0
          %436 = vmatprep.subr.bf16.mxu0 0
          %437 = vmatpush1.bf16.msra.mxu0 0
          %438 = vmatprep.mubr.bf16.mxu0 0
          %439 = vmatmul.mubr.bf16.gmra.mrb[0].mxu0 %v404
          %v440 = vpop.f32.mrb[0].mxu0
          %v441 = vadd.f32 %v377, %v440
          %v442 = vpop.f32.mrb[0].mxu0
          %v443 = vpop.f32.mrb[0].mxu0
          %v444 = vpop.f32.mrb[0].mxu0
          %445 = vdwg.mxu0
          %vm446 = vcmask 74752
          %447 = vst.msk [vmem:[#allocation4] sm:$0x3] %vm446, %v441
        $region44: #{_lambda_.45} parent=35 // pred_fallthru
          _
        // Predicated region
        $region45: #{_lambda_.45} parent=35 // pred_check
          %p448 = pneg %p118
        $region46: #{_lambda_.45} parent=35 // pred_check_branch
          %450 = sbr.rel (%p448) target = $region48
        $region47: #{_lambda_.45} parent=35 // pred_region
          %s452 = ssub.s32 32, 32
          %453 = vsyncadd [#allocation5], %s452
          %s455 = sshll.u32 [#allocation4], 4
          %s456 = int_to_ptr.vmem [resolvable:$true] %s455
          %458 = dma.vmem_to_hbm [thread:$0]  %s456, 32, %s4, [#allocation5]
        $region48: #{_lambda_.45} parent=35 // pred_fallthru
          _
        // Predicated region
        $region49: #{_lambda_.45} parent=35 // pred_check
          %p459 = pneg %p118
        $region50: #{_lambda_.45} parent=35 // pred_check_branch
          %461 = sbr.rel (%p459) target = $region52
        $region51: #{_lambda_.45} parent=35 // pred_region
          %462 = dma.done [#allocation5], 32
        $region52: #{_lambda_.45} parent=35 // pred_fallthru
          _
      $region36: #{_lambda_.45} parent=5 // pred_fallthru
        _
      %p463 = scmp.le.s32.totalorder 2, %s11
      // Predicated region
      $region53: #{_lambda_.45} parent=5 // pred_check
        %p464 = pneg %p463
      $region54: #{_lambda_.45} parent=5 // pred_check_branch
        %466 = sbr.rel (%p464) target = $region56
      $region55: #{_lambda_.45} parent=5 // pred_region
        %s467 = ssub.s32 %s11, 2
      $region56: #{_lambda_.45} parent=5 // pred_fallthru
        _
    $region6: #{_lambda_.45} parent=1 // loop_footer
      %s15 = sadd.s32 1, %s11
    $region7: #{_lambda_.45} parent=1 // loop_footer_branch
      %10 = sbr.rel target = $region3
    $region8: #{_lambda_.45} parent=1 // loop_exit
      _
    %468 = vsyncpa [#allocation5], 1
    %s469 = scalar_lea.sflag [#allocation5], 1
    %470 = vsyncpa %s469, 1

// kernel: _lambda_.42
$region0: #{_lambda_.42}
  #allocation0 [shape = 'u32[]', space=smem, size = 0x4, offset = 0x4, fixed_abs, tag = 'smem constant byte address 0x4 - core index']
  #allocation1 [shape = 'u32[144,128]{1,0:T(1,128)}', space=vmem, size = 0x12000, scoped, tag = 'internal scratch']
  %s0 = inlined_call_operand.vmem [shape: bf16[8,1152], index: 0, kind: input, shape index: {}]
  %s1 = inlined_call_operand.vmem [shape: bf16[1152,128], index: 1, kind: input, shape index: {}]
  %s2 = inlined_call_operand.vmem [shape: f32[1,128], index: 2, kind: input, shape index: {}]
  %s3 = inlined_call_operand.vmem [shape: bf16[8,128], index: 3, kind: output, shape index: {}]
  %s4 = sld [smem:[#allocation0]]
  $region22: #{_lambda_.42} parent=0
    _
  %s6 = ssub.s32 1, %s4
  %s7 = scalar_select 0, %s6, %s4
  // Predicated region
  $region2: #{_lambda_.42} parent=0 // pred_check
    _
  $region3: #{_lambda_.42} parent=0 // pred_check_branch
    %9 = sbr.rel (0) target = $region5
  $region4: #{_lambda_.42} parent=0 // pred_region
    _
  $region5: #{_lambda_.42} parent=0 // pred_fallthru
    _
  // Predicated region
  $region6: #{_lambda_.42} parent=0 // pred_check
    _
  $region7: #{_lambda_.42} parent=0 // pred_check_branch
    %11 = sbr.rel (0) target = $region9
  $region8: #{_lambda_.42} parent=0 // pred_region
    _
  $region9: #{_lambda_.42} parent=0 // pred_fallthru
    _
  // Predicated region
  $region10: #{_lambda_.42} parent=0 // pred_check
    _
  $region11: #{_lambda_.42} parent=0 // pred_check_branch
    %13 = sbr.rel (0) target = $region13
  $region12: #{_lambda_.42} parent=0 // pred_region
    _
  $region13: #{_lambda_.42} parent=0 // pred_fallthru
    _
  %v15 = vld [vmem:[%s0] sm:$0xff]
  %v16 = vld [vmem:[%s0 + $0x8] sm:$0xff]
  %v17 = vld [vmem:[%s0 + $0x10] sm:$0xff]
  %v18 = vld [vmem:[%s0 + $0x18] sm:$0xff]
  %v19 = vld [vmem:[%s0 + $0x20] sm:$0xf]
  %v20 = vld [vmem:[%s1] sm:$0xf]
  %v21 = vld [vmem:[%s1 + $0x4] sm:$0xf]
  %v22 = vld [vmem:[%s1 + $0x8] sm:$0xf]
  %v23 = vld [vmem:[%s1 + $0xc] sm:$0xf]
  %v24 = vld [vmem:[%s1 + $0x10] sm:$0xf]
  %v25 = vld [vmem:[%s1 + $0x14] sm:$0xf]
  %v26 = vld [vmem:[%s1 + $0x18] sm:$0xf]
  %v27 = vld [vmem:[%s1 + $0x1c] sm:$0xf]
  %v28 = vld [vmem:[%s1 + $0x20] sm:$0xf]
  %v29 = vld [vmem:[%s1 + $0x24] sm:$0xf]
  %v30 = vld [vmem:[%s1 + $0x28] sm:$0xf]
  %v31 = vld [vmem:[%s1 + $0x2c] sm:$0xf]
  %v32 = vld [vmem:[%s1 + $0x30] sm:$0xf]
  %v33 = vld [vmem:[%s1 + $0x34] sm:$0xf]
  %v34 = vld [vmem:[%s1 + $0x38] sm:$0xf]
  %v35 = vld [vmem:[%s1 + $0x3c] sm:$0xf]
  %v36 = vld [vmem:[%s1 + $0x40] sm:$0xf]
  %v37 = vld [vmem:[%s1 + $0x44] sm:$0xf]
  %v38 = vld [vmem:[%s1 + $0x48] sm:$0xf]
  %v39 = vld [vmem:[%s1 + $0x4c] sm:$0xf]
  %v40 = vld [vmem:[%s1 + $0x50] sm:$0xf]
  %v41 = vld [vmem:[%s1 + $0x54] sm:$0xf]
  %v42 = vld [vmem:[%s1 + $0x58] sm:$0xf]
  %v43 = vld [vmem:[%s1 + $0x5c] sm:$0xf]
  %v44 = vld [vmem:[%s1 + $0x60] sm:$0xf]
  %v45 = vld [vmem:[%s1 + $0x64] sm:$0xf]
  %v46 = vld [vmem:[%s1 + $0x68] sm:$0xf]
  %v47 = vld [vmem:[%s1 + $0x6c] sm:$0xf]
  %v48 = vld [vmem:[%s1 + $0x70] sm:$0xf]
  %v49 = vld [vmem:[%s1 + $0x74] sm:$0xf]
  %v50 = vld [vmem:[%s1 + $0x78] sm:$0xf]
  %v51 = vld [vmem:[%s1 + $0x7c] sm:$0xf]
  %v52 = vld [vmem:[%s1 + $0x80] sm:$0xf]
  %v53 = vld [vmem:[%s1 + $0x84] sm:$0xf]
  %v54 = vld [vmem:[%s1 + $0x88] sm:$0xf]
  %v55 = vld [vmem:[%s1 + $0x8c] sm:$0xf]
  %v56 = vld [vmem:[%s1 + $0x90] sm:$0xf]
  %v57 = vld [vmem:[%s1 + $0x94] sm:$0xf]
  %v58 = vld [vmem:[%s1 + $0x98] sm:$0xf]
  %v59 = vld [vmem:[%s1 + $0x9c] sm:$0xf]
  %v60 = vld [vmem:[%s1 + $0xa0] sm:$0xf]
  %v61 = vld [vmem:[%s1 + $0xa4] sm:$0xf]
  %v62 = vld [vmem:[%s1 + $0xa8] sm:$0xf]
  %v63 = vld [vmem:[%s1 + $0xac] sm:$0xf]
  %v64 = vld [vmem:[%s1 + $0xb0] sm:$0xf]
  %v65 = vld [vmem:[%s1 + $0xb4] sm:$0xf]
  %v66 = vld [vmem:[%s1 + $0xb8] sm:$0xf]
  %v67 = vld [vmem:[%s1 + $0xbc] sm:$0xf]
  %v68 = vld [vmem:[%s1 + $0xc0] sm:$0xf]
  %v69 = vld [vmem:[%s1 + $0xc4] sm:$0xf]
  %v70 = vld [vmem:[%s1 + $0xc8] sm:$0xf]
  %v71 = vld [vmem:[%s1 + $0xcc] sm:$0xf]
  %v72 = vld [vmem:[%s1 + $0xd0] sm:$0xf]
  %v73 = vld [vmem:[%s1 + $0xd4] sm:$0xf]
  %v74 = vld [vmem:[%s1 + $0xd8] sm:$0xf]
  %v75 = vld [vmem:[%s1 + $0xdc] sm:$0xf]
  %v76 = vld [vmem:[%s1 + $0xe0] sm:$0xf]
  %v77 = vld [vmem:[%s1 + $0xe4] sm:$0xf]
  %v78 = vld [vmem:[%s1 + $0xe8] sm:$0xf]
  %v79 = vld [vmem:[%s1 + $0xec] sm:$0xf]
  %v80 = vld [vmem:[%s1 + $0xf0] sm:$0xf]
  %v81 = vld [vmem:[%s1 + $0xf4] sm:$0xf]
  %v82 = vld [vmem:[%s1 + $0xf8] sm:$0xf]
  %v83 = vld [vmem:[%s1 + $0xfc] sm:$0xf]
  %v84 = vld [vmem:[%s1 + $0x100] sm:$0xf]
  %v85 = vld [vmem:[%s1 + $0x104] sm:$0xf]
  %v86 = vld [vmem:[%s1 + $0x108] sm:$0xf]
  %v87 = vld [vmem:[%s1 + $0x10c] sm:$0xf]
  %v88 = vld [vmem:[%s1 + $0x110] sm:$0xf]
  %v89 = vld [vmem:[%s1 + $0x114] sm:$0xf]
  %v90 = vld [vmem:[%s1 + $0x118] sm:$0xf]
  %v91 = vld [vmem:[%s1 + $0x11c] sm:$0xf]
  %v92 = vld [vmem:[%s1 + $0x120] sm:$0xf]
  %v93 = vld [vmem:[%s1 + $0x124] sm:$0xf]
  %v94 = vld [vmem:[%s1 + $0x128] sm:$0xf]
  %v95 = vld [vmem:[%s1 + $0x12c] sm:$0xf]
  %v96 = vld [vmem:[%s1 + $0x130] sm:$0xf]
  %v97 = vld [vmem:[%s1 + $0x134] sm:$0xf]
  %v98 = vld [vmem:[%s1 + $0x138] sm:$0xf]
  %v99 = vld [vmem:[%s1 + $0x13c] sm:$0xf]
  %v100 = vld [vmem:[%s1 + $0x140] sm:$0xf]
  %v101 = vld [vmem:[%s1 + $0x144] sm:$0xf]
  %v102 = vld [vmem:[%s1 + $0x148] sm:$0xf]
  %v103 = vld [vmem:[%s1 + $0x14c] sm:$0xf]
  %v104 = vld [vmem:[%s1 + $0x150] sm:$0xf]
  %v105 = vld [vmem:[%s1 + $0x154] sm:$0xf]
  %v106 = vld [vmem:[%s1 + $0x158] sm:$0xf]
  %v107 = vld [vmem:[%s1 + $0x15c] sm:$0xf]
  %v108 = vld [vmem:[%s1 + $0x160] sm:$0xf]
  %v109 = vld [vmem:[%s1 + $0x164] sm:$0xf]
  %v110 = vld [vmem:[%s1 + $0x168] sm:$0xf]
  %v111 = vld [vmem:[%s1 + $0x16c] sm:$0xf]
  %v112 = vld [vmem:[%s1 + $0x170] sm:$0xf]
  %v113 = vld [vmem:[%s1 + $0x174] sm:$0xf]
  %v114 = vld [vmem:[%s1 + $0x178] sm:$0xf]
  %v115 = vld [vmem:[%s1 + $0x17c] sm:$0xf]
  %v116 = vld [vmem:[%s1 + $0x180] sm:$0xf]
  %v117 = vld [vmem:[%s1 + $0x184] sm:$0xf]
  %v118 = vld [vmem:[%s1 + $0x188] sm:$0xf]
  %v119 = vld [vmem:[%s1 + $0x18c] sm:$0xf]
  %v120 = vld [vmem:[%s1 + $0x190] sm:$0xf]
  %v121 = vld [vmem:[%s1 + $0x194] sm:$0xf]
  %v122 = vld [vmem:[%s1 + $0x198] sm:$0xf]
  %v123 = vld [vmem:[%s1 + $0x19c] sm:$0xf]
  %v124 = vld [vmem:[%s1 + $0x1a0] sm:$0xf]
  %v125 = vld [vmem:[%s1 + $0x1a4] sm:$0xf]
  %v126 = vld [vmem:[%s1 + $0x1a8] sm:$0xf]
  %v127 = vld [vmem:[%s1 + $0x1ac] sm:$0xf]
  %v128 = vld [vmem:[%s1 + $0x1b0] sm:$0xf]
  %v129 = vld [vmem:[%s1 + $0x1b4] sm:$0xf]
  %v130 = vld [vmem:[%s1 + $0x1b8] sm:$0xf]
  %v131 = vld [vmem:[%s1 + $0x1bc] sm:$0xf]
  %v132 = vld [vmem:[%s1 + $0x1c0] sm:$0xf]
  %v133 = vld [vmem:[%s1 + $0x1c4] sm:$0xf]
  %v134 = vld [vmem:[%s1 + $0x1c8] sm:$0xf]
  %v135 = vld [vmem:[%s1 + $0x1cc] sm:$0xf]
  %v136 = vld [vmem:[%s1 + $0x1d0] sm:$0xf]
  %v137 = vld [vmem:[%s1 + $0x1d4] sm:$0xf]
  %v138 = vld [vmem:[%s1 + $0x1d8] sm:$0xf]
  %v139 = vld [vmem:[%s1 + $0x1dc] sm:$0xf]
  %v140 = vld [vmem:[%s1 + $0x1e0] sm:$0xf]
  %v141 = vld [vmem:[%s1 + $0x1e4] sm:$0xf]
  %v142 = vld [vmem:[%s1 + $0x1e8] sm:$0xf]
  %v143 = vld [vmem:[%s1 + $0x1ec] sm:$0xf]
  %v144 = vld [vmem:[%s1 + $0x1f0] sm:$0xf]
  %v145 = vld [vmem:[%s1 + $0x1f4] sm:$0xf]
  %v146 = vld [vmem:[%s1 + $0x1f8] sm:$0xf]
  %v147 = vld [vmem:[%s1 + $0x1fc] sm:$0xf]
  %v148 = vld [vmem:[%s1 + $0x200] sm:$0xf]
  %v149 = vld [vmem:[%s1 + $0x204] sm:$0xf]
  %v150 = vld [vmem:[%s1 + $0x208] sm:$0xf]
  %v151 = vld [vmem:[%s1 + $0x20c] sm:$0xf]
  %v152 = vld [vmem:[%s1 + $0x210] sm:$0xf]
  %v153 = vld [vmem:[%s1 + $0x214] sm:$0xf]
  %v154 = vld [vmem:[%s1 + $0x218] sm:$0xf]
  %v155 = vld [vmem:[%s1 + $0x21c] sm:$0xf]
  %v156 = vld [vmem:[%s1 + $0x220] sm:$0xf]
  %v157 = vld [vmem:[%s1 + $0x224] sm:$0xf]
  %v158 = vld [vmem:[%s1 + $0x228] sm:$0xf]
  %v159 = vld [vmem:[%s1 + $0x22c] sm:$0xf]
  %v160 = vld [vmem:[%s1 + $0x230] sm:$0xf]
  %v161 = vld [vmem:[%s1 + $0x234] sm:$0xf]
  %v162 = vld [vmem:[%s1 + $0x238] sm:$0xf]
  %v163 = vld [vmem:[%s1 + $0x23c] sm:$0xf]
  %v164 = vld [vmem:[%s2] sm:$0x1]
  %v166 = vlaneseq
  %v167 = vshrl.u32 %v166, 7
  %v168 = vsub.s32 0, %v167
  %v169 = vrot.slane %v164, %v168
  %v176 = vunpack.c.l.b16 %v15
  %v177 = vunpack.c.h.b16 %v15
  %v178 = vunpack.c.l.b16 %v16
  %v179 = vunpack.c.h.b16 %v16
  %v180 = vunpack.c.l.b16 %v17
  %v181 = vunpack.c.h.b16 %v17
  %v182 = vunpack.c.l.b16 %v18
  %v183 = vunpack.c.h.b16 %v18
  %v184 = vunpack.c.l.b16 %v19
  %v185 = vpack.c.b16 %v176, %v176
  %v186 = vpack.c.b16 %v177, %v177
  %v187 = vpack.c.b16 %v178, %v178
  %v188 = vpack.c.b16 %v179, %v179
  %v189 = vpack.c.b16 %v180, %v180
  %v190 = vpack.c.b16 %v181, %v181
  %v191 = vpack.c.b16 %v182, %v182
  %v192 = vpack.c.b16 %v183, %v183
  %v193 = vpack.c.b16 %v184, %v184
  %v347 = vunpack.c.l.b16 %v20
  %v348 = vunpack.c.l.b16 %v21
  %v349 = vunpack.c.l.b16 %v22
  %v350 = vunpack.c.l.b16 %v23
  %v351 = vunpack.c.l.b16 %v24
  %v352 = vunpack.c.l.b16 %v25
  %v353 = vunpack.c.l.b16 %v26
  %v354 = vunpack.c.l.b16 %v27
  %v355 = vunpack.c.l.b16 %v28
  %v356 = vunpack.c.l.b16 %v29
  %v357 = vunpack.c.l.b16 %v30
  %v358 = vunpack.c.l.b16 %v31
  %v359 = vunpack.c.l.b16 %v32
  %v360 = vunpack.c.l.b16 %v33
  %v361 = vunpack.c.l.b16 %v34
  %v362 = vunpack.c.l.b16 %v35
  %v363 = vunpack.c.l.b16 %v36
  %v364 = vunpack.c.l.b16 %v37
  %v365 = vunpack.c.l.b16 %v38
  %v366 = vunpack.c.l.b16 %v39
  %v367 = vunpack.c.l.b16 %v40
  %v368 = vunpack.c.l.b16 %v41
  %v369 = vunpack.c.l.b16 %v42
  %v370 = vunpack.c.l.b16 %v43
  %v371 = vunpack.c.l.b16 %v44
  %v372 = vunpack.c.l.b16 %v45
  %v373 = vunpack.c.l.b16 %v46
  %v374 = vunpack.c.l.b16 %v47
  %v375 = vunpack.c.l.b16 %v48
  %v376 = vunpack.c.l.b16 %v49
  %v377 = vunpack.c.l.b16 %v50
  %v378 = vunpack.c.l.b16 %v51
  %v379 = vunpack.c.l.b16 %v52
  %v380 = vunpack.c.l.b16 %v53
  %v381 = vunpack.c.l.b16 %v54
  %v382 = vunpack.c.l.b16 %v55
  %v383 = vunpack.c.l.b16 %v56
  %v384 = vunpack.c.l.b16 %v57
  %v385 = vunpack.c.l.b16 %v58
  %v386 = vunpack.c.l.b16 %v59
  %v387 = vunpack.c.l.b16 %v60
  %v388 = vunpack.c.l.b16 %v61
  %v389 = vunpack.c.l.b16 %v62
  %v390 = vunpack.c.l.b16 %v63
  %v391 = vunpack.c.l.b16 %v64
  %v392 = vunpack.c.l.b16 %v65
  %v393 = vunpack.c.l.b16 %v66
  %v394 = vunpack.c.l.b16 %v67
  %v395 = vunpack.c.l.b16 %v68
  %v396 = vunpack.c.l.b16 %v69
  %v397 = vunpack.c.l.b16 %v70
  %v398 = vunpack.c.l.b16 %v71
  %v399 = vunpack.c.l.b16 %v72
  %v400 = vunpack.c.l.b16 %v73
  %v401 = vunpack.c.l.b16 %v74
  %v402 = vunpack.c.l.b16 %v75
  %v403 = vunpack.c.l.b16 %v76
  %v404 = vunpack.c.l.b16 %v77
  %v405 = vunpack.c.l.b16 %v78
  %v406 = vunpack.c.l.b16 %v79
  %v407 = vunpack.c.l.b16 %v80
  %v408 = vunpack.c.l.b16 %v81
  %v409 = vunpack.c.l.b16 %v82
  %v410 = vunpack.c.l.b16 %v83
  %v411 = vunpack.c.l.b16 %v84
  %v412 = vunpack.c.l.b16 %v85
  %v413 = vunpack.c.l.b16 %v86
  %v414 = vunpack.c.l.b16 %v87
  %v415 = vunpack.c.l.b16 %v88
  %v416 = vunpack.c.l.b16 %v89
  %v417 = vunpack.c.l.b16 %v90
  %v418 = vunpack.c.l.b16 %v91
  %v419 = vunpack.c.l.b16 %v92
  %v420 = vunpack.c.l.b16 %v93
  %v421 = vunpack.c.l.b16 %v94
  %v422 = vunpack.c.l.b16 %v95
  %v423 = vunpack.c.l.b16 %v96
  %v424 = vunpack.c.l.b16 %v97
  %v425 = vunpack.c.l.b16 %v98
  %v426 = vunpack.c.l.b16 %v99
  %v427 = vunpack.c.l.b16 %v100
  %v428 = vunpack.c.l.b16 %v101
  %v429 = vunpack.c.l.b16 %v102
  %v430 = vunpack.c.l.b16 %v103
  %v431 = vunpack.c.l.b16 %v104
  %v432 = vunpack.c.l.b16 %v105
  %v433 = vunpack.c.l.b16 %v106
  %v434 = vunpack.c.l.b16 %v107
  %v435 = vunpack.c.l.b16 %v108
  %v436 = vunpack.c.l.b16 %v109
  %v437 = vunpack.c.l.b16 %v110
  %v438 = vunpack.c.l.b16 %v111
  %v439 = vunpack.c.l.b16 %v112
  %v440 = vunpack.c.l.b16 %v113
  %v441 = vunpack.c.l.b16 %v114
  %v442 = vunpack.c.l.b16 %v115
  %v443 = vunpack.c.l.b16 %v116
  %v444 = vunpack.c.l.b16 %v117
  %v445 = vunpack.c.l.b16 %v118
  %v446 = vunpack.c.l.b16 %v119
  %v447 = vunpack.c.l.b16 %v120
  %v448 = vunpack.c.l.b16 %v121
  %v449 = vunpack.c.l.b16 %v122
  %v450 = vunpack.c.l.b16 %v123
  %v451 = vunpack.c.l.b16 %v124
  %v452 = vunpack.c.l.b16 %v125
  %v453 = vunpack.c.l.b16 %v126
  %v454 = vunpack.c.l.b16 %v127
  %v455 = vunpack.c.l.b16 %v128
  %v456 = vunpack.c.l.b16 %v129
  %v457 = vunpack.c.l.b16 %v130
  %v458 = vunpack.c.l.b16 %v131
  %v459 = vunpack.c.l.b16 %v132
  %v460 = vunpack.c.l.b16 %v133
  %v461 = vunpack.c.l.b16 %v134
  %v462 = vunpack.c.l.b16 %v135
  %v463 = vunpack.c.l.b16 %v136
  %v464 = vunpack.c.l.b16 %v137
  %v465 = vunpack.c.l.b16 %v138
  %v466 = vunpack.c.l.b16 %v139
  %v467 = vunpack.c.l.b16 %v140
  %v468 = vunpack.c.l.b16 %v141
  %v469 = vunpack.c.l.b16 %v142
  %v470 = vunpack.c.l.b16 %v143
  %v471 = vunpack.c.l.b16 %v144
  %v472 = vunpack.c.l.b16 %v145
  %v473 = vunpack.c.l.b16 %v146
  %v474 = vunpack.c.l.b16 %v147
  %v475 = vunpack.c.l.b16 %v148
  %v476 = vunpack.c.l.b16 %v149
  %v477 = vunpack.c.l.b16 %v150
  %v478 = vunpack.c.l.b16 %v151
  %v479 = vunpack.c.l.b16 %v152
  %v480 = vunpack.c.l.b16 %v153
  %v481 = vunpack.c.l.b16 %v154
  %v482 = vunpack.c.l.b16 %v155
  %v483 = vunpack.c.l.b16 %v156
  %v484 = vunpack.c.l.b16 %v157
  %v485 = vunpack.c.l.b16 %v158
  %v486 = vunpack.c.l.b16 %v159
  %v487 = vunpack.c.l.b16 %v160
  %v488 = vunpack.c.l.b16 %v161
  %v489 = vunpack.c.l.b16 %v162
  %v490 = vunpack.c.l.b16 %v163
  %v491 = vpack.c.b16 %v348, %v347
  %v492 = vpack.c.b16 %v350, %v349
  %v493 = vpack.c.b16 %v352, %v351
  %v494 = vpack.c.b16 %v354, %v353
  %v495 = vpack.c.b16 %v356, %v355
  %v496 = vpack.c.b16 %v358, %v357
  %v497 = vpack.c.b16 %v360, %v359
  %v498 = vpack.c.b16 %v362, %v361
  %v499 = vpack.c.b16 %v364, %v363
  %v500 = vpack.c.b16 %v366, %v365
  %v501 = vpack.c.b16 %v368, %v367
  %v502 = vpack.c.b16 %v370, %v369
  %v503 = vpack.c.b16 %v372, %v371
  %v504 = vpack.c.b16 %v374, %v373
  %v505 = vpack.c.b16 %v376, %v375
  %v506 = vpack.c.b16 %v378, %v377
  %v507 = vpack.c.b16 %v380, %v379
  %v508 = vpack.c.b16 %v382, %v381
  %v509 = vpack.c.b16 %v384, %v383
  %v510 = vpack.c.b16 %v386, %v385
  %v511 = vpack.c.b16 %v388, %v387
  %v512 = vpack.c.b16 %v390, %v389
  %v513 = vpack.c.b16 %v392, %v391
  %v514 = vpack.c.b16 %v394, %v393
  %v515 = vpack.c.b16 %v396, %v395
  %v516 = vpack.c.b16 %v398, %v397
  %v517 = vpack.c.b16 %v400, %v399
  %v518 = vpack.c.b16 %v402, %v401
  %v519 = vpack.c.b16 %v404, %v403
  %v520 = vpack.c.b16 %v406, %v405
  %v521 = vpack.c.b16 %v408, %v407
  %v522 = vpack.c.b16 %v410, %v409
  %v523 = vpack.c.b16 %v412, %v411
  %v524 = vpack.c.b16 %v414, %v413
  %v525 = vpack.c.b16 %v416, %v415
  %v526 = vpack.c.b16 %v418, %v417
  %v527 = vpack.c.b16 %v420, %v419
  %v528 = vpack.c.b16 %v422, %v421
  %v529 = vpack.c.b16 %v424, %v423
  %v530 = vpack.c.b16 %v426, %v425
  %v531 = vpack.c.b16 %v428, %v427
  %v532 = vpack.c.b16 %v430, %v429
  %v533 = vpack.c.b16 %v432, %v431
  %v534 = vpack.c.b16 %v434, %v433
  %v535 = vpack.c.b16 %v436, %v435
  %v536 = vpack.c.b16 %v438, %v437
  %v537 = vpack.c.b16 %v440, %v439
  %v538 = vpack.c.b16 %v442, %v441
  %v539 = vpack.c.b16 %v444, %v443
  %v540 = vpack.c.b16 %v446, %v445
  %v541 = vpack.c.b16 %v448, %v447
  %v542 = vpack.c.b16 %v450, %v449
  %v543 = vpack.c.b16 %v452, %v451
  %v544 = vpack.c.b16 %v454, %v453
  %v545 = vpack.c.b16 %v456, %v455
  %v546 = vpack.c.b16 %v458, %v457
  %v547 = vpack.c.b16 %v460, %v459
  %v548 = vpack.c.b16 %v462, %v461
  %v549 = vpack.c.b16 %v464, %v463
  %v550 = vpack.c.b16 %v466, %v465
  %v551 = vpack.c.b16 %v468, %v467
  %v552 = vpack.c.b16 %v470, %v469
  %v553 = vpack.c.b16 %v472, %v471
  %v554 = vpack.c.b16 %v474, %v473
  %v555 = vpack.c.b16 %v476, %v475
  %v556 = vpack.c.b16 %v478, %v477
  %v557 = vpack.c.b16 %v480, %v479
  %v558 = vpack.c.b16 %v482, %v481
  %v559 = vpack.c.b16 %v484, %v483
  %v560 = vpack.c.b16 %v486, %v485
  %v561 = vpack.c.b16 %v488, %v487
  %v562 = vpack.c.b16 %v490, %v489
  %635 = vmatprep.subr.bf16.mxu0 0
  %636 = vmatpush1.bf16.msra.mxu0 %v491
  %637 = vmatprep.subr.bf16.mxu0 0
  %638 = vmatpush1.bf16.msra.mxu0 %v492
  %639 = vmatprep.subr.bf16.mxu0 0
  %640 = vmatpush1.bf16.msra.mxu0 %v493
  %641 = vmatprep.subr.bf16.mxu0 0
  %642 = vmatpush1.bf16.msra.mxu0 %v494
  %643 = vmatprep.subr.bf16.mxu0 0
  %644 = vmatpush1.bf16.msra.mxu0 %v495
  %645 = vmatprep.subr.bf16.mxu0 0
  %646 = vmatpush1.bf16.msra.mxu0 %v496
  %647 = vmatprep.subr.bf16.mxu0 0
  %648 = vmatpush1.bf16.msra.mxu0 %v497
  %649 = vmatprep.subr.bf16.mxu0 0
  %650 = vmatpush1.bf16.msra.mxu0 %v498
  %651 = vmatprep.subr.bf16.mxu0 0
  %652 = vmatpush1.bf16.msra.mxu0 %v499
  %653 = vmatprep.subr.bf16.mxu0 0
  %654 = vmatpush1.bf16.msra.mxu0 %v500
  %655 = vmatprep.subr.bf16.mxu0 0
  %656 = vmatpush1.bf16.msra.mxu0 %v501
  %657 = vmatprep.subr.bf16.mxu0 0
  %658 = vmatpush1.bf16.msra.mxu0 %v502
  %659 = vmatprep.subr.bf16.mxu0 0
  %660 = vmatpush1.bf16.msra.mxu0 %v503
  %661 = vmatprep.subr.bf16.mxu0 0
  %662 = vmatpush1.bf16.msra.mxu0 %v504
  %663 = vmatprep.subr.bf16.mxu0 0
  %664 = vmatpush1.bf16.msra.mxu0 %v505
  %665 = vmatprep.subr.bf16.mxu0 0
  %666 = vmatpush1.bf16.msra.mxu0 %v506
  %667 = vmatprep.mubr.bf16.mxu0 %v186
  %668 = vmatmul.mubr.bf16.gmra.mrb[0].mxu0 %v185
  %v669 = vpop.f32.mrb[0].mxu0
  %v670 = vadd.f32 %v169, %v669
  %v671 = vpop.f32.mrb[0].mxu0
  %v672 = vpop.f32.mrb[0].mxu0
  %v673 = vpop.f32.mrb[0].mxu0
  %674 = vdwg.mxu0
  %675 = vmatprep.subr.bf16.mxu0 0
  %676 = vmatpush1.bf16.msra.mxu0 %v507
  %677 = vmatprep.subr.bf16.mxu0 0
  %678 = vmatpush1.bf16.msra.mxu0 %v508
  %679 = vmatprep.subr.bf16.mxu0 0
  %680 = vmatpush1.bf16.msra.mxu0 %v509
  %681 = vmatprep.subr.bf16.mxu0 0
  %682 = vmatpush1.bf16.msra.mxu0 %v510
  %683 = vmatprep.subr.bf16.mxu0 0
  %684 = vmatpush1.bf16.msra.mxu0 %v511
  %685 = vmatprep.subr.bf16.mxu0 0
  %686 = vmatpush1.bf16.msra.mxu0 %v512
  %687 = vmatprep.subr.bf16.mxu0 0
  %688 = vmatpush1.bf16.msra.mxu0 %v513
  %689 = vmatprep.subr.bf16.mxu0 0
  %690 = vmatpush1.bf16.msra.mxu0 %v514
  %691 = vmatprep.subr.bf16.mxu0 0
  %692 = vmatpush1.bf16.msra.mxu0 %v515
  %693 = vmatprep.subr.bf16.mxu0 0
  %694 = vmatpush1.bf16.msra.mxu0 %v516
  %695 = vmatprep.subr.bf16.mxu0 0
  %696 = vmatpush1.bf16.msra.mxu0 %v517
  %697 = vmatprep.subr.bf16.mxu0 0
  %698 = vmatpush1.bf16.msra.mxu0 %v518
  %699 = vmatprep.subr.bf16.mxu0 0
  %700 = vmatpush1.bf16.msra.mxu0 %v519
  %701 = vmatprep.subr.bf16.mxu0 0
  %702 = vmatpush1.bf16.msra.mxu0 %v520
  %703 = vmatprep.subr.bf16.mxu0 0
  %704 = vmatpush1.bf16.msra.mxu0 %v521
  %705 = vmatprep.subr.bf16.mxu0 0
  %706 = vmatpush1.bf16.msra.mxu0 %v522
  %707 = vmatprep.mubr.bf16.mxu0 %v188
  %708 = vmatmul.mubr.bf16.gmra.mrb[0].mxu0 %v187
  %v709 = vpop.f32.mrb[0].mxu0
  %v710 = vadd.f32 %v670, %v709
  %v711 = vpop.f32.mrb[0].mxu0
  %v712 = vpop.f32.mrb[0].mxu0
  %v713 = vpop.f32.mrb[0].mxu0
  %714 = vdwg.mxu0
  %715 = vmatprep.subr.bf16.mxu0 0
  %716 = vmatpush1.bf16.msra.mxu0 %v523
  %717 = vmatprep.subr.bf16.mxu0 0
  %718 = vmatpush1.bf16.msra.mxu0 %v524
  %719 = vmatprep.subr.bf16.mxu0 0
  %720 = vmatpush1.bf16.msra.mxu0 %v525
  %721 = vmatprep.subr.bf16.mxu0 0
  %722 = vmatpush1.bf16.msra.mxu0 %v526
  %723 = vmatprep.subr.bf16.mxu0 0
  %724 = vmatpush1.bf16.msra.mxu0 %v527
  %725 = vmatprep.subr.bf16.mxu0 0
  %726 = vmatpush1.bf16.msra.mxu0 %v528
  %727 = vmatprep.subr.bf16.mxu0 0
  %728 = vmatpush1.bf16.msra.mxu0 %v529
  %729 = vmatprep.subr.bf16.mxu0 0
  %730 = vmatpush1.bf16.msra.mxu0 %v530
  %731 = vmatprep.subr.bf16.mxu0 0
  %732 = vmatpush1.bf16.msra.mxu0 %v531
  %733 = vmatprep.subr.bf16.mxu0 0
  %734 = vmatpush1.bf16.msra.mxu0 %v532
  %735 = vmatprep.subr.bf16.mxu0 0
  %736 = vmatpush1.bf16.msra.mxu0 %v533
  %737 = vmatprep.subr.bf16.mxu0 0
  %738 = vmatpush1.bf16.msra.mxu0 %v534
  %739 = vmatprep.subr.bf16.mxu0 0
  %740 = vmatpush1.bf16.msra.mxu0 %v535
  %741 = vmatprep.subr.bf16.mxu0 0
  %742 = vmatpush1.bf16.msra.mxu0 %v536
  %743 = vmatprep.subr.bf16.mxu0 0
  %744 = vmatpush1.bf16.msra.mxu0 %v537
  %745 = vmatprep.subr.bf16.mxu0 0
  %746 = vmatpush1.bf16.msra.mxu0 %v538
  %747 = vmatprep.mubr.bf16.mxu0 %v190
  %748 = vmatmul.mubr.bf16.gmra.mrb[0].mxu0 %v189
  %v749 = vpop.f32.mrb[0].mxu0
  %v750 = vadd.f32 %v710, %v749
  %v751 = vpop.f32.mrb[0].mxu0
  %v752 = vpop.f32.mrb[0].mxu0
  %v753 = vpop.f32.mrb[0].mxu0
  %754 = vdwg.mxu0
  %755 = vmatprep.subr.bf16.mxu0 0
  %756 = vmatpush1.bf16.msra.mxu0 %v539
  %757 = vmatprep.subr.bf16.mxu0 0
  %758 = vmatpush1.bf16.msra.mxu0 %v540
  %759 = vmatprep.subr.bf16.mxu0 0
  %760 = vmatpush1.bf16.msra.mxu0 %v541
  %761 = vmatprep.subr.bf16.mxu0 0
  %762 = vmatpush1.bf16.msra.mxu0 %v542
  %763 = vmatprep.subr.bf16.mxu0 0
  %764 = vmatpush1.bf16.msra.mxu0 %v543
  %765 = vmatprep.subr.bf16.mxu0 0
  %766 = vmatpush1.bf16.msra.mxu0 %v544
  %767 = vmatprep.subr.bf16.mxu0 0
  %768 = vmatpush1.bf16.msra.mxu0 %v545
  %769 = vmatprep.subr.bf16.mxu0 0
  %770 = vmatpush1.bf16.msra.mxu0 %v546
  %771 = vmatprep.subr.bf16.mxu0 0
  %772 = vmatpush1.bf16.msra.mxu0 %v547
  %773 = vmatprep.subr.bf16.mxu0 0
  %774 = vmatpush1.bf16.msra.mxu0 %v548
  %775 = vmatprep.subr.bf16.mxu0 0
  %776 = vmatpush1.bf16.msra.mxu0 %v549
  %777 = vmatprep.subr.bf16.mxu0 0
  %778 = vmatpush1.bf16.msra.mxu0 %v550
  %779 = vmatprep.subr.bf16.mxu0 0
  %780 = vmatpush1.bf16.msra.mxu0 %v551
  %781 = vmatprep.subr.bf16.mxu0 0
  %782 = vmatpush1.bf16.msra.mxu0 %v552
  %783 = vmatprep.subr.bf16.mxu0 0
  %784 = vmatpush1.bf16.msra.mxu0 %v553
  %785 = vmatprep.subr.bf16.mxu0 0
  %786 = vmatpush1.bf16.msra.mxu0 %v554
  %787 = vmatprep.mubr.bf16.mxu0 %v192
  %788 = vmatmul.mubr.bf16.gmra.mrb[0].mxu0 %v191
  %v789 = vpop.f32.mrb[0].mxu0
  %v790 = vadd.f32 %v750, %v789
  %v791 = vpop.f32.mrb[0].mxu0
  %v792 = vpop.f32.mrb[0].mxu0
  %v793 = vpop.f32.mrb[0].mxu0
  %794 = vdwg.mxu0
  %795 = vmatprep.subr.bf16.mxu0 0
  %796 = vmatpush1.bf16.msra.mxu0 %v555
  %797 = vmatprep.subr.bf16.mxu0 0
  %798 = vmatpush1.bf16.msra.mxu0 %v556
  %799 = vmatprep.subr.bf16.mxu0 0
  %800 = vmatpush1.bf16.msra.mxu0 %v557
  %801 = vmatprep.subr.bf16.mxu0 0
  %802 = vmatpush1.bf16.msra.mxu0 %v558
  %803 = vmatprep.subr.bf16.mxu0 0
  %804 = vmatpush1.bf16.msra.mxu0 %v559
  %805 = vmatprep.subr.bf16.mxu0 0
  %806 = vmatpush1.bf16.msra.mxu0 %v560
  %807 = vmatprep.subr.bf16.mxu0 0
  %808 = vmatpush1.bf16.msra.mxu0 %v561
  %809 = vmatprep.subr.bf16.mxu0 0
  %810 = vmatpush1.bf16.msra.mxu0 %v562
  %811 = vmatprep.subr.bf16.mxu0 0
  %812 = vmatpush1.bf16.msra.mxu0 0
  %813 = vmatprep.subr.bf16.mxu0 0
  %814 = vmatpush1.bf16.msra.mxu0 0
  %815 = vmatprep.subr.bf16.mxu0 0
  %816 = vmatpush1.bf16.msra.mxu0 0
  %817 = vmatprep.subr.bf16.mxu0 0
  %818 = vmatpush1.bf16.msra.mxu0 0
  %819 = vmatprep.subr.bf16.mxu0 0
  %820 = vmatpush1.bf16.msra.mxu0 0
  %821 = vmatprep.subr.bf16.mxu0 0
  %822 = vmatpush1.bf16.msra.mxu0 0
  %823 = vmatprep.subr.bf16.mxu0 0
  %824 = vmatpush1.bf16.msra.mxu0 0
  %825 = vmatprep.subr.bf16.mxu0 0
  %826 = vmatpush1.bf16.msra.mxu0 0
  %827 = vmatprep.mubr.bf16.mxu0 0
  %828 = vmatmul.mubr.bf16.gmra.mrb[0].mxu0 %v193
  %v829 = vpop.f32.mrb[0].mxu0
  %v830 = vadd.f32 %v790, %v829
  %v831 = vpop.f32.mrb[0].mxu0
  %v832 = vpop.f32.mrb[0].mxu0
  %v833 = vpop.f32.mrb[0].mxu0
  %834 = vdwg.mxu0
  %v835 = vmax.f32 %v830, 0.0
  %v836 = vpack.c.bf16 %v835, %v835
  %837 = vst [vmem:[%s3] sm:$0xf] %v836
  // Predicated region
  $region14: #{_lambda_.42} parent=0 // pred_check
    _
  $region15: #{_lambda_.42} parent=0 // pred_check_branch
    %839 = sbr.rel (0) target = $region17
  $region16: #{_lambda_.42} parent=0 // pred_region
    _
  $region17: #{_lambda_.42} parent=0 // pred_fallthru
    _
  // Predicated region
  $region18: #{_lambda_.42} parent=0 // pred_check
    _
  $region19: #{_lambda_.42} parent=0 // pred_check_branch
    %841 = sbr.rel (0) target = $region21
  $region20: #{_lambda_.42} parent=0 // pred_region
    _
  $region21: #{_lambda_.42} parent=0 // pred_fallthru
    _

</llo_original>
